<compile_context>
chip_gen: v7x
topology: tpu7x:2x2x1
jax: 0.10.0
libtpu: 0.0.40
codegen_flags: <defaults>
</compile_context>

<pallas_src>
import jax
import jax.numpy as jnp
from jax import lax
from jax.experimental import pallas as pl
from jax.experimental.pallas import tpu as pltpu

N_STEPS = 16          # fixed RK4 steps over t in [0, 1]
T0, T1 = 0.0, 1.0     # evaluation_times = (0.0, 1.0); we return x(T1)

LANE = 128            # TPU lane width (last dim)
SUBLANE = 8           # TPU sublane width (second-last dim, f32)
MAX_B_TILE = 256      # per-grid-step batch tile (rows) for large batches


def _round_up(x, m):
    return ((x + m - 1) // m) * m


def _node_rk4_kernel(x_ref, w1_ref, b1_ref, w2_ref, b2_ref, out_ref):
    # x_ref / out_ref: (B_TILE, DP); weights padded to lane-dense shapes.
    w1 = w1_ref[...]
    w2 = w2_ref[...]
    bt, dp = out_ref.shape
    hp = w1_ref.shape[1]

    # Hoist bias broadcasts out of the integration loop (JAX does not CSE
    # broadcast_in_dim; without this they'd be re-emitted per stage per step).
    b1b = jnp.broadcast_to(b1_ref[...], (bt, hp))
    b2b = jnp.broadcast_to(b2_ref[...], (bt, dp))

    def df(x):
        h = jnp.tanh(jnp.dot(x, w1, preferred_element_type=jnp.float32) + b1b)
        return jnp.dot(h, w2, preferred_element_type=jnp.float32) + b2b

    # Compile-time step constants.
    dt = (T1 - T0) / N_STEPS
    half_dt = 0.5 * dt
    dt6 = dt / 6.0

    def rk4_step(_, x):
        k1 = df(x)
        k2 = df(x + half_dt * k1)
        k3 = df(x + half_dt * k2)
        k4 = df(x + dt * k3)
        return x + dt6 * (k1 + k4 + 2.0 * (k2 + k3))

    # Fully unrolled: tiny live state, no spill risk, no loop overhead.
    out_ref[...] = lax.fori_loop(0, N_STEPS, rk4_step, x_ref[...], unroll=True)


def prepare_node_params(w1, b1, w2, b2):
    """One-time padding of the df-MLP parameters to lane-dense shapes.

    Zero padding is mathematically exact: padded weight rows/cols and bias
    entries are zero and tanh(0) = 0, so padded lanes stay zero.
    """
    D, H = w1.shape
    DP = _round_up(D, LANE)
    HP = _round_up(H, LANE)
    w1_pad = jnp.zeros((DP, HP), jnp.float32).at[:D, :H].set(w1)
    b1_pad = jnp.zeros((1, HP), jnp.float32).at[:, :H].set(b1.reshape(1, H))
    w2_pad = jnp.zeros((HP, DP), jnp.float32).at[:H, :D].set(w2)
    b2_pad = jnp.zeros((1, DP), jnp.float32).at[:, :D].set(b2.reshape(1, D))
    return w1_pad, b1_pad, w2_pad, b2_pad


def node_layer(x0, params):
    """x0: (B, D) float32 -> x(t=1): (B, D) float32."""
    w1_pad, b1_pad, w2_pad, b2_pad = params
    B, D = x0.shape
    DP, HP = w1_pad.shape

    # Single chain; batch padded only to a sublane-aligned tile.  A batch
    # grid axis (parallel) lets large batches shard across TCs on v7x.
    B_TILE = min(_round_up(B, SUBLANE), MAX_B_TILE)
    BP = _round_up(B, B_TILE)
    grid = (BP // B_TILE,)

    x_pad = jnp.zeros((BP, DP), jnp.float32).at[:B, :D].set(x0)

    out = pl.pallas_call(
        _node_rk4_kernel,
        out_shape=jax.ShapeDtypeStruct((BP, DP), jnp.float32),
        grid=grid,
        in_specs=[
            pl.BlockSpec((B_TILE, DP), lambda i: (i, 0)),   # x0 batch tile
            pl.BlockSpec((DP, HP), lambda i: (0, 0)),       # W1
            pl.BlockSpec((1, HP), lambda i: (0, 0)),        # b1
            pl.BlockSpec((HP, DP), lambda i: (0, 0)),       # W2
            pl.BlockSpec((1, DP), lambda i: (0, 0)),        # b2
        ],
        out_specs=pl.BlockSpec((B_TILE, DP), lambda i: (i, 0)),
        compiler_params=pltpu.CompilerParams(
            dimension_semantics=("parallel",)),
    )(x_pad, w1_pad, b1_pad, w2_pad, b2_pad)

    return out[:B, :D]


def node_layer_ref(x0, w1, b1, w2, b2):
    """Pure-JAX reference (same fixed-step RK4) for a sanity check."""
    def df(x):
        return jnp.tanh(x @ w1 + b1) @ w2 + b2

    dt = (T1 - T0) / N_STEPS
    half_dt = 0.5 * dt
    dt6 = dt / 6.0
    x = x0
    for _ in range(N_STEPS):
        k1 = df(x)
        k2 = df(x + half_dt * k1)
        k3 = df(x + half_dt * k2)
        k4 = df(x + dt * k3)
        x = x + dt6 * (k1 + k4 + 2.0 * (k2 + k3))
    return x


if __name__ == "__main__":
    B, D, H = 8, 32, 32  # small shapes: batch=8, state dim=32, hidden=32

    key = jax.random.PRNGKey(0)
    k_x, k_w1, k_b1, k_w2, k_b2 = jax.random.split(key, 5)

    x0 = jax.random.normal(k_x, (B, D), dtype=jnp.float32)
    # deterministic parameter init for the df MLP (scaled Gaussian)
    w1 = 0.1 * jax.random.normal(k_w1, (D, H), dtype=jnp.float32)
    b1 = 0.1 * jax.random.normal(k_b1, (1, H), dtype=jnp.float32)
    w2 = 0.1 * jax.random.normal(k_w2, (H, D), dtype=jnp.float32)
    b2 = 0.1 * jax.random.normal(k_b2, (1, D), dtype=jnp.float32)

    # One-time parameter padding (hoisted out of the per-call wrapper).
    params = prepare_node_params(w1, b1, w2, b2)

    out = node_layer(x0, params)
    out = jax.block_until_ready(out)

    ref = node_layer_ref(x0, w1, b1, w2, b2)
    assert out.shape == (B, D)
    assert jnp.allclose(out, ref, rtol=1e-5, atol=1e-5), "mismatch vs JAX reference"

    print("KERNEL_OK")
</pallas_src>

<mosaic_0001>
module attributes {stable_mosaic.version = 11 : i64} {
  func.func @_node_rk4_kernel(%arg0: i32, %arg1: memref<8x128xf32, #tpu.memory_space<vmem>>, %arg2: memref<128x128xf32, #tpu.memory_space<vmem>>, %arg3: memref<1x128xf32, #tpu.memory_space<vmem>>, %arg4: memref<128x128xf32, #tpu.memory_space<vmem>>, %arg5: memref<1x128xf32, #tpu.memory_space<vmem>>, %arg6: memref<8x128xf32, #tpu.memory_space<vmem>>) attributes {dimension_semantics = [#tpu.dimension_semantics<parallel>], iteration_bounds = array<i64: 1>, scalar_prefetch = 0 : i64, scratch_operands = 0 : i64, tpu.core_type = #tpu.core_type<tc>, window_params = [{transform_indices = @transform_0, window_bounds = array<i64: 8, 128>}, {pipeline_mode = #tpu.pipeline_mode<synchronous>, transform_indices = @transform_1, window_bounds = array<i64: 128, 128>}, {pipeline_mode = #tpu.pipeline_mode<synchronous>, transform_indices = @transform_2, window_bounds = array<i64: 1, 128>}, {pipeline_mode = #tpu.pipeline_mode<synchronous>, transform_indices = @transform_3, window_bounds = array<i64: 128, 128>}, {pipeline_mode = #tpu.pipeline_mode<synchronous>, transform_indices = @transform_4, window_bounds = array<i64: 1, 128>}, {transform_indices = @transform_5, window_bounds = array<i64: 8, 128>}]} {
    %c0 = arith.constant 0 : index
    %c0_0 = arith.constant 0 : index
    %0 = vector.load %arg2[%c0, %c0_0] : memref<128x128xf32, #tpu.memory_space<vmem>>, vector<128x128xf32>
    %c0_1 = arith.constant 0 : index
    %c0_2 = arith.constant 0 : index
    %1 = vector.load %arg4[%c0_1, %c0_2] : memref<128x128xf32, #tpu.memory_space<vmem>>, vector<128x128xf32>
    %c0_3 = arith.constant 0 : index
    %c0_4 = arith.constant 0 : index
    %2 = vector.load %arg3[%c0_3, %c0_4] : memref<1x128xf32, #tpu.memory_space<vmem>>, vector<1x128xf32>
    %3 = vector.shape_cast %2 : vector<1x128xf32> to vector<1x128xf32>
    %4 = vector.broadcast %3 : vector<1x128xf32> to vector<8x128xf32>
    %c0_5 = arith.constant 0 : index
    %c0_6 = arith.constant 0 : index
    %5 = vector.load %arg5[%c0_5, %c0_6] : memref<1x128xf32, #tpu.memory_space<vmem>>, vector<1x128xf32>
    %6 = vector.shape_cast %5 : vector<1x128xf32> to vector<1x128xf32>
    %7 = vector.broadcast %6 : vector<1x128xf32> to vector<8x128xf32>
    %c0_7 = arith.constant 0 : index
    %c0_8 = arith.constant 0 : index
    %8 = vector.load %arg1[%c0_7, %c0_8] : memref<8x128xf32, #tpu.memory_space<vmem>>, vector<8x128xf32>
    %c0_i32 = arith.constant 0 : i32
    %cst = arith.constant dense<0.000000e+00> : vector<8x128xf32>
    %9 = tpu.matmul %8, %0, %cst {dimension_numbers = #tpu.dot_dimension_numbers<[1], [0], [0], [1], [0, 0, 1, 1], [], []>} : vector<8x128xf32>, vector<128x128xf32>, vector<8x128xf32> -> vector<8x128xf32>
    %10 = arith.addf %9, %4 : vector<8x128xf32>
    %11 = math.tanh %10 : vector<8x128xf32>
    %cst_9 = arith.constant dense<0.000000e+00> : vector<8x128xf32>
    %12 = tpu.matmul %11, %1, %cst_9 {dimension_numbers = #tpu.dot_dimension_numbers<[1], [0], [0], [1], [0, 0, 1, 1], [], []>} : vector<8x128xf32>, vector<128x128xf32>, vector<8x128xf32> -> vector<8x128xf32>
    %13 = arith.addf %12, %7 : vector<8x128xf32>
    %cst_10 = arith.constant 3.125000e-02 : f32
    %14 = vector.broadcast %cst_10 : f32 to vector<8x128xf32>
    %15 = arith.mulf %14, %13 : vector<8x128xf32>
    %16 = arith.addf %8, %15 : vector<8x128xf32>
    %cst_11 = arith.constant dense<0.000000e+00> : vector<8x128xf32>
    %17 = tpu.matmul %16, %0, %cst_11 {dimension_numbers = #tpu.dot_dimension_numbers<[1], [0], [0], [1], [0, 0, 1, 1], [], []>} : vector<8x128xf32>, vector<128x128xf32>, vector<8x128xf32> -> vector<8x128xf32>
    %18 = arith.addf %17, %4 : vector<8x128xf32>
    %19 = math.tanh %18 : vector<8x128xf32>
    %cst_12 = arith.constant dense<0.000000e+00> : vector<8x128xf32>
    %20 = tpu.matmul %19, %1, %cst_12 {dimension_numbers = #tpu.dot_dimension_numbers<[1], [0], [0], [1], [0, 0, 1, 1], [], []>} : vector<8x128xf32>, vector<128x128xf32>, vector<8x128xf32> -> vector<8x128xf32>
    %21 = arith.addf %20, %7 : vector<8x128xf32>
    %cst_13 = arith.constant 3.125000e-02 : f32
    %22 = vector.broadcast %cst_13 : f32 to vector<8x128xf32>
    %23 = arith.mulf %22, %21 : vector<8x128xf32>
    %24 = arith.addf %8, %23 : vector<8x128xf32>
    %cst_14 = arith.constant dense<0.000000e+00> : vector<8x128xf32>
    %25 = tpu.matmul %24, %0, %cst_14 {dimension_numbers = #tpu.dot_dimension_numbers<[1], [0], [0], [1], [0, 0, 1, 1], [], []>} : vector<8x128xf32>, vector<128x128xf32>, vector<8x128xf32> -> vector<8x128xf32>
    %26 = arith.addf %25, %4 : vector<8x128xf32>
    %27 = math.tanh %26 : vector<8x128xf32>
    %cst_15 = arith.constant dense<0.000000e+00> : vector<8x128xf32>
    %28 = tpu.matmul %27, %1, %cst_15 {dimension_numbers = #tpu.dot_dimension_numbers<[1], [0], [0], [1], [0, 0, 1, 1], [], []>} : vector<8x128xf32>, vector<128x128xf32>, vector<8x128xf32> -> vector<8x128xf32>
    %29 = arith.addf %28, %7 : vector<8x128xf32>
    %cst_16 = arith.constant 6.250000e-02 : f32
    %30 = vector.broadcast %cst_16 : f32 to vector<8x128xf32>
    %31 = arith.mulf %30, %29 : vector<8x128xf32>
    %32 = arith.addf %8, %31 : vector<8x128xf32>
    %cst_17 = arith.constant dense<0.000000e+00> : vector<8x128xf32>
    %33 = tpu.matmul %32, %0, %cst_17 {dimension_numbers = #tpu.dot_dimension_numbers<[1], [0], [0], [1], [0, 0, 1, 1], [], []>} : vector<8x128xf32>, vector<128x128xf32>, vector<8x128xf32> -> vector<8x128xf32>
    %34 = arith.addf %33, %4 : vector<8x128xf32>
    %35 = math.tanh %34 : vector<8x128xf32>
    %cst_18 = arith.constant dense<0.000000e+00> : vector<8x128xf32>
    %36 = tpu.matmul %35, %1, %cst_18 {dimension_numbers = #tpu.dot_dimension_numbers<[1], [0], [0], [1], [0, 0, 1, 1], [], []>} : vector<8x128xf32>, vector<128x128xf32>, vector<8x128xf32> -> vector<8x128xf32>
    %37 = arith.addf %36, %7 : vector<8x128xf32>
    %38 = arith.addf %13, %37 : vector<8x128xf32>
    %39 = arith.addf %21, %29 : vector<8x128xf32>
    %cst_19 = arith.constant 2.000000e+00 : f32
    %40 = vector.broadcast %cst_19 : f32 to vector<8x128xf32>
    %41 = arith.mulf %40, %39 : vector<8x128xf32>
    %42 = arith.addf %38, %41 : vector<8x128xf32>
    %cst_20 = arith.constant 0.010416667 : f32
    %43 = vector.broadcast %cst_20 : f32 to vector<8x128xf32>
    %44 = arith.mulf %43, %42 : vector<8x128xf32>
    %45 = arith.addf %8, %44 : vector<8x128xf32>
    %c1_i32 = arith.constant 1 : i32
    %cst_21 = arith.constant dense<0.000000e+00> : vector<8x128xf32>
    %46 = tpu.matmul %45, %0, %cst_21 {dimension_numbers = #tpu.dot_dimension_numbers<[1], [0], [0], [1], [0, 0, 1, 1], [], []>} : vector<8x128xf32>, vector<128x128xf32>, vector<8x128xf32> -> vector<8x128xf32>
    %47 = arith.addf %46, %4 : vector<8x128xf32>
    %48 = math.tanh %47 : vector<8x128xf32>
    %cst_22 = arith.constant dense<0.000000e+00> : vector<8x128xf32>
    %49 = tpu.matmul %48, %1, %cst_22 {dimension_numbers = #tpu.dot_dimension_numbers<[1], [0], [0], [1], [0, 0, 1, 1], [], []>} : vector<8x128xf32>, vector<128x128xf32>, vector<8x128xf32> -> vector<8x128xf32>
    %50 = arith.addf %49, %7 : vector<8x128xf32>
    %cst_23 = arith.constant 3.125000e-02 : f32
    %51 = vector.broadcast %cst_23 : f32 to vector<8x128xf32>
    %52 = arith.mulf %51, %50 : vector<8x128xf32>
    %53 = arith.addf %45, %52 : vector<8x128xf32>
    %cst_24 = arith.constant dense<0.000000e+00> : vector<8x128xf32>
    %54 = tpu.matmul %53, %0, %cst_24 {dimension_numbers = #tpu.dot_dimension_numbers<[1], [0], [0], [1], [0, 0, 1, 1], [], []>} : vector<8x128xf32>, vector<128x128xf32>, vector<8x128xf32> -> vector<8x128xf32>
    %55 = arith.addf %54, %4 : vector<8x128xf32>
    %56 = math.tanh %55 : vector<8x128xf32>
    %cst_25 = arith.constant dense<0.000000e+00> : vector<8x128xf32>
    %57 = tpu.matmul %56, %1, %cst_25 {dimension_numbers = #tpu.dot_dimension_numbers<[1], [0], [0], [1], [0, 0, 1, 1], [], []>} : vector<8x128xf32>, vector<128x128xf32>, vector<8x128xf32> -> vector<8x128xf32>
    %58 = arith.addf %57, %7 : vector<8x128xf32>
    %cst_26 = arith.constant 3.125000e-02 : f32
    %59 = vector.broadcast %cst_26 : f32 to vector<8x128xf32>
    %60 = arith.mulf %59, %58 : vector<8x128xf32>
    %61 = arith.addf %45, %60 : vector<8x128xf32>
    %cst_27 = arith.constant dense<0.000000e+00> : vector<8x128xf32>
    %62 = tpu.matmul %61, %0, %cst_27 {dimension_numbers = #tpu.dot_dimension_numbers<[1], [0], [0], [1], [0, 0, 1, 1], [], []>} : vector<8x128xf32>, vector<128x128xf32>, vector<8x128xf32> -> vector<8x128xf32>
    %63 = arith.addf %62, %4 : vector<8x128xf32>
    %64 = math.tanh %63 : vector<8x128xf32>
    %cst_28 = arith.constant dense<0.000000e+00> : vector<8x128xf32>
    %65 = tpu.matmul %64, %1, %cst_28 {dimension_numbers = #tpu.dot_dimension_numbers<[1], [0], [0], [1], [0, 0, 1, 1], [], []>} : vector<8x128xf32>, vector<128x128xf32>, vector<8x128xf32> -> vector<8x128xf32>
    %66 = arith.addf %65, %7 : vector<8x128xf32>
    %cst_29 = arith.constant 6.250000e-02 : f32
    %67 = vector.broadcast %cst_29 : f32 to vector<8x128xf32>
    %68 = arith.mulf %67, %66 : vector<8x128xf32>
    %69 = arith.addf %45, %68 : vector<8x128xf32>
    %cst_30 = arith.constant dense<0.000000e+00> : vector<8x128xf32>
    %70 = tpu.matmul %69, %0, %cst_30 {dimension_numbers = #tpu.dot_dimension_numbers<[1], [0], [0], [1], [0, 0, 1, 1], [], []>} : vector<8x128xf32>, vector<128x128xf32>, vector<8x128xf32> -> vector<8x128xf32>
    %71 = arith.addf %70, %4 : vector<8x128xf32>
    %72 = math.tanh %71 : vector<8x128xf32>
    %cst_31 = arith.constant dense<0.000000e+00> : vector<8x128xf32>
    %73 = tpu.matmul %72, %1, %cst_31 {dimension_numbers = #tpu.dot_dimension_numbers<[1], [0], [0], [1], [0, 0, 1, 1], [], []>} : vector<8x128xf32>, vector<128x128xf32>, vector<8x128xf32> -> vector<8x128xf32>
    %74 = arith.addf %73, %7 : vector<8x128xf32>
    %75 = arith.addf %50, %74 : vector<8x128xf32>
    %76 = arith.addf %58, %66 : vector<8x128xf32>
    %cst_32 = arith.constant 2.000000e+00 : f32
    %77 = vector.broadcast %cst_32 : f32 to vector<8x128xf32>
    %78 = arith.mulf %77, %76 : vector<8x128xf32>
    %79 = arith.addf %75, %78 : vector<8x128xf32>
    %cst_33 = arith.constant 0.010416667 : f32
    %80 = vector.broadcast %cst_33 : f32 to vector<8x128xf32>
    %81 = arith.mulf %80, %79 : vector<8x128xf32>
    %82 = arith.addf %45, %81 : vector<8x128xf32>
    %c2_i32 = arith.constant 2 : i32
    %cst_34 = arith.constant dense<0.000000e+00> : vector<8x128xf32>
    %83 = tpu.matmul %82, %0, %cst_34 {dimension_numbers = #tpu.dot_dimension_numbers<[1], [0], [0], [1], [0, 0, 1, 1], [], []>} : vector<8x128xf32>, vector<128x128xf32>, vector<8x128xf32> -> vector<8x128xf32>
    %84 = arith.addf %83, %4 : vector<8x128xf32>
    %85 = math.tanh %84 : vector<8x128xf32>
    %cst_35 = arith.constant dense<0.000000e+00> : vector<8x128xf32>
    %86 = tpu.matmul %85, %1, %cst_35 {dimension_numbers = #tpu.dot_dimension_numbers<[1], [0], [0], [1], [0, 0, 1, 1], [], []>} : vector<8x128xf32>, vector<128x128xf32>, vector<8x128xf32> -> vector<8x128xf32>
    %87 = arith.addf %86, %7 : vector<8x128xf32>
    %cst_36 = arith.constant 3.125000e-02 : f32
    %88 = vector.broadcast %cst_36 : f32 to vector<8x128xf32>
    %89 = arith.mulf %88, %87 : vector<8x128xf32>
    %90 = arith.addf %82, %89 : vector<8x128xf32>
    %cst_37 = arith.constant dense<0.000000e+00> : vector<8x128xf32>
    %91 = tpu.matmul %90, %0, %cst_37 {dimension_numbers = #tpu.dot_dimension_numbers<[1], [0], [0], [1], [0, 0, 1, 1], [], []>} : vector<8x128xf32>, vector<128x128xf32>, vector<8x128xf32> -> vector<8x128xf32>
    %92 = arith.addf %91, %4 : vector<8x128xf32>
    %93 = math.tanh %92 : vector<8x128xf32>
    %cst_38 = arith.constant dense<0.000000e+00> : vector<8x128xf32>
    %94 = tpu.matmul %93, %1, %cst_38 {dimension_numbers = #tpu.dot_dimension_numbers<[1], [0], [0], [1], [0, 0, 1, 1], [], []>} : vector<8x128xf32>, vector<128x128xf32>, vector<8x128xf32> -> vector<8x128xf32>
    %95 = arith.addf %94, %7 : vector<8x128xf32>
    %cst_39 = arith.constant 3.125000e-02 : f32
    %96 = vector.broadcast %cst_39 : f32 to vector<8x128xf32>
    %97 = arith.mulf %96, %95 : vector<8x128xf32>
    %98 = arith.addf %82, %97 : vector<8x128xf32>
    %cst_40 = arith.constant dense<0.000000e+00> : vector<8x128xf32>
    %99 = tpu.matmul %98, %0, %cst_40 {dimension_numbers = #tpu.dot_dimension_numbers<[1], [0], [0], [1], [0, 0, 1, 1], [], []>} : vector<8x128xf32>, vector<128x128xf32>, vector<8x128xf32> -> vector<8x128xf32>
    %100 = arith.addf %99, %4 : vector<8x128xf32>
    %101 = math.tanh %100 : vector<8x128xf32>
    %cst_41 = arith.constant dense<0.000000e+00> : vector<8x128xf32>
    %102 = tpu.matmul %101, %1, %cst_41 {dimension_numbers = #tpu.dot_dimension_numbers<[1], [0], [0], [1], [0, 0, 1, 1], [], []>} : vector<8x128xf32>, vector<128x128xf32>, vector<8x128xf32> -> vector<8x128xf32>
    %103 = arith.addf %102, %7 : vector<8x128xf32>
    %cst_42 = arith.constant 6.250000e-02 : f32
    %104 = vector.broadcast %cst_42 : f32 to vector<8x128xf32>
    %105 = arith.mulf %104, %103 : vector<8x128xf32>
    %106 = arith.addf %82, %105 : vector<8x128xf32>
    %cst_43 = arith.constant dense<0.000000e+00> : vector<8x128xf32>
    %107 = tpu.matmul %106, %0, %cst_43 {dimension_numbers = #tpu.dot_dimension_numbers<[1], [0], [0], [1], [0, 0, 1, 1], [], []>} : vector<8x128xf32>, vector<128x128xf32>, vector<8x128xf32> -> vector<8x128xf32>
    %108 = arith.addf %107, %4 : vector<8x128xf32>
    %109 = math.tanh %108 : vector<8x128xf32>
    %cst_44 = arith.constant dense<0.000000e+00> : vector<8x128xf32>
    %110 = tpu.matmul %109, %1, %cst_44 {dimension_numbers = #tpu.dot_dimension_numbers<[1], [0], [0], [1], [0, 0, 1, 1], [], []>} : vector<8x128xf32>, vector<128x128xf32>, vector<8x128xf32> -> vector<8x128xf32>
    %111 = arith.addf %110, %7 : vector<8x128xf32>
    %112 = arith.addf %87, %111 : vector<8x128xf32>
    %113 = arith.addf %95, %103 : vector<8x128xf32>
    %cst_45 = arith.constant 2.000000e+00 : f32
    %114 = vector.broadcast %cst_45 : f32 to vector<8x128xf32>
    %115 = arith.mulf %114, %113 : vector<8x128xf32>
    %116 = arith.addf %112, %115 : vector<8x128xf32>
    %cst_46 = arith.constant 0.010416667 : f32
    %117 = vector.broadcast %cst_46 : f32 to vector<8x128xf32>
    %118 = arith.mulf %117, %116 : vector<8x128xf32>
    %119 = arith.addf %82, %118 : vector<8x128xf32>
    %c3_i32 = arith.constant 3 : i32
    %cst_47 = arith.constant dense<0.000000e+00> : vector<8x128xf32>
    %120 = tpu.matmul %119, %0, %cst_47 {dimension_numbers = #tpu.dot_dimension_numbers<[1], [0], [0], [1], [0, 0, 1, 1], [], []>} : vector<8x128xf32>, vector<128x128xf32>, vector<8x128xf32> -> vector<8x128xf32>
    %121 = arith.addf %120, %4 : vector<8x128xf32>
    %122 = math.tanh %121 : vector<8x128xf32>
    %cst_48 = arith.constant dense<0.000000e+00> : vector<8x128xf32>
    %123 = tpu.matmul %122, %1, %cst_48 {dimension_numbers = #tpu.dot_dimension_numbers<[1], [0], [0], [1], [0, 0, 1, 1], [], []>} : vector<8x128xf32>, vector<128x128xf32>, vector<8x128xf32> -> vector<8x128xf32>
    %124 = arith.addf %123, %7 : vector<8x128xf32>
    %cst_49 = arith.constant 3.125000e-02 : f32
    %125 = vector.broadcast %cst_49 : f32 to vector<8x128xf32>
    %126 = arith.mulf %125, %124 : vector<8x128xf32>
    %127 = arith.addf %119, %126 : vector<8x128xf32>
    %cst_50 = arith.constant dense<0.000000e+00> : vector<8x128xf32>
    %128 = tpu.matmul %127, %0, %cst_50 {dimension_numbers = #tpu.dot_dimension_numbers<[1], [0], [0], [1], [0, 0, 1, 1], [], []>} : vector<8x128xf32>, vector<128x128xf32>, vector<8x128xf32> -> vector<8x128xf32>
    %129 = arith.addf %128, %4 : vector<8x128xf32>
    %130 = math.tanh %129 : vector<8x128xf32>
    %cst_51 = arith.constant dense<0.000000e+00> : vector<8x128xf32>
    %131 = tpu.matmul %130, %1, %cst_51 {dimension_numbers = #tpu.dot_dimension_numbers<[1], [0], [0], [1], [0, 0, 1, 1], [], []>} : vector<8x128xf32>, vector<128x128xf32>, vector<8x128xf32> -> vector<8x128xf32>
    %132 = arith.addf %131, %7 : vector<8x128xf32>
    %cst_52 = arith.constant 3.125000e-02 : f32
    %133 = vector.broadcast %cst_52 : f32 to vector<8x128xf32>
    %134 = arith.mulf %133, %132 : vector<8x128xf32>
    %135 = arith.addf %119, %134 : vector<8x128xf32>
    %cst_53 = arith.constant dense<0.000000e+00> : vector<8x128xf32>
    %136 = tpu.matmul %135, %0, %cst_53 {dimension_numbers = #tpu.dot_dimension_numbers<[1], [0], [0], [1], [0, 0, 1, 1], [], []>} : vector<8x128xf32>, vector<128x128xf32>, vector<8x128xf32> -> vector<8x128xf32>
    %137 = arith.addf %136, %4 : vector<8x128xf32>
    %138 = math.tanh %137 : vector<8x128xf32>
    %cst_54 = arith.constant dense<0.000000e+00> : vector<8x128xf32>
    %139 = tpu.matmul %138, %1, %cst_54 {dimension_numbers = #tpu.dot_dimension_numbers<[1], [0], [0], [1], [0, 0, 1, 1], [], []>} : vector<8x128xf32>, vector<128x128xf32>, vector<8x128xf32> -> vector<8x128xf32>
    %140 = arith.addf %139, %7 : vector<8x128xf32>
    %cst_55 = arith.constant 6.250000e-02 : f32
    %141 = vector.broadcast %cst_55 : f32 to vector<8x128xf32>
    %142 = arith.mulf %141, %140 : vector<8x128xf32>
    %143 = arith.addf %119, %142 : vector<8x128xf32>
    %cst_56 = arith.constant dense<0.000000e+00> : vector<8x128xf32>
    %144 = tpu.matmul %143, %0, %cst_56 {dimension_numbers = #tpu.dot_dimension_numbers<[1], [0], [0], [1], [0, 0, 1, 1], [], []>} : vector<8x128xf32>, vector<128x128xf32>, vector<8x128xf32> -> vector<8x128xf32>
    %145 = arith.addf %144, %4 : vector<8x128xf32>
    %146 = math.tanh %145 : vector<8x128xf32>
    %cst_57 = arith.constant dense<0.000000e+00> : vector<8x128xf32>
    %147 = tpu.matmul %146, %1, %cst_57 {dimension_numbers = #tpu.dot_dimension_numbers<[1], [0], [0], [1], [0, 0, 1, 1], [], []>} : vector<8x128xf32>, vector<128x128xf32>, vector<8x128xf32> -> vector<8x128xf32>
    %148 = arith.addf %147, %7 : vector<8x128xf32>
    %149 = arith.addf %124, %148 : vector<8x128xf32>
    %150 = arith.addf %132, %140 : vector<8x128xf32>
    %cst_58 = arith.constant 2.000000e+00 : f32
    %151 = vector.broadcast %cst_58 : f32 to vector<8x128xf32>
    %152 = arith.mulf %151, %150 : vector<8x128xf32>
    %153 = arith.addf %149, %152 : vector<8x128xf32>
    %cst_59 = arith.constant 0.010416667 : f32
    %154 = vector.broadcast %cst_59 : f32 to vector<8x128xf32>
    %155 = arith.mulf %154, %153 : vector<8x128xf32>
    %156 = arith.addf %119, %155 : vector<8x128xf32>
    %c4_i32 = arith.constant 4 : i32
    %cst_60 = arith.constant dense<0.000000e+00> : vector<8x128xf32>
    %157 = tpu.matmul %156, %0, %cst_60 {dimension_numbers = #tpu.dot_dimension_numbers<[1], [0], [0], [1], [0, 0, 1, 1], [], []>} : vector<8x128xf32>, vector<128x128xf32>, vector<8x128xf32> -> vector<8x128xf32>
    %158 = arith.addf %157, %4 : vector<8x128xf32>
    %159 = math.tanh %158 : vector<8x128xf32>
    %cst_61 = arith.constant dense<0.000000e+00> : vector<8x128xf32>
    %160 = tpu.matmul %159, %1, %cst_61 {dimension_numbers = #tpu.dot_dimension_numbers<[1], [0], [0], [1], [0, 0, 1, 1], [], []>} : vector<8x128xf32>, vector<128x128xf32>, vector<8x128xf32> -> vector<8x128xf32>
    %161 = arith.addf %160, %7 : vector<8x128xf32>
    %cst_62 = arith.constant 3.125000e-02 : f32
    %162 = vector.broadcast %cst_62 : f32 to vector<8x128xf32>
    %163 = arith.mulf %162, %161 : vector<8x128xf32>
    %164 = arith.addf %156, %163 : vector<8x128xf32>
    %cst_63 = arith.constant dense<0.000000e+00> : vector<8x128xf32>
    %165 = tpu.matmul %164, %0, %cst_63 {dimension_numbers = #tpu.dot_dimension_numbers<[1], [0], [0], [1], [0, 0, 1, 1], [], []>} : vector<8x128xf32>, vector<128x128xf32>, vector<8x128xf32> -> vector<8x128xf32>
    %166 = arith.addf %165, %4 : vector<8x128xf32>
    %167 = math.tanh %166 : vector<8x128xf32>
    %cst_64 = arith.constant dense<0.000000e+00> : vector<8x128xf32>
    %168 = tpu.matmul %167, %1, %cst_64 {dimension_numbers = #tpu.dot_dimension_numbers<[1], [0], [0], [1], [0, 0, 1, 1], [], []>} : vector<8x128xf32>, vector<128x128xf32>, vector<8x128xf32> -> vector<8x128xf32>
    %169 = arith.addf %168, %7 : vector<8x128xf32>
    %cst_65 = arith.constant 3.125000e-02 : f32
    %170 = vector.broadcast %cst_65 : f32 to vector<8x128xf32>
    %171 = arith.mulf %170, %169 : vector<8x128xf32>
    %172 = arith.addf %156, %171 : vector<8x128xf32>
    %cst_66 = arith.constant dense<0.000000e+00> : vector<8x128xf32>
    %173 = tpu.matmul %172, %0, %cst_66 {dimension_numbers = #tpu.dot_dimension_numbers<[1], [0], [0], [1], [0, 0, 1, 1], [], []>} : vector<8x128xf32>, vector<128x128xf32>, vector<8x128xf32> -> vector<8x128xf32>
    %174 = arith.addf %173, %4 : vector<8x128xf32>
    %175 = math.tanh %174 : vector<8x128xf32>
    %cst_67 = arith.constant dense<0.000000e+00> : vector<8x128xf32>
    %176 = tpu.matmul %175, %1, %cst_67 {dimension_numbers = #tpu.dot_dimension_numbers<[1], [0], [0], [1], [0, 0, 1, 1], [], []>} : vector<8x128xf32>, vector<128x128xf32>, vector<8x128xf32> -> vector<8x128xf32>
    %177 = arith.addf %176, %7 : vector<8x128xf32>
    %cst_68 = arith.constant 6.250000e-02 : f32
    %178 = vector.broadcast %cst_68 : f32 to vector<8x128xf32>
    %179 = arith.mulf %178, %177 : vector<8x128xf32>
    %180 = arith.addf %156, %179 : vector<8x128xf32>
    %cst_69 = arith.constant dense<0.000000e+00> : vector<8x128xf32>
    %181 = tpu.matmul %180, %0, %cst_69 {dimension_numbers = #tpu.dot_dimension_numbers<[1], [0], [0], [1], [0, 0, 1, 1], [], []>} : vector<8x128xf32>, vector<128x128xf32>, vector<8x128xf32> -> vector<8x128xf32>
    %182 = arith.addf %181, %4 : vector<8x128xf32>
    %183 = math.tanh %182 : vector<8x128xf32>
    %cst_70 = arith.constant dense<0.000000e+00> : vector<8x128xf32>
    %184 = tpu.matmul %183, %1, %cst_70 {dimension_numbers = #tpu.dot_dimension_numbers<[1], [0], [0], [1], [0, 0, 1, 1], [], []>} : vector<8x128xf32>, vector<128x128xf32>, vector<8x128xf32> -> vector<8x128xf32>
    %185 = arith.addf %184, %7 : vector<8x128xf32>
    %186 = arith.addf %161, %185 : vector<8x128xf32>
    %187 = arith.addf %169, %177 : vector<8x128xf32>
    %cst_71 = arith.constant 2.000000e+00 : f32
    %188 = vector.broadcast %cst_71 : f32 to vector<8x128xf32>
    %189 = arith.mulf %188, %187 : vector<8x128xf32>
    %190 = arith.addf %186, %189 : vector<8x128xf32>
    %cst_72 = arith.constant 0.010416667 : f32
    %191 = vector.broadcast %cst_72 : f32 to vector<8x128xf32>
    %192 = arith.mulf %191, %190 : vector<8x128xf32>
    %193 = arith.addf %156, %192 : vector<8x128xf32>
    %c5_i32 = arith.constant 5 : i32
    %cst_73 = arith.constant dense<0.000000e+00> : vector<8x128xf32>
    %194 = tpu.matmul %193, %0, %cst_73 {dimension_numbers = #tpu.dot_dimension_numbers<[1], [0], [0], [1], [0, 0, 1, 1], [], []>} : vector<8x128xf32>, vector<128x128xf32>, vector<8x128xf32> -> vector<8x128xf32>
    %195 = arith.addf %194, %4 : vector<8x128xf32>
    %196 = math.tanh %195 : vector<8x128xf32>
    %cst_74 = arith.constant dense<0.000000e+00> : vector<8x128xf32>
    %197 = tpu.matmul %196, %1, %cst_74 {dimension_numbers = #tpu.dot_dimension_numbers<[1], [0], [0], [1], [0, 0, 1, 1], [], []>} : vector<8x128xf32>, vector<128x128xf32>, vector<8x128xf32> -> vector<8x128xf32>
    %198 = arith.addf %197, %7 : vector<8x128xf32>
    %cst_75 = arith.constant 3.125000e-02 : f32
    %199 = vector.broadcast %cst_75 : f32 to vector<8x128xf32>
    %200 = arith.mulf %199, %198 : vector<8x128xf32>
    %201 = arith.addf %193, %200 : vector<8x128xf32>
    %cst_76 = arith.constant dense<0.000000e+00> : vector<8x128xf32>
    %202 = tpu.matmul %201, %0, %cst_76 {dimension_numbers = #tpu.dot_dimension_numbers<[1], [0], [0], [1], [0, 0, 1, 1], [], []>} : vector<8x128xf32>, vector<128x128xf32>, vector<8x128xf32> -> vector<8x128xf32>
    %203 = arith.addf %202, %4 : vector<8x128xf32>
    %204 = math.tanh %203 : vector<8x128xf32>
    %cst_77 = arith.constant dense<0.000000e+00> : vector<8x128xf32>
    %205 = tpu.matmul %204, %1, %cst_77 {dimension_numbers = #tpu.dot_dimension_numbers<[1], [0], [0], [1], [0, 0, 1, 1], [], []>} : vector<8x128xf32>, vector<128x128xf32>, vector<8x128xf32> -> vector<8x128xf32>
    %206 = arith.addf %205, %7 : vector<8x128xf32>
    %cst_78 = arith.constant 3.125000e-02 : f32
    %207 = vector.broadcast %cst_78 : f32 to vector<8x128xf32>
    %208 = arith.mulf %207, %206 : vector<8x128xf32>
    %209 = arith.addf %193, %208 : vector<8x128xf32>
    %cst_79 = arith.constant dense<0.000000e+00> : vector<8x128xf32>
    %210 = tpu.matmul %209, %0, %cst_79 {dimension_numbers = #tpu.dot_dimension_numbers<[1], [0], [0], [1], [0, 0, 1, 1], [], []>} : vector<8x128xf32>, vector<128x128xf32>, vector<8x128xf32> -> vector<8x128xf32>
    %211 = arith.addf %210, %4 : vector<8x128xf32>
    %212 = math.tanh %211 : vector<8x128xf32>
    %cst_80 = arith.constant dense<0.000000e+00> : vector<8x128xf32>
    %213 = tpu.matmul %212, %1, %cst_80 {dimension_numbers = #tpu.dot_dimension_numbers<[1], [0], [0], [1], [0, 0, 1, 1], [], []>} : vector<8x128xf32>, vector<128x128xf32>, vector<8x128xf32> -> vector<8x128xf32>
    %214 = arith.addf %213, %7 : vector<8x128xf32>
    %cst_81 = arith.constant 6.250000e-02 : f32
    %215 = vector.broadcast %cst_81 : f32 to vector<8x128xf32>
    %216 = arith.mulf %215, %214 : vector<8x128xf32>
    %217 = arith.addf %193, %216 : vector<8x128xf32>
    %cst_82 = arith.constant dense<0.000000e+00> : vector<8x128xf32>
    %218 = tpu.matmul %217, %0, %cst_82 {dimension_numbers = #tpu.dot_dimension_numbers<[1], [0], [0], [1], [0, 0, 1, 1], [], []>} : vector<8x128xf32>, vector<128x128xf32>, vector<8x128xf32> -> vector<8x128xf32>
    %219 = arith.addf %218, %4 : vector<8x128xf32>
    %220 = math.tanh %219 : vector<8x128xf32>
    %cst_83 = arith.constant dense<0.000000e+00> : vector<8x128xf32>
    %221 = tpu.matmul %220, %1, %cst_83 {dimension_numbers = #tpu.dot_dimension_numbers<[1], [0], [0], [1], [0, 0, 1, 1], [], []>} : vector<8x128xf32>, vector<128x128xf32>, vector<8x128xf32> -> vector<8x128xf32>
    %222 = arith.addf %221, %7 : vector<8x128xf32>
    %223 = arith.addf %198, %222 : vector<8x128xf32>
    %224 = arith.addf %206, %214 : vector<8x128xf32>
    %cst_84 = arith.constant 2.000000e+00 : f32
    %225 = vector.broadcast %cst_84 : f32 to vector<8x128xf32>
    %226 = arith.mulf %225, %224 : vector<8x128xf32>
    %227 = arith.addf %223, %226 : vector<8x128xf32>
    %cst_85 = arith.constant 0.010416667 : f32
    %228 = vector.broadcast %cst_85 : f32 to vector<8x128xf32>
    %229 = arith.mulf %228, %227 : vector<8x128xf32>
    %230 = arith.addf %193, %229 : vector<8x128xf32>
    %c6_i32 = arith.constant 6 : i32
    %cst_86 = arith.constant dense<0.000000e+00> : vector<8x128xf32>
    %231 = tpu.matmul %230, %0, %cst_86 {dimension_numbers = #tpu.dot_dimension_numbers<[1], [0], [0], [1], [0, 0, 1, 1], [], []>} : vector<8x128xf32>, vector<128x128xf32>, vector<8x128xf32> -> vector<8x128xf32>
    %232 = arith.addf %231, %4 : vector<8x128xf32>
    %233 = math.tanh %232 : vector<8x128xf32>
    %cst_87 = arith.constant dense<0.000000e+00> : vector<8x128xf32>
    %234 = tpu.matmul %233, %1, %cst_87 {dimension_numbers = #tpu.dot_dimension_numbers<[1], [0], [0], [1], [0, 0, 1, 1], [], []>} : vector<8x128xf32>, vector<128x128xf32>, vector<8x128xf32> -> vector<8x128xf32>
    %235 = arith.addf %234, %7 : vector<8x128xf32>
    %cst_88 = arith.constant 3.125000e-02 : f32
    %236 = vector.broadcast %cst_88 : f32 to vector<8x128xf32>
    %237 = arith.mulf %236, %235 : vector<8x128xf32>
    %238 = arith.addf %230, %237 : vector<8x128xf32>
    %cst_89 = arith.constant dense<0.000000e+00> : vector<8x128xf32>
    %239 = tpu.matmul %238, %0, %cst_89 {dimension_numbers = #tpu.dot_dimension_numbers<[1], [0], [0], [1], [0, 0, 1, 1], [], []>} : vector<8x128xf32>, vector<128x128xf32>, vector<8x128xf32> -> vector<8x128xf32>
    %240 = arith.addf %239, %4 : vector<8x128xf32>
    %241 = math.tanh %240 : vector<8x128xf32>
    %cst_90 = arith.constant dense<0.000000e+00> : vector<8x128xf32>
    %242 = tpu.matmul %241, %1, %cst_90 {dimension_numbers = #tpu.dot_dimension_numbers<[1], [0], [0], [1], [0, 0, 1, 1], [], []>} : vector<8x128xf32>, vector<128x128xf32>, vector<8x128xf32> -> vector<8x128xf32>
    %243 = arith.addf %242, %7 : vector<8x128xf32>
    %cst_91 = arith.constant 3.125000e-02 : f32
    %244 = vector.broadcast %cst_91 : f32 to vector<8x128xf32>
    %245 = arith.mulf %244, %243 : vector<8x128xf32>
    %246 = arith.addf %230, %245 : vector<8x128xf32>
    %cst_92 = arith.constant dense<0.000000e+00> : vector<8x128xf32>
    %247 = tpu.matmul %246, %0, %cst_92 {dimension_numbers = #tpu.dot_dimension_numbers<[1], [0], [0], [1], [0, 0, 1, 1], [], []>} : vector<8x128xf32>, vector<128x128xf32>, vector<8x128xf32> -> vector<8x128xf32>
    %248 = arith.addf %247, %4 : vector<8x128xf32>
    %249 = math.tanh %248 : vector<8x128xf32>
    %cst_93 = arith.constant dense<0.000000e+00> : vector<8x128xf32>
    %250 = tpu.matmul %249, %1, %cst_93 {dimension_numbers = #tpu.dot_dimension_numbers<[1], [0], [0], [1], [0, 0, 1, 1], [], []>} : vector<8x128xf32>, vector<128x128xf32>, vector<8x128xf32> -> vector<8x128xf32>
    %251 = arith.addf %250, %7 : vector<8x128xf32>
    %cst_94 = arith.constant 6.250000e-02 : f32
    %252 = vector.broadcast %cst_94 : f32 to vector<8x128xf32>
    %253 = arith.mulf %252, %251 : vector<8x128xf32>
    %254 = arith.addf %230, %253 : vector<8x128xf32>
    %cst_95 = arith.constant dense<0.000000e+00> : vector<8x128xf32>
    %255 = tpu.matmul %254, %0, %cst_95 {dimension_numbers = #tpu.dot_dimension_numbers<[1], [0], [0], [1], [0, 0, 1, 1], [], []>} : vector<8x128xf32>, vector<128x128xf32>, vector<8x128xf32> -> vector<8x128xf32>
    %256 = arith.addf %255, %4 : vector<8x128xf32>
    %257 = math.tanh %256 : vector<8x128xf32>
    %cst_96 = arith.constant dense<0.000000e+00> : vector<8x128xf32>
    %258 = tpu.matmul %257, %1, %cst_96 {dimension_numbers = #tpu.dot_dimension_numbers<[1], [0], [0], [1], [0, 0, 1, 1], [], []>} : vector<8x128xf32>, vector<128x128xf32>, vector<8x128xf32> -> vector<8x128xf32>
    %259 = arith.addf %258, %7 : vector<8x128xf32>
    %260 = arith.addf %235, %259 : vector<8x128xf32>
    %261 = arith.addf %243, %251 : vector<8x128xf32>
    %cst_97 = arith.constant 2.000000e+00 : f32
    %262 = vector.broadcast %cst_97 : f32 to vector<8x128xf32>
    %263 = arith.mulf %262, %261 : vector<8x128xf32>
    %264 = arith.addf %260, %263 : vector<8x128xf32>
    %cst_98 = arith.constant 0.010416667 : f32
    %265 = vector.broadcast %cst_98 : f32 to vector<8x128xf32>
    %266 = arith.mulf %265, %264 : vector<8x128xf32>
    %267 = arith.addf %230, %266 : vector<8x128xf32>
    %c7_i32 = arith.constant 7 : i32
    %cst_99 = arith.constant dense<0.000000e+00> : vector<8x128xf32>
    %268 = tpu.matmul %267, %0, %cst_99 {dimension_numbers = #tpu.dot_dimension_numbers<[1], [0], [0], [1], [0, 0, 1, 1], [], []>} : vector<8x128xf32>, vector<128x128xf32>, vector<8x128xf32> -> vector<8x128xf32>
    %269 = arith.addf %268, %4 : vector<8x128xf32>
    %270 = math.tanh %269 : vector<8x128xf32>
    %cst_100 = arith.constant dense<0.000000e+00> : vector<8x128xf32>
    %271 = tpu.matmul %270, %1, %cst_100 {dimension_numbers = #tpu.dot_dimension_numbers<[1], [0], [0], [1], [0, 0, 1, 1], [], []>} : vector<8x128xf32>, vector<128x128xf32>, vector<8x128xf32> -> vector<8x128xf32>
    %272 = arith.addf %271, %7 : vector<8x128xf32>
    %cst_101 = arith.constant 3.125000e-02 : f32
    %273 = vector.broadcast %cst_101 : f32 to vector<8x128xf32>
    %274 = arith.mulf %273, %272 : vector<8x128xf32>
    %275 = arith.addf %267, %274 : vector<8x128xf32>
    %cst_102 = arith.constant dense<0.000000e+00> : vector<8x128xf32>
    %276 = tpu.matmul %275, %0, %cst_102 {dimension_numbers = #tpu.dot_dimension_numbers<[1], [0], [0], [1], [0, 0, 1, 1], [], []>} : vector<8x128xf32>, vector<128x128xf32>, vector<8x128xf32> -> vector<8x128xf32>
    %277 = arith.addf %276, %4 : vector<8x128xf32>
    %278 = math.tanh %277 : vector<8x128xf32>
    %cst_103 = arith.constant dense<0.000000e+00> : vector<8x128xf32>
    %279 = tpu.matmul %278, %1, %cst_103 {dimension_numbers = #tpu.dot_dimension_numbers<[1], [0], [0], [1], [0, 0, 1, 1], [], []>} : vector<8x128xf32>, vector<128x128xf32>, vector<8x128xf32> -> vector<8x128xf32>
    %280 = arith.addf %279, %7 : vector<8x128xf32>
    %cst_104 = arith.constant 3.125000e-02 : f32
    %281 = vector.broadcast %cst_104 : f32 to vector<8x128xf32>
    %282 = arith.mulf %281, %280 : vector<8x128xf32>
    %283 = arith.addf %267, %282 : vector<8x128xf32>
    %cst_105 = arith.constant dense<0.000000e+00> : vector<8x128xf32>
    %284 = tpu.matmul %283, %0, %cst_105 {dimension_numbers = #tpu.dot_dimension_numbers<[1], [0], [0], [1], [0, 0, 1, 1], [], []>} : vector<8x128xf32>, vector<128x128xf32>, vector<8x128xf32> -> vector<8x128xf32>
    %285 = arith.addf %284, %4 : vector<8x128xf32>
    %286 = math.tanh %285 : vector<8x128xf32>
    %cst_106 = arith.constant dense<0.000000e+00> : vector<8x128xf32>
    %287 = tpu.matmul %286, %1, %cst_106 {dimension_numbers = #tpu.dot_dimension_numbers<[1], [0], [0], [1], [0, 0, 1, 1], [], []>} : vector<8x128xf32>, vector<128x128xf32>, vector<8x128xf32> -> vector<8x128xf32>
    %288 = arith.addf %287, %7 : vector<8x128xf32>
    %cst_107 = arith.constant 6.250000e-02 : f32
    %289 = vector.broadcast %cst_107 : f32 to vector<8x128xf32>
    %290 = arith.mulf %289, %288 : vector<8x128xf32>
    %291 = arith.addf %267, %290 : vector<8x128xf32>
    %cst_108 = arith.constant dense<0.000000e+00> : vector<8x128xf32>
    %292 = tpu.matmul %291, %0, %cst_108 {dimension_numbers = #tpu.dot_dimension_numbers<[1], [0], [0], [1], [0, 0, 1, 1], [], []>} : vector<8x128xf32>, vector<128x128xf32>, vector<8x128xf32> -> vector<8x128xf32>
    %293 = arith.addf %292, %4 : vector<8x128xf32>
    %294 = math.tanh %293 : vector<8x128xf32>
    %cst_109 = arith.constant dense<0.000000e+00> : vector<8x128xf32>
    %295 = tpu.matmul %294, %1, %cst_109 {dimension_numbers = #tpu.dot_dimension_numbers<[1], [0], [0], [1], [0, 0, 1, 1], [], []>} : vector<8x128xf32>, vector<128x128xf32>, vector<8x128xf32> -> vector<8x128xf32>
    %296 = arith.addf %295, %7 : vector<8x128xf32>
    %297 = arith.addf %272, %296 : vector<8x128xf32>
    %298 = arith.addf %280, %288 : vector<8x128xf32>
    %cst_110 = arith.constant 2.000000e+00 : f32
    %299 = vector.broadcast %cst_110 : f32 to vector<8x128xf32>
    %300 = arith.mulf %299, %298 : vector<8x128xf32>
    %301 = arith.addf %297, %300 : vector<8x128xf32>
    %cst_111 = arith.constant 0.010416667 : f32
    %302 = vector.broadcast %cst_111 : f32 to vector<8x128xf32>
    %303 = arith.mulf %302, %301 : vector<8x128xf32>
    %304 = arith.addf %267, %303 : vector<8x128xf32>
    %c8_i32 = arith.constant 8 : i32
    %cst_112 = arith.constant dense<0.000000e+00> : vector<8x128xf32>
    %305 = tpu.matmul %304, %0, %cst_112 {dimension_numbers = #tpu.dot_dimension_numbers<[1], [0], [0], [1], [0, 0, 1, 1], [], []>} : vector<8x128xf32>, vector<128x128xf32>, vector<8x128xf32> -> vector<8x128xf32>
    %306 = arith.addf %305, %4 : vector<8x128xf32>
    %307 = math.tanh %306 : vector<8x128xf32>
    %cst_113 = arith.constant dense<0.000000e+00> : vector<8x128xf32>
    %308 = tpu.matmul %307, %1, %cst_113 {dimension_numbers = #tpu.dot_dimension_numbers<[1], [0], [0], [1], [0, 0, 1, 1], [], []>} : vector<8x128xf32>, vector<128x128xf32>, vector<8x128xf32> -> vector<8x128xf32>
    %309 = arith.addf %308, %7 : vector<8x128xf32>
    %cst_114 = arith.constant 3.125000e-02 : f32
    %310 = vector.broadcast %cst_114 : f32 to vector<8x128xf32>
    %311 = arith.mulf %310, %309 : vector<8x128xf32>
    %312 = arith.addf %304, %311 : vector<8x128xf32>
    %cst_115 = arith.constant dense<0.000000e+00> : vector<8x128xf32>
    %313 = tpu.matmul %312, %0, %cst_115 {dimension_numbers = #tpu.dot_dimension_numbers<[1], [0], [0], [1], [0, 0, 1, 1], [], []>} : vector<8x128xf32>, vector<128x128xf32>, vector<8x128xf32> -> vector<8x128xf32>
    %314 = arith.addf %313, %4 : vector<8x128xf32>
    %315 = math.tanh %314 : vector<8x128xf32>
    %cst_116 = arith.constant dense<0.000000e+00> : vector<8x128xf32>
    %316 = tpu.matmul %315, %1, %cst_116 {dimension_numbers = #tpu.dot_dimension_numbers<[1], [0], [0], [1], [0, 0, 1, 1], [], []>} : vector<8x128xf32>, vector<128x128xf32>, vector<8x128xf32> -> vector<8x128xf32>
    %317 = arith.addf %316, %7 : vector<8x128xf32>
    %cst_117 = arith.constant 3.125000e-02 : f32
    %318 = vector.broadcast %cst_117 : f32 to vector<8x128xf32>
    %319 = arith.mulf %318, %317 : vector<8x128xf32>
    %320 = arith.addf %304, %319 : vector<8x128xf32>
    %cst_118 = arith.constant dense<0.000000e+00> : vector<8x128xf32>
    %321 = tpu.matmul %320, %0, %cst_118 {dimension_numbers = #tpu.dot_dimension_numbers<[1], [0], [0], [1], [0, 0, 1, 1], [], []>} : vector<8x128xf32>, vector<128x128xf32>, vector<8x128xf32> -> vector<8x128xf32>
    %322 = arith.addf %321, %4 : vector<8x128xf32>
    %323 = math.tanh %322 : vector<8x128xf32>
    %cst_119 = arith.constant dense<0.000000e+00> : vector<8x128xf32>
    %324 = tpu.matmul %323, %1, %cst_119 {dimension_numbers = #tpu.dot_dimension_numbers<[1], [0], [0], [1], [0, 0, 1, 1], [], []>} : vector<8x128xf32>, vector<128x128xf32>, vector<8x128xf32> -> vector<8x128xf32>
    %325 = arith.addf %324, %7 : vector<8x128xf32>
    %cst_120 = arith.constant 6.250000e-02 : f32
    %326 = vector.broadcast %cst_120 : f32 to vector<8x128xf32>
    %327 = arith.mulf %326, %325 : vector<8x128xf32>
    %328 = arith.addf %304, %327 : vector<8x128xf32>
    %cst_121 = arith.constant dense<0.000000e+00> : vector<8x128xf32>
    %329 = tpu.matmul %328, %0, %cst_121 {dimension_numbers = #tpu.dot_dimension_numbers<[1], [0], [0], [1], [0, 0, 1, 1], [], []>} : vector<8x128xf32>, vector<128x128xf32>, vector<8x128xf32> -> vector<8x128xf32>
    %330 = arith.addf %329, %4 : vector<8x128xf32>
    %331 = math.tanh %330 : vector<8x128xf32>
    %cst_122 = arith.constant dense<0.000000e+00> : vector<8x128xf32>
    %332 = tpu.matmul %331, %1, %cst_122 {dimension_numbers = #tpu.dot_dimension_numbers<[1], [0], [0], [1], [0, 0, 1, 1], [], []>} : vector<8x128xf32>, vector<128x128xf32>, vector<8x128xf32> -> vector<8x128xf32>
    %333 = arith.addf %332, %7 : vector<8x128xf32>
    %334 = arith.addf %309, %333 : vector<8x128xf32>
    %335 = arith.addf %317, %325 : vector<8x128xf32>
    %cst_123 = arith.constant 2.000000e+00 : f32
    %336 = vector.broadcast %cst_123 : f32 to vector<8x128xf32>
    %337 = arith.mulf %336, %335 : vector<8x128xf32>
    %338 = arith.addf %334, %337 : vector<8x128xf32>
    %cst_124 = arith.constant 0.010416667 : f32
    %339 = vector.broadcast %cst_124 : f32 to vector<8x128xf32>
    %340 = arith.mulf %339, %338 : vector<8x128xf32>
    %341 = arith.addf %304, %340 : vector<8x128xf32>
    %c9_i32 = arith.constant 9 : i32
    %cst_125 = arith.constant dense<0.000000e+00> : vector<8x128xf32>
    %342 = tpu.matmul %341, %0, %cst_125 {dimension_numbers = #tpu.dot_dimension_numbers<[1], [0], [0], [1], [0, 0, 1, 1], [], []>} : vector<8x128xf32>, vector<128x128xf32>, vector<8x128xf32> -> vector<8x128xf32>
    %343 = arith.addf %342, %4 : vector<8x128xf32>
    %344 = math.tanh %343 : vector<8x128xf32>
    %cst_126 = arith.constant dense<0.000000e+00> : vector<8x128xf32>
    %345 = tpu.matmul %344, %1, %cst_126 {dimension_numbers = #tpu.dot_dimension_numbers<[1], [0], [0], [1], [0, 0, 1, 1], [], []>} : vector<8x128xf32>, vector<128x128xf32>, vector<8x128xf32> -> vector<8x128xf32>
    %346 = arith.addf %345, %7 : vector<8x128xf32>
    %cst_127 = arith.constant 3.125000e-02 : f32
    %347 = vector.broadcast %cst_127 : f32 to vector<8x128xf32>
    %348 = arith.mulf %347, %346 : vector<8x128xf32>
    %349 = arith.addf %341, %348 : vector<8x128xf32>
    %cst_128 = arith.constant dense<0.000000e+00> : vector<8x128xf32>
    %350 = tpu.matmul %349, %0, %cst_128 {dimension_numbers = #tpu.dot_dimension_numbers<[1], [0], [0], [1], [0, 0, 1, 1], [], []>} : vector<8x128xf32>, vector<128x128xf32>, vector<8x128xf32> -> vector<8x128xf32>
    %351 = arith.addf %350, %4 : vector<8x128xf32>
    %352 = math.tanh %351 : vector<8x128xf32>
    %cst_129 = arith.constant dense<0.000000e+00> : vector<8x128xf32>
    %353 = tpu.matmul %352, %1, %cst_129 {dimension_numbers = #tpu.dot_dimension_numbers<[1], [0], [0], [1], [0, 0, 1, 1], [], []>} : vector<8x128xf32>, vector<128x128xf32>, vector<8x128xf32> -> vector<8x128xf32>
    %354 = arith.addf %353, %7 : vector<8x128xf32>
    %cst_130 = arith.constant 3.125000e-02 : f32
    %355 = vector.broadcast %cst_130 : f32 to vector<8x128xf32>
    %356 = arith.mulf %355, %354 : vector<8x128xf32>
    %357 = arith.addf %341, %356 : vector<8x128xf32>
    %cst_131 = arith.constant dense<0.000000e+00> : vector<8x128xf32>
    %358 = tpu.matmul %357, %0, %cst_131 {dimension_numbers = #tpu.dot_dimension_numbers<[1], [0], [0], [1], [0, 0, 1, 1], [], []>} : vector<8x128xf32>, vector<128x128xf32>, vector<8x128xf32> -> vector<8x128xf32>
    %359 = arith.addf %358, %4 : vector<8x128xf32>
    %360 = math.tanh %359 : vector<8x128xf32>
    %cst_132 = arith.constant dense<0.000000e+00> : vector<8x128xf32>
    %361 = tpu.matmul %360, %1, %cst_132 {dimension_numbers = #tpu.dot_dimension_numbers<[1], [0], [0], [1], [0, 0, 1, 1], [], []>} : vector<8x128xf32>, vector<128x128xf32>, vector<8x128xf32> -> vector<8x128xf32>
    %362 = arith.addf %361, %7 : vector<8x128xf32>
    %cst_133 = arith.constant 6.250000e-02 : f32
    %363 = vector.broadcast %cst_133 : f32 to vector<8x128xf32>
    %364 = arith.mulf %363, %362 : vector<8x128xf32>
    %365 = arith.addf %341, %364 : vector<8x128xf32>
    %cst_134 = arith.constant dense<0.000000e+00> : vector<8x128xf32>
    %366 = tpu.matmul %365, %0, %cst_134 {dimension_numbers = #tpu.dot_dimension_numbers<[1], [0], [0], [1], [0, 0, 1, 1], [], []>} : vector<8x128xf32>, vector<128x128xf32>, vector<8x128xf32> -> vector<8x128xf32>
    %367 = arith.addf %366, %4 : vector<8x128xf32>
    %368 = math.tanh %367 : vector<8x128xf32>
    %cst_135 = arith.constant dense<0.000000e+00> : vector<8x128xf32>
    %369 = tpu.matmul %368, %1, %cst_135 {dimension_numbers = #tpu.dot_dimension_numbers<[1], [0], [0], [1], [0, 0, 1, 1], [], []>} : vector<8x128xf32>, vector<128x128xf32>, vector<8x128xf32> -> vector<8x128xf32>
    %370 = arith.addf %369, %7 : vector<8x128xf32>
    %371 = arith.addf %346, %370 : vector<8x128xf32>
    %372 = arith.addf %354, %362 : vector<8x128xf32>
    %cst_136 = arith.constant 2.000000e+00 : f32
    %373 = vector.broadcast %cst_136 : f32 to vector<8x128xf32>
    %374 = arith.mulf %373, %372 : vector<8x128xf32>
    %375 = arith.addf %371, %374 : vector<8x128xf32>
    %cst_137 = arith.constant 0.010416667 : f32
    %376 = vector.broadcast %cst_137 : f32 to vector<8x128xf32>
    %377 = arith.mulf %376, %375 : vector<8x128xf32>
    %378 = arith.addf %341, %377 : vector<8x128xf32>
    %c10_i32 = arith.constant 10 : i32
    %cst_138 = arith.constant dense<0.000000e+00> : vector<8x128xf32>
    %379 = tpu.matmul %378, %0, %cst_138 {dimension_numbers = #tpu.dot_dimension_numbers<[1], [0], [0], [1], [0, 0, 1, 1], [], []>} : vector<8x128xf32>, vector<128x128xf32>, vector<8x128xf32> -> vector<8x128xf32>
    %380 = arith.addf %379, %4 : vector<8x128xf32>
    %381 = math.tanh %380 : vector<8x128xf32>
    %cst_139 = arith.constant dense<0.000000e+00> : vector<8x128xf32>
    %382 = tpu.matmul %381, %1, %cst_139 {dimension_numbers = #tpu.dot_dimension_numbers<[1], [0], [0], [1], [0, 0, 1, 1], [], []>} : vector<8x128xf32>, vector<128x128xf32>, vector<8x128xf32> -> vector<8x128xf32>
    %383 = arith.addf %382, %7 : vector<8x128xf32>
    %cst_140 = arith.constant 3.125000e-02 : f32
    %384 = vector.broadcast %cst_140 : f32 to vector<8x128xf32>
    %385 = arith.mulf %384, %383 : vector<8x128xf32>
    %386 = arith.addf %378, %385 : vector<8x128xf32>
    %cst_141 = arith.constant dense<0.000000e+00> : vector<8x128xf32>
    %387 = tpu.matmul %386, %0, %cst_141 {dimension_numbers = #tpu.dot_dimension_numbers<[1], [0], [0], [1], [0, 0, 1, 1], [], []>} : vector<8x128xf32>, vector<128x128xf32>, vector<8x128xf32> -> vector<8x128xf32>
    %388 = arith.addf %387, %4 : vector<8x128xf32>
    %389 = math.tanh %388 : vector<8x128xf32>
    %cst_142 = arith.constant dense<0.000000e+00> : vector<8x128xf32>
    %390 = tpu.matmul %389, %1, %cst_142 {dimension_numbers = #tpu.dot_dimension_numbers<[1], [0], [0], [1], [0, 0, 1, 1], [], []>} : vector<8x128xf32>, vector<128x128xf32>, vector<8x128xf32> -> vector<8x128xf32>
    %391 = arith.addf %390, %7 : vector<8x128xf32>
    %cst_143 = arith.constant 3.125000e-02 : f32
    %392 = vector.broadcast %cst_143 : f32 to vector<8x128xf32>
    %393 = arith.mulf %392, %391 : vector<8x128xf32>
    %394 = arith.addf %378, %393 : vector<8x128xf32>
    %cst_144 = arith.constant dense<0.000000e+00> : vector<8x128xf32>
    %395 = tpu.matmul %394, %0, %cst_144 {dimension_numbers = #tpu.dot_dimension_numbers<[1], [0], [0], [1], [0, 0, 1, 1], [], []>} : vector<8x128xf32>, vector<128x128xf32>, vector<8x128xf32> -> vector<8x128xf32>
    %396 = arith.addf %395, %4 : vector<8x128xf32>
    %397 = math.tanh %396 : vector<8x128xf32>
    %cst_145 = arith.constant dense<0.000000e+00> : vector<8x128xf32>
    %398 = tpu.matmul %397, %1, %cst_145 {dimension_numbers = #tpu.dot_dimension_numbers<[1], [0], [0], [1], [0, 0, 1, 1], [], []>} : vector<8x128xf32>, vector<128x128xf32>, vector<8x128xf32> -> vector<8x128xf32>
    %399 = arith.addf %398, %7 : vector<8x128xf32>
    %cst_146 = arith.constant 6.250000e-02 : f32
    %400 = vector.broadcast %cst_146 : f32 to vector<8x128xf32>
    %401 = arith.mulf %400, %399 : vector<8x128xf32>
    %402 = arith.addf %378, %401 : vector<8x128xf32>
    %cst_147 = arith.constant dense<0.000000e+00> : vector<8x128xf32>
    %403 = tpu.matmul %402, %0, %cst_147 {dimension_numbers = #tpu.dot_dimension_numbers<[1], [0], [0], [1], [0, 0, 1, 1], [], []>} : vector<8x128xf32>, vector<128x128xf32>, vector<8x128xf32> -> vector<8x128xf32>
    %404 = arith.addf %403, %4 : vector<8x128xf32>
    %405 = math.tanh %404 : vector<8x128xf32>
    %cst_148 = arith.constant dense<0.000000e+00> : vector<8x128xf32>
    %406 = tpu.matmul %405, %1, %cst_148 {dimension_numbers = #tpu.dot_dimension_numbers<[1], [0], [0], [1], [0, 0, 1, 1], [], []>} : vector<8x128xf32>, vector<128x128xf32>, vector<8x128xf32> -> vector<8x128xf32>
    %407 = arith.addf %406, %7 : vector<8x128xf32>
    %408 = arith.addf %383, %407 : vector<8x128xf32>
    %409 = arith.addf %391, %399 : vector<8x128xf32>
    %cst_149 = arith.constant 2.000000e+00 : f32
    %410 = vector.broadcast %cst_149 : f32 to vector<8x128xf32>
    %411 = arith.mulf %410, %409 : vector<8x128xf32>
    %412 = arith.addf %408, %411 : vector<8x128xf32>
    %cst_150 = arith.constant 0.010416667 : f32
    %413 = vector.broadcast %cst_150 : f32 to vector<8x128xf32>
    %414 = arith.mulf %413, %412 : vector<8x128xf32>
    %415 = arith.addf %378, %414 : vector<8x128xf32>
    %c11_i32 = arith.constant 11 : i32
    %cst_151 = arith.constant dense<0.000000e+00> : vector<8x128xf32>
    %416 = tpu.matmul %415, %0, %cst_151 {dimension_numbers = #tpu.dot_dimension_numbers<[1], [0], [0], [1], [0, 0, 1, 1], [], []>} : vector<8x128xf32>, vector<128x128xf32>, vector<8x128xf32> -> vector<8x128xf32>
    %417 = arith.addf %416, %4 : vector<8x128xf32>
    %418 = math.tanh %417 : vector<8x128xf32>
    %cst_152 = arith.constant dense<0.000000e+00> : vector<8x128xf32>
    %419 = tpu.matmul %418, %1, %cst_152 {dimension_numbers = #tpu.dot_dimension_numbers<[1], [0], [0], [1], [0, 0, 1, 1], [], []>} : vector<8x128xf32>, vector<128x128xf32>, vector<8x128xf32> -> vector<8x128xf32>
    %420 = arith.addf %419, %7 : vector<8x128xf32>
    %cst_153 = arith.constant 3.125000e-02 : f32
    %421 = vector.broadcast %cst_153 : f32 to vector<8x128xf32>
    %422 = arith.mulf %421, %420 : vector<8x128xf32>
    %423 = arith.addf %415, %422 : vector<8x128xf32>
    %cst_154 = arith.constant dense<0.000000e+00> : vector<8x128xf32>
    %424 = tpu.matmul %423, %0, %cst_154 {dimension_numbers = #tpu.dot_dimension_numbers<[1], [0], [0], [1], [0, 0, 1, 1], [], []>} : vector<8x128xf32>, vector<128x128xf32>, vector<8x128xf32> -> vector<8x128xf32>
    %425 = arith.addf %424, %4 : vector<8x128xf32>
    %426 = math.tanh %425 : vector<8x128xf32>
    %cst_155 = arith.constant dense<0.000000e+00> : vector<8x128xf32>
    %427 = tpu.matmul %426, %1, %cst_155 {dimension_numbers = #tpu.dot_dimension_numbers<[1], [0], [0], [1], [0, 0, 1, 1], [], []>} : vector<8x128xf32>, vector<128x128xf32>, vector<8x128xf32> -> vector<8x128xf32>
    %428 = arith.addf %427, %7 : vector<8x128xf32>
    %cst_156 = arith.constant 3.125000e-02 : f32
    %429 = vector.broadcast %cst_156 : f32 to vector<8x128xf32>
    %430 = arith.mulf %429, %428 : vector<8x128xf32>
    %431 = arith.addf %415, %430 : vector<8x128xf32>
    %cst_157 = arith.constant dense<0.000000e+00> : vector<8x128xf32>
    %432 = tpu.matmul %431, %0, %cst_157 {dimension_numbers = #tpu.dot_dimension_numbers<[1], [0], [0], [1], [0, 0, 1, 1], [], []>} : vector<8x128xf32>, vector<128x128xf32>, vector<8x128xf32> -> vector<8x128xf32>
    %433 = arith.addf %432, %4 : vector<8x128xf32>
    %434 = math.tanh %433 : vector<8x128xf32>
    %cst_158 = arith.constant dense<0.000000e+00> : vector<8x128xf32>
    %435 = tpu.matmul %434, %1, %cst_158 {dimension_numbers = #tpu.dot_dimension_numbers<[1], [0], [0], [1], [0, 0, 1, 1], [], []>} : vector<8x128xf32>, vector<128x128xf32>, vector<8x128xf32> -> vector<8x128xf32>
    %436 = arith.addf %435, %7 : vector<8x128xf32>
    %cst_159 = arith.constant 6.250000e-02 : f32
    %437 = vector.broadcast %cst_159 : f32 to vector<8x128xf32>
    %438 = arith.mulf %437, %436 : vector<8x128xf32>
    %439 = arith.addf %415, %438 : vector<8x128xf32>
    %cst_160 = arith.constant dense<0.000000e+00> : vector<8x128xf32>
    %440 = tpu.matmul %439, %0, %cst_160 {dimension_numbers = #tpu.dot_dimension_numbers<[1], [0], [0], [1], [0, 0, 1, 1], [], []>} : vector<8x128xf32>, vector<128x128xf32>, vector<8x128xf32> -> vector<8x128xf32>
    %441 = arith.addf %440, %4 : vector<8x128xf32>
    %442 = math.tanh %441 : vector<8x128xf32>
    %cst_161 = arith.constant dense<0.000000e+00> : vector<8x128xf32>
    %443 = tpu.matmul %442, %1, %cst_161 {dimension_numbers = #tpu.dot_dimension_numbers<[1], [0], [0], [1], [0, 0, 1, 1], [], []>} : vector<8x128xf32>, vector<128x128xf32>, vector<8x128xf32> -> vector<8x128xf32>
    %444 = arith.addf %443, %7 : vector<8x128xf32>
    %445 = arith.addf %420, %444 : vector<8x128xf32>
    %446 = arith.addf %428, %436 : vector<8x128xf32>
    %cst_162 = arith.constant 2.000000e+00 : f32
    %447 = vector.broadcast %cst_162 : f32 to vector<8x128xf32>
    %448 = arith.mulf %447, %446 : vector<8x128xf32>
    %449 = arith.addf %445, %448 : vector<8x128xf32>
    %cst_163 = arith.constant 0.010416667 : f32
    %450 = vector.broadcast %cst_163 : f32 to vector<8x128xf32>
    %451 = arith.mulf %450, %449 : vector<8x128xf32>
    %452 = arith.addf %415, %451 : vector<8x128xf32>
    %c12_i32 = arith.constant 12 : i32
    %cst_164 = arith.constant dense<0.000000e+00> : vector<8x128xf32>
    %453 = tpu.matmul %452, %0, %cst_164 {dimension_numbers = #tpu.dot_dimension_numbers<[1], [0], [0], [1], [0, 0, 1, 1], [], []>} : vector<8x128xf32>, vector<128x128xf32>, vector<8x128xf32> -> vector<8x128xf32>
    %454 = arith.addf %453, %4 : vector<8x128xf32>
    %455 = math.tanh %454 : vector<8x128xf32>
    %cst_165 = arith.constant dense<0.000000e+00> : vector<8x128xf32>
    %456 = tpu.matmul %455, %1, %cst_165 {dimension_numbers = #tpu.dot_dimension_numbers<[1], [0], [0], [1], [0, 0, 1, 1], [], []>} : vector<8x128xf32>, vector<128x128xf32>, vector<8x128xf32> -> vector<8x128xf32>
    %457 = arith.addf %456, %7 : vector<8x128xf32>
    %cst_166 = arith.constant 3.125000e-02 : f32
    %458 = vector.broadcast %cst_166 : f32 to vector<8x128xf32>
    %459 = arith.mulf %458, %457 : vector<8x128xf32>
    %460 = arith.addf %452, %459 : vector<8x128xf32>
    %cst_167 = arith.constant dense<0.000000e+00> : vector<8x128xf32>
    %461 = tpu.matmul %460, %0, %cst_167 {dimension_numbers = #tpu.dot_dimension_numbers<[1], [0], [0], [1], [0, 0, 1, 1], [], []>} : vector<8x128xf32>, vector<128x128xf32>, vector<8x128xf32> -> vector<8x128xf32>
    %462 = arith.addf %461, %4 : vector<8x128xf32>
    %463 = math.tanh %462 : vector<8x128xf32>
    %cst_168 = arith.constant dense<0.000000e+00> : vector<8x128xf32>
    %464 = tpu.matmul %463, %1, %cst_168 {dimension_numbers = #tpu.dot_dimension_numbers<[1], [0], [0], [1], [0, 0, 1, 1], [], []>} : vector<8x128xf32>, vector<128x128xf32>, vector<8x128xf32> -> vector<8x128xf32>
    %465 = arith.addf %464, %7 : vector<8x128xf32>
    %cst_169 = arith.constant 3.125000e-02 : f32
    %466 = vector.broadcast %cst_169 : f32 to vector<8x128xf32>
    %467 = arith.mulf %466, %465 : vector<8x128xf32>
    %468 = arith.addf %452, %467 : vector<8x128xf32>
    %cst_170 = arith.constant dense<0.000000e+00> : vector<8x128xf32>
    %469 = tpu.matmul %468, %0, %cst_170 {dimension_numbers = #tpu.dot_dimension_numbers<[1], [0], [0], [1], [0, 0, 1, 1], [], []>} : vector<8x128xf32>, vector<128x128xf32>, vector<8x128xf32> -> vector<8x128xf32>
    %470 = arith.addf %469, %4 : vector<8x128xf32>
    %471 = math.tanh %470 : vector<8x128xf32>
    %cst_171 = arith.constant dense<0.000000e+00> : vector<8x128xf32>
    %472 = tpu.matmul %471, %1, %cst_171 {dimension_numbers = #tpu.dot_dimension_numbers<[1], [0], [0], [1], [0, 0, 1, 1], [], []>} : vector<8x128xf32>, vector<128x128xf32>, vector<8x128xf32> -> vector<8x128xf32>
    %473 = arith.addf %472, %7 : vector<8x128xf32>
    %cst_172 = arith.constant 6.250000e-02 : f32
    %474 = vector.broadcast %cst_172 : f32 to vector<8x128xf32>
    %475 = arith.mulf %474, %473 : vector<8x128xf32>
    %476 = arith.addf %452, %475 : vector<8x128xf32>
    %cst_173 = arith.constant dense<0.000000e+00> : vector<8x128xf32>
    %477 = tpu.matmul %476, %0, %cst_173 {dimension_numbers = #tpu.dot_dimension_numbers<[1], [0], [0], [1], [0, 0, 1, 1], [], []>} : vector<8x128xf32>, vector<128x128xf32>, vector<8x128xf32> -> vector<8x128xf32>
    %478 = arith.addf %477, %4 : vector<8x128xf32>
    %479 = math.tanh %478 : vector<8x128xf32>
    %cst_174 = arith.constant dense<0.000000e+00> : vector<8x128xf32>
    %480 = tpu.matmul %479, %1, %cst_174 {dimension_numbers = #tpu.dot_dimension_numbers<[1], [0], [0], [1], [0, 0, 1, 1], [], []>} : vector<8x128xf32>, vector<128x128xf32>, vector<8x128xf32> -> vector<8x128xf32>
    %481 = arith.addf %480, %7 : vector<8x128xf32>
    %482 = arith.addf %457, %481 : vector<8x128xf32>
    %483 = arith.addf %465, %473 : vector<8x128xf32>
    %cst_175 = arith.constant 2.000000e+00 : f32
    %484 = vector.broadcast %cst_175 : f32 to vector<8x128xf32>
    %485 = arith.mulf %484, %483 : vector<8x128xf32>
    %486 = arith.addf %482, %485 : vector<8x128xf32>
    %cst_176 = arith.constant 0.010416667 : f32
    %487 = vector.broadcast %cst_176 : f32 to vector<8x128xf32>
    %488 = arith.mulf %487, %486 : vector<8x128xf32>
    %489 = arith.addf %452, %488 : vector<8x128xf32>
    %c13_i32 = arith.constant 13 : i32
    %cst_177 = arith.constant dense<0.000000e+00> : vector<8x128xf32>
    %490 = tpu.matmul %489, %0, %cst_177 {dimension_numbers = #tpu.dot_dimension_numbers<[1], [0], [0], [1], [0, 0, 1, 1], [], []>} : vector<8x128xf32>, vector<128x128xf32>, vector<8x128xf32> -> vector<8x128xf32>
    %491 = arith.addf %490, %4 : vector<8x128xf32>
    %492 = math.tanh %491 : vector<8x128xf32>
    %cst_178 = arith.constant dense<0.000000e+00> : vector<8x128xf32>
    %493 = tpu.matmul %492, %1, %cst_178 {dimension_numbers = #tpu.dot_dimension_numbers<[1], [0], [0], [1], [0, 0, 1, 1], [], []>} : vector<8x128xf32>, vector<128x128xf32>, vector<8x128xf32> -> vector<8x128xf32>
    %494 = arith.addf %493, %7 : vector<8x128xf32>
    %cst_179 = arith.constant 3.125000e-02 : f32
    %495 = vector.broadcast %cst_179 : f32 to vector<8x128xf32>
    %496 = arith.mulf %495, %494 : vector<8x128xf32>
    %497 = arith.addf %489, %496 : vector<8x128xf32>
    %cst_180 = arith.constant dense<0.000000e+00> : vector<8x128xf32>
    %498 = tpu.matmul %497, %0, %cst_180 {dimension_numbers = #tpu.dot_dimension_numbers<[1], [0], [0], [1], [0, 0, 1, 1], [], []>} : vector<8x128xf32>, vector<128x128xf32>, vector<8x128xf32> -> vector<8x128xf32>
    %499 = arith.addf %498, %4 : vector<8x128xf32>
    %500 = math.tanh %499 : vector<8x128xf32>
    %cst_181 = arith.constant dense<0.000000e+00> : vector<8x128xf32>
    %501 = tpu.matmul %500, %1, %cst_181 {dimension_numbers = #tpu.dot_dimension_numbers<[1], [0], [0], [1], [0, 0, 1, 1], [], []>} : vector<8x128xf32>, vector<128x128xf32>, vector<8x128xf32> -> vector<8x128xf32>
    %502 = arith.addf %501, %7 : vector<8x128xf32>
    %cst_182 = arith.constant 3.125000e-02 : f32
    %503 = vector.broadcast %cst_182 : f32 to vector<8x128xf32>
    %504 = arith.mulf %503, %502 : vector<8x128xf32>
    %505 = arith.addf %489, %504 : vector<8x128xf32>
    %cst_183 = arith.constant dense<0.000000e+00> : vector<8x128xf32>
    %506 = tpu.matmul %505, %0, %cst_183 {dimension_numbers = #tpu.dot_dimension_numbers<[1], [0], [0], [1], [0, 0, 1, 1], [], []>} : vector<8x128xf32>, vector<128x128xf32>, vector<8x128xf32> -> vector<8x128xf32>
    %507 = arith.addf %506, %4 : vector<8x128xf32>
    %508 = math.tanh %507 : vector<8x128xf32>
    %cst_184 = arith.constant dense<0.000000e+00> : vector<8x128xf32>
    %509 = tpu.matmul %508, %1, %cst_184 {dimension_numbers = #tpu.dot_dimension_numbers<[1], [0], [0], [1], [0, 0, 1, 1], [], []>} : vector<8x128xf32>, vector<128x128xf32>, vector<8x128xf32> -> vector<8x128xf32>
    %510 = arith.addf %509, %7 : vector<8x128xf32>
    %cst_185 = arith.constant 6.250000e-02 : f32
    %511 = vector.broadcast %cst_185 : f32 to vector<8x128xf32>
    %512 = arith.mulf %511, %510 : vector<8x128xf32>
    %513 = arith.addf %489, %512 : vector<8x128xf32>
    %cst_186 = arith.constant dense<0.000000e+00> : vector<8x128xf32>
    %514 = tpu.matmul %513, %0, %cst_186 {dimension_numbers = #tpu.dot_dimension_numbers<[1], [0], [0], [1], [0, 0, 1, 1], [], []>} : vector<8x128xf32>, vector<128x128xf32>, vector<8x128xf32> -> vector<8x128xf32>
    %515 = arith.addf %514, %4 : vector<8x128xf32>
    %516 = math.tanh %515 : vector<8x128xf32>
    %cst_187 = arith.constant dense<0.000000e+00> : vector<8x128xf32>
    %517 = tpu.matmul %516, %1, %cst_187 {dimension_numbers = #tpu.dot_dimension_numbers<[1], [0], [0], [1], [0, 0, 1, 1], [], []>} : vector<8x128xf32>, vector<128x128xf32>, vector<8x128xf32> -> vector<8x128xf32>
    %518 = arith.addf %517, %7 : vector<8x128xf32>
    %519 = arith.addf %494, %518 : vector<8x128xf32>
    %520 = arith.addf %502, %510 : vector<8x128xf32>
    %cst_188 = arith.constant 2.000000e+00 : f32
    %521 = vector.broadcast %cst_188 : f32 to vector<8x128xf32>
    %522 = arith.mulf %521, %520 : vector<8x128xf32>
    %523 = arith.addf %519, %522 : vector<8x128xf32>
    %cst_189 = arith.constant 0.010416667 : f32
    %524 = vector.broadcast %cst_189 : f32 to vector<8x128xf32>
    %525 = arith.mulf %524, %523 : vector<8x128xf32>
    %526 = arith.addf %489, %525 : vector<8x128xf32>
    %c14_i32 = arith.constant 14 : i32
    %cst_190 = arith.constant dense<0.000000e+00> : vector<8x128xf32>
    %527 = tpu.matmul %526, %0, %cst_190 {dimension_numbers = #tpu.dot_dimension_numbers<[1], [0], [0], [1], [0, 0, 1, 1], [], []>} : vector<8x128xf32>, vector<128x128xf32>, vector<8x128xf32> -> vector<8x128xf32>
    %528 = arith.addf %527, %4 : vector<8x128xf32>
    %529 = math.tanh %528 : vector<8x128xf32>
    %cst_191 = arith.constant dense<0.000000e+00> : vector<8x128xf32>
    %530 = tpu.matmul %529, %1, %cst_191 {dimension_numbers = #tpu.dot_dimension_numbers<[1], [0], [0], [1], [0, 0, 1, 1], [], []>} : vector<8x128xf32>, vector<128x128xf32>, vector<8x128xf32> -> vector<8x128xf32>
    %531 = arith.addf %530, %7 : vector<8x128xf32>
    %cst_192 = arith.constant 3.125000e-02 : f32
    %532 = vector.broadcast %cst_192 : f32 to vector<8x128xf32>
    %533 = arith.mulf %532, %531 : vector<8x128xf32>
    %534 = arith.addf %526, %533 : vector<8x128xf32>
    %cst_193 = arith.constant dense<0.000000e+00> : vector<8x128xf32>
    %535 = tpu.matmul %534, %0, %cst_193 {dimension_numbers = #tpu.dot_dimension_numbers<[1], [0], [0], [1], [0, 0, 1, 1], [], []>} : vector<8x128xf32>, vector<128x128xf32>, vector<8x128xf32> -> vector<8x128xf32>
    %536 = arith.addf %535, %4 : vector<8x128xf32>
    %537 = math.tanh %536 : vector<8x128xf32>
    %cst_194 = arith.constant dense<0.000000e+00> : vector<8x128xf32>
    %538 = tpu.matmul %537, %1, %cst_194 {dimension_numbers = #tpu.dot_dimension_numbers<[1], [0], [0], [1], [0, 0, 1, 1], [], []>} : vector<8x128xf32>, vector<128x128xf32>, vector<8x128xf32> -> vector<8x128xf32>
    %539 = arith.addf %538, %7 : vector<8x128xf32>
    %cst_195 = arith.constant 3.125000e-02 : f32
    %540 = vector.broadcast %cst_195 : f32 to vector<8x128xf32>
    %541 = arith.mulf %540, %539 : vector<8x128xf32>
    %542 = arith.addf %526, %541 : vector<8x128xf32>
    %cst_196 = arith.constant dense<0.000000e+00> : vector<8x128xf32>
    %543 = tpu.matmul %542, %0, %cst_196 {dimension_numbers = #tpu.dot_dimension_numbers<[1], [0], [0], [1], [0, 0, 1, 1], [], []>} : vector<8x128xf32>, vector<128x128xf32>, vector<8x128xf32> -> vector<8x128xf32>
    %544 = arith.addf %543, %4 : vector<8x128xf32>
    %545 = math.tanh %544 : vector<8x128xf32>
    %cst_197 = arith.constant dense<0.000000e+00> : vector<8x128xf32>
    %546 = tpu.matmul %545, %1, %cst_197 {dimension_numbers = #tpu.dot_dimension_numbers<[1], [0], [0], [1], [0, 0, 1, 1], [], []>} : vector<8x128xf32>, vector<128x128xf32>, vector<8x128xf32> -> vector<8x128xf32>
    %547 = arith.addf %546, %7 : vector<8x128xf32>
    %cst_198 = arith.constant 6.250000e-02 : f32
    %548 = vector.broadcast %cst_198 : f32 to vector<8x128xf32>
    %549 = arith.mulf %548, %547 : vector<8x128xf32>
    %550 = arith.addf %526, %549 : vector<8x128xf32>
    %cst_199 = arith.constant dense<0.000000e+00> : vector<8x128xf32>
    %551 = tpu.matmul %550, %0, %cst_199 {dimension_numbers = #tpu.dot_dimension_numbers<[1], [0], [0], [1], [0, 0, 1, 1], [], []>} : vector<8x128xf32>, vector<128x128xf32>, vector<8x128xf32> -> vector<8x128xf32>
    %552 = arith.addf %551, %4 : vector<8x128xf32>
    %553 = math.tanh %552 : vector<8x128xf32>
    %cst_200 = arith.constant dense<0.000000e+00> : vector<8x128xf32>
    %554 = tpu.matmul %553, %1, %cst_200 {dimension_numbers = #tpu.dot_dimension_numbers<[1], [0], [0], [1], [0, 0, 1, 1], [], []>} : vector<8x128xf32>, vector<128x128xf32>, vector<8x128xf32> -> vector<8x128xf32>
    %555 = arith.addf %554, %7 : vector<8x128xf32>
    %556 = arith.addf %531, %555 : vector<8x128xf32>
    %557 = arith.addf %539, %547 : vector<8x128xf32>
    %cst_201 = arith.constant 2.000000e+00 : f32
    %558 = vector.broadcast %cst_201 : f32 to vector<8x128xf32>
    %559 = arith.mulf %558, %557 : vector<8x128xf32>
    %560 = arith.addf %556, %559 : vector<8x128xf32>
    %cst_202 = arith.constant 0.010416667 : f32
    %561 = vector.broadcast %cst_202 : f32 to vector<8x128xf32>
    %562 = arith.mulf %561, %560 : vector<8x128xf32>
    %563 = arith.addf %526, %562 : vector<8x128xf32>
    %c15_i32 = arith.constant 15 : i32
    %cst_203 = arith.constant dense<0.000000e+00> : vector<8x128xf32>
    %564 = tpu.matmul %563, %0, %cst_203 {dimension_numbers = #tpu.dot_dimension_numbers<[1], [0], [0], [1], [0, 0, 1, 1], [], []>} : vector<8x128xf32>, vector<128x128xf32>, vector<8x128xf32> -> vector<8x128xf32>
    %565 = arith.addf %564, %4 : vector<8x128xf32>
    %566 = math.tanh %565 : vector<8x128xf32>
    %cst_204 = arith.constant dense<0.000000e+00> : vector<8x128xf32>
    %567 = tpu.matmul %566, %1, %cst_204 {dimension_numbers = #tpu.dot_dimension_numbers<[1], [0], [0], [1], [0, 0, 1, 1], [], []>} : vector<8x128xf32>, vector<128x128xf32>, vector<8x128xf32> -> vector<8x128xf32>
    %568 = arith.addf %567, %7 : vector<8x128xf32>
    %cst_205 = arith.constant 3.125000e-02 : f32
    %569 = vector.broadcast %cst_205 : f32 to vector<8x128xf32>
    %570 = arith.mulf %569, %568 : vector<8x128xf32>
    %571 = arith.addf %563, %570 : vector<8x128xf32>
    %cst_206 = arith.constant dense<0.000000e+00> : vector<8x128xf32>
    %572 = tpu.matmul %571, %0, %cst_206 {dimension_numbers = #tpu.dot_dimension_numbers<[1], [0], [0], [1], [0, 0, 1, 1], [], []>} : vector<8x128xf32>, vector<128x128xf32>, vector<8x128xf32> -> vector<8x128xf32>
    %573 = arith.addf %572, %4 : vector<8x128xf32>
    %574 = math.tanh %573 : vector<8x128xf32>
    %cst_207 = arith.constant dense<0.000000e+00> : vector<8x128xf32>
    %575 = tpu.matmul %574, %1, %cst_207 {dimension_numbers = #tpu.dot_dimension_numbers<[1], [0], [0], [1], [0, 0, 1, 1], [], []>} : vector<8x128xf32>, vector<128x128xf32>, vector<8x128xf32> -> vector<8x128xf32>
    %576 = arith.addf %575, %7 : vector<8x128xf32>
    %cst_208 = arith.constant 3.125000e-02 : f32
    %577 = vector.broadcast %cst_208 : f32 to vector<8x128xf32>
    %578 = arith.mulf %577, %576 : vector<8x128xf32>
    %579 = arith.addf %563, %578 : vector<8x128xf32>
    %cst_209 = arith.constant dense<0.000000e+00> : vector<8x128xf32>
    %580 = tpu.matmul %579, %0, %cst_209 {dimension_numbers = #tpu.dot_dimension_numbers<[1], [0], [0], [1], [0, 0, 1, 1], [], []>} : vector<8x128xf32>, vector<128x128xf32>, vector<8x128xf32> -> vector<8x128xf32>
    %581 = arith.addf %580, %4 : vector<8x128xf32>
    %582 = math.tanh %581 : vector<8x128xf32>
    %cst_210 = arith.constant dense<0.000000e+00> : vector<8x128xf32>
    %583 = tpu.matmul %582, %1, %cst_210 {dimension_numbers = #tpu.dot_dimension_numbers<[1], [0], [0], [1], [0, 0, 1, 1], [], []>} : vector<8x128xf32>, vector<128x128xf32>, vector<8x128xf32> -> vector<8x128xf32>
    %584 = arith.addf %583, %7 : vector<8x128xf32>
    %cst_211 = arith.constant 6.250000e-02 : f32
    %585 = vector.broadcast %cst_211 : f32 to vector<8x128xf32>
    %586 = arith.mulf %585, %584 : vector<8x128xf32>
    %587 = arith.addf %563, %586 : vector<8x128xf32>
    %cst_212 = arith.constant dense<0.000000e+00> : vector<8x128xf32>
    %588 = tpu.matmul %587, %0, %cst_212 {dimension_numbers = #tpu.dot_dimension_numbers<[1], [0], [0], [1], [0, 0, 1, 1], [], []>} : vector<8x128xf32>, vector<128x128xf32>, vector<8x128xf32> -> vector<8x128xf32>
    %589 = arith.addf %588, %4 : vector<8x128xf32>
    %590 = math.tanh %589 : vector<8x128xf32>
    %cst_213 = arith.constant dense<0.000000e+00> : vector<8x128xf32>
    %591 = tpu.matmul %590, %1, %cst_213 {dimension_numbers = #tpu.dot_dimension_numbers<[1], [0], [0], [1], [0, 0, 1, 1], [], []>} : vector<8x128xf32>, vector<128x128xf32>, vector<8x128xf32> -> vector<8x128xf32>
    %592 = arith.addf %591, %7 : vector<8x128xf32>
    %593 = arith.addf %568, %592 : vector<8x128xf32>
    %594 = arith.addf %576, %584 : vector<8x128xf32>
    %cst_214 = arith.constant 2.000000e+00 : f32
    %595 = vector.broadcast %cst_214 : f32 to vector<8x128xf32>
    %596 = arith.mulf %595, %594 : vector<8x128xf32>
    %597 = arith.addf %593, %596 : vector<8x128xf32>
    %cst_215 = arith.constant 0.010416667 : f32
    %598 = vector.broadcast %cst_215 : f32 to vector<8x128xf32>
    %599 = arith.mulf %598, %597 : vector<8x128xf32>
    %600 = arith.addf %563, %599 : vector<8x128xf32>
    %c0_216 = arith.constant 0 : index
    %c0_217 = arith.constant 0 : index
    %601 = vector.load %arg6[%c0_216, %c0_217] : memref<8x128xf32, #tpu.memory_space<vmem>>, vector<8x128xf32>
    tpu.vector_store %arg6[%c0_216, %c0_217], %600 {strides = array<i32>} : memref<8x128xf32, #tpu.memory_space<vmem>>, vector<8x128xf32>,
    return
  }
  func.func @transform_0(%arg0: i32) -> (i32, i32) {
    %c0_i32 = arith.constant 0 : i32
    %c0_i32_0 = arith.constant 0 : i32
    return %arg0, %c0_i32 : i32, i32
  }
  func.func @transform_1(%arg0: i32) -> (i32, i32) {
    %c0_i32 = arith.constant 0 : i32
    %c0_i32_0 = arith.constant 0 : i32
    %c0_i32_1 = arith.constant 0 : i32
    return %c0_i32, %c0_i32_0 : i32, i32
  }
  func.func @transform_2(%arg0: i32) -> (i32, i32) {
    %c0_i32 = arith.constant 0 : i32
    %c0_i32_0 = arith.constant 0 : i32
    %c0_i32_1 = arith.constant 0 : i32
    return %c0_i32, %c0_i32_0 : i32, i32
  }
  func.func @transform_3(%arg0: i32) -> (i32, i32) {
    %c0_i32 = arith.constant 0 : i32
    %c0_i32_0 = arith.constant 0 : i32
    %c0_i32_1 = arith.constant 0 : i32
    return %c0_i32, %c0_i32_0 : i32, i32
  }
  func.func @transform_4(%arg0: i32) -> (i32, i32) {
    %c0_i32 = arith.constant 0 : i32
    %c0_i32_0 = arith.constant 0 : i32
    %c0_i32_1 = arith.constant 0 : i32
    return %c0_i32, %c0_i32_0 : i32, i32
  }
  func.func @transform_5(%arg0: i32) -> (i32, i32) {
    %c0_i32 = arith.constant 0 : i32
    %c0_i32_0 = arith.constant 0 : i32
    return %arg0, %c0_i32 : i32, i32
  }
}

</mosaic_0001>

<llo_original>
// kernel: tpu_custom_call.1
$region0: #{tpu_custom_call.1}
  #allocation0 [shape = 'u32[]', space=smem, size = 0x4, offset = 0x4, fixed_abs, tag = 'smem constant byte address 0x4 - core index']
  #allocation1 [shape = 'u32[144,128]{1,0:T(1,128)}', space=vmem, size = 0x12000, scoped, tag = 'internal scratch']
  %s0 = inlined_call_operand.hbm [shape: f32[8,128], index: 0, kind: input, shape index: {}]
  %s1 = inlined_call_operand.hbm [shape: f32[128,128], index: 1, kind: input, shape index: {}]
  %s2 = inlined_call_operand.vmem [shape: f32[1,128], index: 2, kind: input, shape index: {}]
  %s3 = inlined_call_operand.hbm [shape: f32[128,128], index: 3, kind: input, shape index: {}]
  %s4 = inlined_call_operand.vmem [shape: f32[1,128], index: 4, kind: input, shape index: {}]
  %s5 = inlined_call_operand.hbm [shape: f32[8,128], index: 5, kind: output, shape index: {}]
  %s6 = sld [smem:[#allocation0]]
  $region42: #{tpu_custom_call.1} parent=0
    _
  %s8 = ssub.s32 1, %s6
  %s9 = scalar_select 0, %s8, %s6
  $region1: #{tpu_custom_call.1} parent=0
    #allocation2 [shape = 'u8[4096]{0}', space=vmem, size = 0x1000, scoped, tag = 'input window, operand 0, single buffered']
    #allocation3 [shape = 's32[1]{0}', space=sflag, size = 0x4, scoped, tag = 'scoped memory for tpu_custom_call.1']
    #allocation4 [shape = 's32[1]{0}', space=sflag, size = 0x4, scoped, tag = 'scoped memory for tpu_custom_call.1']
    #allocation5 [shape = 'u8[65536]{0}', space=vmem, size = 0x10000, scoped, tag = 'input window, operand 1, single buffered']
    #allocation6 [shape = 's32[1]{0}', space=sflag, size = 0x4, scoped, tag = 'scoped memory for tpu_custom_call.1']
    #allocation7 [shape = 'u8[65536]{0}', space=vmem, size = 0x10000, scoped, tag = 'input window, operand 3, single buffered']
    #allocation8 [shape = 'u8[4096]{0}', space=vmem, size = 0x1000, scoped, tag = 'output window, operand 0, single buffered']
    %10 = vsyncpa [#allocation3], 0
    %11 = vsyncpa [#allocation6], 0
    %12 = vsyncpa [#allocation4], 0
    // Predicated region
    $region2: #{tpu_custom_call.1} parent=1 // pred_check
      _
    $region3: #{tpu_custom_call.1} parent=1 // pred_check_branch
      %14 = sbr.rel (0) target = $region5
    $region4: #{tpu_custom_call.1} parent=1 // pred_region
      %s16 = ssub.s32 128, 128
      %17 = vsyncadd [#allocation3], %s16
      %s19 = sshll.u32 [#allocation2], 4
      %s20 = int_to_ptr.vmem [resolvable:$true] %s19
      %22 = dma.hbm_to_vmem [thread:$0]  %s0, 128, %s20, [#allocation3]
    $region5: #{tpu_custom_call.1} parent=1 // pred_fallthru
      _
    // Predicated region
    $region6: #{tpu_custom_call.1} parent=1 // pred_check
      _
    $region7: #{tpu_custom_call.1} parent=1 // pred_check_branch
      %24 = sbr.rel (0) target = $region9
    $region8: #{tpu_custom_call.1} parent=1 // pred_region
      %s26 = ssub.s32 2048, 2048
      %27 = vsyncadd [#allocation6], %s26
      %s28 = sshll.u32 [#allocation5], 4
      %s29 = int_to_ptr.vmem [resolvable:$true] %s28
      %34 = dma.hbm_to_vmem [thread:$0]  %s1, 2048, %s29, [#allocation6], 128, 128, 8
    $region9: #{tpu_custom_call.1} parent=1 // pred_fallthru
      _
    // Predicated region
    $region10: #{tpu_custom_call.1} parent=1 // pred_check
      _
    $region11: #{tpu_custom_call.1} parent=1 // pred_check_branch
      %36 = sbr.rel (0) target = $region13
    $region12: #{tpu_custom_call.1} parent=1 // pred_region
      _
    $region13: #{tpu_custom_call.1} parent=1 // pred_fallthru
      _
    // Predicated region
    $region14: #{tpu_custom_call.1} parent=1 // pred_check
      _
    $region15: #{tpu_custom_call.1} parent=1 // pred_check_branch
      %38 = sbr.rel (0) target = $region17
    $region16: #{tpu_custom_call.1} parent=1 // pred_region
      %s40 = ssub.s32 2048, 2048
      %41 = vsyncadd [#allocation6], %s40
      %s42 = sshll.u32 [#allocation7], 4
      %s43 = int_to_ptr.vmem [resolvable:$true] %s42
      %48 = dma.hbm_to_vmem [thread:$0]  %s3, 2048, %s43, [#allocation6], 128, 128, 8
    $region17: #{tpu_custom_call.1} parent=1 // pred_fallthru
      _
    // Predicated region
    $region18: #{tpu_custom_call.1} parent=1 // pred_check
      _
    $region19: #{tpu_custom_call.1} parent=1 // pred_check_branch
      %50 = sbr.rel (0) target = $region21
    $region20: #{tpu_custom_call.1} parent=1 // pred_region
      _
    $region21: #{tpu_custom_call.1} parent=1 // pred_fallthru
      _
    // Predicated region
    $region22: #{tpu_custom_call.1} parent=1 // pred_check
      _
    $region23: #{tpu_custom_call.1} parent=1 // pred_check_branch
      %52 = sbr.rel (0) target = $region25
    $region24: #{tpu_custom_call.1} parent=1 // pred_region
      %53 = dma.done [#allocation3], 128
    $region25: #{tpu_custom_call.1} parent=1 // pred_fallthru
      _
    // Predicated region
    $region26: #{tpu_custom_call.1} parent=1 // pred_check
      _
    $region27: #{tpu_custom_call.1} parent=1 // pred_check_branch
      %55 = sbr.rel (0) target = $region29
    $region28: #{tpu_custom_call.1} parent=1 // pred_region
      %56 = dma.done [#allocation6], 2048
    $region29: #{tpu_custom_call.1} parent=1 // pred_fallthru
      _
    // Predicated region
    $region30: #{tpu_custom_call.1} parent=1 // pred_check
      _
    $region31: #{tpu_custom_call.1} parent=1 // pred_check_branch
      %58 = sbr.rel (0) target = $region33
    $region32: #{tpu_custom_call.1} parent=1 // pred_region
      %59 = dma.done [#allocation6], 2048
    $region33: #{tpu_custom_call.1} parent=1 // pred_fallthru
      _
    %v60 = vld [vmem:[#allocation5] sm:$0xff]
    %v61 = vld [vmem:[#allocation5 + $0x8] sm:$0xff]
    %v62 = vld [vmem:[#allocation5 + $0x10] sm:$0xff]
    %v63 = vld [vmem:[#allocation5 + $0x18] sm:$0xff]
    %v64 = vld [vmem:[#allocation5 + $0x20] sm:$0xff]
    %v65 = vld [vmem:[#allocation5 + $0x28] sm:$0xff]
    %v66 = vld [vmem:[#allocation5 + $0x30] sm:$0xff]
    %v67 = vld [vmem:[#allocation5 + $0x38] sm:$0xff]
    %v68 = vld [vmem:[#allocation5 + $0x40] sm:$0xff]
    %v69 = vld [vmem:[#allocation5 + $0x48] sm:$0xff]
    %v70 = vld [vmem:[#allocation5 + $0x50] sm:$0xff]
    %v71 = vld [vmem:[#allocation5 + $0x58] sm:$0xff]
    %v72 = vld [vmem:[#allocation5 + $0x60] sm:$0xff]
    %v73 = vld [vmem:[#allocation5 + $0x68] sm:$0xff]
    %v74 = vld [vmem:[#allocation5 + $0x70] sm:$0xff]
    %v75 = vld [vmem:[#allocation5 + $0x78] sm:$0xff]
    %v76 = vld [vmem:[#allocation7] sm:$0xff]
    %v77 = vld [vmem:[#allocation7 + $0x8] sm:$0xff]
    %v78 = vld [vmem:[#allocation7 + $0x10] sm:$0xff]
    %v79 = vld [vmem:[#allocation7 + $0x18] sm:$0xff]
    %v80 = vld [vmem:[#allocation7 + $0x20] sm:$0xff]
    %v81 = vld [vmem:[#allocation7 + $0x28] sm:$0xff]
    %v82 = vld [vmem:[#allocation7 + $0x30] sm:$0xff]
    %v83 = vld [vmem:[#allocation7 + $0x38] sm:$0xff]
    %v84 = vld [vmem:[#allocation7 + $0x40] sm:$0xff]
    %v85 = vld [vmem:[#allocation7 + $0x48] sm:$0xff]
    %v86 = vld [vmem:[#allocation7 + $0x50] sm:$0xff]
    %v87 = vld [vmem:[#allocation7 + $0x58] sm:$0xff]
    %v88 = vld [vmem:[#allocation7 + $0x60] sm:$0xff]
    %v89 = vld [vmem:[#allocation7 + $0x68] sm:$0xff]
    %v90 = vld [vmem:[#allocation7 + $0x70] sm:$0xff]
    %v91 = vld [vmem:[#allocation7 + $0x78] sm:$0xff]
    %v92 = vld [vmem:[%s2] sm:$0x1]
    %v94 = vlaneseq
    %v95 = vshrl.u32 %v94, 7
    %v96 = vsub.s32 0, %v95
    %v97 = vrot.slane %v92, %v96
    %v99 = vld [vmem:[%s4] sm:$0x1]
    %v101 = vlaneseq
    %v102 = vshrl.u32 %v101, 7
    %v103 = vsub.s32 0, %v102
    %v104 = vrot.slane %v99, %v103
    %v106 = vld [vmem:[#allocation2] sm:$0xff]
    %107 = vmatprep.subr.mxu0 0.0
    %108 = vmatpush1.msra.mxu0 %v60
    %109 = vmatprep.subr.mxu0 0.0
    %110 = vmatpush1.msra.mxu0 %v61
    %111 = vmatprep.subr.mxu0 0.0
    %112 = vmatpush1.msra.mxu0 %v62
    %113 = vmatprep.subr.mxu0 0.0
    %114 = vmatpush1.msra.mxu0 %v63
    %115 = vmatprep.subr.mxu0 0.0
    %116 = vmatpush1.msra.mxu0 %v64
    %117 = vmatprep.subr.mxu0 0.0
    %118 = vmatpush1.msra.mxu0 %v65
    %119 = vmatprep.subr.mxu0 0.0
    %120 = vmatpush1.msra.mxu0 %v66
    %121 = vmatprep.subr.mxu0 0.0
    %122 = vmatpush1.msra.mxu0 %v67
    %123 = vmatprep.subr.mxu0 0.0
    %124 = vmatpush1.msra.mxu0 %v68
    %125 = vmatprep.subr.mxu0 0.0
    %126 = vmatpush1.msra.mxu0 %v69
    %127 = vmatprep.subr.mxu0 0.0
    %128 = vmatpush1.msra.mxu0 %v70
    %129 = vmatprep.subr.mxu0 0.0
    %130 = vmatpush1.msra.mxu0 %v71
    %131 = vmatprep.subr.mxu0 0.0
    %132 = vmatpush1.msra.mxu0 %v72
    %133 = vmatprep.subr.mxu0 0.0
    %134 = vmatpush1.msra.mxu0 %v73
    %135 = vmatprep.subr.mxu0 0.0
    %136 = vmatpush1.msra.mxu0 %v74
    %137 = vmatprep.subr.mxu0 0.0
    %138 = vmatpush1.msra.mxu0 %v75
    %139 = vmatprep.subr.mxu0 0.0
    %140 = vmatpush1.msra.mxu0 0.0
    %141 = vmatprep.subr.mxu0 0.0
    %142 = vmatpush1.msra.mxu0 0.0
    %143 = vmatprep.subr.mxu0 0.0
    %144 = vmatpush1.msra.mxu0 0.0
    %145 = vmatprep.subr.mxu0 0.0
    %146 = vmatpush1.msra.mxu0 0.0
    %147 = vmatprep.subr.mxu0 0.0
    %148 = vmatpush1.msra.mxu0 0.0
    %149 = vmatprep.subr.mxu0 0.0
    %150 = vmatpush1.msra.mxu0 0.0
    %151 = vmatprep.subr.mxu0 0.0
    %152 = vmatpush1.msra.mxu0 0.0
    %153 = vmatprep.subr.mxu0 0.0
    %154 = vmatpush1.msra.mxu0 0.0
    %155 = vmatprep.subr.mxu0 0.0
    %156 = vmatpush1.msra.mxu0 0.0
    %157 = vmatprep.subr.mxu0 0.0
    %158 = vmatpush1.msra.mxu0 0.0
    %159 = vmatprep.subr.mxu0 0.0
    %160 = vmatpush1.msra.mxu0 0.0
    %161 = vmatprep.subr.mxu0 0.0
    %162 = vmatpush1.msra.mxu0 0.0
    %163 = vmatprep.subr.mxu0 0.0
    %164 = vmatpush1.msra.mxu0 0.0
    %165 = vmatprep.subr.mxu0 0.0
    %166 = vmatpush1.msra.mxu0 0.0
    %167 = vmatprep.subr.mxu0 0.0
    %168 = vmatpush1.msra.mxu0 0.0
    %169 = vmatprep.subr.mxu0 0.0
    %170 = vmatpush1.msra.mxu0 0.0
    %171 = vmatprep.mubr.f32.mxu0 0.0
    %172 = vmatmul.mubr.f32.gmra.mrb[0].mxu0 %v106
    %v173 = vpop.f32.mrb[0].mxu0
    %v174 = vadd.f32 %v97, %v173
    %v175 = vpop.f32.mrb[0].mxu0
    %176 = vdwg.mxu0
    %v177 = vtanh.pop %v174
    %178 = vmatprep.subr.mxu0 0.0
    %179 = vmatpush1.msra.mxu0 %v76
    %180 = vmatprep.subr.mxu0 0.0
    %181 = vmatpush1.msra.mxu0 %v77
    %182 = vmatprep.subr.mxu0 0.0
    %183 = vmatpush1.msra.mxu0 %v78
    %184 = vmatprep.subr.mxu0 0.0
    %185 = vmatpush1.msra.mxu0 %v79
    %186 = vmatprep.subr.mxu0 0.0
    %187 = vmatpush1.msra.mxu0 %v80
    %188 = vmatprep.subr.mxu0 0.0
    %189 = vmatpush1.msra.mxu0 %v81
    %190 = vmatprep.subr.mxu0 0.0
    %191 = vmatpush1.msra.mxu0 %v82
    %192 = vmatprep.subr.mxu0 0.0
    %193 = vmatpush1.msra.mxu0 %v83
    %194 = vmatprep.subr.mxu0 0.0
    %195 = vmatpush1.msra.mxu0 %v84
    %196 = vmatprep.subr.mxu0 0.0
    %197 = vmatpush1.msra.mxu0 %v85
    %198 = vmatprep.subr.mxu0 0.0
    %199 = vmatpush1.msra.mxu0 %v86
    %200 = vmatprep.subr.mxu0 0.0
    %201 = vmatpush1.msra.mxu0 %v87
    %202 = vmatprep.subr.mxu0 0.0
    %203 = vmatpush1.msra.mxu0 %v88
    %204 = vmatprep.subr.mxu0 0.0
    %205 = vmatpush1.msra.mxu0 %v89
    %206 = vmatprep.subr.mxu0 0.0
    %207 = vmatpush1.msra.mxu0 %v90
    %208 = vmatprep.subr.mxu0 0.0
    %209 = vmatpush1.msra.mxu0 %v91
    %210 = vmatprep.subr.mxu0 0.0
    %211 = vmatpush1.msra.mxu0 0.0
    %212 = vmatprep.subr.mxu0 0.0
    %213 = vmatpush1.msra.mxu0 0.0
    %214 = vmatprep.subr.mxu0 0.0
    %215 = vmatpush1.msra.mxu0 0.0
    %216 = vmatprep.subr.mxu0 0.0
    %217 = vmatpush1.msra.mxu0 0.0
    %218 = vmatprep.subr.mxu0 0.0
    %219 = vmatpush1.msra.mxu0 0.0
    %220 = vmatprep.subr.mxu0 0.0
    %221 = vmatpush1.msra.mxu0 0.0
    %222 = vmatprep.subr.mxu0 0.0
    %223 = vmatpush1.msra.mxu0 0.0
    %224 = vmatprep.subr.mxu0 0.0
    %225 = vmatpush1.msra.mxu0 0.0
    %226 = vmatprep.subr.mxu0 0.0
    %227 = vmatpush1.msra.mxu0 0.0
    %228 = vmatprep.subr.mxu0 0.0
    %229 = vmatpush1.msra.mxu0 0.0
    %230 = vmatprep.subr.mxu0 0.0
    %231 = vmatpush1.msra.mxu0 0.0
    %232 = vmatprep.subr.mxu0 0.0
    %233 = vmatpush1.msra.mxu0 0.0
    %234 = vmatprep.subr.mxu0 0.0
    %235 = vmatpush1.msra.mxu0 0.0
    %236 = vmatprep.subr.mxu0 0.0
    %237 = vmatpush1.msra.mxu0 0.0
    %238 = vmatprep.subr.mxu0 0.0
    %239 = vmatpush1.msra.mxu0 0.0
    %240 = vmatprep.subr.mxu0 0.0
    %241 = vmatpush1.msra.mxu0 0.0
    %242 = vmatprep.mubr.f32.mxu0 0.0
    %243 = vmatmul.mubr.f32.gmra.mrb[0].mxu0 %v177
    %v244 = vpop.f32.mrb[0].mxu0
    %v245 = vadd.f32 %v104, %v244
    %v246 = vpop.f32.mrb[0].mxu0
    %247 = vdwg.mxu0
    %v248 = vmul.f32 %v245, 0.03125
    %v249 = vadd.f32 %v106, %v248
    %250 = vmatprep.subr.mxu0 0.0
    %251 = vmatpush1.msra.mxu0 %v60
    %252 = vmatprep.subr.mxu0 0.0
    %253 = vmatpush1.msra.mxu0 %v61
    %254 = vmatprep.subr.mxu0 0.0
    %255 = vmatpush1.msra.mxu0 %v62
    %256 = vmatprep.subr.mxu0 0.0
    %257 = vmatpush1.msra.mxu0 %v63
    %258 = vmatprep.subr.mxu0 0.0
    %259 = vmatpush1.msra.mxu0 %v64
    %260 = vmatprep.subr.mxu0 0.0
    %261 = vmatpush1.msra.mxu0 %v65
    %262 = vmatprep.subr.mxu0 0.0
    %263 = vmatpush1.msra.mxu0 %v66
    %264 = vmatprep.subr.mxu0 0.0
    %265 = vmatpush1.msra.mxu0 %v67
    %266 = vmatprep.subr.mxu0 0.0
    %267 = vmatpush1.msra.mxu0 %v68
    %268 = vmatprep.subr.mxu0 0.0
    %269 = vmatpush1.msra.mxu0 %v69
    %270 = vmatprep.subr.mxu0 0.0
    %271 = vmatpush1.msra.mxu0 %v70
    %272 = vmatprep.subr.mxu0 0.0
    %273 = vmatpush1.msra.mxu0 %v71
    %274 = vmatprep.subr.mxu0 0.0
    %275 = vmatpush1.msra.mxu0 %v72
    %276 = vmatprep.subr.mxu0 0.0
    %277 = vmatpush1.msra.mxu0 %v73
    %278 = vmatprep.subr.mxu0 0.0
    %279 = vmatpush1.msra.mxu0 %v74
    %280 = vmatprep.subr.mxu0 0.0
    %281 = vmatpush1.msra.mxu0 %v75
    %282 = vmatprep.subr.mxu0 0.0
    %283 = vmatpush1.msra.mxu0 0.0
    %284 = vmatprep.subr.mxu0 0.0
    %285 = vmatpush1.msra.mxu0 0.0
    %286 = vmatprep.subr.mxu0 0.0
    %287 = vmatpush1.msra.mxu0 0.0
    %288 = vmatprep.subr.mxu0 0.0
    %289 = vmatpush1.msra.mxu0 0.0
    %290 = vmatprep.subr.mxu0 0.0
    %291 = vmatpush1.msra.mxu0 0.0
    %292 = vmatprep.subr.mxu0 0.0
    %293 = vmatpush1.msra.mxu0 0.0
    %294 = vmatprep.subr.mxu0 0.0
    %295 = vmatpush1.msra.mxu0 0.0
    %296 = vmatprep.subr.mxu0 0.0
    %297 = vmatpush1.msra.mxu0 0.0
    %298 = vmatprep.subr.mxu0 0.0
    %299 = vmatpush1.msra.mxu0 0.0
    %300 = vmatprep.subr.mxu0 0.0
    %301 = vmatpush1.msra.mxu0 0.0
    %302 = vmatprep.subr.mxu0 0.0
    %303 = vmatpush1.msra.mxu0 0.0
    %304 = vmatprep.subr.mxu0 0.0
    %305 = vmatpush1.msra.mxu0 0.0
    %306 = vmatprep.subr.mxu0 0.0
    %307 = vmatpush1.msra.mxu0 0.0
    %308 = vmatprep.subr.mxu0 0.0
    %309 = vmatpush1.msra.mxu0 0.0
    %310 = vmatprep.subr.mxu0 0.0
    %311 = vmatpush1.msra.mxu0 0.0
    %312 = vmatprep.subr.mxu0 0.0
    %313 = vmatpush1.msra.mxu0 0.0
    %314 = vmatprep.mubr.f32.mxu0 0.0
    %315 = vmatmul.mubr.f32.gmra.mrb[0].mxu0 %v249
    %v316 = vpop.f32.mrb[0].mxu0
    %v317 = vadd.f32 %v97, %v316
    %v318 = vpop.f32.mrb[0].mxu0
    %319 = vdwg.mxu0
    %v320 = vtanh.pop %v317
    %321 = vmatprep.subr.mxu0 0.0
    %322 = vmatpush1.msra.mxu0 %v76
    %323 = vmatprep.subr.mxu0 0.0
    %324 = vmatpush1.msra.mxu0 %v77
    %325 = vmatprep.subr.mxu0 0.0
    %326 = vmatpush1.msra.mxu0 %v78
    %327 = vmatprep.subr.mxu0 0.0
    %328 = vmatpush1.msra.mxu0 %v79
    %329 = vmatprep.subr.mxu0 0.0
    %330 = vmatpush1.msra.mxu0 %v80
    %331 = vmatprep.subr.mxu0 0.0
    %332 = vmatpush1.msra.mxu0 %v81
    %333 = vmatprep.subr.mxu0 0.0
    %334 = vmatpush1.msra.mxu0 %v82
    %335 = vmatprep.subr.mxu0 0.0
    %336 = vmatpush1.msra.mxu0 %v83
    %337 = vmatprep.subr.mxu0 0.0
    %338 = vmatpush1.msra.mxu0 %v84
    %339 = vmatprep.subr.mxu0 0.0
    %340 = vmatpush1.msra.mxu0 %v85
    %341 = vmatprep.subr.mxu0 0.0
    %342 = vmatpush1.msra.mxu0 %v86
    %343 = vmatprep.subr.mxu0 0.0
    %344 = vmatpush1.msra.mxu0 %v87
    %345 = vmatprep.subr.mxu0 0.0
    %346 = vmatpush1.msra.mxu0 %v88
    %347 = vmatprep.subr.mxu0 0.0
    %348 = vmatpush1.msra.mxu0 %v89
    %349 = vmatprep.subr.mxu0 0.0
    %350 = vmatpush1.msra.mxu0 %v90
    %351 = vmatprep.subr.mxu0 0.0
    %352 = vmatpush1.msra.mxu0 %v91
    %353 = vmatprep.subr.mxu0 0.0
    %354 = vmatpush1.msra.mxu0 0.0
    %355 = vmatprep.subr.mxu0 0.0
    %356 = vmatpush1.msra.mxu0 0.0
    %357 = vmatprep.subr.mxu0 0.0
    %358 = vmatpush1.msra.mxu0 0.0
    %359 = vmatprep.subr.mxu0 0.0
    %360 = vmatpush1.msra.mxu0 0.0
    %361 = vmatprep.subr.mxu0 0.0
    %362 = vmatpush1.msra.mxu0 0.0
    %363 = vmatprep.subr.mxu0 0.0
    %364 = vmatpush1.msra.mxu0 0.0
    %365 = vmatprep.subr.mxu0 0.0
    %366 = vmatpush1.msra.mxu0 0.0
    %367 = vmatprep.subr.mxu0 0.0
    %368 = vmatpush1.msra.mxu0 0.0
    %369 = vmatprep.subr.mxu0 0.0
    %370 = vmatpush1.msra.mxu0 0.0
    %371 = vmatprep.subr.mxu0 0.0
    %372 = vmatpush1.msra.mxu0 0.0
    %373 = vmatprep.subr.mxu0 0.0
    %374 = vmatpush1.msra.mxu0 0.0
    %375 = vmatprep.subr.mxu0 0.0
    %376 = vmatpush1.msra.mxu0 0.0
    %377 = vmatprep.subr.mxu0 0.0
    %378 = vmatpush1.msra.mxu0 0.0
    %379 = vmatprep.subr.mxu0 0.0
    %380 = vmatpush1.msra.mxu0 0.0
    %381 = vmatprep.subr.mxu0 0.0
    %382 = vmatpush1.msra.mxu0 0.0
    %383 = vmatprep.subr.mxu0 0.0
    %384 = vmatpush1.msra.mxu0 0.0
    %385 = vmatprep.mubr.f32.mxu0 0.0
    %386 = vmatmul.mubr.f32.gmra.mrb[0].mxu0 %v320
    %v387 = vpop.f32.mrb[0].mxu0
    %v388 = vadd.f32 %v104, %v387
    %v389 = vpop.f32.mrb[0].mxu0
    %390 = vdwg.mxu0
    %v391 = vmul.f32 %v388, 0.03125
    %v392 = vadd.f32 %v106, %v391
    %393 = vmatprep.subr.mxu0 0.0
    %394 = vmatpush1.msra.mxu0 %v60
    %395 = vmatprep.subr.mxu0 0.0
    %396 = vmatpush1.msra.mxu0 %v61
    %397 = vmatprep.subr.mxu0 0.0
    %398 = vmatpush1.msra.mxu0 %v62
    %399 = vmatprep.subr.mxu0 0.0
    %400 = vmatpush1.msra.mxu0 %v63
    %401 = vmatprep.subr.mxu0 0.0
    %402 = vmatpush1.msra.mxu0 %v64
    %403 = vmatprep.subr.mxu0 0.0
    %404 = vmatpush1.msra.mxu0 %v65
    %405 = vmatprep.subr.mxu0 0.0
    %406 = vmatpush1.msra.mxu0 %v66
    %407 = vmatprep.subr.mxu0 0.0
    %408 = vmatpush1.msra.mxu0 %v67
    %409 = vmatprep.subr.mxu0 0.0
    %410 = vmatpush1.msra.mxu0 %v68
    %411 = vmatprep.subr.mxu0 0.0
    %412 = vmatpush1.msra.mxu0 %v69
    %413 = vmatprep.subr.mxu0 0.0
    %414 = vmatpush1.msra.mxu0 %v70
    %415 = vmatprep.subr.mxu0 0.0
    %416 = vmatpush1.msra.mxu0 %v71
    %417 = vmatprep.subr.mxu0 0.0
    %418 = vmatpush1.msra.mxu0 %v72
    %419 = vmatprep.subr.mxu0 0.0
    %420 = vmatpush1.msra.mxu0 %v73
    %421 = vmatprep.subr.mxu0 0.0
    %422 = vmatpush1.msra.mxu0 %v74
    %423 = vmatprep.subr.mxu0 0.0
    %424 = vmatpush1.msra.mxu0 %v75
    %425 = vmatprep.subr.mxu0 0.0
    %426 = vmatpush1.msra.mxu0 0.0
    %427 = vmatprep.subr.mxu0 0.0
    %428 = vmatpush1.msra.mxu0 0.0
    %429 = vmatprep.subr.mxu0 0.0
    %430 = vmatpush1.msra.mxu0 0.0
    %431 = vmatprep.subr.mxu0 0.0
    %432 = vmatpush1.msra.mxu0 0.0
    %433 = vmatprep.subr.mxu0 0.0
    %434 = vmatpush1.msra.mxu0 0.0
    %435 = vmatprep.subr.mxu0 0.0
    %436 = vmatpush1.msra.mxu0 0.0
    %437 = vmatprep.subr.mxu0 0.0
    %438 = vmatpush1.msra.mxu0 0.0
    %439 = vmatprep.subr.mxu0 0.0
    %440 = vmatpush1.msra.mxu0 0.0
    %441 = vmatprep.subr.mxu0 0.0
    %442 = vmatpush1.msra.mxu0 0.0
    %443 = vmatprep.subr.mxu0 0.0
    %444 = vmatpush1.msra.mxu0 0.0
    %445 = vmatprep.subr.mxu0 0.0
    %446 = vmatpush1.msra.mxu0 0.0
    %447 = vmatprep.subr.mxu0 0.0
    %448 = vmatpush1.msra.mxu0 0.0
    %449 = vmatprep.subr.mxu0 0.0
    %450 = vmatpush1.msra.mxu0 0.0
    %451 = vmatprep.subr.mxu0 0.0
    %452 = vmatpush1.msra.mxu0 0.0
    %453 = vmatprep.subr.mxu0 0.0
    %454 = vmatpush1.msra.mxu0 0.0
    %455 = vmatprep.subr.mxu0 0.0
    %456 = vmatpush1.msra.mxu0 0.0
    %457 = vmatprep.mubr.f32.mxu0 0.0
    %458 = vmatmul.mubr.f32.gmra.mrb[0].mxu0 %v392
    %v459 = vpop.f32.mrb[0].mxu0
    %v460 = vadd.f32 %v97, %v459
    %v461 = vpop.f32.mrb[0].mxu0
    %462 = vdwg.mxu0
    %v463 = vtanh.pop %v460
    %464 = vmatprep.subr.mxu0 0.0
    %465 = vmatpush1.msra.mxu0 %v76
    %466 = vmatprep.subr.mxu0 0.0
    %467 = vmatpush1.msra.mxu0 %v77
    %468 = vmatprep.subr.mxu0 0.0
    %469 = vmatpush1.msra.mxu0 %v78
    %470 = vmatprep.subr.mxu0 0.0
    %471 = vmatpush1.msra.mxu0 %v79
    %472 = vmatprep.subr.mxu0 0.0
    %473 = vmatpush1.msra.mxu0 %v80
    %474 = vmatprep.subr.mxu0 0.0
    %475 = vmatpush1.msra.mxu0 %v81
    %476 = vmatprep.subr.mxu0 0.0
    %477 = vmatpush1.msra.mxu0 %v82
    %478 = vmatprep.subr.mxu0 0.0
    %479 = vmatpush1.msra.mxu0 %v83
    %480 = vmatprep.subr.mxu0 0.0
    %481 = vmatpush1.msra.mxu0 %v84
    %482 = vmatprep.subr.mxu0 0.0
    %483 = vmatpush1.msra.mxu0 %v85
    %484 = vmatprep.subr.mxu0 0.0
    %485 = vmatpush1.msra.mxu0 %v86
    %486 = vmatprep.subr.mxu0 0.0
    %487 = vmatpush1.msra.mxu0 %v87
    %488 = vmatprep.subr.mxu0 0.0
    %489 = vmatpush1.msra.mxu0 %v88
    %490 = vmatprep.subr.mxu0 0.0
    %491 = vmatpush1.msra.mxu0 %v89
    %492 = vmatprep.subr.mxu0 0.0
    %493 = vmatpush1.msra.mxu0 %v90
    %494 = vmatprep.subr.mxu0 0.0
    %495 = vmatpush1.msra.mxu0 %v91
    %496 = vmatprep.subr.mxu0 0.0
    %497 = vmatpush1.msra.mxu0 0.0
    %498 = vmatprep.subr.mxu0 0.0
    %499 = vmatpush1.msra.mxu0 0.0
    %500 = vmatprep.subr.mxu0 0.0
    %501 = vmatpush1.msra.mxu0 0.0
    %502 = vmatprep.subr.mxu0 0.0
    %503 = vmatpush1.msra.mxu0 0.0
    %504 = vmatprep.subr.mxu0 0.0
    %505 = vmatpush1.msra.mxu0 0.0
    %506 = vmatprep.subr.mxu0 0.0
    %507 = vmatpush1.msra.mxu0 0.0
    %508 = vmatprep.subr.mxu0 0.0
    %509 = vmatpush1.msra.mxu0 0.0
    %510 = vmatprep.subr.mxu0 0.0
    %511 = vmatpush1.msra.mxu0 0.0
    %512 = vmatprep.subr.mxu0 0.0
    %513 = vmatpush1.msra.mxu0 0.0
    %514 = vmatprep.subr.mxu0 0.0
    %515 = vmatpush1.msra.mxu0 0.0
    %516 = vmatprep.subr.mxu0 0.0
    %517 = vmatpush1.msra.mxu0 0.0
    %518 = vmatprep.subr.mxu0 0.0
    %519 = vmatpush1.msra.mxu0 0.0
    %520 = vmatprep.subr.mxu0 0.0
    %521 = vmatpush1.msra.mxu0 0.0
    %522 = vmatprep.subr.mxu0 0.0
    %523 = vmatpush1.msra.mxu0 0.0
    %524 = vmatprep.subr.mxu0 0.0
    %525 = vmatpush1.msra.mxu0 0.0
    %526 = vmatprep.subr.mxu0 0.0
    %527 = vmatpush1.msra.mxu0 0.0
    %528 = vmatprep.mubr.f32.mxu0 0.0
    %529 = vmatmul.mubr.f32.gmra.mrb[0].mxu0 %v463
    %v530 = vpop.f32.mrb[0].mxu0
    %v531 = vadd.f32 %v104, %v530
    %v532 = vpop.f32.mrb[0].mxu0
    %533 = vdwg.mxu0
    %v534 = vmul.f32 %v531, 0.0625
    %v535 = vadd.f32 %v106, %v534
    %536 = vmatprep.subr.mxu0 0.0
    %537 = vmatpush1.msra.mxu0 %v60
    %538 = vmatprep.subr.mxu0 0.0
    %539 = vmatpush1.msra.mxu0 %v61
    %540 = vmatprep.subr.mxu0 0.0
    %541 = vmatpush1.msra.mxu0 %v62
    %542 = vmatprep.subr.mxu0 0.0
    %543 = vmatpush1.msra.mxu0 %v63
    %544 = vmatprep.subr.mxu0 0.0
    %545 = vmatpush1.msra.mxu0 %v64
    %546 = vmatprep.subr.mxu0 0.0
    %547 = vmatpush1.msra.mxu0 %v65
    %548 = vmatprep.subr.mxu0 0.0
    %549 = vmatpush1.msra.mxu0 %v66
    %550 = vmatprep.subr.mxu0 0.0
    %551 = vmatpush1.msra.mxu0 %v67
    %552 = vmatprep.subr.mxu0 0.0
    %553 = vmatpush1.msra.mxu0 %v68
    %554 = vmatprep.subr.mxu0 0.0
    %555 = vmatpush1.msra.mxu0 %v69
    %556 = vmatprep.subr.mxu0 0.0
    %557 = vmatpush1.msra.mxu0 %v70
    %558 = vmatprep.subr.mxu0 0.0
    %559 = vmatpush1.msra.mxu0 %v71
    %560 = vmatprep.subr.mxu0 0.0
    %561 = vmatpush1.msra.mxu0 %v72
    %562 = vmatprep.subr.mxu0 0.0
    %563 = vmatpush1.msra.mxu0 %v73
    %564 = vmatprep.subr.mxu0 0.0
    %565 = vmatpush1.msra.mxu0 %v74
    %566 = vmatprep.subr.mxu0 0.0
    %567 = vmatpush1.msra.mxu0 %v75
    %568 = vmatprep.subr.mxu0 0.0
    %569 = vmatpush1.msra.mxu0 0.0
    %570 = vmatprep.subr.mxu0 0.0
    %571 = vmatpush1.msra.mxu0 0.0
    %572 = vmatprep.subr.mxu0 0.0
    %573 = vmatpush1.msra.mxu0 0.0
    %574 = vmatprep.subr.mxu0 0.0
    %575 = vmatpush1.msra.mxu0 0.0
    %576 = vmatprep.subr.mxu0 0.0
    %577 = vmatpush1.msra.mxu0 0.0
    %578 = vmatprep.subr.mxu0 0.0
    %579 = vmatpush1.msra.mxu0 0.0
    %580 = vmatprep.subr.mxu0 0.0
    %581 = vmatpush1.msra.mxu0 0.0
    %582 = vmatprep.subr.mxu0 0.0
    %583 = vmatpush1.msra.mxu0 0.0
    %584 = vmatprep.subr.mxu0 0.0
    %585 = vmatpush1.msra.mxu0 0.0
    %586 = vmatprep.subr.mxu0 0.0
    %587 = vmatpush1.msra.mxu0 0.0
    %588 = vmatprep.subr.mxu0 0.0
    %589 = vmatpush1.msra.mxu0 0.0
    %590 = vmatprep.subr.mxu0 0.0
    %591 = vmatpush1.msra.mxu0 0.0
    %592 = vmatprep.subr.mxu0 0.0
    %593 = vmatpush1.msra.mxu0 0.0
    %594 = vmatprep.subr.mxu0 0.0
    %595 = vmatpush1.msra.mxu0 0.0
    %596 = vmatprep.subr.mxu0 0.0
    %597 = vmatpush1.msra.mxu0 0.0
    %598 = vmatprep.subr.mxu0 0.0
    %599 = vmatpush1.msra.mxu0 0.0
    %600 = vmatprep.mubr.f32.mxu0 0.0
    %601 = vmatmul.mubr.f32.gmra.mrb[0].mxu0 %v535
    %v602 = vpop.f32.mrb[0].mxu0
    %v603 = vadd.f32 %v97, %v602
    %v604 = vpop.f32.mrb[0].mxu0
    %605 = vdwg.mxu0
    %v606 = vtanh.pop %v603
    %607 = vmatprep.subr.mxu0 0.0
    %608 = vmatpush1.msra.mxu0 %v76
    %609 = vmatprep.subr.mxu0 0.0
    %610 = vmatpush1.msra.mxu0 %v77
    %611 = vmatprep.subr.mxu0 0.0
    %612 = vmatpush1.msra.mxu0 %v78
    %613 = vmatprep.subr.mxu0 0.0
    %614 = vmatpush1.msra.mxu0 %v79
    %615 = vmatprep.subr.mxu0 0.0
    %616 = vmatpush1.msra.mxu0 %v80
    %617 = vmatprep.subr.mxu0 0.0
    %618 = vmatpush1.msra.mxu0 %v81
    %619 = vmatprep.subr.mxu0 0.0
    %620 = vmatpush1.msra.mxu0 %v82
    %621 = vmatprep.subr.mxu0 0.0
    %622 = vmatpush1.msra.mxu0 %v83
    %623 = vmatprep.subr.mxu0 0.0
    %624 = vmatpush1.msra.mxu0 %v84
    %625 = vmatprep.subr.mxu0 0.0
    %626 = vmatpush1.msra.mxu0 %v85
    %627 = vmatprep.subr.mxu0 0.0
    %628 = vmatpush1.msra.mxu0 %v86
    %629 = vmatprep.subr.mxu0 0.0
    %630 = vmatpush1.msra.mxu0 %v87
    %631 = vmatprep.subr.mxu0 0.0
    %632 = vmatpush1.msra.mxu0 %v88
    %633 = vmatprep.subr.mxu0 0.0
    %634 = vmatpush1.msra.mxu0 %v89
    %635 = vmatprep.subr.mxu0 0.0
    %636 = vmatpush1.msra.mxu0 %v90
    %637 = vmatprep.subr.mxu0 0.0
    %638 = vmatpush1.msra.mxu0 %v91
    %639 = vmatprep.subr.mxu0 0.0
    %640 = vmatpush1.msra.mxu0 0.0
    %641 = vmatprep.subr.mxu0 0.0
    %642 = vmatpush1.msra.mxu0 0.0
    %643 = vmatprep.subr.mxu0 0.0
    %644 = vmatpush1.msra.mxu0 0.0
    %645 = vmatprep.subr.mxu0 0.0
    %646 = vmatpush1.msra.mxu0 0.0
    %647 = vmatprep.subr.mxu0 0.0
    %648 = vmatpush1.msra.mxu0 0.0
    %649 = vmatprep.subr.mxu0 0.0
    %650 = vmatpush1.msra.mxu0 0.0
    %651 = vmatprep.subr.mxu0 0.0
    %652 = vmatpush1.msra.mxu0 0.0
    %653 = vmatprep.subr.mxu0 0.0
    %654 = vmatpush1.msra.mxu0 0.0
    %655 = vmatprep.subr.mxu0 0.0
    %656 = vmatpush1.msra.mxu0 0.0
    %657 = vmatprep.subr.mxu0 0.0
    %658 = vmatpush1.msra.mxu0 0.0
    %659 = vmatprep.subr.mxu0 0.0
    %660 = vmatpush1.msra.mxu0 0.0
    %661 = vmatprep.subr.mxu0 0.0
    %662 = vmatpush1.msra.mxu0 0.0
    %663 = vmatprep.subr.mxu0 0.0
    %664 = vmatpush1.msra.mxu0 0.0
    %665 = vmatprep.subr.mxu0 0.0
    %666 = vmatpush1.msra.mxu0 0.0
    %667 = vmatprep.subr.mxu0 0.0
    %668 = vmatpush1.msra.mxu0 0.0
    %669 = vmatprep.subr.mxu0 0.0
    %670 = vmatpush1.msra.mxu0 0.0
    %671 = vmatprep.mubr.f32.mxu0 0.0
    %672 = vmatmul.mubr.f32.gmra.mrb[0].mxu0 %v606
    %v673 = vpop.f32.mrb[0].mxu0
    %v674 = vadd.f32 %v104, %v673
    %v675 = vpop.f32.mrb[0].mxu0
    %676 = vdwg.mxu0
    %v677 = vadd.f32 %v245, %v674
    %v678 = vadd.f32 %v388, %v531
    %v679 = vmul.f32 %v678, 2.0
    %v680 = vadd.f32 %v677, %v679
    %v681 = vmul.f32 %v680, 0.010416667
    %v682 = vadd.f32 %v106, %v681
    %683 = vmatprep.subr.mxu0 0.0
    %684 = vmatpush1.msra.mxu0 %v60
    %685 = vmatprep.subr.mxu0 0.0
    %686 = vmatpush1.msra.mxu0 %v61
    %687 = vmatprep.subr.mxu0 0.0
    %688 = vmatpush1.msra.mxu0 %v62
    %689 = vmatprep.subr.mxu0 0.0
    %690 = vmatpush1.msra.mxu0 %v63
    %691 = vmatprep.subr.mxu0 0.0
    %692 = vmatpush1.msra.mxu0 %v64
    %693 = vmatprep.subr.mxu0 0.0
    %694 = vmatpush1.msra.mxu0 %v65
    %695 = vmatprep.subr.mxu0 0.0
    %696 = vmatpush1.msra.mxu0 %v66
    %697 = vmatprep.subr.mxu0 0.0
    %698 = vmatpush1.msra.mxu0 %v67
    %699 = vmatprep.subr.mxu0 0.0
    %700 = vmatpush1.msra.mxu0 %v68
    %701 = vmatprep.subr.mxu0 0.0
    %702 = vmatpush1.msra.mxu0 %v69
    %703 = vmatprep.subr.mxu0 0.0
    %704 = vmatpush1.msra.mxu0 %v70
    %705 = vmatprep.subr.mxu0 0.0
    %706 = vmatpush1.msra.mxu0 %v71
    %707 = vmatprep.subr.mxu0 0.0
    %708 = vmatpush1.msra.mxu0 %v72
    %709 = vmatprep.subr.mxu0 0.0
    %710 = vmatpush1.msra.mxu0 %v73
    %711 = vmatprep.subr.mxu0 0.0
    %712 = vmatpush1.msra.mxu0 %v74
    %713 = vmatprep.subr.mxu0 0.0
    %714 = vmatpush1.msra.mxu0 %v75
    %715 = vmatprep.subr.mxu0 0.0
    %716 = vmatpush1.msra.mxu0 0.0
    %717 = vmatprep.subr.mxu0 0.0
    %718 = vmatpush1.msra.mxu0 0.0
    %719 = vmatprep.subr.mxu0 0.0
    %720 = vmatpush1.msra.mxu0 0.0
    %721 = vmatprep.subr.mxu0 0.0
    %722 = vmatpush1.msra.mxu0 0.0
    %723 = vmatprep.subr.mxu0 0.0
    %724 = vmatpush1.msra.mxu0 0.0
    %725 = vmatprep.subr.mxu0 0.0
    %726 = vmatpush1.msra.mxu0 0.0
    %727 = vmatprep.subr.mxu0 0.0
    %728 = vmatpush1.msra.mxu0 0.0
    %729 = vmatprep.subr.mxu0 0.0
    %730 = vmatpush1.msra.mxu0 0.0
    %731 = vmatprep.subr.mxu0 0.0
    %732 = vmatpush1.msra.mxu0 0.0
    %733 = vmatprep.subr.mxu0 0.0
    %734 = vmatpush1.msra.mxu0 0.0
    %735 = vmatprep.subr.mxu0 0.0
    %736 = vmatpush1.msra.mxu0 0.0
    %737 = vmatprep.subr.mxu0 0.0
    %738 = vmatpush1.msra.mxu0 0.0
    %739 = vmatprep.subr.mxu0 0.0
    %740 = vmatpush1.msra.mxu0 0.0
    %741 = vmatprep.subr.mxu0 0.0
    %742 = vmatpush1.msra.mxu0 0.0
    %743 = vmatprep.subr.mxu0 0.0
    %744 = vmatpush1.msra.mxu0 0.0
    %745 = vmatprep.subr.mxu0 0.0
    %746 = vmatpush1.msra.mxu0 0.0
    %747 = vmatprep.mubr.f32.mxu0 0.0
    %748 = vmatmul.mubr.f32.gmra.mrb[0].mxu0 %v682
    %v749 = vpop.f32.mrb[0].mxu0
    %v750 = vadd.f32 %v97, %v749
    %v751 = vpop.f32.mrb[0].mxu0
    %752 = vdwg.mxu0
    %v753 = vtanh.pop %v750
    %754 = vmatprep.subr.mxu0 0.0
    %755 = vmatpush1.msra.mxu0 %v76
    %756 = vmatprep.subr.mxu0 0.0
    %757 = vmatpush1.msra.mxu0 %v77
    %758 = vmatprep.subr.mxu0 0.0
    %759 = vmatpush1.msra.mxu0 %v78
    %760 = vmatprep.subr.mxu0 0.0
    %761 = vmatpush1.msra.mxu0 %v79
    %762 = vmatprep.subr.mxu0 0.0
    %763 = vmatpush1.msra.mxu0 %v80
    %764 = vmatprep.subr.mxu0 0.0
    %765 = vmatpush1.msra.mxu0 %v81
    %766 = vmatprep.subr.mxu0 0.0
    %767 = vmatpush1.msra.mxu0 %v82
    %768 = vmatprep.subr.mxu0 0.0
    %769 = vmatpush1.msra.mxu0 %v83
    %770 = vmatprep.subr.mxu0 0.0
    %771 = vmatpush1.msra.mxu0 %v84
    %772 = vmatprep.subr.mxu0 0.0
    %773 = vmatpush1.msra.mxu0 %v85
    %774 = vmatprep.subr.mxu0 0.0
    %775 = vmatpush1.msra.mxu0 %v86
    %776 = vmatprep.subr.mxu0 0.0
    %777 = vmatpush1.msra.mxu0 %v87
    %778 = vmatprep.subr.mxu0 0.0
    %779 = vmatpush1.msra.mxu0 %v88
    %780 = vmatprep.subr.mxu0 0.0
    %781 = vmatpush1.msra.mxu0 %v89
    %782 = vmatprep.subr.mxu0 0.0
    %783 = vmatpush1.msra.mxu0 %v90
    %784 = vmatprep.subr.mxu0 0.0
    %785 = vmatpush1.msra.mxu0 %v91
    %786 = vmatprep.subr.mxu0 0.0
    %787 = vmatpush1.msra.mxu0 0.0
    %788 = vmatprep.subr.mxu0 0.0
    %789 = vmatpush1.msra.mxu0 0.0
    %790 = vmatprep.subr.mxu0 0.0
    %791 = vmatpush1.msra.mxu0 0.0
    %792 = vmatprep.subr.mxu0 0.0
    %793 = vmatpush1.msra.mxu0 0.0
    %794 = vmatprep.subr.mxu0 0.0
    %795 = vmatpush1.msra.mxu0 0.0
    %796 = vmatprep.subr.mxu0 0.0
    %797 = vmatpush1.msra.mxu0 0.0
    %798 = vmatprep.subr.mxu0 0.0
    %799 = vmatpush1.msra.mxu0 0.0
    %800 = vmatprep.subr.mxu0 0.0
    %801 = vmatpush1.msra.mxu0 0.0
    %802 = vmatprep.subr.mxu0 0.0
    %803 = vmatpush1.msra.mxu0 0.0
    %804 = vmatprep.subr.mxu0 0.0
    %805 = vmatpush1.msra.mxu0 0.0
    %806 = vmatprep.subr.mxu0 0.0
    %807 = vmatpush1.msra.mxu0 0.0
    %808 = vmatprep.subr.mxu0 0.0
    %809 = vmatpush1.msra.mxu0 0.0
    %810 = vmatprep.subr.mxu0 0.0
    %811 = vmatpush1.msra.mxu0 0.0
    %812 = vmatprep.subr.mxu0 0.0
    %813 = vmatpush1.msra.mxu0 0.0
    %814 = vmatprep.subr.mxu0 0.0
    %815 = vmatpush1.msra.mxu0 0.0
    %816 = vmatprep.subr.mxu0 0.0
    %817 = vmatpush1.msra.mxu0 0.0
    %818 = vmatprep.mubr.f32.mxu0 0.0
    %819 = vmatmul.mubr.f32.gmra.mrb[0].mxu0 %v753
    %v820 = vpop.f32.mrb[0].mxu0
    %v821 = vadd.f32 %v104, %v820
    %v822 = vpop.f32.mrb[0].mxu0
    %823 = vdwg.mxu0
    %v824 = vmul.f32 %v821, 0.03125
    %v825 = vadd.f32 %v682, %v824
    %826 = vmatprep.subr.mxu0 0.0
    %827 = vmatpush1.msra.mxu0 %v60
    %828 = vmatprep.subr.mxu0 0.0
    %829 = vmatpush1.msra.mxu0 %v61
    %830 = vmatprep.subr.mxu0 0.0
    %831 = vmatpush1.msra.mxu0 %v62
    %832 = vmatprep.subr.mxu0 0.0
    %833 = vmatpush1.msra.mxu0 %v63
    %834 = vmatprep.subr.mxu0 0.0
    %835 = vmatpush1.msra.mxu0 %v64
    %836 = vmatprep.subr.mxu0 0.0
    %837 = vmatpush1.msra.mxu0 %v65
    %838 = vmatprep.subr.mxu0 0.0
    %839 = vmatpush1.msra.mxu0 %v66
    %840 = vmatprep.subr.mxu0 0.0
    %841 = vmatpush1.msra.mxu0 %v67
    %842 = vmatprep.subr.mxu0 0.0
    %843 = vmatpush1.msra.mxu0 %v68
    %844 = vmatprep.subr.mxu0 0.0
    %845 = vmatpush1.msra.mxu0 %v69
    %846 = vmatprep.subr.mxu0 0.0
    %847 = vmatpush1.msra.mxu0 %v70
    %848 = vmatprep.subr.mxu0 0.0
    %849 = vmatpush1.msra.mxu0 %v71
    %850 = vmatprep.subr.mxu0 0.0
    %851 = vmatpush1.msra.mxu0 %v72
    %852 = vmatprep.subr.mxu0 0.0
    %853 = vmatpush1.msra.mxu0 %v73
    %854 = vmatprep.subr.mxu0 0.0
    %855 = vmatpush1.msra.mxu0 %v74
    %856 = vmatprep.subr.mxu0 0.0
    %857 = vmatpush1.msra.mxu0 %v75
    %858 = vmatprep.subr.mxu0 0.0
    %859 = vmatpush1.msra.mxu0 0.0
    %860 = vmatprep.subr.mxu0 0.0
    %861 = vmatpush1.msra.mxu0 0.0
    %862 = vmatprep.subr.mxu0 0.0
    %863 = vmatpush1.msra.mxu0 0.0
    %864 = vmatprep.subr.mxu0 0.0
    %865 = vmatpush1.msra.mxu0 0.0
    %866 = vmatprep.subr.mxu0 0.0
    %867 = vmatpush1.msra.mxu0 0.0
    %868 = vmatprep.subr.mxu0 0.0
    %869 = vmatpush1.msra.mxu0 0.0
    %870 = vmatprep.subr.mxu0 0.0
    %871 = vmatpush1.msra.mxu0 0.0
    %872 = vmatprep.subr.mxu0 0.0
    %873 = vmatpush1.msra.mxu0 0.0
    %874 = vmatprep.subr.mxu0 0.0
    %875 = vmatpush1.msra.mxu0 0.0
    %876 = vmatprep.subr.mxu0 0.0
    %877 = vmatpush1.msra.mxu0 0.0
    %878 = vmatprep.subr.mxu0 0.0
    %879 = vmatpush1.msra.mxu0 0.0
    %880 = vmatprep.subr.mxu0 0.0
    %881 = vmatpush1.msra.mxu0 0.0
    %882 = vmatprep.subr.mxu0 0.0
    %883 = vmatpush1.msra.mxu0 0.0
    %884 = vmatprep.subr.mxu0 0.0
    %885 = vmatpush1.msra.mxu0 0.0
    %886 = vmatprep.subr.mxu0 0.0
    %887 = vmatpush1.msra.mxu0 0.0
    %888 = vmatprep.subr.mxu0 0.0
    %889 = vmatpush1.msra.mxu0 0.0
    %890 = vmatprep.mubr.f32.mxu0 0.0
    %891 = vmatmul.mubr.f32.gmra.mrb[0].mxu0 %v825
    %v892 = vpop.f32.mrb[0].mxu0
    %v893 = vadd.f32 %v97, %v892
    %v894 = vpop.f32.mrb[0].mxu0
    %895 = vdwg.mxu0
    %v896 = vtanh.pop %v893
    %897 = vmatprep.subr.mxu0 0.0
    %898 = vmatpush1.msra.mxu0 %v76
    %899 = vmatprep.subr.mxu0 0.0
    %900 = vmatpush1.msra.mxu0 %v77
    %901 = vmatprep.subr.mxu0 0.0
    %902 = vmatpush1.msra.mxu0 %v78
    %903 = vmatprep.subr.mxu0 0.0
    %904 = vmatpush1.msra.mxu0 %v79
    %905 = vmatprep.subr.mxu0 0.0
    %906 = vmatpush1.msra.mxu0 %v80
    %907 = vmatprep.subr.mxu0 0.0
    %908 = vmatpush1.msra.mxu0 %v81
    %909 = vmatprep.subr.mxu0 0.0
    %910 = vmatpush1.msra.mxu0 %v82
    %911 = vmatprep.subr.mxu0 0.0
    %912 = vmatpush1.msra.mxu0 %v83
    %913 = vmatprep.subr.mxu0 0.0
    %914 = vmatpush1.msra.mxu0 %v84
    %915 = vmatprep.subr.mxu0 0.0
    %916 = vmatpush1.msra.mxu0 %v85
    %917 = vmatprep.subr.mxu0 0.0
    %918 = vmatpush1.msra.mxu0 %v86
    %919 = vmatprep.subr.mxu0 0.0
    %920 = vmatpush1.msra.mxu0 %v87
    %921 = vmatprep.subr.mxu0 0.0
    %922 = vmatpush1.msra.mxu0 %v88
    %923 = vmatprep.subr.mxu0 0.0
    %924 = vmatpush1.msra.mxu0 %v89
    %925 = vmatprep.subr.mxu0 0.0
    %926 = vmatpush1.msra.mxu0 %v90
    %927 = vmatprep.subr.mxu0 0.0
    %928 = vmatpush1.msra.mxu0 %v91
    %929 = vmatprep.subr.mxu0 0.0
    %930 = vmatpush1.msra.mxu0 0.0
    %931 = vmatprep.subr.mxu0 0.0
    %932 = vmatpush1.msra.mxu0 0.0
    %933 = vmatprep.subr.mxu0 0.0
    %934 = vmatpush1.msra.mxu0 0.0
    %935 = vmatprep.subr.mxu0 0.0
    %936 = vmatpush1.msra.mxu0 0.0
    %937 = vmatprep.subr.mxu0 0.0
    %938 = vmatpush1.msra.mxu0 0.0
    %939 = vmatprep.subr.mxu0 0.0
    %940 = vmatpush1.msra.mxu0 0.0
    %941 = vmatprep.subr.mxu0 0.0
    %942 = vmatpush1.msra.mxu0 0.0
    %943 = vmatprep.subr.mxu0 0.0
    %944 = vmatpush1.msra.mxu0 0.0
    %945 = vmatprep.subr.mxu0 0.0
    %946 = vmatpush1.msra.mxu0 0.0
    %947 = vmatprep.subr.mxu0 0.0
    %948 = vmatpush1.msra.mxu0 0.0
    %949 = vmatprep.subr.mxu0 0.0
    %950 = vmatpush1.msra.mxu0 0.0
    %951 = vmatprep.subr.mxu0 0.0
    %952 = vmatpush1.msra.mxu0 0.0
    %953 = vmatprep.subr.mxu0 0.0
    %954 = vmatpush1.msra.mxu0 0.0
    %955 = vmatprep.subr.mxu0 0.0
    %956 = vmatpush1.msra.mxu0 0.0
    %957 = vmatprep.subr.mxu0 0.0
    %958 = vmatpush1.msra.mxu0 0.0
    %959 = vmatprep.subr.mxu0 0.0
    %960 = vmatpush1.msra.mxu0 0.0
    %961 = vmatprep.mubr.f32.mxu0 0.0
    %962 = vmatmul.mubr.f32.gmra.mrb[0].mxu0 %v896
    %v963 = vpop.f32.mrb[0].mxu0
    %v964 = vadd.f32 %v104, %v963
    %v965 = vpop.f32.mrb[0].mxu0
    %966 = vdwg.mxu0
    %v967 = vmul.f32 %v964, 0.03125
    %v968 = vadd.f32 %v682, %v967
    %969 = vmatprep.subr.mxu0 0.0
    %970 = vmatpush1.msra.mxu0 %v60
    %971 = vmatprep.subr.mxu0 0.0
    %972 = vmatpush1.msra.mxu0 %v61
    %973 = vmatprep.subr.mxu0 0.0
    %974 = vmatpush1.msra.mxu0 %v62
    %975 = vmatprep.subr.mxu0 0.0
    %976 = vmatpush1.msra.mxu0 %v63
    %977 = vmatprep.subr.mxu0 0.0
    %978 = vmatpush1.msra.mxu0 %v64
    %979 = vmatprep.subr.mxu0 0.0
    %980 = vmatpush1.msra.mxu0 %v65
    %981 = vmatprep.subr.mxu0 0.0
    %982 = vmatpush1.msra.mxu0 %v66
    %983 = vmatprep.subr.mxu0 0.0
    %984 = vmatpush1.msra.mxu0 %v67
    %985 = vmatprep.subr.mxu0 0.0
    %986 = vmatpush1.msra.mxu0 %v68
    %987 = vmatprep.subr.mxu0 0.0
    %988 = vmatpush1.msra.mxu0 %v69
    %989 = vmatprep.subr.mxu0 0.0
    %990 = vmatpush1.msra.mxu0 %v70
    %991 = vmatprep.subr.mxu0 0.0
    %992 = vmatpush1.msra.mxu0 %v71
    %993 = vmatprep.subr.mxu0 0.0
    %994 = vmatpush1.msra.mxu0 %v72
    %995 = vmatprep.subr.mxu0 0.0
    %996 = vmatpush1.msra.mxu0 %v73
    %997 = vmatprep.subr.mxu0 0.0
    %998 = vmatpush1.msra.mxu0 %v74
    %999 = vmatprep.subr.mxu0 0.0
    %1000 = vmatpush1.msra.mxu0 %v75
    %1001 = vmatprep.subr.mxu0 0.0
    %1002 = vmatpush1.msra.mxu0 0.0
    %1003 = vmatprep.subr.mxu0 0.0
    %1004 = vmatpush1.msra.mxu0 0.0
    %1005 = vmatprep.subr.mxu0 0.0
    %1006 = vmatpush1.msra.mxu0 0.0
    %1007 = vmatprep.subr.mxu0 0.0
    %1008 = vmatpush1.msra.mxu0 0.0
    %1009 = vmatprep.subr.mxu0 0.0
    %1010 = vmatpush1.msra.mxu0 0.0
    %1011 = vmatprep.subr.mxu0 0.0
    %1012 = vmatpush1.msra.mxu0 0.0
    %1013 = vmatprep.subr.mxu0 0.0
    %1014 = vmatpush1.msra.mxu0 0.0
    %1015 = vmatprep.subr.mxu0 0.0
    %1016 = vmatpush1.msra.mxu0 0.0
    %1017 = vmatprep.subr.mxu0 0.0
    %1018 = vmatpush1.msra.mxu0 0.0
    %1019 = vmatprep.subr.mxu0 0.0
    %1020 = vmatpush1.msra.mxu0 0.0
    %1021 = vmatprep.subr.mxu0 0.0
    %1022 = vmatpush1.msra.mxu0 0.0
    %1023 = vmatprep.subr.mxu0 0.0
    %1024 = vmatpush1.msra.mxu0 0.0
    %1025 = vmatprep.subr.mxu0 0.0
    %1026 = vmatpush1.msra.mxu0 0.0
    %1027 = vmatprep.subr.mxu0 0.0
    %1028 = vmatpush1.msra.mxu0 0.0
    %1029 = vmatprep.subr.mxu0 0.0
    %1030 = vmatpush1.msra.mxu0 0.0
    %1031 = vmatprep.subr.mxu0 0.0
    %1032 = vmatpush1.msra.mxu0 0.0
    %1033 = vmatprep.mubr.f32.mxu0 0.0
    %1034 = vmatmul.mubr.f32.gmra.mrb[0].mxu0 %v968
    %v1035 = vpop.f32.mrb[0].mxu0
    %v1036 = vadd.f32 %v97, %v1035
    %v1037 = vpop.f32.mrb[0].mxu0
    %1038 = vdwg.mxu0
    %v1039 = vtanh.pop %v1036
    %1040 = vmatprep.subr.mxu0 0.0
    %1041 = vmatpush1.msra.mxu0 %v76
    %1042 = vmatprep.subr.mxu0 0.0
    %1043 = vmatpush1.msra.mxu0 %v77
    %1044 = vmatprep.subr.mxu0 0.0
    %1045 = vmatpush1.msra.mxu0 %v78
    %1046 = vmatprep.subr.mxu0 0.0
    %1047 = vmatpush1.msra.mxu0 %v79
    %1048 = vmatprep.subr.mxu0 0.0
    %1049 = vmatpush1.msra.mxu0 %v80
    %1050 = vmatprep.subr.mxu0 0.0
    %1051 = vmatpush1.msra.mxu0 %v81
    %1052 = vmatprep.subr.mxu0 0.0
    %1053 = vmatpush1.msra.mxu0 %v82
    %1054 = vmatprep.subr.mxu0 0.0
    %1055 = vmatpush1.msra.mxu0 %v83
    %1056 = vmatprep.subr.mxu0 0.0
    %1057 = vmatpush1.msra.mxu0 %v84
    %1058 = vmatprep.subr.mxu0 0.0
    %1059 = vmatpush1.msra.mxu0 %v85
    %1060 = vmatprep.subr.mxu0 0.0
    %1061 = vmatpush1.msra.mxu0 %v86
    %1062 = vmatprep.subr.mxu0 0.0
    %1063 = vmatpush1.msra.mxu0 %v87
    %1064 = vmatprep.subr.mxu0 0.0
    %1065 = vmatpush1.msra.mxu0 %v88
    %1066 = vmatprep.subr.mxu0 0.0
    %1067 = vmatpush1.msra.mxu0 %v89
    %1068 = vmatprep.subr.mxu0 0.0
    %1069 = vmatpush1.msra.mxu0 %v90
    %1070 = vmatprep.subr.mxu0 0.0
    %1071 = vmatpush1.msra.mxu0 %v91
    %1072 = vmatprep.subr.mxu0 0.0
    %1073 = vmatpush1.msra.mxu0 0.0
    %1074 = vmatprep.subr.mxu0 0.0
    %1075 = vmatpush1.msra.mxu0 0.0
    %1076 = vmatprep.subr.mxu0 0.0
    %1077 = vmatpush1.msra.mxu0 0.0
    %1078 = vmatprep.subr.mxu0 0.0
    %1079 = vmatpush1.msra.mxu0 0.0
    %1080 = vmatprep.subr.mxu0 0.0
    %1081 = vmatpush1.msra.mxu0 0.0
    %1082 = vmatprep.subr.mxu0 0.0
    %1083 = vmatpush1.msra.mxu0 0.0
    %1084 = vmatprep.subr.mxu0 0.0
    %1085 = vmatpush1.msra.mxu0 0.0
    %1086 = vmatprep.subr.mxu0 0.0
    %1087 = vmatpush1.msra.mxu0 0.0
    %1088 = vmatprep.subr.mxu0 0.0
    %1089 = vmatpush1.msra.mxu0 0.0
    %1090 = vmatprep.subr.mxu0 0.0
    %1091 = vmatpush1.msra.mxu0 0.0
    %1092 = vmatprep.subr.mxu0 0.0
    %1093 = vmatpush1.msra.mxu0 0.0
    %1094 = vmatprep.subr.mxu0 0.0
    %1095 = vmatpush1.msra.mxu0 0.0
    %1096 = vmatprep.subr.mxu0 0.0
    %1097 = vmatpush1.msra.mxu0 0.0
    %1098 = vmatprep.subr.mxu0 0.0
    %1099 = vmatpush1.msra.mxu0 0.0
    %1100 = vmatprep.subr.mxu0 0.0
    %1101 = vmatpush1.msra.mxu0 0.0
    %1102 = vmatprep.subr.mxu0 0.0
    %1103 = vmatpush1.msra.mxu0 0.0
    %1104 = vmatprep.mubr.f32.mxu0 0.0
    %1105 = vmatmul.mubr.f32.gmra.mrb[0].mxu0 %v1039
    %v1106 = vpop.f32.mrb[0].mxu0
    %v1107 = vadd.f32 %v104, %v1106
    %v1108 = vpop.f32.mrb[0].mxu0
    %1109 = vdwg.mxu0
    %v1110 = vmul.f32 %v1107, 0.0625
    %v1111 = vadd.f32 %v682, %v1110
    %1112 = vmatprep.subr.mxu0 0.0
    %1113 = vmatpush1.msra.mxu0 %v60
    %1114 = vmatprep.subr.mxu0 0.0
    %1115 = vmatpush1.msra.mxu0 %v61
    %1116 = vmatprep.subr.mxu0 0.0
    %1117 = vmatpush1.msra.mxu0 %v62
    %1118 = vmatprep.subr.mxu0 0.0
    %1119 = vmatpush1.msra.mxu0 %v63
    %1120 = vmatprep.subr.mxu0 0.0
    %1121 = vmatpush1.msra.mxu0 %v64
    %1122 = vmatprep.subr.mxu0 0.0
    %1123 = vmatpush1.msra.mxu0 %v65
    %1124 = vmatprep.subr.mxu0 0.0
    %1125 = vmatpush1.msra.mxu0 %v66
    %1126 = vmatprep.subr.mxu0 0.0
    %1127 = vmatpush1.msra.mxu0 %v67
    %1128 = vmatprep.subr.mxu0 0.0
    %1129 = vmatpush1.msra.mxu0 %v68
    %1130 = vmatprep.subr.mxu0 0.0
    %1131 = vmatpush1.msra.mxu0 %v69
    %1132 = vmatprep.subr.mxu0 0.0
    %1133 = vmatpush1.msra.mxu0 %v70
    %1134 = vmatprep.subr.mxu0 0.0
    %1135 = vmatpush1.msra.mxu0 %v71
    %1136 = vmatprep.subr.mxu0 0.0
    %1137 = vmatpush1.msra.mxu0 %v72
    %1138 = vmatprep.subr.mxu0 0.0
    %1139 = vmatpush1.msra.mxu0 %v73
    %1140 = vmatprep.subr.mxu0 0.0
    %1141 = vmatpush1.msra.mxu0 %v74
    %1142 = vmatprep.subr.mxu0 0.0
    %1143 = vmatpush1.msra.mxu0 %v75
    %1144 = vmatprep.subr.mxu0 0.0
    %1145 = vmatpush1.msra.mxu0 0.0
    %1146 = vmatprep.subr.mxu0 0.0
    %1147 = vmatpush1.msra.mxu0 0.0
    %1148 = vmatprep.subr.mxu0 0.0
    %1149 = vmatpush1.msra.mxu0 0.0
    %1150 = vmatprep.subr.mxu0 0.0
    %1151 = vmatpush1.msra.mxu0 0.0
    %1152 = vmatprep.subr.mxu0 0.0
    %1153 = vmatpush1.msra.mxu0 0.0
    %1154 = vmatprep.subr.mxu0 0.0
    %1155 = vmatpush1.msra.mxu0 0.0
    %1156 = vmatprep.subr.mxu0 0.0
    %1157 = vmatpush1.msra.mxu0 0.0
    %1158 = vmatprep.subr.mxu0 0.0
    %1159 = vmatpush1.msra.mxu0 0.0
    %1160 = vmatprep.subr.mxu0 0.0
    %1161 = vmatpush1.msra.mxu0 0.0
    %1162 = vmatprep.subr.mxu0 0.0
    %1163 = vmatpush1.msra.mxu0 0.0
    %1164 = vmatprep.subr.mxu0 0.0
    %1165 = vmatpush1.msra.mxu0 0.0
    %1166 = vmatprep.subr.mxu0 0.0
    %1167 = vmatpush1.msra.mxu0 0.0
    %1168 = vmatprep.subr.mxu0 0.0
    %1169 = vmatpush1.msra.mxu0 0.0
    %1170 = vmatprep.subr.mxu0 0.0
    %1171 = vmatpush1.msra.mxu0 0.0
    %1172 = vmatprep.subr.mxu0 0.0
    %1173 = vmatpush1.msra.mxu0 0.0
    %1174 = vmatprep.subr.mxu0 0.0
    %1175 = vmatpush1.msra.mxu0 0.0
    %1176 = vmatprep.mubr.f32.mxu0 0.0
    %1177 = vmatmul.mubr.f32.gmra.mrb[0].mxu0 %v1111
    %v1178 = vpop.f32.mrb[0].mxu0
    %v1179 = vadd.f32 %v97, %v1178
    %v1180 = vpop.f32.mrb[0].mxu0
    %1181 = vdwg.mxu0
    %v1182 = vtanh.pop %v1179
    %1183 = vmatprep.subr.mxu0 0.0
    %1184 = vmatpush1.msra.mxu0 %v76
    %1185 = vmatprep.subr.mxu0 0.0
    %1186 = vmatpush1.msra.mxu0 %v77
    %1187 = vmatprep.subr.mxu0 0.0
    %1188 = vmatpush1.msra.mxu0 %v78
    %1189 = vmatprep.subr.mxu0 0.0
    %1190 = vmatpush1.msra.mxu0 %v79
    %1191 = vmatprep.subr.mxu0 0.0
    %1192 = vmatpush1.msra.mxu0 %v80
    %1193 = vmatprep.subr.mxu0 0.0
    %1194 = vmatpush1.msra.mxu0 %v81
    %1195 = vmatprep.subr.mxu0 0.0
    %1196 = vmatpush1.msra.mxu0 %v82
    %1197 = vmatprep.subr.mxu0 0.0
    %1198 = vmatpush1.msra.mxu0 %v83
    %1199 = vmatprep.subr.mxu0 0.0
    %1200 = vmatpush1.msra.mxu0 %v84
    %1201 = vmatprep.subr.mxu0 0.0
    %1202 = vmatpush1.msra.mxu0 %v85
    %1203 = vmatprep.subr.mxu0 0.0
    %1204 = vmatpush1.msra.mxu0 %v86
    %1205 = vmatprep.subr.mxu0 0.0
    %1206 = vmatpush1.msra.mxu0 %v87
    %1207 = vmatprep.subr.mxu0 0.0
    %1208 = vmatpush1.msra.mxu0 %v88
    %1209 = vmatprep.subr.mxu0 0.0
    %1210 = vmatpush1.msra.mxu0 %v89
    %1211 = vmatprep.subr.mxu0 0.0
    %1212 = vmatpush1.msra.mxu0 %v90
    %1213 = vmatprep.subr.mxu0 0.0
    %1214 = vmatpush1.msra.mxu0 %v91
    %1215 = vmatprep.subr.mxu0 0.0
    %1216 = vmatpush1.msra.mxu0 0.0
    %1217 = vmatprep.subr.mxu0 0.0
    %1218 = vmatpush1.msra.mxu0 0.0
    %1219 = vmatprep.subr.mxu0 0.0
    %1220 = vmatpush1.msra.mxu0 0.0
    %1221 = vmatprep.subr.mxu0 0.0
    %1222 = vmatpush1.msra.mxu0 0.0
    %1223 = vmatprep.subr.mxu0 0.0
    %1224 = vmatpush1.msra.mxu0 0.0
    %1225 = vmatprep.subr.mxu0 0.0
    %1226 = vmatpush1.msra.mxu0 0.0
    %1227 = vmatprep.subr.mxu0 0.0
    %1228 = vmatpush1.msra.mxu0 0.0
    %1229 = vmatprep.subr.mxu0 0.0
    %1230 = vmatpush1.msra.mxu0 0.0
    %1231 = vmatprep.subr.mxu0 0.0
    %1232 = vmatpush1.msra.mxu0 0.0
    %1233 = vmatprep.subr.mxu0 0.0
    %1234 = vmatpush1.msra.mxu0 0.0
    %1235 = vmatprep.subr.mxu0 0.0
    %1236 = vmatpush1.msra.mxu0 0.0
    %1237 = vmatprep.subr.mxu0 0.0
    %1238 = vmatpush1.msra.mxu0 0.0
    %1239 = vmatprep.subr.mxu0 0.0
    %1240 = vmatpush1.msra.mxu0 0.0
    %1241 = vmatprep.subr.mxu0 0.0
    %1242 = vmatpush1.msra.mxu0 0.0
    %1243 = vmatprep.subr.mxu0 0.0
    %1244 = vmatpush1.msra.mxu0 0.0
    %1245 = vmatprep.subr.mxu0 0.0
    %1246 = vmatpush1.msra.mxu0 0.0
    %1247 = vmatprep.mubr.f32.mxu0 0.0
    %1248 = vmatmul.mubr.f32.gmra.mrb[0].mxu0 %v1182
    %v1249 = vpop.f32.mrb[0].mxu0
    %v1250 = vadd.f32 %v104, %v1249
    %v1251 = vpop.f32.mrb[0].mxu0
    %1252 = vdwg.mxu0
    %v1253 = vadd.f32 %v821, %v1250
    %v1254 = vadd.f32 %v964, %v1107
    %v1255 = vmul.f32 %v1254, 2.0
    %v1256 = vadd.f32 %v1253, %v1255
    %v1257 = vmul.f32 %v1256, 0.010416667
    %v1258 = vadd.f32 %v682, %v1257
    %1259 = vmatprep.subr.mxu0 0.0
    %1260 = vmatpush1.msra.mxu0 %v60
    %1261 = vmatprep.subr.mxu0 0.0
    %1262 = vmatpush1.msra.mxu0 %v61
    %1263 = vmatprep.subr.mxu0 0.0
    %1264 = vmatpush1.msra.mxu0 %v62
    %1265 = vmatprep.subr.mxu0 0.0
    %1266 = vmatpush1.msra.mxu0 %v63
    %1267 = vmatprep.subr.mxu0 0.0
    %1268 = vmatpush1.msra.mxu0 %v64
    %1269 = vmatprep.subr.mxu0 0.0
    %1270 = vmatpush1.msra.mxu0 %v65
    %1271 = vmatprep.subr.mxu0 0.0
    %1272 = vmatpush1.msra.mxu0 %v66
    %1273 = vmatprep.subr.mxu0 0.0
    %1274 = vmatpush1.msra.mxu0 %v67
    %1275 = vmatprep.subr.mxu0 0.0
    %1276 = vmatpush1.msra.mxu0 %v68
    %1277 = vmatprep.subr.mxu0 0.0
    %1278 = vmatpush1.msra.mxu0 %v69
    %1279 = vmatprep.subr.mxu0 0.0
    %1280 = vmatpush1.msra.mxu0 %v70
    %1281 = vmatprep.subr.mxu0 0.0
    %1282 = vmatpush1.msra.mxu0 %v71
    %1283 = vmatprep.subr.mxu0 0.0
    %1284 = vmatpush1.msra.mxu0 %v72
    %1285 = vmatprep.subr.mxu0 0.0
    %1286 = vmatpush1.msra.mxu0 %v73
    %1287 = vmatprep.subr.mxu0 0.0
    %1288 = vmatpush1.msra.mxu0 %v74
    %1289 = vmatprep.subr.mxu0 0.0
    %1290 = vmatpush1.msra.mxu0 %v75
    %1291 = vmatprep.subr.mxu0 0.0
    %1292 = vmatpush1.msra.mxu0 0.0
    %1293 = vmatprep.subr.mxu0 0.0
    %1294 = vmatpush1.msra.mxu0 0.0
    %1295 = vmatprep.subr.mxu0 0.0
    %1296 = vmatpush1.msra.mxu0 0.0
    %1297 = vmatprep.subr.mxu0 0.0
    %1298 = vmatpush1.msra.mxu0 0.0
    %1299 = vmatprep.subr.mxu0 0.0
    %1300 = vmatpush1.msra.mxu0 0.0
    %1301 = vmatprep.subr.mxu0 0.0
    %1302 = vmatpush1.msra.mxu0 0.0
    %1303 = vmatprep.subr.mxu0 0.0
    %1304 = vmatpush1.msra.mxu0 0.0
    %1305 = vmatprep.subr.mxu0 0.0
    %1306 = vmatpush1.msra.mxu0 0.0
    %1307 = vmatprep.subr.mxu0 0.0
    %1308 = vmatpush1.msra.mxu0 0.0
    %1309 = vmatprep.subr.mxu0 0.0
    %1310 = vmatpush1.msra.mxu0 0.0
    %1311 = vmatprep.subr.mxu0 0.0
    %1312 = vmatpush1.msra.mxu0 0.0
    %1313 = vmatprep.subr.mxu0 0.0
    %1314 = vmatpush1.msra.mxu0 0.0
    %1315 = vmatprep.subr.mxu0 0.0
    %1316 = vmatpush1.msra.mxu0 0.0
    %1317 = vmatprep.subr.mxu0 0.0
    %1318 = vmatpush1.msra.mxu0 0.0
    %1319 = vmatprep.subr.mxu0 0.0
    %1320 = vmatpush1.msra.mxu0 0.0
    %1321 = vmatprep.subr.mxu0 0.0
    %1322 = vmatpush1.msra.mxu0 0.0
    %1323 = vmatprep.mubr.f32.mxu0 0.0
    %1324 = vmatmul.mubr.f32.gmra.mrb[0].mxu0 %v1258
    %v1325 = vpop.f32.mrb[0].mxu0
    %v1326 = vadd.f32 %v97, %v1325
    %v1327 = vpop.f32.mrb[0].mxu0
    %1328 = vdwg.mxu0
    %v1329 = vtanh.pop %v1326
    %1330 = vmatprep.subr.mxu0 0.0
    %1331 = vmatpush1.msra.mxu0 %v76
    %1332 = vmatprep.subr.mxu0 0.0
    %1333 = vmatpush1.msra.mxu0 %v77
    %1334 = vmatprep.subr.mxu0 0.0
    %1335 = vmatpush1.msra.mxu0 %v78
    %1336 = vmatprep.subr.mxu0 0.0
    %1337 = vmatpush1.msra.mxu0 %v79
    %1338 = vmatprep.subr.mxu0 0.0
    %1339 = vmatpush1.msra.mxu0 %v80
    %1340 = vmatprep.subr.mxu0 0.0
    %1341 = vmatpush1.msra.mxu0 %v81
    %1342 = vmatprep.subr.mxu0 0.0
    %1343 = vmatpush1.msra.mxu0 %v82
    %1344 = vmatprep.subr.mxu0 0.0
    %1345 = vmatpush1.msra.mxu0 %v83
    %1346 = vmatprep.subr.mxu0 0.0
    %1347 = vmatpush1.msra.mxu0 %v84
    %1348 = vmatprep.subr.mxu0 0.0
    %1349 = vmatpush1.msra.mxu0 %v85
    %1350 = vmatprep.subr.mxu0 0.0
    %1351 = vmatpush1.msra.mxu0 %v86
    %1352 = vmatprep.subr.mxu0 0.0
    %1353 = vmatpush1.msra.mxu0 %v87
    %1354 = vmatprep.subr.mxu0 0.0
    %1355 = vmatpush1.msra.mxu0 %v88
    %1356 = vmatprep.subr.mxu0 0.0
    %1357 = vmatpush1.msra.mxu0 %v89
    %1358 = vmatprep.subr.mxu0 0.0
    %1359 = vmatpush1.msra.mxu0 %v90
    %1360 = vmatprep.subr.mxu0 0.0
    %1361 = vmatpush1.msra.mxu0 %v91
    %1362 = vmatprep.subr.mxu0 0.0
    %1363 = vmatpush1.msra.mxu0 0.0
    %1364 = vmatprep.subr.mxu0 0.0
    %1365 = vmatpush1.msra.mxu0 0.0
    %1366 = vmatprep.subr.mxu0 0.0
    %1367 = vmatpush1.msra.mxu0 0.0
    %1368 = vmatprep.subr.mxu0 0.0
    %1369 = vmatpush1.msra.mxu0 0.0
    %1370 = vmatprep.subr.mxu0 0.0
    %1371 = vmatpush1.msra.mxu0 0.0
    %1372 = vmatprep.subr.mxu0 0.0
    %1373 = vmatpush1.msra.mxu0 0.0
    %1374 = vmatprep.subr.mxu0 0.0
    %1375 = vmatpush1.msra.mxu0 0.0
    %1376 = vmatprep.subr.mxu0 0.0
    %1377 = vmatpush1.msra.mxu0 0.0
    %1378 = vmatprep.subr.mxu0 0.0
    %1379 = vmatpush1.msra.mxu0 0.0
    %1380 = vmatprep.subr.mxu0 0.0
    %1381 = vmatpush1.msra.mxu0 0.0
    %1382 = vmatprep.subr.mxu0 0.0
    %1383 = vmatpush1.msra.mxu0 0.0
    %1384 = vmatprep.subr.mxu0 0.0
    %1385 = vmatpush1.msra.mxu0 0.0
    %1386 = vmatprep.subr.mxu0 0.0
    %1387 = vmatpush1.msra.mxu0 0.0
    %1388 = vmatprep.subr.mxu0 0.0
    %1389 = vmatpush1.msra.mxu0 0.0
    %1390 = vmatprep.subr.mxu0 0.0
    %1391 = vmatpush1.msra.mxu0 0.0
    %1392 = vmatprep.subr.mxu0 0.0
    %1393 = vmatpush1.msra.mxu0 0.0
    %1394 = vmatprep.mubr.f32.mxu0 0.0
    %1395 = vmatmul.mubr.f32.gmra.mrb[0].mxu0 %v1329
    %v1396 = vpop.f32.mrb[0].mxu0
    %v1397 = vadd.f32 %v104, %v1396
    %v1398 = vpop.f32.mrb[0].mxu0
    %1399 = vdwg.mxu0
    %v1400 = vmul.f32 %v1397, 0.03125
    %v1401 = vadd.f32 %v1258, %v1400
    %1402 = vmatprep.subr.mxu0 0.0
    %1403 = vmatpush1.msra.mxu0 %v60
    %1404 = vmatprep.subr.mxu0 0.0
    %1405 = vmatpush1.msra.mxu0 %v61
    %1406 = vmatprep.subr.mxu0 0.0
    %1407 = vmatpush1.msra.mxu0 %v62
    %1408 = vmatprep.subr.mxu0 0.0
    %1409 = vmatpush1.msra.mxu0 %v63
    %1410 = vmatprep.subr.mxu0 0.0
    %1411 = vmatpush1.msra.mxu0 %v64
    %1412 = vmatprep.subr.mxu0 0.0
    %1413 = vmatpush1.msra.mxu0 %v65
    %1414 = vmatprep.subr.mxu0 0.0
    %1415 = vmatpush1.msra.mxu0 %v66
    %1416 = vmatprep.subr.mxu0 0.0
    %1417 = vmatpush1.msra.mxu0 %v67
    %1418 = vmatprep.subr.mxu0 0.0
    %1419 = vmatpush1.msra.mxu0 %v68
    %1420 = vmatprep.subr.mxu0 0.0
    %1421 = vmatpush1.msra.mxu0 %v69
    %1422 = vmatprep.subr.mxu0 0.0
    %1423 = vmatpush1.msra.mxu0 %v70
    %1424 = vmatprep.subr.mxu0 0.0
    %1425 = vmatpush1.msra.mxu0 %v71
    %1426 = vmatprep.subr.mxu0 0.0
    %1427 = vmatpush1.msra.mxu0 %v72
    %1428 = vmatprep.subr.mxu0 0.0
    %1429 = vmatpush1.msra.mxu0 %v73
    %1430 = vmatprep.subr.mxu0 0.0
    %1431 = vmatpush1.msra.mxu0 %v74
    %1432 = vmatprep.subr.mxu0 0.0
    %1433 = vmatpush1.msra.mxu0 %v75
    %1434 = vmatprep.subr.mxu0 0.0
    %1435 = vmatpush1.msra.mxu0 0.0
    %1436 = vmatprep.subr.mxu0 0.0
    %1437 = vmatpush1.msra.mxu0 0.0
    %1438 = vmatprep.subr.mxu0 0.0
    %1439 = vmatpush1.msra.mxu0 0.0
    %1440 = vmatprep.subr.mxu0 0.0
    %1441 = vmatpush1.msra.mxu0 0.0
    %1442 = vmatprep.subr.mxu0 0.0
    %1443 = vmatpush1.msra.mxu0 0.0
    %1444 = vmatprep.subr.mxu0 0.0
    %1445 = vmatpush1.msra.mxu0 0.0
    %1446 = vmatprep.subr.mxu0 0.0
    %1447 = vmatpush1.msra.mxu0 0.0
    %1448 = vmatprep.subr.mxu0 0.0
    %1449 = vmatpush1.msra.mxu0 0.0
    %1450 = vmatprep.subr.mxu0 0.0
    %1451 = vmatpush1.msra.mxu0 0.0
    %1452 = vmatprep.subr.mxu0 0.0
    %1453 = vmatpush1.msra.mxu0 0.0
    %1454 = vmatprep.subr.mxu0 0.0
    %1455 = vmatpush1.msra.mxu0 0.0
    %1456 = vmatprep.subr.mxu0 0.0
    %1457 = vmatpush1.msra.mxu0 0.0
    %1458 = vmatprep.subr.mxu0 0.0
    %1459 = vmatpush1.msra.mxu0 0.0
    %1460 = vmatprep.subr.mxu0 0.0
    %1461 = vmatpush1.msra.mxu0 0.0
    %1462 = vmatprep.subr.mxu0 0.0
    %1463 = vmatpush1.msra.mxu0 0.0
    %1464 = vmatprep.subr.mxu0 0.0
    %1465 = vmatpush1.msra.mxu0 0.0
    %1466 = vmatprep.mubr.f32.mxu0 0.0
    %1467 = vmatmul.mubr.f32.gmra.mrb[0].mxu0 %v1401
    %v1468 = vpop.f32.mrb[0].mxu0
    %v1469 = vadd.f32 %v97, %v1468
    %v1470 = vpop.f32.mrb[0].mxu0
    %1471 = vdwg.mxu0
    %v1472 = vtanh.pop %v1469
    %1473 = vmatprep.subr.mxu0 0.0
    %1474 = vmatpush1.msra.mxu0 %v76
    %1475 = vmatprep.subr.mxu0 0.0
    %1476 = vmatpush1.msra.mxu0 %v77
    %1477 = vmatprep.subr.mxu0 0.0
    %1478 = vmatpush1.msra.mxu0 %v78
    %1479 = vmatprep.subr.mxu0 0.0
    %1480 = vmatpush1.msra.mxu0 %v79
    %1481 = vmatprep.subr.mxu0 0.0
    %1482 = vmatpush1.msra.mxu0 %v80
    %1483 = vmatprep.subr.mxu0 0.0
    %1484 = vmatpush1.msra.mxu0 %v81
    %1485 = vmatprep.subr.mxu0 0.0
    %1486 = vmatpush1.msra.mxu0 %v82
    %1487 = vmatprep.subr.mxu0 0.0
    %1488 = vmatpush1.msra.mxu0 %v83
    %1489 = vmatprep.subr.mxu0 0.0
    %1490 = vmatpush1.msra.mxu0 %v84
    %1491 = vmatprep.subr.mxu0 0.0
    %1492 = vmatpush1.msra.mxu0 %v85
    %1493 = vmatprep.subr.mxu0 0.0
    %1494 = vmatpush1.msra.mxu0 %v86
    %1495 = vmatprep.subr.mxu0 0.0
    %1496 = vmatpush1.msra.mxu0 %v87
    %1497 = vmatprep.subr.mxu0 0.0
    %1498 = vmatpush1.msra.mxu0 %v88
    %1499 = vmatprep.subr.mxu0 0.0
    %1500 = vmatpush1.msra.mxu0 %v89
    %1501 = vmatprep.subr.mxu0 0.0
    %1502 = vmatpush1.msra.mxu0 %v90
    %1503 = vmatprep.subr.mxu0 0.0
    %1504 = vmatpush1.msra.mxu0 %v91
    %1505 = vmatprep.subr.mxu0 0.0
    %1506 = vmatpush1.msra.mxu0 0.0
    %1507 = vmatprep.subr.mxu0 0.0
    %1508 = vmatpush1.msra.mxu0 0.0
    %1509 = vmatprep.subr.mxu0 0.0
    %1510 = vmatpush1.msra.mxu0 0.0
    %1511 = vmatprep.subr.mxu0 0.0
    %1512 = vmatpush1.msra.mxu0 0.0
    %1513 = vmatprep.subr.mxu0 0.0
    %1514 = vmatpush1.msra.mxu0 0.0
    %1515 = vmatprep.subr.mxu0 0.0
    %1516 = vmatpush1.msra.mxu0 0.0
    %1517 = vmatprep.subr.mxu0 0.0
    %1518 = vmatpush1.msra.mxu0 0.0
    %1519 = vmatprep.subr.mxu0 0.0
    %1520 = vmatpush1.msra.mxu0 0.0
    %1521 = vmatprep.subr.mxu0 0.0
    %1522 = vmatpush1.msra.mxu0 0.0
    %1523 = vmatprep.subr.mxu0 0.0
    %1524 = vmatpush1.msra.mxu0 0.0
    %1525 = vmatprep.subr.mxu0 0.0
    %1526 = vmatpush1.msra.mxu0 0.0
    %1527 = vmatprep.subr.mxu0 0.0
    %1528 = vmatpush1.msra.mxu0 0.0
    %1529 = vmatprep.subr.mxu0 0.0
    %1530 = vmatpush1.msra.mxu0 0.0
    %1531 = vmatprep.subr.mxu0 0.0
    %1532 = vmatpush1.msra.mxu0 0.0
    %1533 = vmatprep.subr.mxu0 0.0
    %1534 = vmatpush1.msra.mxu0 0.0
    %1535 = vmatprep.subr.mxu0 0.0
    %1536 = vmatpush1.msra.mxu0 0.0
    %1537 = vmatprep.mubr.f32.mxu0 0.0
    %1538 = vmatmul.mubr.f32.gmra.mrb[0].mxu0 %v1472
    %v1539 = vpop.f32.mrb[0].mxu0
    %v1540 = vadd.f32 %v104, %v1539
    %v1541 = vpop.f32.mrb[0].mxu0
    %1542 = vdwg.mxu0
    %v1543 = vmul.f32 %v1540, 0.03125
    %v1544 = vadd.f32 %v1258, %v1543
    %1545 = vmatprep.subr.mxu0 0.0
    %1546 = vmatpush1.msra.mxu0 %v60
    %1547 = vmatprep.subr.mxu0 0.0
    %1548 = vmatpush1.msra.mxu0 %v61
    %1549 = vmatprep.subr.mxu0 0.0
    %1550 = vmatpush1.msra.mxu0 %v62
    %1551 = vmatprep.subr.mxu0 0.0
    %1552 = vmatpush1.msra.mxu0 %v63
    %1553 = vmatprep.subr.mxu0 0.0
    %1554 = vmatpush1.msra.mxu0 %v64
    %1555 = vmatprep.subr.mxu0 0.0
    %1556 = vmatpush1.msra.mxu0 %v65
    %1557 = vmatprep.subr.mxu0 0.0
    %1558 = vmatpush1.msra.mxu0 %v66
    %1559 = vmatprep.subr.mxu0 0.0
    %1560 = vmatpush1.msra.mxu0 %v67
    %1561 = vmatprep.subr.mxu0 0.0
    %1562 = vmatpush1.msra.mxu0 %v68
    %1563 = vmatprep.subr.mxu0 0.0
    %1564 = vmatpush1.msra.mxu0 %v69
    %1565 = vmatprep.subr.mxu0 0.0
    %1566 = vmatpush1.msra.mxu0 %v70
    %1567 = vmatprep.subr.mxu0 0.0
    %1568 = vmatpush1.msra.mxu0 %v71
    %1569 = vmatprep.subr.mxu0 0.0
    %1570 = vmatpush1.msra.mxu0 %v72
    %1571 = vmatprep.subr.mxu0 0.0
    %1572 = vmatpush1.msra.mxu0 %v73
    %1573 = vmatprep.subr.mxu0 0.0
    %1574 = vmatpush1.msra.mxu0 %v74
    %1575 = vmatprep.subr.mxu0 0.0
    %1576 = vmatpush1.msra.mxu0 %v75
    %1577 = vmatprep.subr.mxu0 0.0
    %1578 = vmatpush1.msra.mxu0 0.0
    %1579 = vmatprep.subr.mxu0 0.0
    %1580 = vmatpush1.msra.mxu0 0.0
    %1581 = vmatprep.subr.mxu0 0.0
    %1582 = vmatpush1.msra.mxu0 0.0
    %1583 = vmatprep.subr.mxu0 0.0
    %1584 = vmatpush1.msra.mxu0 0.0
    %1585 = vmatprep.subr.mxu0 0.0
    %1586 = vmatpush1.msra.mxu0 0.0
    %1587 = vmatprep.subr.mxu0 0.0
    %1588 = vmatpush1.msra.mxu0 0.0
    %1589 = vmatprep.subr.mxu0 0.0
    %1590 = vmatpush1.msra.mxu0 0.0
    %1591 = vmatprep.subr.mxu0 0.0
    %1592 = vmatpush1.msra.mxu0 0.0
    %1593 = vmatprep.subr.mxu0 0.0
    %1594 = vmatpush1.msra.mxu0 0.0
    %1595 = vmatprep.subr.mxu0 0.0
    %1596 = vmatpush1.msra.mxu0 0.0
    %1597 = vmatprep.subr.mxu0 0.0
    %1598 = vmatpush1.msra.mxu0 0.0
    %1599 = vmatprep.subr.mxu0 0.0
    %1600 = vmatpush1.msra.mxu0 0.0
    %1601 = vmatprep.subr.mxu0 0.0
    %1602 = vmatpush1.msra.mxu0 0.0
    %1603 = vmatprep.subr.mxu0 0.0
    %1604 = vmatpush1.msra.mxu0 0.0
    %1605 = vmatprep.subr.mxu0 0.0
    %1606 = vmatpush1.msra.mxu0 0.0
    %1607 = vmatprep.subr.mxu0 0.0
    %1608 = vmatpush1.msra.mxu0 0.0
    %1609 = vmatprep.mubr.f32.mxu0 0.0
    %1610 = vmatmul.mubr.f32.gmra.mrb[0].mxu0 %v1544
    %v1611 = vpop.f32.mrb[0].mxu0
    %v1612 = vadd.f32 %v97, %v1611
    %v1613 = vpop.f32.mrb[0].mxu0
    %1614 = vdwg.mxu0
    %v1615 = vtanh.pop %v1612
    %1616 = vmatprep.subr.mxu0 0.0
    %1617 = vmatpush1.msra.mxu0 %v76
    %1618 = vmatprep.subr.mxu0 0.0
    %1619 = vmatpush1.msra.mxu0 %v77
    %1620 = vmatprep.subr.mxu0 0.0
    %1621 = vmatpush1.msra.mxu0 %v78
    %1622 = vmatprep.subr.mxu0 0.0
    %1623 = vmatpush1.msra.mxu0 %v79
    %1624 = vmatprep.subr.mxu0 0.0
    %1625 = vmatpush1.msra.mxu0 %v80
    %1626 = vmatprep.subr.mxu0 0.0
    %1627 = vmatpush1.msra.mxu0 %v81
    %1628 = vmatprep.subr.mxu0 0.0
    %1629 = vmatpush1.msra.mxu0 %v82
    %1630 = vmatprep.subr.mxu0 0.0
    %1631 = vmatpush1.msra.mxu0 %v83
    %1632 = vmatprep.subr.mxu0 0.0
    %1633 = vmatpush1.msra.mxu0 %v84
    %1634 = vmatprep.subr.mxu0 0.0
    %1635 = vmatpush1.msra.mxu0 %v85
    %1636 = vmatprep.subr.mxu0 0.0
    %1637 = vmatpush1.msra.mxu0 %v86
    %1638 = vmatprep.subr.mxu0 0.0
    %1639 = vmatpush1.msra.mxu0 %v87
    %1640 = vmatprep.subr.mxu0 0.0
    %1641 = vmatpush1.msra.mxu0 %v88
    %1642 = vmatprep.subr.mxu0 0.0
    %1643 = vmatpush1.msra.mxu0 %v89
    %1644 = vmatprep.subr.mxu0 0.0
    %1645 = vmatpush1.msra.mxu0 %v90
    %1646 = vmatprep.subr.mxu0 0.0
    %1647 = vmatpush1.msra.mxu0 %v91
    %1648 = vmatprep.subr.mxu0 0.0
    %1649 = vmatpush1.msra.mxu0 0.0
    %1650 = vmatprep.subr.mxu0 0.0
    %1651 = vmatpush1.msra.mxu0 0.0
    %1652 = vmatprep.subr.mxu0 0.0
    %1653 = vmatpush1.msra.mxu0 0.0
    %1654 = vmatprep.subr.mxu0 0.0
    %1655 = vmatpush1.msra.mxu0 0.0
    %1656 = vmatprep.subr.mxu0 0.0
    %1657 = vmatpush1.msra.mxu0 0.0
    %1658 = vmatprep.subr.mxu0 0.0
    %1659 = vmatpush1.msra.mxu0 0.0
    %1660 = vmatprep.subr.mxu0 0.0
    %1661 = vmatpush1.msra.mxu0 0.0
    %1662 = vmatprep.subr.mxu0 0.0
    %1663 = vmatpush1.msra.mxu0 0.0
    %1664 = vmatprep.subr.mxu0 0.0
    %1665 = vmatpush1.msra.mxu0 0.0
    %1666 = vmatprep.subr.mxu0 0.0
    %1667 = vmatpush1.msra.mxu0 0.0
    %1668 = vmatprep.subr.mxu0 0.0
    %1669 = vmatpush1.msra.mxu0 0.0
    %1670 = vmatprep.subr.mxu0 0.0
    %1671 = vmatpush1.msra.mxu0 0.0
    %1672 = vmatprep.subr.mxu0 0.0
    %1673 = vmatpush1.msra.mxu0 0.0
    %1674 = vmatprep.subr.mxu0 0.0
    %1675 = vmatpush1.msra.mxu0 0.0
    %1676 = vmatprep.subr.mxu0 0.0
    %1677 = vmatpush1.msra.mxu0 0.0
    %1678 = vmatprep.subr.mxu0 0.0
    %1679 = vmatpush1.msra.mxu0 0.0
    %1680 = vmatprep.mubr.f32.mxu0 0.0
    %1681 = vmatmul.mubr.f32.gmra.mrb[0].mxu0 %v1615
    %v1682 = vpop.f32.mrb[0].mxu0
    %v1683 = vadd.f32 %v104, %v1682
    %v1684 = vpop.f32.mrb[0].mxu0
    %1685 = vdwg.mxu0
    %v1686 = vmul.f32 %v1683, 0.0625
    %v1687 = vadd.f32 %v1258, %v1686
    %1688 = vmatprep.subr.mxu0 0.0
    %1689 = vmatpush1.msra.mxu0 %v60
    %1690 = vmatprep.subr.mxu0 0.0
    %1691 = vmatpush1.msra.mxu0 %v61
    %1692 = vmatprep.subr.mxu0 0.0
    %1693 = vmatpush1.msra.mxu0 %v62
    %1694 = vmatprep.subr.mxu0 0.0
    %1695 = vmatpush1.msra.mxu0 %v63
    %1696 = vmatprep.subr.mxu0 0.0
    %1697 = vmatpush1.msra.mxu0 %v64
    %1698 = vmatprep.subr.mxu0 0.0
    %1699 = vmatpush1.msra.mxu0 %v65
    %1700 = vmatprep.subr.mxu0 0.0
    %1701 = vmatpush1.msra.mxu0 %v66
    %1702 = vmatprep.subr.mxu0 0.0
    %1703 = vmatpush1.msra.mxu0 %v67
    %1704 = vmatprep.subr.mxu0 0.0
    %1705 = vmatpush1.msra.mxu0 %v68
    %1706 = vmatprep.subr.mxu0 0.0
    %1707 = vmatpush1.msra.mxu0 %v69
    %1708 = vmatprep.subr.mxu0 0.0
    %1709 = vmatpush1.msra.mxu0 %v70
    %1710 = vmatprep.subr.mxu0 0.0
    %1711 = vmatpush1.msra.mxu0 %v71
    %1712 = vmatprep.subr.mxu0 0.0
    %1713 = vmatpush1.msra.mxu0 %v72
    %1714 = vmatprep.subr.mxu0 0.0
    %1715 = vmatpush1.msra.mxu0 %v73
    %1716 = vmatprep.subr.mxu0 0.0
    %1717 = vmatpush1.msra.mxu0 %v74
    %1718 = vmatprep.subr.mxu0 0.0
    %1719 = vmatpush1.msra.mxu0 %v75
    %1720 = vmatprep.subr.mxu0 0.0
    %1721 = vmatpush1.msra.mxu0 0.0
    %1722 = vmatprep.subr.mxu0 0.0
    %1723 = vmatpush1.msra.mxu0 0.0
    %1724 = vmatprep.subr.mxu0 0.0
    %1725 = vmatpush1.msra.mxu0 0.0
    %1726 = vmatprep.subr.mxu0 0.0
    %1727 = vmatpush1.msra.mxu0 0.0
    %1728 = vmatprep.subr.mxu0 0.0
    %1729 = vmatpush1.msra.mxu0 0.0
    %1730 = vmatprep.subr.mxu0 0.0
    %1731 = vmatpush1.msra.mxu0 0.0
    %1732 = vmatprep.subr.mxu0 0.0
    %1733 = vmatpush1.msra.mxu0 0.0
    %1734 = vmatprep.subr.mxu0 0.0
    %1735 = vmatpush1.msra.mxu0 0.0
    %1736 = vmatprep.subr.mxu0 0.0
    %1737 = vmatpush1.msra.mxu0 0.0
    %1738 = vmatprep.subr.mxu0 0.0
    %1739 = vmatpush1.msra.mxu0 0.0
    %1740 = vmatprep.subr.mxu0 0.0
    %1741 = vmatpush1.msra.mxu0 0.0
    %1742 = vmatprep.subr.mxu0 0.0
    %1743 = vmatpush1.msra.mxu0 0.0
    %1744 = vmatprep.subr.mxu0 0.0
    %1745 = vmatpush1.msra.mxu0 0.0
    %1746 = vmatprep.subr.mxu0 0.0
    %1747 = vmatpush1.msra.mxu0 0.0
    %1748 = vmatprep.subr.mxu0 0.0
    %1749 = vmatpush1.msra.mxu0 0.0
    %1750 = vmatprep.subr.mxu0 0.0
    %1751 = vmatpush1.msra.mxu0 0.0
    %1752 = vmatprep.mubr.f32.mxu0 0.0
    %1753 = vmatmul.mubr.f32.gmra.mrb[0].mxu0 %v1687
    %v1754 = vpop.f32.mrb[0].mxu0
    %v1755 = vadd.f32 %v97, %v1754
    %v1756 = vpop.f32.mrb[0].mxu0
    %1757 = vdwg.mxu0
    %v1758 = vtanh.pop %v1755
    %1759 = vmatprep.subr.mxu0 0.0
    %1760 = vmatpush1.msra.mxu0 %v76
    %1761 = vmatprep.subr.mxu0 0.0
    %1762 = vmatpush1.msra.mxu0 %v77
    %1763 = vmatprep.subr.mxu0 0.0
    %1764 = vmatpush1.msra.mxu0 %v78
    %1765 = vmatprep.subr.mxu0 0.0
    %1766 = vmatpush1.msra.mxu0 %v79
    %1767 = vmatprep.subr.mxu0 0.0
    %1768 = vmatpush1.msra.mxu0 %v80
    %1769 = vmatprep.subr.mxu0 0.0
    %1770 = vmatpush1.msra.mxu0 %v81
    %1771 = vmatprep.subr.mxu0 0.0
    %1772 = vmatpush1.msra.mxu0 %v82
    %1773 = vmatprep.subr.mxu0 0.0
    %1774 = vmatpush1.msra.mxu0 %v83
    %1775 = vmatprep.subr.mxu0 0.0
    %1776 = vmatpush1.msra.mxu0 %v84
    %1777 = vmatprep.subr.mxu0 0.0
    %1778 = vmatpush1.msra.mxu0 %v85
    %1779 = vmatprep.subr.mxu0 0.0
    %1780 = vmatpush1.msra.mxu0 %v86
    %1781 = vmatprep.subr.mxu0 0.0
    %1782 = vmatpush1.msra.mxu0 %v87
    %1783 = vmatprep.subr.mxu0 0.0
    %1784 = vmatpush1.msra.mxu0 %v88
    %1785 = vmatprep.subr.mxu0 0.0
    %1786 = vmatpush1.msra.mxu0 %v89
    %1787 = vmatprep.subr.mxu0 0.0
    %1788 = vmatpush1.msra.mxu0 %v90
    %1789 = vmatprep.subr.mxu0 0.0
    %1790 = vmatpush1.msra.mxu0 %v91
    %1791 = vmatprep.subr.mxu0 0.0
    %1792 = vmatpush1.msra.mxu0 0.0
    %1793 = vmatprep.subr.mxu0 0.0
    %1794 = vmatpush1.msra.mxu0 0.0
    %1795 = vmatprep.subr.mxu0 0.0
    %1796 = vmatpush1.msra.mxu0 0.0
    %1797 = vmatprep.subr.mxu0 0.0
    %1798 = vmatpush1.msra.mxu0 0.0
    %1799 = vmatprep.subr.mxu0 0.0
    %1800 = vmatpush1.msra.mxu0 0.0
    %1801 = vmatprep.subr.mxu0 0.0
    %1802 = vmatpush1.msra.mxu0 0.0
    %1803 = vmatprep.subr.mxu0 0.0
    %1804 = vmatpush1.msra.mxu0 0.0
    %1805 = vmatprep.subr.mxu0 0.0
    %1806 = vmatpush1.msra.mxu0 0.0
    %1807 = vmatprep.subr.mxu0 0.0
    %1808 = vmatpush1.msra.mxu0 0.0
    %1809 = vmatprep.subr.mxu0 0.0
    %1810 = vmatpush1.msra.mxu0 0.0
    %1811 = vmatprep.subr.mxu0 0.0
    %1812 = vmatpush1.msra.mxu0 0.0
    %1813 = vmatprep.subr.mxu0 0.0
    %1814 = vmatpush1.msra.mxu0 0.0
    %1815 = vmatprep.subr.mxu0 0.0
    %1816 = vmatpush1.msra.mxu0 0.0
    %1817 = vmatprep.subr.mxu0 0.0
    %1818 = vmatpush1.msra.mxu0 0.0
    %1819 = vmatprep.subr.mxu0 0.0
    %1820 = vmatpush1.msra.mxu0 0.0
    %1821 = vmatprep.subr.mxu0 0.0
    %1822 = vmatpush1.msra.mxu0 0.0
    %1823 = vmatprep.mubr.f32.mxu0 0.0
    %1824 = vmatmul.mubr.f32.gmra.mrb[0].mxu0 %v1758
    %v1825 = vpop.f32.mrb[0].mxu0
    %v1826 = vadd.f32 %v104, %v1825
    %v1827 = vpop.f32.mrb[0].mxu0
    %1828 = vdwg.mxu0
    %v1829 = vadd.f32 %v1397, %v1826
    %v1830 = vadd.f32 %v1540, %v1683
    %v1831 = vmul.f32 %v1830, 2.0
    %v1832 = vadd.f32 %v1829, %v1831
    %v1833 = vmul.f32 %v1832, 0.010416667
    %v1834 = vadd.f32 %v1258, %v1833
    %1835 = vmatprep.subr.mxu0 0.0
    %1836 = vmatpush1.msra.mxu0 %v60
    %1837 = vmatprep.subr.mxu0 0.0
    %1838 = vmatpush1.msra.mxu0 %v61
    %1839 = vmatprep.subr.mxu0 0.0
    %1840 = vmatpush1.msra.mxu0 %v62
    %1841 = vmatprep.subr.mxu0 0.0
    %1842 = vmatpush1.msra.mxu0 %v63
    %1843 = vmatprep.subr.mxu0 0.0
    %1844 = vmatpush1.msra.mxu0 %v64
    %1845 = vmatprep.subr.mxu0 0.0
    %1846 = vmatpush1.msra.mxu0 %v65
    %1847 = vmatprep.subr.mxu0 0.0
    %1848 = vmatpush1.msra.mxu0 %v66
    %1849 = vmatprep.subr.mxu0 0.0
    %1850 = vmatpush1.msra.mxu0 %v67
    %1851 = vmatprep.subr.mxu0 0.0
    %1852 = vmatpush1.msra.mxu0 %v68
    %1853 = vmatprep.subr.mxu0 0.0
    %1854 = vmatpush1.msra.mxu0 %v69
    %1855 = vmatprep.subr.mxu0 0.0
    %1856 = vmatpush1.msra.mxu0 %v70
    %1857 = vmatprep.subr.mxu0 0.0
    %1858 = vmatpush1.msra.mxu0 %v71
    %1859 = vmatprep.subr.mxu0 0.0
    %1860 = vmatpush1.msra.mxu0 %v72
    %1861 = vmatprep.subr.mxu0 0.0
    %1862 = vmatpush1.msra.mxu0 %v73
    %1863 = vmatprep.subr.mxu0 0.0
    %1864 = vmatpush1.msra.mxu0 %v74
    %1865 = vmatprep.subr.mxu0 0.0
    %1866 = vmatpush1.msra.mxu0 %v75
    %1867 = vmatprep.subr.mxu0 0.0
    %1868 = vmatpush1.msra.mxu0 0.0
    %1869 = vmatprep.subr.mxu0 0.0
    %1870 = vmatpush1.msra.mxu0 0.0
    %1871 = vmatprep.subr.mxu0 0.0
    %1872 = vmatpush1.msra.mxu0 0.0
    %1873 = vmatprep.subr.mxu0 0.0
    %1874 = vmatpush1.msra.mxu0 0.0
    %1875 = vmatprep.subr.mxu0 0.0
    %1876 = vmatpush1.msra.mxu0 0.0
    %1877 = vmatprep.subr.mxu0 0.0
    %1878 = vmatpush1.msra.mxu0 0.0
    %1879 = vmatprep.subr.mxu0 0.0
    %1880 = vmatpush1.msra.mxu0 0.0
    %1881 = vmatprep.subr.mxu0 0.0
    %1882 = vmatpush1.msra.mxu0 0.0
    %1883 = vmatprep.subr.mxu0 0.0
    %1884 = vmatpush1.msra.mxu0 0.0
    %1885 = vmatprep.subr.mxu0 0.0
    %1886 = vmatpush1.msra.mxu0 0.0
    %1887 = vmatprep.subr.mxu0 0.0
    %1888 = vmatpush1.msra.mxu0 0.0
    %1889 = vmatprep.subr.mxu0 0.0
    %1890 = vmatpush1.msra.mxu0 0.0
    %1891 = vmatprep.subr.mxu0 0.0
    %1892 = vmatpush1.msra.mxu0 0.0
    %1893 = vmatprep.subr.mxu0 0.0
    %1894 = vmatpush1.msra.mxu0 0.0
    %1895 = vmatprep.subr.mxu0 0.0
    %1896 = vmatpush1.msra.mxu0 0.0
    %1897 = vmatprep.subr.mxu0 0.0
    %1898 = vmatpush1.msra.mxu0 0.0
    %1899 = vmatprep.mubr.f32.mxu0 0.0
    %1900 = vmatmul.mubr.f32.gmra.mrb[0].mxu0 %v1834
    %v1901 = vpop.f32.mrb[0].mxu0
    %v1902 = vadd.f32 %v97, %v1901
    %v1903 = vpop.f32.mrb[0].mxu0
    %1904 = vdwg.mxu0
    %v1905 = vtanh.pop %v1902
    %1906 = vmatprep.subr.mxu0 0.0
    %1907 = vmatpush1.msra.mxu0 %v76
    %1908 = vmatprep.subr.mxu0 0.0
    %1909 = vmatpush1.msra.mxu0 %v77
    %1910 = vmatprep.subr.mxu0 0.0
    %1911 = vmatpush1.msra.mxu0 %v78
    %1912 = vmatprep.subr.mxu0 0.0
    %1913 = vmatpush1.msra.mxu0 %v79
    %1914 = vmatprep.subr.mxu0 0.0
    %1915 = vmatpush1.msra.mxu0 %v80
    %1916 = vmatprep.subr.mxu0 0.0
    %1917 = vmatpush1.msra.mxu0 %v81
    %1918 = vmatprep.subr.mxu0 0.0
    %1919 = vmatpush1.msra.mxu0 %v82
    %1920 = vmatprep.subr.mxu0 0.0
    %1921 = vmatpush1.msra.mxu0 %v83
    %1922 = vmatprep.subr.mxu0 0.0
    %1923 = vmatpush1.msra.mxu0 %v84
    %1924 = vmatprep.subr.mxu0 0.0
    %1925 = vmatpush1.msra.mxu0 %v85
    %1926 = vmatprep.subr.mxu0 0.0
    %1927 = vmatpush1.msra.mxu0 %v86
    %1928 = vmatprep.subr.mxu0 0.0
    %1929 = vmatpush1.msra.mxu0 %v87
    %1930 = vmatprep.subr.mxu0 0.0
    %1931 = vmatpush1.msra.mxu0 %v88
    %1932 = vmatprep.subr.mxu0 0.0
    %1933 = vmatpush1.msra.mxu0 %v89
    %1934 = vmatprep.subr.mxu0 0.0
    %1935 = vmatpush1.msra.mxu0 %v90
    %1936 = vmatprep.subr.mxu0 0.0
    %1937 = vmatpush1.msra.mxu0 %v91
    %1938 = vmatprep.subr.mxu0 0.0
    %1939 = vmatpush1.msra.mxu0 0.0
    %1940 = vmatprep.subr.mxu0 0.0
    %1941 = vmatpush1.msra.mxu0 0.0
    %1942 = vmatprep.subr.mxu0 0.0
    %1943 = vmatpush1.msra.mxu0 0.0
    %1944 = vmatprep.subr.mxu0 0.0
    %1945 = vmatpush1.msra.mxu0 0.0
    %1946 = vmatprep.subr.mxu0 0.0
    %1947 = vmatpush1.msra.mxu0 0.0
    %1948 = vmatprep.subr.mxu0 0.0
    %1949 = vmatpush1.msra.mxu0 0.0
    %1950 = vmatprep.subr.mxu0 0.0
    %1951 = vmatpush1.msra.mxu0 0.0
    %1952 = vmatprep.subr.mxu0 0.0
    %1953 = vmatpush1.msra.mxu0 0.0
    %1954 = vmatprep.subr.mxu0 0.0
    %1955 = vmatpush1.msra.mxu0 0.0
    %1956 = vmatprep.subr.mxu0 0.0
    %1957 = vmatpush1.msra.mxu0 0.0
    %1958 = vmatprep.subr.mxu0 0.0
    %1959 = vmatpush1.msra.mxu0 0.0
    %1960 = vmatprep.subr.mxu0 0.0
    %1961 = vmatpush1.msra.mxu0 0.0
    %1962 = vmatprep.subr.mxu0 0.0
    %1963 = vmatpush1.msra.mxu0 0.0
    %1964 = vmatprep.subr.mxu0 0.0
    %1965 = vmatpush1.msra.mxu0 0.0
    %1966 = vmatprep.subr.mxu0 0.0
    %1967 = vmatpush1.msra.mxu0 0.0
    %1968 = vmatprep.subr.mxu0 0.0
    %1969 = vmatpush1.msra.mxu0 0.0
    %1970 = vmatprep.mubr.f32.mxu0 0.0
    %1971 = vmatmul.mubr.f32.gmra.mrb[0].mxu0 %v1905
    %v1972 = vpop.f32.mrb[0].mxu0
    %v1973 = vadd.f32 %v104, %v1972
    %v1974 = vpop.f32.mrb[0].mxu0
    %1975 = vdwg.mxu0
    %v1976 = vmul.f32 %v1973, 0.03125
    %v1977 = vadd.f32 %v1834, %v1976
    %1978 = vmatprep.subr.mxu0 0.0
    %1979 = vmatpush1.msra.mxu0 %v60
    %1980 = vmatprep.subr.mxu0 0.0
    %1981 = vmatpush1.msra.mxu0 %v61
    %1982 = vmatprep.subr.mxu0 0.0
    %1983 = vmatpush1.msra.mxu0 %v62
    %1984 = vmatprep.subr.mxu0 0.0
    %1985 = vmatpush1.msra.mxu0 %v63
    %1986 = vmatprep.subr.mxu0 0.0
    %1987 = vmatpush1.msra.mxu0 %v64
    %1988 = vmatprep.subr.mxu0 0.0
    %1989 = vmatpush1.msra.mxu0 %v65
    %1990 = vmatprep.subr.mxu0 0.0
    %1991 = vmatpush1.msra.mxu0 %v66
    %1992 = vmatprep.subr.mxu0 0.0
    %1993 = vmatpush1.msra.mxu0 %v67
    %1994 = vmatprep.subr.mxu0 0.0
    %1995 = vmatpush1.msra.mxu0 %v68
    %1996 = vmatprep.subr.mxu0 0.0
    %1997 = vmatpush1.msra.mxu0 %v69
    %1998 = vmatprep.subr.mxu0 0.0
    %1999 = vmatpush1.msra.mxu0 %v70
    %2000 = vmatprep.subr.mxu0 0.0
    %2001 = vmatpush1.msra.mxu0 %v71
    %2002 = vmatprep.subr.mxu0 0.0
    %2003 = vmatpush1.msra.mxu0 %v72
    %2004 = vmatprep.subr.mxu0 0.0
    %2005 = vmatpush1.msra.mxu0 %v73
    %2006 = vmatprep.subr.mxu0 0.0
    %2007 = vmatpush1.msra.mxu0 %v74
    %2008 = vmatprep.subr.mxu0 0.0
    %2009 = vmatpush1.msra.mxu0 %v75
    %2010 = vmatprep.subr.mxu0 0.0
    %2011 = vmatpush1.msra.mxu0 0.0
    %2012 = vmatprep.subr.mxu0 0.0
    %2013 = vmatpush1.msra.mxu0 0.0
    %2014 = vmatprep.subr.mxu0 0.0
    %2015 = vmatpush1.msra.mxu0 0.0
    %2016 = vmatprep.subr.mxu0 0.0
    %2017 = vmatpush1.msra.mxu0 0.0
    %2018 = vmatprep.subr.mxu0 0.0
    %2019 = vmatpush1.msra.mxu0 0.0
    %2020 = vmatprep.subr.mxu0 0.0
    %2021 = vmatpush1.msra.mxu0 0.0
    %2022 = vmatprep.subr.mxu0 0.0
    %2023 = vmatpush1.msra.mxu0 0.0
    %2024 = vmatprep.subr.mxu0 0.0
    %2025 = vmatpush1.msra.mxu0 0.0
    %2026 = vmatprep.subr.mxu0 0.0
    %2027 = vmatpush1.msra.mxu0 0.0
    %2028 = vmatprep.subr.mxu0 0.0
    %2029 = vmatpush1.msra.mxu0 0.0
    %2030 = vmatprep.subr.mxu0 0.0
    %2031 = vmatpush1.msra.mxu0 0.0
    %2032 = vmatprep.subr.mxu0 0.0
    %2033 = vmatpush1.msra.mxu0 0.0
    %2034 = vmatprep.subr.mxu0 0.0
    %2035 = vmatpush1.msra.mxu0 0.0
    %2036 = vmatprep.subr.mxu0 0.0
    %2037 = vmatpush1.msra.mxu0 0.0
    %2038 = vmatprep.subr.mxu0 0.0
    %2039 = vmatpush1.msra.mxu0 0.0
    %2040 = vmatprep.subr.mxu0 0.0
    %2041 = vmatpush1.msra.mxu0 0.0
    %2042 = vmatprep.mubr.f32.mxu0 0.0
    %2043 = vmatmul.mubr.f32.gmra.mrb[0].mxu0 %v1977
    %v2044 = vpop.f32.mrb[0].mxu0
    %v2045 = vadd.f32 %v97, %v2044
    %v2046 = vpop.f32.mrb[0].mxu0
    %2047 = vdwg.mxu0
    %v2048 = vtanh.pop %v2045
    %2049 = vmatprep.subr.mxu0 0.0
    %2050 = vmatpush1.msra.mxu0 %v76
    %2051 = vmatprep.subr.mxu0 0.0
    %2052 = vmatpush1.msra.mxu0 %v77
    %2053 = vmatprep.subr.mxu0 0.0
    %2054 = vmatpush1.msra.mxu0 %v78
    %2055 = vmatprep.subr.mxu0 0.0
    %2056 = vmatpush1.msra.mxu0 %v79
    %2057 = vmatprep.subr.mxu0 0.0
    %2058 = vmatpush1.msra.mxu0 %v80
    %2059 = vmatprep.subr.mxu0 0.0
    %2060 = vmatpush1.msra.mxu0 %v81
    %2061 = vmatprep.subr.mxu0 0.0
    %2062 = vmatpush1.msra.mxu0 %v82
    %2063 = vmatprep.subr.mxu0 0.0
    %2064 = vmatpush1.msra.mxu0 %v83
    %2065 = vmatprep.subr.mxu0 0.0
    %2066 = vmatpush1.msra.mxu0 %v84
    %2067 = vmatprep.subr.mxu0 0.0
    %2068 = vmatpush1.msra.mxu0 %v85
    %2069 = vmatprep.subr.mxu0 0.0
    %2070 = vmatpush1.msra.mxu0 %v86
    %2071 = vmatprep.subr.mxu0 0.0
    %2072 = vmatpush1.msra.mxu0 %v87
    %2073 = vmatprep.subr.mxu0 0.0
    %2074 = vmatpush1.msra.mxu0 %v88
    %2075 = vmatprep.subr.mxu0 0.0
    %2076 = vmatpush1.msra.mxu0 %v89
    %2077 = vmatprep.subr.mxu0 0.0
    %2078 = vmatpush1.msra.mxu0 %v90
    %2079 = vmatprep.subr.mxu0 0.0
    %2080 = vmatpush1.msra.mxu0 %v91
    %2081 = vmatprep.subr.mxu0 0.0
    %2082 = vmatpush1.msra.mxu0 0.0
    %2083 = vmatprep.subr.mxu0 0.0
    %2084 = vmatpush1.msra.mxu0 0.0
    %2085 = vmatprep.subr.mxu0 0.0
    %2086 = vmatpush1.msra.mxu0 0.0
    %2087 = vmatprep.subr.mxu0 0.0
    %2088 = vmatpush1.msra.mxu0 0.0
    %2089 = vmatprep.subr.mxu0 0.0
    %2090 = vmatpush1.msra.mxu0 0.0
    %2091 = vmatprep.subr.mxu0 0.0
    %2092 = vmatpush1.msra.mxu0 0.0
    %2093 = vmatprep.subr.mxu0 0.0
    %2094 = vmatpush1.msra.mxu0 0.0
    %2095 = vmatprep.subr.mxu0 0.0
    %2096 = vmatpush1.msra.mxu0 0.0
    %2097 = vmatprep.subr.mxu0 0.0
    %2098 = vmatpush1.msra.mxu0 0.0
    %2099 = vmatprep.subr.mxu0 0.0
    %2100 = vmatpush1.msra.mxu0 0.0
    %2101 = vmatprep.subr.mxu0 0.0
    %2102 = vmatpush1.msra.mxu0 0.0
    %2103 = vmatprep.subr.mxu0 0.0
    %2104 = vmatpush1.msra.mxu0 0.0
    %2105 = vmatprep.subr.mxu0 0.0
    %2106 = vmatpush1.msra.mxu0 0.0
    %2107 = vmatprep.subr.mxu0 0.0
    %2108 = vmatpush1.msra.mxu0 0.0
    %2109 = vmatprep.subr.mxu0 0.0
    %2110 = vmatpush1.msra.mxu0 0.0
    %2111 = vmatprep.subr.mxu0 0.0
    %2112 = vmatpush1.msra.mxu0 0.0
    %2113 = vmatprep.mubr.f32.mxu0 0.0
    %2114 = vmatmul.mubr.f32.gmra.mrb[0].mxu0 %v2048
    %v2115 = vpop.f32.mrb[0].mxu0
    %v2116 = vadd.f32 %v104, %v2115
    %v2117 = vpop.f32.mrb[0].mxu0
    %2118 = vdwg.mxu0
    %v2119 = vmul.f32 %v2116, 0.03125
    %v2120 = vadd.f32 %v1834, %v2119
    %2121 = vmatprep.subr.mxu0 0.0
    %2122 = vmatpush1.msra.mxu0 %v60
    %2123 = vmatprep.subr.mxu0 0.0
    %2124 = vmatpush1.msra.mxu0 %v61
    %2125 = vmatprep.subr.mxu0 0.0
    %2126 = vmatpush1.msra.mxu0 %v62
    %2127 = vmatprep.subr.mxu0 0.0
    %2128 = vmatpush1.msra.mxu0 %v63
    %2129 = vmatprep.subr.mxu0 0.0
    %2130 = vmatpush1.msra.mxu0 %v64
    %2131 = vmatprep.subr.mxu0 0.0
    %2132 = vmatpush1.msra.mxu0 %v65
    %2133 = vmatprep.subr.mxu0 0.0
    %2134 = vmatpush1.msra.mxu0 %v66
    %2135 = vmatprep.subr.mxu0 0.0
    %2136 = vmatpush1.msra.mxu0 %v67
    %2137 = vmatprep.subr.mxu0 0.0
    %2138 = vmatpush1.msra.mxu0 %v68
    %2139 = vmatprep.subr.mxu0 0.0
    %2140 = vmatpush1.msra.mxu0 %v69
    %2141 = vmatprep.subr.mxu0 0.0
    %2142 = vmatpush1.msra.mxu0 %v70
    %2143 = vmatprep.subr.mxu0 0.0
    %2144 = vmatpush1.msra.mxu0 %v71
    %2145 = vmatprep.subr.mxu0 0.0
    %2146 = vmatpush1.msra.mxu0 %v72
    %2147 = vmatprep.subr.mxu0 0.0
    %2148 = vmatpush1.msra.mxu0 %v73
    %2149 = vmatprep.subr.mxu0 0.0
    %2150 = vmatpush1.msra.mxu0 %v74
    %2151 = vmatprep.subr.mxu0 0.0
    %2152 = vmatpush1.msra.mxu0 %v75
    %2153 = vmatprep.subr.mxu0 0.0
    %2154 = vmatpush1.msra.mxu0 0.0
    %2155 = vmatprep.subr.mxu0 0.0
    %2156 = vmatpush1.msra.mxu0 0.0
    %2157 = vmatprep.subr.mxu0 0.0
    %2158 = vmatpush1.msra.mxu0 0.0
    %2159 = vmatprep.subr.mxu0 0.0
    %2160 = vmatpush1.msra.mxu0 0.0
    %2161 = vmatprep.subr.mxu0 0.0
    %2162 = vmatpush1.msra.mxu0 0.0
    %2163 = vmatprep.subr.mxu0 0.0
    %2164 = vmatpush1.msra.mxu0 0.0
    %2165 = vmatprep.subr.mxu0 0.0
    %2166 = vmatpush1.msra.mxu0 0.0
    %2167 = vmatprep.subr.mxu0 0.0
    %2168 = vmatpush1.msra.mxu0 0.0
    %2169 = vmatprep.subr.mxu0 0.0
    %2170 = vmatpush1.msra.mxu0 0.0
    %2171 = vmatprep.subr.mxu0 0.0
    %2172 = vmatpush1.msra.mxu0 0.0
    %2173 = vmatprep.subr.mxu0 0.0
    %2174 = vmatpush1.msra.mxu0 0.0
    %2175 = vmatprep.subr.mxu0 0.0
    %2176 = vmatpush1.msra.mxu0 0.0
    %2177 = vmatprep.subr.mxu0 0.0
    %2178 = vmatpush1.msra.mxu0 0.0
    %2179 = vmatprep.subr.mxu0 0.0
    %2180 = vmatpush1.msra.mxu0 0.0
    %2181 = vmatprep.subr.mxu0 0.0
    %2182 = vmatpush1.msra.mxu0 0.0
    %2183 = vmatprep.subr.mxu0 0.0
    %2184 = vmatpush1.msra.mxu0 0.0
    %2185 = vmatprep.mubr.f32.mxu0 0.0
    %2186 = vmatmul.mubr.f32.gmra.mrb[0].mxu0 %v2120
    %v2187 = vpop.f32.mrb[0].mxu0
    %v2188 = vadd.f32 %v97, %v2187
    %v2189 = vpop.f32.mrb[0].mxu0
    %2190 = vdwg.mxu0
    %v2191 = vtanh.pop %v2188
    %2192 = vmatprep.subr.mxu0 0.0
    %2193 = vmatpush1.msra.mxu0 %v76
    %2194 = vmatprep.subr.mxu0 0.0
    %2195 = vmatpush1.msra.mxu0 %v77
    %2196 = vmatprep.subr.mxu0 0.0
    %2197 = vmatpush1.msra.mxu0 %v78
    %2198 = vmatprep.subr.mxu0 0.0
    %2199 = vmatpush1.msra.mxu0 %v79
    %2200 = vmatprep.subr.mxu0 0.0
    %2201 = vmatpush1.msra.mxu0 %v80
    %2202 = vmatprep.subr.mxu0 0.0
    %2203 = vmatpush1.msra.mxu0 %v81
    %2204 = vmatprep.subr.mxu0 0.0
    %2205 = vmatpush1.msra.mxu0 %v82
    %2206 = vmatprep.subr.mxu0 0.0
    %2207 = vmatpush1.msra.mxu0 %v83
    %2208 = vmatprep.subr.mxu0 0.0
    %2209 = vmatpush1.msra.mxu0 %v84
    %2210 = vmatprep.subr.mxu0 0.0
    %2211 = vmatpush1.msra.mxu0 %v85
    %2212 = vmatprep.subr.mxu0 0.0
    %2213 = vmatpush1.msra.mxu0 %v86
    %2214 = vmatprep.subr.mxu0 0.0
    %2215 = vmatpush1.msra.mxu0 %v87
    %2216 = vmatprep.subr.mxu0 0.0
    %2217 = vmatpush1.msra.mxu0 %v88
    %2218 = vmatprep.subr.mxu0 0.0
    %2219 = vmatpush1.msra.mxu0 %v89
    %2220 = vmatprep.subr.mxu0 0.0
    %2221 = vmatpush1.msra.mxu0 %v90
    %2222 = vmatprep.subr.mxu0 0.0
    %2223 = vmatpush1.msra.mxu0 %v91
    %2224 = vmatprep.subr.mxu0 0.0
    %2225 = vmatpush1.msra.mxu0 0.0
    %2226 = vmatprep.subr.mxu0 0.0
    %2227 = vmatpush1.msra.mxu0 0.0
    %2228 = vmatprep.subr.mxu0 0.0
    %2229 = vmatpush1.msra.mxu0 0.0
    %2230 = vmatprep.subr.mxu0 0.0
    %2231 = vmatpush1.msra.mxu0 0.0
    %2232 = vmatprep.subr.mxu0 0.0
    %2233 = vmatpush1.msra.mxu0 0.0
    %2234 = vmatprep.subr.mxu0 0.0
    %2235 = vmatpush1.msra.mxu0 0.0
    %2236 = vmatprep.subr.mxu0 0.0
    %2237 = vmatpush1.msra.mxu0 0.0
    %2238 = vmatprep.subr.mxu0 0.0
    %2239 = vmatpush1.msra.mxu0 0.0
    %2240 = vmatprep.subr.mxu0 0.0
    %2241 = vmatpush1.msra.mxu0 0.0
    %2242 = vmatprep.subr.mxu0 0.0
    %2243 = vmatpush1.msra.mxu0 0.0
    %2244 = vmatprep.subr.mxu0 0.0
    %2245 = vmatpush1.msra.mxu0 0.0
    %2246 = vmatprep.subr.mxu0 0.0
    %2247 = vmatpush1.msra.mxu0 0.0
    %2248 = vmatprep.subr.mxu0 0.0
    %2249 = vmatpush1.msra.mxu0 0.0
    %2250 = vmatprep.subr.mxu0 0.0
    %2251 = vmatpush1.msra.mxu0 0.0
    %2252 = vmatprep.subr.mxu0 0.0
    %2253 = vmatpush1.msra.mxu0 0.0
    %2254 = vmatprep.subr.mxu0 0.0
    %2255 = vmatpush1.msra.mxu0 0.0
    %2256 = vmatprep.mubr.f32.mxu0 0.0
    %2257 = vmatmul.mubr.f32.gmra.mrb[0].mxu0 %v2191
    %v2258 = vpop.f32.mrb[0].mxu0
    %v2259 = vadd.f32 %v104, %v2258
    %v2260 = vpop.f32.mrb[0].mxu0
    %2261 = vdwg.mxu0
    %v2262 = vmul.f32 %v2259, 0.0625
    %v2263 = vadd.f32 %v1834, %v2262
    %2264 = vmatprep.subr.mxu0 0.0
    %2265 = vmatpush1.msra.mxu0 %v60
    %2266 = vmatprep.subr.mxu0 0.0
    %2267 = vmatpush1.msra.mxu0 %v61
    %2268 = vmatprep.subr.mxu0 0.0
    %2269 = vmatpush1.msra.mxu0 %v62
    %2270 = vmatprep.subr.mxu0 0.0
    %2271 = vmatpush1.msra.mxu0 %v63
    %2272 = vmatprep.subr.mxu0 0.0
    %2273 = vmatpush1.msra.mxu0 %v64
    %2274 = vmatprep.subr.mxu0 0.0
    %2275 = vmatpush1.msra.mxu0 %v65
    %2276 = vmatprep.subr.mxu0 0.0
    %2277 = vmatpush1.msra.mxu0 %v66
    %2278 = vmatprep.subr.mxu0 0.0
    %2279 = vmatpush1.msra.mxu0 %v67
    %2280 = vmatprep.subr.mxu0 0.0
    %2281 = vmatpush1.msra.mxu0 %v68
    %2282 = vmatprep.subr.mxu0 0.0
    %2283 = vmatpush1.msra.mxu0 %v69
    %2284 = vmatprep.subr.mxu0 0.0
    %2285 = vmatpush1.msra.mxu0 %v70
    %2286 = vmatprep.subr.mxu0 0.0
    %2287 = vmatpush1.msra.mxu0 %v71
    %2288 = vmatprep.subr.mxu0 0.0
    %2289 = vmatpush1.msra.mxu0 %v72
    %2290 = vmatprep.subr.mxu0 0.0
    %2291 = vmatpush1.msra.mxu0 %v73
    %2292 = vmatprep.subr.mxu0 0.0
    %2293 = vmatpush1.msra.mxu0 %v74
    %2294 = vmatprep.subr.mxu0 0.0
    %2295 = vmatpush1.msra.mxu0 %v75
    %2296 = vmatprep.subr.mxu0 0.0
    %2297 = vmatpush1.msra.mxu0 0.0
    %2298 = vmatprep.subr.mxu0 0.0
    %2299 = vmatpush1.msra.mxu0 0.0
    %2300 = vmatprep.subr.mxu0 0.0
    %2301 = vmatpush1.msra.mxu0 0.0
    %2302 = vmatprep.subr.mxu0 0.0
    %2303 = vmatpush1.msra.mxu0 0.0
    %2304 = vmatprep.subr.mxu0 0.0
    %2305 = vmatpush1.msra.mxu0 0.0
    %2306 = vmatprep.subr.mxu0 0.0
    %2307 = vmatpush1.msra.mxu0 0.0
    %2308 = vmatprep.subr.mxu0 0.0
    %2309 = vmatpush1.msra.mxu0 0.0
    %2310 = vmatprep.subr.mxu0 0.0
    %2311 = vmatpush1.msra.mxu0 0.0
    %2312 = vmatprep.subr.mxu0 0.0
    %2313 = vmatpush1.msra.mxu0 0.0
    %2314 = vmatprep.subr.mxu0 0.0
    %2315 = vmatpush1.msra.mxu0 0.0
    %2316 = vmatprep.subr.mxu0 0.0
    %2317 = vmatpush1.msra.mxu0 0.0
    %2318 = vmatprep.subr.mxu0 0.0
    %2319 = vmatpush1.msra.mxu0 0.0
    %2320 = vmatprep.subr.mxu0 0.0
    %2321 = vmatpush1.msra.mxu0 0.0
    %2322 = vmatprep.subr.mxu0 0.0
    %2323 = vmatpush1.msra.mxu0 0.0
    %2324 = vmatprep.subr.mxu0 0.0
    %2325 = vmatpush1.msra.mxu0 0.0
    %2326 = vmatprep.subr.mxu0 0.0
    %2327 = vmatpush1.msra.mxu0 0.0
    %2328 = vmatprep.mubr.f32.mxu0 0.0
    %2329 = vmatmul.mubr.f32.gmra.mrb[0].mxu0 %v2263
    %v2330 = vpop.f32.mrb[0].mxu0
    %v2331 = vadd.f32 %v97, %v2330
    %v2332 = vpop.f32.mrb[0].mxu0
    %2333 = vdwg.mxu0
    %v2334 = vtanh.pop %v2331
    %2335 = vmatprep.subr.mxu0 0.0
    %2336 = vmatpush1.msra.mxu0 %v76
    %2337 = vmatprep.subr.mxu0 0.0
    %2338 = vmatpush1.msra.mxu0 %v77
    %2339 = vmatprep.subr.mxu0 0.0
    %2340 = vmatpush1.msra.mxu0 %v78
    %2341 = vmatprep.subr.mxu0 0.0
    %2342 = vmatpush1.msra.mxu0 %v79
    %2343 = vmatprep.subr.mxu0 0.0
    %2344 = vmatpush1.msra.mxu0 %v80
    %2345 = vmatprep.subr.mxu0 0.0
    %2346 = vmatpush1.msra.mxu0 %v81
    %2347 = vmatprep.subr.mxu0 0.0
    %2348 = vmatpush1.msra.mxu0 %v82
    %2349 = vmatprep.subr.mxu0 0.0
    %2350 = vmatpush1.msra.mxu0 %v83
    %2351 = vmatprep.subr.mxu0 0.0
    %2352 = vmatpush1.msra.mxu0 %v84
    %2353 = vmatprep.subr.mxu0 0.0
    %2354 = vmatpush1.msra.mxu0 %v85
    %2355 = vmatprep.subr.mxu0 0.0
    %2356 = vmatpush1.msra.mxu0 %v86
    %2357 = vmatprep.subr.mxu0 0.0
    %2358 = vmatpush1.msra.mxu0 %v87
    %2359 = vmatprep.subr.mxu0 0.0
    %2360 = vmatpush1.msra.mxu0 %v88
    %2361 = vmatprep.subr.mxu0 0.0
    %2362 = vmatpush1.msra.mxu0 %v89
    %2363 = vmatprep.subr.mxu0 0.0
    %2364 = vmatpush1.msra.mxu0 %v90
    %2365 = vmatprep.subr.mxu0 0.0
    %2366 = vmatpush1.msra.mxu0 %v91
    %2367 = vmatprep.subr.mxu0 0.0
    %2368 = vmatpush1.msra.mxu0 0.0
    %2369 = vmatprep.subr.mxu0 0.0
    %2370 = vmatpush1.msra.mxu0 0.0
    %2371 = vmatprep.subr.mxu0 0.0
    %2372 = vmatpush1.msra.mxu0 0.0
    %2373 = vmatprep.subr.mxu0 0.0
    %2374 = vmatpush1.msra.mxu0 0.0
    %2375 = vmatprep.subr.mxu0 0.0
    %2376 = vmatpush1.msra.mxu0 0.0
    %2377 = vmatprep.subr.mxu0 0.0
    %2378 = vmatpush1.msra.mxu0 0.0
    %2379 = vmatprep.subr.mxu0 0.0
    %2380 = vmatpush1.msra.mxu0 0.0
    %2381 = vmatprep.subr.mxu0 0.0
    %2382 = vmatpush1.msra.mxu0 0.0
    %2383 = vmatprep.subr.mxu0 0.0
    %2384 = vmatpush1.msra.mxu0 0.0
    %2385 = vmatprep.subr.mxu0 0.0
    %2386 = vmatpush1.msra.mxu0 0.0
    %2387 = vmatprep.subr.mxu0 0.0
    %2388 = vmatpush1.msra.mxu0 0.0
    %2389 = vmatprep.subr.mxu0 0.0
    %2390 = vmatpush1.msra.mxu0 0.0
    %2391 = vmatprep.subr.mxu0 0.0
    %2392 = vmatpush1.msra.mxu0 0.0
    %2393 = vmatprep.subr.mxu0 0.0
    %2394 = vmatpush1.msra.mxu0 0.0
    %2395 = vmatprep.subr.mxu0 0.0
    %2396 = vmatpush1.msra.mxu0 0.0
    %2397 = vmatprep.subr.mxu0 0.0
    %2398 = vmatpush1.msra.mxu0 0.0
    %2399 = vmatprep.mubr.f32.mxu0 0.0
    %2400 = vmatmul.mubr.f32.gmra.mrb[0].mxu0 %v2334
    %v2401 = vpop.f32.mrb[0].mxu0
    %v2402 = vadd.f32 %v104, %v2401
    %v2403 = vpop.f32.mrb[0].mxu0
    %2404 = vdwg.mxu0
    %v2405 = vadd.f32 %v1973, %v2402
    %v2406 = vadd.f32 %v2116, %v2259
    %v2407 = vmul.f32 %v2406, 2.0
    %v2408 = vadd.f32 %v2405, %v2407
    %v2409 = vmul.f32 %v2408, 0.010416667
    %v2410 = vadd.f32 %v1834, %v2409
    %2411 = vmatprep.subr.mxu0 0.0
    %2412 = vmatpush1.msra.mxu0 %v60
    %2413 = vmatprep.subr.mxu0 0.0
    %2414 = vmatpush1.msra.mxu0 %v61
    %2415 = vmatprep.subr.mxu0 0.0
    %2416 = vmatpush1.msra.mxu0 %v62
    %2417 = vmatprep.subr.mxu0 0.0
    %2418 = vmatpush1.msra.mxu0 %v63
    %2419 = vmatprep.subr.mxu0 0.0
    %2420 = vmatpush1.msra.mxu0 %v64
    %2421 = vmatprep.subr.mxu0 0.0
    %2422 = vmatpush1.msra.mxu0 %v65
    %2423 = vmatprep.subr.mxu0 0.0
    %2424 = vmatpush1.msra.mxu0 %v66
    %2425 = vmatprep.subr.mxu0 0.0
    %2426 = vmatpush1.msra.mxu0 %v67
    %2427 = vmatprep.subr.mxu0 0.0
    %2428 = vmatpush1.msra.mxu0 %v68
    %2429 = vmatprep.subr.mxu0 0.0
    %2430 = vmatpush1.msra.mxu0 %v69
    %2431 = vmatprep.subr.mxu0 0.0
    %2432 = vmatpush1.msra.mxu0 %v70
    %2433 = vmatprep.subr.mxu0 0.0
    %2434 = vmatpush1.msra.mxu0 %v71
    %2435 = vmatprep.subr.mxu0 0.0
    %2436 = vmatpush1.msra.mxu0 %v72
    %2437 = vmatprep.subr.mxu0 0.0
    %2438 = vmatpush1.msra.mxu0 %v73
    %2439 = vmatprep.subr.mxu0 0.0
    %2440 = vmatpush1.msra.mxu0 %v74
    %2441 = vmatprep.subr.mxu0 0.0
    %2442 = vmatpush1.msra.mxu0 %v75
    %2443 = vmatprep.subr.mxu0 0.0
    %2444 = vmatpush1.msra.mxu0 0.0
    %2445 = vmatprep.subr.mxu0 0.0
    %2446 = vmatpush1.msra.mxu0 0.0
    %2447 = vmatprep.subr.mxu0 0.0
    %2448 = vmatpush1.msra.mxu0 0.0
    %2449 = vmatprep.subr.mxu0 0.0
    %2450 = vmatpush1.msra.mxu0 0.0
    %2451 = vmatprep.subr.mxu0 0.0
    %2452 = vmatpush1.msra.mxu0 0.0
    %2453 = vmatprep.subr.mxu0 0.0
    %2454 = vmatpush1.msra.mxu0 0.0
    %2455 = vmatprep.subr.mxu0 0.0
    %2456 = vmatpush1.msra.mxu0 0.0
    %2457 = vmatprep.subr.mxu0 0.0
    %2458 = vmatpush1.msra.mxu0 0.0
    %2459 = vmatprep.subr.mxu0 0.0
    %2460 = vmatpush1.msra.mxu0 0.0
    %2461 = vmatprep.subr.mxu0 0.0
    %2462 = vmatpush1.msra.mxu0 0.0
    %2463 = vmatprep.subr.mxu0 0.0
    %2464 = vmatpush1.msra.mxu0 0.0
    %2465 = vmatprep.subr.mxu0 0.0
    %2466 = vmatpush1.msra.mxu0 0.0
    %2467 = vmatprep.subr.mxu0 0.0
    %2468 = vmatpush1.msra.mxu0 0.0
    %2469 = vmatprep.subr.mxu0 0.0
    %2470 = vmatpush1.msra.mxu0 0.0
    %2471 = vmatprep.subr.mxu0 0.0
    %2472 = vmatpush1.msra.mxu0 0.0
    %2473 = vmatprep.subr.mxu0 0.0
    %2474 = vmatpush1.msra.mxu0 0.0
    %2475 = vmatprep.mubr.f32.mxu0 0.0
    %2476 = vmatmul.mubr.f32.gmra.mrb[0].mxu0 %v2410
    %v2477 = vpop.f32.mrb[0].mxu0
    %v2478 = vadd.f32 %v97, %v2477
    %v2479 = vpop.f32.mrb[0].mxu0
    %2480 = vdwg.mxu0
    %v2481 = vtanh.pop %v2478
    %2482 = vmatprep.subr.mxu0 0.0
    %2483 = vmatpush1.msra.mxu0 %v76
    %2484 = vmatprep.subr.mxu0 0.0
    %2485 = vmatpush1.msra.mxu0 %v77
    %2486 = vmatprep.subr.mxu0 0.0
    %2487 = vmatpush1.msra.mxu0 %v78
    %2488 = vmatprep.subr.mxu0 0.0
    %2489 = vmatpush1.msra.mxu0 %v79
    %2490 = vmatprep.subr.mxu0 0.0
    %2491 = vmatpush1.msra.mxu0 %v80
    %2492 = vmatprep.subr.mxu0 0.0
    %2493 = vmatpush1.msra.mxu0 %v81
    %2494 = vmatprep.subr.mxu0 0.0
    %2495 = vmatpush1.msra.mxu0 %v82
    %2496 = vmatprep.subr.mxu0 0.0
    %2497 = vmatpush1.msra.mxu0 %v83
    %2498 = vmatprep.subr.mxu0 0.0
    %2499 = vmatpush1.msra.mxu0 %v84
    %2500 = vmatprep.subr.mxu0 0.0
    %2501 = vmatpush1.msra.mxu0 %v85
    %2502 = vmatprep.subr.mxu0 0.0
    %2503 = vmatpush1.msra.mxu0 %v86
    %2504 = vmatprep.subr.mxu0 0.0
    %2505 = vmatpush1.msra.mxu0 %v87
    %2506 = vmatprep.subr.mxu0 0.0
    %2507 = vmatpush1.msra.mxu0 %v88
    %2508 = vmatprep.subr.mxu0 0.0
    %2509 = vmatpush1.msra.mxu0 %v89
    %2510 = vmatprep.subr.mxu0 0.0
    %2511 = vmatpush1.msra.mxu0 %v90
    %2512 = vmatprep.subr.mxu0 0.0
    %2513 = vmatpush1.msra.mxu0 %v91
    %2514 = vmatprep.subr.mxu0 0.0
    %2515 = vmatpush1.msra.mxu0 0.0
    %2516 = vmatprep.subr.mxu0 0.0
    %2517 = vmatpush1.msra.mxu0 0.0
    %2518 = vmatprep.subr.mxu0 0.0
    %2519 = vmatpush1.msra.mxu0 0.0
    %2520 = vmatprep.subr.mxu0 0.0
    %2521 = vmatpush1.msra.mxu0 0.0
    %2522 = vmatprep.subr.mxu0 0.0
    %2523 = vmatpush1.msra.mxu0 0.0
    %2524 = vmatprep.subr.mxu0 0.0
    %2525 = vmatpush1.msra.mxu0 0.0
    %2526 = vmatprep.subr.mxu0 0.0
    %2527 = vmatpush1.msra.mxu0 0.0
    %2528 = vmatprep.subr.mxu0 0.0
    %2529 = vmatpush1.msra.mxu0 0.0
    %2530 = vmatprep.subr.mxu0 0.0
    %2531 = vmatpush1.msra.mxu0 0.0
    %2532 = vmatprep.subr.mxu0 0.0
    %2533 = vmatpush1.msra.mxu0 0.0
    %2534 = vmatprep.subr.mxu0 0.0
    %2535 = vmatpush1.msra.mxu0 0.0
    %2536 = vmatprep.subr.mxu0 0.0
    %2537 = vmatpush1.msra.mxu0 0.0
    %2538 = vmatprep.subr.mxu0 0.0
    %2539 = vmatpush1.msra.mxu0 0.0
    %2540 = vmatprep.subr.mxu0 0.0
    %2541 = vmatpush1.msra.mxu0 0.0
    %2542 = vmatprep.subr.mxu0 0.0
    %2543 = vmatpush1.msra.mxu0 0.0
    %2544 = vmatprep.subr.mxu0 0.0
    %2545 = vmatpush1.msra.mxu0 0.0
    %2546 = vmatprep.mubr.f32.mxu0 0.0
    %2547 = vmatmul.mubr.f32.gmra.mrb[0].mxu0 %v2481
    %v2548 = vpop.f32.mrb[0].mxu0
    %v2549 = vadd.f32 %v104, %v2548
    %v2550 = vpop.f32.mrb[0].mxu0
    %2551 = vdwg.mxu0
    %v2552 = vmul.f32 %v2549, 0.03125
    %v2553 = vadd.f32 %v2410, %v2552
    %2554 = vmatprep.subr.mxu0 0.0
    %2555 = vmatpush1.msra.mxu0 %v60
    %2556 = vmatprep.subr.mxu0 0.0
    %2557 = vmatpush1.msra.mxu0 %v61
    %2558 = vmatprep.subr.mxu0 0.0
    %2559 = vmatpush1.msra.mxu0 %v62
    %2560 = vmatprep.subr.mxu0 0.0
    %2561 = vmatpush1.msra.mxu0 %v63
    %2562 = vmatprep.subr.mxu0 0.0
    %2563 = vmatpush1.msra.mxu0 %v64
    %2564 = vmatprep.subr.mxu0 0.0
    %2565 = vmatpush1.msra.mxu0 %v65
    %2566 = vmatprep.subr.mxu0 0.0
    %2567 = vmatpush1.msra.mxu0 %v66
    %2568 = vmatprep.subr.mxu0 0.0
    %2569 = vmatpush1.msra.mxu0 %v67
    %2570 = vmatprep.subr.mxu0 0.0
    %2571 = vmatpush1.msra.mxu0 %v68
    %2572 = vmatprep.subr.mxu0 0.0
    %2573 = vmatpush1.msra.mxu0 %v69
    %2574 = vmatprep.subr.mxu0 0.0
    %2575 = vmatpush1.msra.mxu0 %v70
    %2576 = vmatprep.subr.mxu0 0.0
    %2577 = vmatpush1.msra.mxu0 %v71
    %2578 = vmatprep.subr.mxu0 0.0
    %2579 = vmatpush1.msra.mxu0 %v72
    %2580 = vmatprep.subr.mxu0 0.0
    %2581 = vmatpush1.msra.mxu0 %v73
    %2582 = vmatprep.subr.mxu0 0.0
    %2583 = vmatpush1.msra.mxu0 %v74
    %2584 = vmatprep.subr.mxu0 0.0
    %2585 = vmatpush1.msra.mxu0 %v75
    %2586 = vmatprep.subr.mxu0 0.0
    %2587 = vmatpush1.msra.mxu0 0.0
    %2588 = vmatprep.subr.mxu0 0.0
    %2589 = vmatpush1.msra.mxu0 0.0
    %2590 = vmatprep.subr.mxu0 0.0
    %2591 = vmatpush1.msra.mxu0 0.0
    %2592 = vmatprep.subr.mxu0 0.0
    %2593 = vmatpush1.msra.mxu0 0.0
    %2594 = vmatprep.subr.mxu0 0.0
    %2595 = vmatpush1.msra.mxu0 0.0
    %2596 = vmatprep.subr.mxu0 0.0
    %2597 = vmatpush1.msra.mxu0 0.0
    %2598 = vmatprep.subr.mxu0 0.0
    %2599 = vmatpush1.msra.mxu0 0.0
    %2600 = vmatprep.subr.mxu0 0.0
    %2601 = vmatpush1.msra.mxu0 0.0
    %2602 = vmatprep.subr.mxu0 0.0
    %2603 = vmatpush1.msra.mxu0 0.0
    %2604 = vmatprep.subr.mxu0 0.0
    %2605 = vmatpush1.msra.mxu0 0.0
    %2606 = vmatprep.subr.mxu0 0.0
    %2607 = vmatpush1.msra.mxu0 0.0
    %2608 = vmatprep.subr.mxu0 0.0
    %2609 = vmatpush1.msra.mxu0 0.0
    %2610 = vmatprep.subr.mxu0 0.0
    %2611 = vmatpush1.msra.mxu0 0.0
    %2612 = vmatprep.subr.mxu0 0.0
    %2613 = vmatpush1.msra.mxu0 0.0
    %2614 = vmatprep.subr.mxu0 0.0
    %2615 = vmatpush1.msra.mxu0 0.0
    %2616 = vmatprep.subr.mxu0 0.0
    %2617 = vmatpush1.msra.mxu0 0.0
    %2618 = vmatprep.mubr.f32.mxu0 0.0
    %2619 = vmatmul.mubr.f32.gmra.mrb[0].mxu0 %v2553
    %v2620 = vpop.f32.mrb[0].mxu0
    %v2621 = vadd.f32 %v97, %v2620
    %v2622 = vpop.f32.mrb[0].mxu0
    %2623 = vdwg.mxu0
    %v2624 = vtanh.pop %v2621
    %2625 = vmatprep.subr.mxu0 0.0
    %2626 = vmatpush1.msra.mxu0 %v76
    %2627 = vmatprep.subr.mxu0 0.0
    %2628 = vmatpush1.msra.mxu0 %v77
    %2629 = vmatprep.subr.mxu0 0.0
    %2630 = vmatpush1.msra.mxu0 %v78
    %2631 = vmatprep.subr.mxu0 0.0
    %2632 = vmatpush1.msra.mxu0 %v79
    %2633 = vmatprep.subr.mxu0 0.0
    %2634 = vmatpush1.msra.mxu0 %v80
    %2635 = vmatprep.subr.mxu0 0.0
    %2636 = vmatpush1.msra.mxu0 %v81
    %2637 = vmatprep.subr.mxu0 0.0
    %2638 = vmatpush1.msra.mxu0 %v82
    %2639 = vmatprep.subr.mxu0 0.0
    %2640 = vmatpush1.msra.mxu0 %v83
    %2641 = vmatprep.subr.mxu0 0.0
    %2642 = vmatpush1.msra.mxu0 %v84
    %2643 = vmatprep.subr.mxu0 0.0
    %2644 = vmatpush1.msra.mxu0 %v85
    %2645 = vmatprep.subr.mxu0 0.0
    %2646 = vmatpush1.msra.mxu0 %v86
    %2647 = vmatprep.subr.mxu0 0.0
    %2648 = vmatpush1.msra.mxu0 %v87
    %2649 = vmatprep.subr.mxu0 0.0
    %2650 = vmatpush1.msra.mxu0 %v88
    %2651 = vmatprep.subr.mxu0 0.0
    %2652 = vmatpush1.msra.mxu0 %v89
    %2653 = vmatprep.subr.mxu0 0.0
    %2654 = vmatpush1.msra.mxu0 %v90
    %2655 = vmatprep.subr.mxu0 0.0
    %2656 = vmatpush1.msra.mxu0 %v91
    %2657 = vmatprep.subr.mxu0 0.0
    %2658 = vmatpush1.msra.mxu0 0.0
    %2659 = vmatprep.subr.mxu0 0.0
    %2660 = vmatpush1.msra.mxu0 0.0
    %2661 = vmatprep.subr.mxu0 0.0
    %2662 = vmatpush1.msra.mxu0 0.0
    %2663 = vmatprep.subr.mxu0 0.0
    %2664 = vmatpush1.msra.mxu0 0.0
    %2665 = vmatprep.subr.mxu0 0.0
    %2666 = vmatpush1.msra.mxu0 0.0
    %2667 = vmatprep.subr.mxu0 0.0
    %2668 = vmatpush1.msra.mxu0 0.0
    %2669 = vmatprep.subr.mxu0 0.0
    %2670 = vmatpush1.msra.mxu0 0.0
    %2671 = vmatprep.subr.mxu0 0.0
    %2672 = vmatpush1.msra.mxu0 0.0
    %2673 = vmatprep.subr.mxu0 0.0
    %2674 = vmatpush1.msra.mxu0 0.0
    %2675 = vmatprep.subr.mxu0 0.0
    %2676 = vmatpush1.msra.mxu0 0.0
    %2677 = vmatprep.subr.mxu0 0.0
    %2678 = vmatpush1.msra.mxu0 0.0
    %2679 = vmatprep.subr.mxu0 0.0
    %2680 = vmatpush1.msra.mxu0 0.0
    %2681 = vmatprep.subr.mxu0 0.0
    %2682 = vmatpush1.msra.mxu0 0.0
    %2683 = vmatprep.subr.mxu0 0.0
    %2684 = vmatpush1.msra.mxu0 0.0
    %2685 = vmatprep.subr.mxu0 0.0
    %2686 = vmatpush1.msra.mxu0 0.0
    %2687 = vmatprep.subr.mxu0 0.0
    %2688 = vmatpush1.msra.mxu0 0.0
    %2689 = vmatprep.mubr.f32.mxu0 0.0
    %2690 = vmatmul.mubr.f32.gmra.mrb[0].mxu0 %v2624
    %v2691 = vpop.f32.mrb[0].mxu0
    %v2692 = vadd.f32 %v104, %v2691
    %v2693 = vpop.f32.mrb[0].mxu0
    %2694 = vdwg.mxu0
    %v2695 = vmul.f32 %v2692, 0.03125
    %v2696 = vadd.f32 %v2410, %v2695
    %2697 = vmatprep.subr.mxu0 0.0
    %2698 = vmatpush1.msra.mxu0 %v60
    %2699 = vmatprep.subr.mxu0 0.0
    %2700 = vmatpush1.msra.mxu0 %v61
    %2701 = vmatprep.subr.mxu0 0.0
    %2702 = vmatpush1.msra.mxu0 %v62
    %2703 = vmatprep.subr.mxu0 0.0
    %2704 = vmatpush1.msra.mxu0 %v63
    %2705 = vmatprep.subr.mxu0 0.0
    %2706 = vmatpush1.msra.mxu0 %v64
    %2707 = vmatprep.subr.mxu0 0.0
    %2708 = vmatpush1.msra.mxu0 %v65
    %2709 = vmatprep.subr.mxu0 0.0
    %2710 = vmatpush1.msra.mxu0 %v66
    %2711 = vmatprep.subr.mxu0 0.0
    %2712 = vmatpush1.msra.mxu0 %v67
    %2713 = vmatprep.subr.mxu0 0.0
    %2714 = vmatpush1.msra.mxu0 %v68
    %2715 = vmatprep.subr.mxu0 0.0
    %2716 = vmatpush1.msra.mxu0 %v69
    %2717 = vmatprep.subr.mxu0 0.0
    %2718 = vmatpush1.msra.mxu0 %v70
    %2719 = vmatprep.subr.mxu0 0.0
    %2720 = vmatpush1.msra.mxu0 %v71
    %2721 = vmatprep.subr.mxu0 0.0
    %2722 = vmatpush1.msra.mxu0 %v72
    %2723 = vmatprep.subr.mxu0 0.0
    %2724 = vmatpush1.msra.mxu0 %v73
    %2725 = vmatprep.subr.mxu0 0.0
    %2726 = vmatpush1.msra.mxu0 %v74
    %2727 = vmatprep.subr.mxu0 0.0
    %2728 = vmatpush1.msra.mxu0 %v75
    %2729 = vmatprep.subr.mxu0 0.0
    %2730 = vmatpush1.msra.mxu0 0.0
    %2731 = vmatprep.subr.mxu0 0.0
    %2732 = vmatpush1.msra.mxu0 0.0
    %2733 = vmatprep.subr.mxu0 0.0
    %2734 = vmatpush1.msra.mxu0 0.0
    %2735 = vmatprep.subr.mxu0 0.0
    %2736 = vmatpush1.msra.mxu0 0.0
    %2737 = vmatprep.subr.mxu0 0.0
    %2738 = vmatpush1.msra.mxu0 0.0
    %2739 = vmatprep.subr.mxu0 0.0
    %2740 = vmatpush1.msra.mxu0 0.0
    %2741 = vmatprep.subr.mxu0 0.0
    %2742 = vmatpush1.msra.mxu0 0.0
    %2743 = vmatprep.subr.mxu0 0.0
    %2744 = vmatpush1.msra.mxu0 0.0
    %2745 = vmatprep.subr.mxu0 0.0
    %2746 = vmatpush1.msra.mxu0 0.0
    %2747 = vmatprep.subr.mxu0 0.0
    %2748 = vmatpush1.msra.mxu0 0.0
    %2749 = vmatprep.subr.mxu0 0.0
    %2750 = vmatpush1.msra.mxu0 0.0
    %2751 = vmatprep.subr.mxu0 0.0
    %2752 = vmatpush1.msra.mxu0 0.0
    %2753 = vmatprep.subr.mxu0 0.0
    %2754 = vmatpush1.msra.mxu0 0.0
    %2755 = vmatprep.subr.mxu0 0.0
    %2756 = vmatpush1.msra.mxu0 0.0
    %2757 = vmatprep.subr.mxu0 0.0
    %2758 = vmatpush1.msra.mxu0 0.0
    %2759 = vmatprep.subr.mxu0 0.0
    %2760 = vmatpush1.msra.mxu0 0.0
    %2761 = vmatprep.mubr.f32.mxu0 0.0
    %2762 = vmatmul.mubr.f32.gmra.mrb[0].mxu0 %v2696
    %v2763 = vpop.f32.mrb[0].mxu0
    %v2764 = vadd.f32 %v97, %v2763
    %v2765 = vpop.f32.mrb[0].mxu0
    %2766 = vdwg.mxu0
    %v2767 = vtanh.pop %v2764
    %2768 = vmatprep.subr.mxu0 0.0
    %2769 = vmatpush1.msra.mxu0 %v76
    %2770 = vmatprep.subr.mxu0 0.0
    %2771 = vmatpush1.msra.mxu0 %v77
    %2772 = vmatprep.subr.mxu0 0.0
    %2773 = vmatpush1.msra.mxu0 %v78
    %2774 = vmatprep.subr.mxu0 0.0
    %2775 = vmatpush1.msra.mxu0 %v79
    %2776 = vmatprep.subr.mxu0 0.0
    %2777 = vmatpush1.msra.mxu0 %v80
    %2778 = vmatprep.subr.mxu0 0.0
    %2779 = vmatpush1.msra.mxu0 %v81
    %2780 = vmatprep.subr.mxu0 0.0
    %2781 = vmatpush1.msra.mxu0 %v82
    %2782 = vmatprep.subr.mxu0 0.0
    %2783 = vmatpush1.msra.mxu0 %v83
    %2784 = vmatprep.subr.mxu0 0.0
    %2785 = vmatpush1.msra.mxu0 %v84
    %2786 = vmatprep.subr.mxu0 0.0
    %2787 = vmatpush1.msra.mxu0 %v85
    %2788 = vmatprep.subr.mxu0 0.0
    %2789 = vmatpush1.msra.mxu0 %v86
    %2790 = vmatprep.subr.mxu0 0.0
    %2791 = vmatpush1.msra.mxu0 %v87
    %2792 = vmatprep.subr.mxu0 0.0
    %2793 = vmatpush1.msra.mxu0 %v88
    %2794 = vmatprep.subr.mxu0 0.0
    %2795 = vmatpush1.msra.mxu0 %v89
    %2796 = vmatprep.subr.mxu0 0.0
    %2797 = vmatpush1.msra.mxu0 %v90
    %2798 = vmatprep.subr.mxu0 0.0
    %2799 = vmatpush1.msra.mxu0 %v91
    %2800 = vmatprep.subr.mxu0 0.0
    %2801 = vmatpush1.msra.mxu0 0.0
    %2802 = vmatprep.subr.mxu0 0.0
    %2803 = vmatpush1.msra.mxu0 0.0
    %2804 = vmatprep.subr.mxu0 0.0
    %2805 = vmatpush1.msra.mxu0 0.0
    %2806 = vmatprep.subr.mxu0 0.0
    %2807 = vmatpush1.msra.mxu0 0.0
    %2808 = vmatprep.subr.mxu0 0.0
    %2809 = vmatpush1.msra.mxu0 0.0
    %2810 = vmatprep.subr.mxu0 0.0
    %2811 = vmatpush1.msra.mxu0 0.0
    %2812 = vmatprep.subr.mxu0 0.0
    %2813 = vmatpush1.msra.mxu0 0.0
    %2814 = vmatprep.subr.mxu0 0.0
    %2815 = vmatpush1.msra.mxu0 0.0
    %2816 = vmatprep.subr.mxu0 0.0
    %2817 = vmatpush1.msra.mxu0 0.0
    %2818 = vmatprep.subr.mxu0 0.0
    %2819 = vmatpush1.msra.mxu0 0.0
    %2820 = vmatprep.subr.mxu0 0.0
    %2821 = vmatpush1.msra.mxu0 0.0
    %2822 = vmatprep.subr.mxu0 0.0
    %2823 = vmatpush1.msra.mxu0 0.0
    %2824 = vmatprep.subr.mxu0 0.0
    %2825 = vmatpush1.msra.mxu0 0.0
    %2826 = vmatprep.subr.mxu0 0.0
    %2827 = vmatpush1.msra.mxu0 0.0
    %2828 = vmatprep.subr.mxu0 0.0
    %2829 = vmatpush1.msra.mxu0 0.0
    %2830 = vmatprep.subr.mxu0 0.0
    %2831 = vmatpush1.msra.mxu0 0.0
    %2832 = vmatprep.mubr.f32.mxu0 0.0
    %2833 = vmatmul.mubr.f32.gmra.mrb[0].mxu0 %v2767
    %v2834 = vpop.f32.mrb[0].mxu0
    %v2835 = vadd.f32 %v104, %v2834
    %v2836 = vpop.f32.mrb[0].mxu0
    %2837 = vdwg.mxu0
    %v2838 = vmul.f32 %v2835, 0.0625
    %v2839 = vadd.f32 %v2410, %v2838
    %2840 = vmatprep.subr.mxu0 0.0
    %2841 = vmatpush1.msra.mxu0 %v60
    %2842 = vmatprep.subr.mxu0 0.0
    %2843 = vmatpush1.msra.mxu0 %v61
    %2844 = vmatprep.subr.mxu0 0.0
    %2845 = vmatpush1.msra.mxu0 %v62
    %2846 = vmatprep.subr.mxu0 0.0
    %2847 = vmatpush1.msra.mxu0 %v63
    %2848 = vmatprep.subr.mxu0 0.0
    %2849 = vmatpush1.msra.mxu0 %v64
    %2850 = vmatprep.subr.mxu0 0.0
    %2851 = vmatpush1.msra.mxu0 %v65
    %2852 = vmatprep.subr.mxu0 0.0
    %2853 = vmatpush1.msra.mxu0 %v66
    %2854 = vmatprep.subr.mxu0 0.0
    %2855 = vmatpush1.msra.mxu0 %v67
    %2856 = vmatprep.subr.mxu0 0.0
    %2857 = vmatpush1.msra.mxu0 %v68
    %2858 = vmatprep.subr.mxu0 0.0
    %2859 = vmatpush1.msra.mxu0 %v69
    %2860 = vmatprep.subr.mxu0 0.0
    %2861 = vmatpush1.msra.mxu0 %v70
    %2862 = vmatprep.subr.mxu0 0.0
    %2863 = vmatpush1.msra.mxu0 %v71
    %2864 = vmatprep.subr.mxu0 0.0
    %2865 = vmatpush1.msra.mxu0 %v72
    %2866 = vmatprep.subr.mxu0 0.0
    %2867 = vmatpush1.msra.mxu0 %v73
    %2868 = vmatprep.subr.mxu0 0.0
    %2869 = vmatpush1.msra.mxu0 %v74
    %2870 = vmatprep.subr.mxu0 0.0
    %2871 = vmatpush1.msra.mxu0 %v75
    %2872 = vmatprep.subr.mxu0 0.0
    %2873 = vmatpush1.msra.mxu0 0.0
    %2874 = vmatprep.subr.mxu0 0.0
    %2875 = vmatpush1.msra.mxu0 0.0
    %2876 = vmatprep.subr.mxu0 0.0
    %2877 = vmatpush1.msra.mxu0 0.0
    %2878 = vmatprep.subr.mxu0 0.0
    %2879 = vmatpush1.msra.mxu0 0.0
    %2880 = vmatprep.subr.mxu0 0.0
    %2881 = vmatpush1.msra.mxu0 0.0
    %2882 = vmatprep.subr.mxu0 0.0
    %2883 = vmatpush1.msra.mxu0 0.0
    %2884 = vmatprep.subr.mxu0 0.0
    %2885 = vmatpush1.msra.mxu0 0.0
    %2886 = vmatprep.subr.mxu0 0.0
    %2887 = vmatpush1.msra.mxu0 0.0
    %2888 = vmatprep.subr.mxu0 0.0
    %2889 = vmatpush1.msra.mxu0 0.0
    %2890 = vmatprep.subr.mxu0 0.0
    %2891 = vmatpush1.msra.mxu0 0.0
    %2892 = vmatprep.subr.mxu0 0.0
    %2893 = vmatpush1.msra.mxu0 0.0
    %2894 = vmatprep.subr.mxu0 0.0
    %2895 = vmatpush1.msra.mxu0 0.0
    %2896 = vmatprep.subr.mxu0 0.0
    %2897 = vmatpush1.msra.mxu0 0.0
    %2898 = vmatprep.subr.mxu0 0.0
    %2899 = vmatpush1.msra.mxu0 0.0
    %2900 = vmatprep.subr.mxu0 0.0
    %2901 = vmatpush1.msra.mxu0 0.0
    %2902 = vmatprep.subr.mxu0 0.0
    %2903 = vmatpush1.msra.mxu0 0.0
    %2904 = vmatprep.mubr.f32.mxu0 0.0
    %2905 = vmatmul.mubr.f32.gmra.mrb[0].mxu0 %v2839
    %v2906 = vpop.f32.mrb[0].mxu0
    %v2907 = vadd.f32 %v97, %v2906
    %v2908 = vpop.f32.mrb[0].mxu0
    %2909 = vdwg.mxu0
    %v2910 = vtanh.pop %v2907
    %2911 = vmatprep.subr.mxu0 0.0
    %2912 = vmatpush1.msra.mxu0 %v76
    %2913 = vmatprep.subr.mxu0 0.0
    %2914 = vmatpush1.msra.mxu0 %v77
    %2915 = vmatprep.subr.mxu0 0.0
    %2916 = vmatpush1.msra.mxu0 %v78
    %2917 = vmatprep.subr.mxu0 0.0
    %2918 = vmatpush1.msra.mxu0 %v79
    %2919 = vmatprep.subr.mxu0 0.0
    %2920 = vmatpush1.msra.mxu0 %v80
    %2921 = vmatprep.subr.mxu0 0.0
    %2922 = vmatpush1.msra.mxu0 %v81
    %2923 = vmatprep.subr.mxu0 0.0
    %2924 = vmatpush1.msra.mxu0 %v82
    %2925 = vmatprep.subr.mxu0 0.0
    %2926 = vmatpush1.msra.mxu0 %v83
    %2927 = vmatprep.subr.mxu0 0.0
    %2928 = vmatpush1.msra.mxu0 %v84
    %2929 = vmatprep.subr.mxu0 0.0
    %2930 = vmatpush1.msra.mxu0 %v85
    %2931 = vmatprep.subr.mxu0 0.0
    %2932 = vmatpush1.msra.mxu0 %v86
    %2933 = vmatprep.subr.mxu0 0.0
    %2934 = vmatpush1.msra.mxu0 %v87
    %2935 = vmatprep.subr.mxu0 0.0
    %2936 = vmatpush1.msra.mxu0 %v88
    %2937 = vmatprep.subr.mxu0 0.0
    %2938 = vmatpush1.msra.mxu0 %v89
    %2939 = vmatprep.subr.mxu0 0.0
    %2940 = vmatpush1.msra.mxu0 %v90
    %2941 = vmatprep.subr.mxu0 0.0
    %2942 = vmatpush1.msra.mxu0 %v91
    %2943 = vmatprep.subr.mxu0 0.0
    %2944 = vmatpush1.msra.mxu0 0.0
    %2945 = vmatprep.subr.mxu0 0.0
    %2946 = vmatpush1.msra.mxu0 0.0
    %2947 = vmatprep.subr.mxu0 0.0
    %2948 = vmatpush1.msra.mxu0 0.0
    %2949 = vmatprep.subr.mxu0 0.0
    %2950 = vmatpush1.msra.mxu0 0.0
    %2951 = vmatprep.subr.mxu0 0.0
    %2952 = vmatpush1.msra.mxu0 0.0
    %2953 = vmatprep.subr.mxu0 0.0
    %2954 = vmatpush1.msra.mxu0 0.0
    %2955 = vmatprep.subr.mxu0 0.0
    %2956 = vmatpush1.msra.mxu0 0.0
    %2957 = vmatprep.subr.mxu0 0.0
    %2958 = vmatpush1.msra.mxu0 0.0
    %2959 = vmatprep.subr.mxu0 0.0
    %2960 = vmatpush1.msra.mxu0 0.0
    %2961 = vmatprep.subr.mxu0 0.0
    %2962 = vmatpush1.msra.mxu0 0.0
    %2963 = vmatprep.subr.mxu0 0.0
    %2964 = vmatpush1.msra.mxu0 0.0
    %2965 = vmatprep.subr.mxu0 0.0
    %2966 = vmatpush1.msra.mxu0 0.0
    %2967 = vmatprep.subr.mxu0 0.0
    %2968 = vmatpush1.msra.mxu0 0.0
    %2969 = vmatprep.subr.mxu0 0.0
    %2970 = vmatpush1.msra.mxu0 0.0
    %2971 = vmatprep.subr.mxu0 0.0
    %2972 = vmatpush1.msra.mxu0 0.0
    %2973 = vmatprep.subr.mxu0 0.0
    %2974 = vmatpush1.msra.mxu0 0.0
    %2975 = vmatprep.mubr.f32.mxu0 0.0
    %2976 = vmatmul.mubr.f32.gmra.mrb[0].mxu0 %v2910
    %v2977 = vpop.f32.mrb[0].mxu0
    %v2978 = vadd.f32 %v104, %v2977
    %v2979 = vpop.f32.mrb[0].mxu0
    %2980 = vdwg.mxu0
    %v2981 = vadd.f32 %v2549, %v2978
    %v2982 = vadd.f32 %v2692, %v2835
    %v2983 = vmul.f32 %v2982, 2.0
    %v2984 = vadd.f32 %v2981, %v2983
    %v2985 = vmul.f32 %v2984, 0.010416667
    %v2986 = vadd.f32 %v2410, %v2985
    %2987 = vmatprep.subr.mxu0 0.0
    %2988 = vmatpush1.msra.mxu0 %v60
    %2989 = vmatprep.subr.mxu0 0.0
    %2990 = vmatpush1.msra.mxu0 %v61
    %2991 = vmatprep.subr.mxu0 0.0
    %2992 = vmatpush1.msra.mxu0 %v62
    %2993 = vmatprep.subr.mxu0 0.0
    %2994 = vmatpush1.msra.mxu0 %v63
    %2995 = vmatprep.subr.mxu0 0.0
    %2996 = vmatpush1.msra.mxu0 %v64
    %2997 = vmatprep.subr.mxu0 0.0
    %2998 = vmatpush1.msra.mxu0 %v65
    %2999 = vmatprep.subr.mxu0 0.0
    %3000 = vmatpush1.msra.mxu0 %v66
    %3001 = vmatprep.subr.mxu0 0.0
    %3002 = vmatpush1.msra.mxu0 %v67
    %3003 = vmatprep.subr.mxu0 0.0
    %3004 = vmatpush1.msra.mxu0 %v68
    %3005 = vmatprep.subr.mxu0 0.0
    %3006 = vmatpush1.msra.mxu0 %v69
    %3007 = vmatprep.subr.mxu0 0.0
    %3008 = vmatpush1.msra.mxu0 %v70
    %3009 = vmatprep.subr.mxu0 0.0
    %3010 = vmatpush1.msra.mxu0 %v71
    %3011 = vmatprep.subr.mxu0 0.0
    %3012 = vmatpush1.msra.mxu0 %v72
    %3013 = vmatprep.subr.mxu0 0.0
    %3014 = vmatpush1.msra.mxu0 %v73
    %3015 = vmatprep.subr.mxu0 0.0
    %3016 = vmatpush1.msra.mxu0 %v74
    %3017 = vmatprep.subr.mxu0 0.0
    %3018 = vmatpush1.msra.mxu0 %v75
    %3019 = vmatprep.subr.mxu0 0.0
    %3020 = vmatpush1.msra.mxu0 0.0
    %3021 = vmatprep.subr.mxu0 0.0
    %3022 = vmatpush1.msra.mxu0 0.0
    %3023 = vmatprep.subr.mxu0 0.0
    %3024 = vmatpush1.msra.mxu0 0.0
    %3025 = vmatprep.subr.mxu0 0.0
    %3026 = vmatpush1.msra.mxu0 0.0
    %3027 = vmatprep.subr.mxu0 0.0
    %3028 = vmatpush1.msra.mxu0 0.0
    %3029 = vmatprep.subr.mxu0 0.0
    %3030 = vmatpush1.msra.mxu0 0.0
    %3031 = vmatprep.subr.mxu0 0.0
    %3032 = vmatpush1.msra.mxu0 0.0
    %3033 = vmatprep.subr.mxu0 0.0
    %3034 = vmatpush1.msra.mxu0 0.0
    %3035 = vmatprep.subr.mxu0 0.0
    %3036 = vmatpush1.msra.mxu0 0.0
    %3037 = vmatprep.subr.mxu0 0.0
    %3038 = vmatpush1.msra.mxu0 0.0
    %3039 = vmatprep.subr.mxu0 0.0
    %3040 = vmatpush1.msra.mxu0 0.0
    %3041 = vmatprep.subr.mxu0 0.0
    %3042 = vmatpush1.msra.mxu0 0.0
    %3043 = vmatprep.subr.mxu0 0.0
    %3044 = vmatpush1.msra.mxu0 0.0
    %3045 = vmatprep.subr.mxu0 0.0
    %3046 = vmatpush1.msra.mxu0 0.0
    %3047 = vmatprep.subr.mxu0 0.0
    %3048 = vmatpush1.msra.mxu0 0.0
    %3049 = vmatprep.subr.mxu0 0.0
    %3050 = vmatpush1.msra.mxu0 0.0
    %3051 = vmatprep.mubr.f32.mxu0 0.0
    %3052 = vmatmul.mubr.f32.gmra.mrb[0].mxu0 %v2986
    %v3053 = vpop.f32.mrb[0].mxu0
    %v3054 = vadd.f32 %v97, %v3053
    %v3055 = vpop.f32.mrb[0].mxu0
    %3056 = vdwg.mxu0
    %v3057 = vtanh.pop %v3054
    %3058 = vmatprep.subr.mxu0 0.0
    %3059 = vmatpush1.msra.mxu0 %v76
    %3060 = vmatprep.subr.mxu0 0.0
    %3061 = vmatpush1.msra.mxu0 %v77
    %3062 = vmatprep.subr.mxu0 0.0
    %3063 = vmatpush1.msra.mxu0 %v78
    %3064 = vmatprep.subr.mxu0 0.0
    %3065 = vmatpush1.msra.mxu0 %v79
    %3066 = vmatprep.subr.mxu0 0.0
    %3067 = vmatpush1.msra.mxu0 %v80
    %3068 = vmatprep.subr.mxu0 0.0
    %3069 = vmatpush1.msra.mxu0 %v81
    %3070 = vmatprep.subr.mxu0 0.0
    %3071 = vmatpush1.msra.mxu0 %v82
    %3072 = vmatprep.subr.mxu0 0.0
    %3073 = vmatpush1.msra.mxu0 %v83
    %3074 = vmatprep.subr.mxu0 0.0
    %3075 = vmatpush1.msra.mxu0 %v84
    %3076 = vmatprep.subr.mxu0 0.0
    %3077 = vmatpush1.msra.mxu0 %v85
    %3078 = vmatprep.subr.mxu0 0.0
    %3079 = vmatpush1.msra.mxu0 %v86
    %3080 = vmatprep.subr.mxu0 0.0
    %3081 = vmatpush1.msra.mxu0 %v87
    %3082 = vmatprep.subr.mxu0 0.0
    %3083 = vmatpush1.msra.mxu0 %v88
    %3084 = vmatprep.subr.mxu0 0.0
    %3085 = vmatpush1.msra.mxu0 %v89
    %3086 = vmatprep.subr.mxu0 0.0
    %3087 = vmatpush1.msra.mxu0 %v90
    %3088 = vmatprep.subr.mxu0 0.0
    %3089 = vmatpush1.msra.mxu0 %v91
    %3090 = vmatprep.subr.mxu0 0.0
    %3091 = vmatpush1.msra.mxu0 0.0
    %3092 = vmatprep.subr.mxu0 0.0
    %3093 = vmatpush1.msra.mxu0 0.0
    %3094 = vmatprep.subr.mxu0 0.0
    %3095 = vmatpush1.msra.mxu0 0.0
    %3096 = vmatprep.subr.mxu0 0.0
    %3097 = vmatpush1.msra.mxu0 0.0
    %3098 = vmatprep.subr.mxu0 0.0
    %3099 = vmatpush1.msra.mxu0 0.0
    %3100 = vmatprep.subr.mxu0 0.0
    %3101 = vmatpush1.msra.mxu0 0.0
    %3102 = vmatprep.subr.mxu0 0.0
    %3103 = vmatpush1.msra.mxu0 0.0
    %3104 = vmatprep.subr.mxu0 0.0
    %3105 = vmatpush1.msra.mxu0 0.0
    %3106 = vmatprep.subr.mxu0 0.0
    %3107 = vmatpush1.msra.mxu0 0.0
    %3108 = vmatprep.subr.mxu0 0.0
    %3109 = vmatpush1.msra.mxu0 0.0
    %3110 = vmatprep.subr.mxu0 0.0
    %3111 = vmatpush1.msra.mxu0 0.0
    %3112 = vmatprep.subr.mxu0 0.0
    %3113 = vmatpush1.msra.mxu0 0.0
    %3114 = vmatprep.subr.mxu0 0.0
    %3115 = vmatpush1.msra.mxu0 0.0
    %3116 = vmatprep.subr.mxu0 0.0
    %3117 = vmatpush1.msra.mxu0 0.0
    %3118 = vmatprep.subr.mxu0 0.0
    %3119 = vmatpush1.msra.mxu0 0.0
    %3120 = vmatprep.subr.mxu0 0.0
    %3121 = vmatpush1.msra.mxu0 0.0
    %3122 = vmatprep.mubr.f32.mxu0 0.0
    %3123 = vmatmul.mubr.f32.gmra.mrb[0].mxu0 %v3057
    %v3124 = vpop.f32.mrb[0].mxu0
    %v3125 = vadd.f32 %v104, %v3124
    %v3126 = vpop.f32.mrb[0].mxu0
    %3127 = vdwg.mxu0
    %v3128 = vmul.f32 %v3125, 0.03125
    %v3129 = vadd.f32 %v2986, %v3128
    %3130 = vmatprep.subr.mxu0 0.0
    %3131 = vmatpush1.msra.mxu0 %v60
    %3132 = vmatprep.subr.mxu0 0.0
    %3133 = vmatpush1.msra.mxu0 %v61
    %3134 = vmatprep.subr.mxu0 0.0
    %3135 = vmatpush1.msra.mxu0 %v62
    %3136 = vmatprep.subr.mxu0 0.0
    %3137 = vmatpush1.msra.mxu0 %v63
    %3138 = vmatprep.subr.mxu0 0.0
    %3139 = vmatpush1.msra.mxu0 %v64
    %3140 = vmatprep.subr.mxu0 0.0
    %3141 = vmatpush1.msra.mxu0 %v65
    %3142 = vmatprep.subr.mxu0 0.0
    %3143 = vmatpush1.msra.mxu0 %v66
    %3144 = vmatprep.subr.mxu0 0.0
    %3145 = vmatpush1.msra.mxu0 %v67
    %3146 = vmatprep.subr.mxu0 0.0
    %3147 = vmatpush1.msra.mxu0 %v68
    %3148 = vmatprep.subr.mxu0 0.0
    %3149 = vmatpush1.msra.mxu0 %v69
    %3150 = vmatprep.subr.mxu0 0.0
    %3151 = vmatpush1.msra.mxu0 %v70
    %3152 = vmatprep.subr.mxu0 0.0
    %3153 = vmatpush1.msra.mxu0 %v71
    %3154 = vmatprep.subr.mxu0 0.0
    %3155 = vmatpush1.msra.mxu0 %v72
    %3156 = vmatprep.subr.mxu0 0.0
    %3157 = vmatpush1.msra.mxu0 %v73
    %3158 = vmatprep.subr.mxu0 0.0
    %3159 = vmatpush1.msra.mxu0 %v74
    %3160 = vmatprep.subr.mxu0 0.0
    %3161 = vmatpush1.msra.mxu0 %v75
    %3162 = vmatprep.subr.mxu0 0.0
    %3163 = vmatpush1.msra.mxu0 0.0
    %3164 = vmatprep.subr.mxu0 0.0
    %3165 = vmatpush1.msra.mxu0 0.0
    %3166 = vmatprep.subr.mxu0 0.0
    %3167 = vmatpush1.msra.mxu0 0.0
    %3168 = vmatprep.subr.mxu0 0.0
    %3169 = vmatpush1.msra.mxu0 0.0
    %3170 = vmatprep.subr.mxu0 0.0
    %3171 = vmatpush1.msra.mxu0 0.0
    %3172 = vmatprep.subr.mxu0 0.0
    %3173 = vmatpush1.msra.mxu0 0.0
    %3174 = vmatprep.subr.mxu0 0.0
    %3175 = vmatpush1.msra.mxu0 0.0
    %3176 = vmatprep.subr.mxu0 0.0
    %3177 = vmatpush1.msra.mxu0 0.0
    %3178 = vmatprep.subr.mxu0 0.0
    %3179 = vmatpush1.msra.mxu0 0.0
    %3180 = vmatprep.subr.mxu0 0.0
    %3181 = vmatpush1.msra.mxu0 0.0
    %3182 = vmatprep.subr.mxu0 0.0
    %3183 = vmatpush1.msra.mxu0 0.0
    %3184 = vmatprep.subr.mxu0 0.0
    %3185 = vmatpush1.msra.mxu0 0.0
    %3186 = vmatprep.subr.mxu0 0.0
    %3187 = vmatpush1.msra.mxu0 0.0
    %3188 = vmatprep.subr.mxu0 0.0
    %3189 = vmatpush1.msra.mxu0 0.0
    %3190 = vmatprep.subr.mxu0 0.0
    %3191 = vmatpush1.msra.mxu0 0.0
    %3192 = vmatprep.subr.mxu0 0.0
    %3193 = vmatpush1.msra.mxu0 0.0
    %3194 = vmatprep.mubr.f32.mxu0 0.0
    %3195 = vmatmul.mubr.f32.gmra.mrb[0].mxu0 %v3129
    %v3196 = vpop.f32.mrb[0].mxu0
    %v3197 = vadd.f32 %v97, %v3196
    %v3198 = vpop.f32.mrb[0].mxu0
    %3199 = vdwg.mxu0
    %v3200 = vtanh.pop %v3197
    %3201 = vmatprep.subr.mxu0 0.0
    %3202 = vmatpush1.msra.mxu0 %v76
    %3203 = vmatprep.subr.mxu0 0.0
    %3204 = vmatpush1.msra.mxu0 %v77
    %3205 = vmatprep.subr.mxu0 0.0
    %3206 = vmatpush1.msra.mxu0 %v78
    %3207 = vmatprep.subr.mxu0 0.0
    %3208 = vmatpush1.msra.mxu0 %v79
    %3209 = vmatprep.subr.mxu0 0.0
    %3210 = vmatpush1.msra.mxu0 %v80
    %3211 = vmatprep.subr.mxu0 0.0
    %3212 = vmatpush1.msra.mxu0 %v81
    %3213 = vmatprep.subr.mxu0 0.0
    %3214 = vmatpush1.msra.mxu0 %v82
    %3215 = vmatprep.subr.mxu0 0.0
    %3216 = vmatpush1.msra.mxu0 %v83
    %3217 = vmatprep.subr.mxu0 0.0
    %3218 = vmatpush1.msra.mxu0 %v84
    %3219 = vmatprep.subr.mxu0 0.0
    %3220 = vmatpush1.msra.mxu0 %v85
    %3221 = vmatprep.subr.mxu0 0.0
    %3222 = vmatpush1.msra.mxu0 %v86
    %3223 = vmatprep.subr.mxu0 0.0
    %3224 = vmatpush1.msra.mxu0 %v87
    %3225 = vmatprep.subr.mxu0 0.0
    %3226 = vmatpush1.msra.mxu0 %v88
    %3227 = vmatprep.subr.mxu0 0.0
    %3228 = vmatpush1.msra.mxu0 %v89
    %3229 = vmatprep.subr.mxu0 0.0
    %3230 = vmatpush1.msra.mxu0 %v90
    %3231 = vmatprep.subr.mxu0 0.0
    %3232 = vmatpush1.msra.mxu0 %v91
    %3233 = vmatprep.subr.mxu0 0.0
    %3234 = vmatpush1.msra.mxu0 0.0
    %3235 = vmatprep.subr.mxu0 0.0
    %3236 = vmatpush1.msra.mxu0 0.0
    %3237 = vmatprep.subr.mxu0 0.0
    %3238 = vmatpush1.msra.mxu0 0.0
    %3239 = vmatprep.subr.mxu0 0.0
    %3240 = vmatpush1.msra.mxu0 0.0
    %3241 = vmatprep.subr.mxu0 0.0
    %3242 = vmatpush1.msra.mxu0 0.0
    %3243 = vmatprep.subr.mxu0 0.0
    %3244 = vmatpush1.msra.mxu0 0.0
    %3245 = vmatprep.subr.mxu0 0.0
    %3246 = vmatpush1.msra.mxu0 0.0
    %3247 = vmatprep.subr.mxu0 0.0
    %3248 = vmatpush1.msra.mxu0 0.0
    %3249 = vmatprep.subr.mxu0 0.0
    %3250 = vmatpush1.msra.mxu0 0.0
    %3251 = vmatprep.subr.mxu0 0.0
    %3252 = vmatpush1.msra.mxu0 0.0
    %3253 = vmatprep.subr.mxu0 0.0
    %3254 = vmatpush1.msra.mxu0 0.0
    %3255 = vmatprep.subr.mxu0 0.0
    %3256 = vmatpush1.msra.mxu0 0.0
    %3257 = vmatprep.subr.mxu0 0.0
    %3258 = vmatpush1.msra.mxu0 0.0
    %3259 = vmatprep.subr.mxu0 0.0
    %3260 = vmatpush1.msra.mxu0 0.0
    %3261 = vmatprep.subr.mxu0 0.0
    %3262 = vmatpush1.msra.mxu0 0.0
    %3263 = vmatprep.subr.mxu0 0.0
    %3264 = vmatpush1.msra.mxu0 0.0
    %3265 = vmatprep.mubr.f32.mxu0 0.0
    %3266 = vmatmul.mubr.f32.gmra.mrb[0].mxu0 %v3200
    %v3267 = vpop.f32.mrb[0].mxu0
    %v3268 = vadd.f32 %v104, %v3267
    %v3269 = vpop.f32.mrb[0].mxu0
    %3270 = vdwg.mxu0
    %v3271 = vmul.f32 %v3268, 0.03125
    %v3272 = vadd.f32 %v2986, %v3271
    %3273 = vmatprep.subr.mxu0 0.0
    %3274 = vmatpush1.msra.mxu0 %v60
    %3275 = vmatprep.subr.mxu0 0.0
    %3276 = vmatpush1.msra.mxu0 %v61
    %3277 = vmatprep.subr.mxu0 0.0
    %3278 = vmatpush1.msra.mxu0 %v62
    %3279 = vmatprep.subr.mxu0 0.0
    %3280 = vmatpush1.msra.mxu0 %v63
    %3281 = vmatprep.subr.mxu0 0.0
    %3282 = vmatpush1.msra.mxu0 %v64
    %3283 = vmatprep.subr.mxu0 0.0
    %3284 = vmatpush1.msra.mxu0 %v65
    %3285 = vmatprep.subr.mxu0 0.0
    %3286 = vmatpush1.msra.mxu0 %v66
    %3287 = vmatprep.subr.mxu0 0.0
    %3288 = vmatpush1.msra.mxu0 %v67
    %3289 = vmatprep.subr.mxu0 0.0
    %3290 = vmatpush1.msra.mxu0 %v68
    %3291 = vmatprep.subr.mxu0 0.0
    %3292 = vmatpush1.msra.mxu0 %v69
    %3293 = vmatprep.subr.mxu0 0.0
    %3294 = vmatpush1.msra.mxu0 %v70
    %3295 = vmatprep.subr.mxu0 0.0
    %3296 = vmatpush1.msra.mxu0 %v71
    %3297 = vmatprep.subr.mxu0 0.0
    %3298 = vmatpush1.msra.mxu0 %v72
    %3299 = vmatprep.subr.mxu0 0.0
    %3300 = vmatpush1.msra.mxu0 %v73
    %3301 = vmatprep.subr.mxu0 0.0
    %3302 = vmatpush1.msra.mxu0 %v74
    %3303 = vmatprep.subr.mxu0 0.0
    %3304 = vmatpush1.msra.mxu0 %v75
    %3305 = vmatprep.subr.mxu0 0.0
    %3306 = vmatpush1.msra.mxu0 0.0
    %3307 = vmatprep.subr.mxu0 0.0
    %3308 = vmatpush1.msra.mxu0 0.0
    %3309 = vmatprep.subr.mxu0 0.0
    %3310 = vmatpush1.msra.mxu0 0.0
    %3311 = vmatprep.subr.mxu0 0.0
    %3312 = vmatpush1.msra.mxu0 0.0
    %3313 = vmatprep.subr.mxu0 0.0
    %3314 = vmatpush1.msra.mxu0 0.0
    %3315 = vmatprep.subr.mxu0 0.0
    %3316 = vmatpush1.msra.mxu0 0.0
    %3317 = vmatprep.subr.mxu0 0.0
    %3318 = vmatpush1.msra.mxu0 0.0
    %3319 = vmatprep.subr.mxu0 0.0
    %3320 = vmatpush1.msra.mxu0 0.0
    %3321 = vmatprep.subr.mxu0 0.0
    %3322 = vmatpush1.msra.mxu0 0.0
    %3323 = vmatprep.subr.mxu0 0.0
    %3324 = vmatpush1.msra.mxu0 0.0
    %3325 = vmatprep.subr.mxu0 0.0
    %3326 = vmatpush1.msra.mxu0 0.0
    %3327 = vmatprep.subr.mxu0 0.0
    %3328 = vmatpush1.msra.mxu0 0.0
    %3329 = vmatprep.subr.mxu0 0.0
    %3330 = vmatpush1.msra.mxu0 0.0
    %3331 = vmatprep.subr.mxu0 0.0
    %3332 = vmatpush1.msra.mxu0 0.0
    %3333 = vmatprep.subr.mxu0 0.0
    %3334 = vmatpush1.msra.mxu0 0.0
    %3335 = vmatprep.subr.mxu0 0.0
    %3336 = vmatpush1.msra.mxu0 0.0
    %3337 = vmatprep.mubr.f32.mxu0 0.0
    %3338 = vmatmul.mubr.f32.gmra.mrb[0].mxu0 %v3272
    %v3339 = vpop.f32.mrb[0].mxu0
    %v3340 = vadd.f32 %v97, %v3339
    %v3341 = vpop.f32.mrb[0].mxu0
    %3342 = vdwg.mxu0
    %v3343 = vtanh.pop %v3340
    %3344 = vmatprep.subr.mxu0 0.0
    %3345 = vmatpush1.msra.mxu0 %v76
    %3346 = vmatprep.subr.mxu0 0.0
    %3347 = vmatpush1.msra.mxu0 %v77
    %3348 = vmatprep.subr.mxu0 0.0
    %3349 = vmatpush1.msra.mxu0 %v78
    %3350 = vmatprep.subr.mxu0 0.0
    %3351 = vmatpush1.msra.mxu0 %v79
    %3352 = vmatprep.subr.mxu0 0.0
    %3353 = vmatpush1.msra.mxu0 %v80
    %3354 = vmatprep.subr.mxu0 0.0
    %3355 = vmatpush1.msra.mxu0 %v81
    %3356 = vmatprep.subr.mxu0 0.0
    %3357 = vmatpush1.msra.mxu0 %v82
    %3358 = vmatprep.subr.mxu0 0.0
    %3359 = vmatpush1.msra.mxu0 %v83
    %3360 = vmatprep.subr.mxu0 0.0
    %3361 = vmatpush1.msra.mxu0 %v84
    %3362 = vmatprep.subr.mxu0 0.0
    %3363 = vmatpush1.msra.mxu0 %v85
    %3364 = vmatprep.subr.mxu0 0.0
    %3365 = vmatpush1.msra.mxu0 %v86
    %3366 = vmatprep.subr.mxu0 0.0
    %3367 = vmatpush1.msra.mxu0 %v87
    %3368 = vmatprep.subr.mxu0 0.0
    %3369 = vmatpush1.msra.mxu0 %v88
    %3370 = vmatprep.subr.mxu0 0.0
    %3371 = vmatpush1.msra.mxu0 %v89
    %3372 = vmatprep.subr.mxu0 0.0
    %3373 = vmatpush1.msra.mxu0 %v90
    %3374 = vmatprep.subr.mxu0 0.0
    %3375 = vmatpush1.msra.mxu0 %v91
    %3376 = vmatprep.subr.mxu0 0.0
    %3377 = vmatpush1.msra.mxu0 0.0
    %3378 = vmatprep.subr.mxu0 0.0
    %3379 = vmatpush1.msra.mxu0 0.0
    %3380 = vmatprep.subr.mxu0 0.0
    %3381 = vmatpush1.msra.mxu0 0.0
    %3382 = vmatprep.subr.mxu0 0.0
    %3383 = vmatpush1.msra.mxu0 0.0
    %3384 = vmatprep.subr.mxu0 0.0
    %3385 = vmatpush1.msra.mxu0 0.0
    %3386 = vmatprep.subr.mxu0 0.0
    %3387 = vmatpush1.msra.mxu0 0.0
    %3388 = vmatprep.subr.mxu0 0.0
    %3389 = vmatpush1.msra.mxu0 0.0
    %3390 = vmatprep.subr.mxu0 0.0
    %3391 = vmatpush1.msra.mxu0 0.0
    %3392 = vmatprep.subr.mxu0 0.0
    %3393 = vmatpush1.msra.mxu0 0.0
    %3394 = vmatprep.subr.mxu0 0.0
    %3395 = vmatpush1.msra.mxu0 0.0
    %3396 = vmatprep.subr.mxu0 0.0
    %3397 = vmatpush1.msra.mxu0 0.0
    %3398 = vmatprep.subr.mxu0 0.0
    %3399 = vmatpush1.msra.mxu0 0.0
    %3400 = vmatprep.subr.mxu0 0.0
    %3401 = vmatpush1.msra.mxu0 0.0
    %3402 = vmatprep.subr.mxu0 0.0
    %3403 = vmatpush1.msra.mxu0 0.0
    %3404 = vmatprep.subr.mxu0 0.0
    %3405 = vmatpush1.msra.mxu0 0.0
    %3406 = vmatprep.subr.mxu0 0.0
    %3407 = vmatpush1.msra.mxu0 0.0
    %3408 = vmatprep.mubr.f32.mxu0 0.0
    %3409 = vmatmul.mubr.f32.gmra.mrb[0].mxu0 %v3343
    %v3410 = vpop.f32.mrb[0].mxu0
    %v3411 = vadd.f32 %v104, %v3410
    %v3412 = vpop.f32.mrb[0].mxu0
    %3413 = vdwg.mxu0
    %v3414 = vmul.f32 %v3411, 0.0625
    %v3415 = vadd.f32 %v2986, %v3414
    %3416 = vmatprep.subr.mxu0 0.0
    %3417 = vmatpush1.msra.mxu0 %v60
    %3418 = vmatprep.subr.mxu0 0.0
    %3419 = vmatpush1.msra.mxu0 %v61
    %3420 = vmatprep.subr.mxu0 0.0
    %3421 = vmatpush1.msra.mxu0 %v62
    %3422 = vmatprep.subr.mxu0 0.0
    %3423 = vmatpush1.msra.mxu0 %v63
    %3424 = vmatprep.subr.mxu0 0.0
    %3425 = vmatpush1.msra.mxu0 %v64
    %3426 = vmatprep.subr.mxu0 0.0
    %3427 = vmatpush1.msra.mxu0 %v65
    %3428 = vmatprep.subr.mxu0 0.0
    %3429 = vmatpush1.msra.mxu0 %v66
    %3430 = vmatprep.subr.mxu0 0.0
    %3431 = vmatpush1.msra.mxu0 %v67
    %3432 = vmatprep.subr.mxu0 0.0
    %3433 = vmatpush1.msra.mxu0 %v68
    %3434 = vmatprep.subr.mxu0 0.0
    %3435 = vmatpush1.msra.mxu0 %v69
    %3436 = vmatprep.subr.mxu0 0.0
    %3437 = vmatpush1.msra.mxu0 %v70
    %3438 = vmatprep.subr.mxu0 0.0
    %3439 = vmatpush1.msra.mxu0 %v71
    %3440 = vmatprep.subr.mxu0 0.0
    %3441 = vmatpush1.msra.mxu0 %v72
    %3442 = vmatprep.subr.mxu0 0.0
    %3443 = vmatpush1.msra.mxu0 %v73
    %3444 = vmatprep.subr.mxu0 0.0
    %3445 = vmatpush1.msra.mxu0 %v74
    %3446 = vmatprep.subr.mxu0 0.0
    %3447 = vmatpush1.msra.mxu0 %v75
    %3448 = vmatprep.subr.mxu0 0.0
    %3449 = vmatpush1.msra.mxu0 0.0
    %3450 = vmatprep.subr.mxu0 0.0
    %3451 = vmatpush1.msra.mxu0 0.0
    %3452 = vmatprep.subr.mxu0 0.0
    %3453 = vmatpush1.msra.mxu0 0.0
    %3454 = vmatprep.subr.mxu0 0.0
    %3455 = vmatpush1.msra.mxu0 0.0
    %3456 = vmatprep.subr.mxu0 0.0
    %3457 = vmatpush1.msra.mxu0 0.0
    %3458 = vmatprep.subr.mxu0 0.0
    %3459 = vmatpush1.msra.mxu0 0.0
    %3460 = vmatprep.subr.mxu0 0.0
    %3461 = vmatpush1.msra.mxu0 0.0
    %3462 = vmatprep.subr.mxu0 0.0
    %3463 = vmatpush1.msra.mxu0 0.0
    %3464 = vmatprep.subr.mxu0 0.0
    %3465 = vmatpush1.msra.mxu0 0.0
    %3466 = vmatprep.subr.mxu0 0.0
    %3467 = vmatpush1.msra.mxu0 0.0
    %3468 = vmatprep.subr.mxu0 0.0
    %3469 = vmatpush1.msra.mxu0 0.0
    %3470 = vmatprep.subr.mxu0 0.0
    %3471 = vmatpush1.msra.mxu0 0.0
    %3472 = vmatprep.subr.mxu0 0.0
    %3473 = vmatpush1.msra.mxu0 0.0
    %3474 = vmatprep.subr.mxu0 0.0
    %3475 = vmatpush1.msra.mxu0 0.0
    %3476 = vmatprep.subr.mxu0 0.0
    %3477 = vmatpush1.msra.mxu0 0.0
    %3478 = vmatprep.subr.mxu0 0.0
    %3479 = vmatpush1.msra.mxu0 0.0
    %3480 = vmatprep.mubr.f32.mxu0 0.0
    %3481 = vmatmul.mubr.f32.gmra.mrb[0].mxu0 %v3415
    %v3482 = vpop.f32.mrb[0].mxu0
    %v3483 = vadd.f32 %v97, %v3482
    %v3484 = vpop.f32.mrb[0].mxu0
    %3485 = vdwg.mxu0
    %v3486 = vtanh.pop %v3483
    %3487 = vmatprep.subr.mxu0 0.0
    %3488 = vmatpush1.msra.mxu0 %v76
    %3489 = vmatprep.subr.mxu0 0.0
    %3490 = vmatpush1.msra.mxu0 %v77
    %3491 = vmatprep.subr.mxu0 0.0
    %3492 = vmatpush1.msra.mxu0 %v78
    %3493 = vmatprep.subr.mxu0 0.0
    %3494 = vmatpush1.msra.mxu0 %v79
    %3495 = vmatprep.subr.mxu0 0.0
    %3496 = vmatpush1.msra.mxu0 %v80
    %3497 = vmatprep.subr.mxu0 0.0
    %3498 = vmatpush1.msra.mxu0 %v81
    %3499 = vmatprep.subr.mxu0 0.0
    %3500 = vmatpush1.msra.mxu0 %v82
    %3501 = vmatprep.subr.mxu0 0.0
    %3502 = vmatpush1.msra.mxu0 %v83
    %3503 = vmatprep.subr.mxu0 0.0
    %3504 = vmatpush1.msra.mxu0 %v84
    %3505 = vmatprep.subr.mxu0 0.0
    %3506 = vmatpush1.msra.mxu0 %v85
    %3507 = vmatprep.subr.mxu0 0.0
    %3508 = vmatpush1.msra.mxu0 %v86
    %3509 = vmatprep.subr.mxu0 0.0
    %3510 = vmatpush1.msra.mxu0 %v87
    %3511 = vmatprep.subr.mxu0 0.0
    %3512 = vmatpush1.msra.mxu0 %v88
    %3513 = vmatprep.subr.mxu0 0.0
    %3514 = vmatpush1.msra.mxu0 %v89
    %3515 = vmatprep.subr.mxu0 0.0
    %3516 = vmatpush1.msra.mxu0 %v90
    %3517 = vmatprep.subr.mxu0 0.0
    %3518 = vmatpush1.msra.mxu0 %v91
    %3519 = vmatprep.subr.mxu0 0.0
    %3520 = vmatpush1.msra.mxu0 0.0
    %3521 = vmatprep.subr.mxu0 0.0
    %3522 = vmatpush1.msra.mxu0 0.0
    %3523 = vmatprep.subr.mxu0 0.0
    %3524 = vmatpush1.msra.mxu0 0.0
    %3525 = vmatprep.subr.mxu0 0.0
    %3526 = vmatpush1.msra.mxu0 0.0
    %3527 = vmatprep.subr.mxu0 0.0
    %3528 = vmatpush1.msra.mxu0 0.0
    %3529 = vmatprep.subr.mxu0 0.0
    %3530 = vmatpush1.msra.mxu0 0.0
    %3531 = vmatprep.subr.mxu0 0.0
    %3532 = vmatpush1.msra.mxu0 0.0
    %3533 = vmatprep.subr.mxu0 0.0
    %3534 = vmatpush1.msra.mxu0 0.0
    %3535 = vmatprep.subr.mxu0 0.0
    %3536 = vmatpush1.msra.mxu0 0.0
    %3537 = vmatprep.subr.mxu0 0.0
    %3538 = vmatpush1.msra.mxu0 0.0
    %3539 = vmatprep.subr.mxu0 0.0
    %3540 = vmatpush1.msra.mxu0 0.0
    %3541 = vmatprep.subr.mxu0 0.0
    %3542 = vmatpush1.msra.mxu0 0.0
    %3543 = vmatprep.subr.mxu0 0.0
    %3544 = vmatpush1.msra.mxu0 0.0
    %3545 = vmatprep.subr.mxu0 0.0
    %3546 = vmatpush1.msra.mxu0 0.0
    %3547 = vmatprep.subr.mxu0 0.0
    %3548 = vmatpush1.msra.mxu0 0.0
    %3549 = vmatprep.subr.mxu0 0.0
    %3550 = vmatpush1.msra.mxu0 0.0
    %3551 = vmatprep.mubr.f32.mxu0 0.0
    %3552 = vmatmul.mubr.f32.gmra.mrb[0].mxu0 %v3486
    %v3553 = vpop.f32.mrb[0].mxu0
    %v3554 = vadd.f32 %v104, %v3553
    %v3555 = vpop.f32.mrb[0].mxu0
    %3556 = vdwg.mxu0
    %v3557 = vadd.f32 %v3125, %v3554
    %v3558 = vadd.f32 %v3268, %v3411
    %v3559 = vmul.f32 %v3558, 2.0
    %v3560 = vadd.f32 %v3557, %v3559
    %v3561 = vmul.f32 %v3560, 0.010416667
    %v3562 = vadd.f32 %v2986, %v3561
    %3563 = vmatprep.subr.mxu0 0.0
    %3564 = vmatpush1.msra.mxu0 %v60
    %3565 = vmatprep.subr.mxu0 0.0
    %3566 = vmatpush1.msra.mxu0 %v61
    %3567 = vmatprep.subr.mxu0 0.0
    %3568 = vmatpush1.msra.mxu0 %v62
    %3569 = vmatprep.subr.mxu0 0.0
    %3570 = vmatpush1.msra.mxu0 %v63
    %3571 = vmatprep.subr.mxu0 0.0
    %3572 = vmatpush1.msra.mxu0 %v64
    %3573 = vmatprep.subr.mxu0 0.0
    %3574 = vmatpush1.msra.mxu0 %v65
    %3575 = vmatprep.subr.mxu0 0.0
    %3576 = vmatpush1.msra.mxu0 %v66
    %3577 = vmatprep.subr.mxu0 0.0
    %3578 = vmatpush1.msra.mxu0 %v67
    %3579 = vmatprep.subr.mxu0 0.0
    %3580 = vmatpush1.msra.mxu0 %v68
    %3581 = vmatprep.subr.mxu0 0.0
    %3582 = vmatpush1.msra.mxu0 %v69
    %3583 = vmatprep.subr.mxu0 0.0
    %3584 = vmatpush1.msra.mxu0 %v70
    %3585 = vmatprep.subr.mxu0 0.0
    %3586 = vmatpush1.msra.mxu0 %v71
    %3587 = vmatprep.subr.mxu0 0.0
    %3588 = vmatpush1.msra.mxu0 %v72
    %3589 = vmatprep.subr.mxu0 0.0
    %3590 = vmatpush1.msra.mxu0 %v73
    %3591 = vmatprep.subr.mxu0 0.0
    %3592 = vmatpush1.msra.mxu0 %v74
    %3593 = vmatprep.subr.mxu0 0.0
    %3594 = vmatpush1.msra.mxu0 %v75
    %3595 = vmatprep.subr.mxu0 0.0
    %3596 = vmatpush1.msra.mxu0 0.0
    %3597 = vmatprep.subr.mxu0 0.0
    %3598 = vmatpush1.msra.mxu0 0.0
    %3599 = vmatprep.subr.mxu0 0.0
    %3600 = vmatpush1.msra.mxu0 0.0
    %3601 = vmatprep.subr.mxu0 0.0
    %3602 = vmatpush1.msra.mxu0 0.0
    %3603 = vmatprep.subr.mxu0 0.0
    %3604 = vmatpush1.msra.mxu0 0.0
    %3605 = vmatprep.subr.mxu0 0.0
    %3606 = vmatpush1.msra.mxu0 0.0
    %3607 = vmatprep.subr.mxu0 0.0
    %3608 = vmatpush1.msra.mxu0 0.0
    %3609 = vmatprep.subr.mxu0 0.0
    %3610 = vmatpush1.msra.mxu0 0.0
    %3611 = vmatprep.subr.mxu0 0.0
    %3612 = vmatpush1.msra.mxu0 0.0
    %3613 = vmatprep.subr.mxu0 0.0
    %3614 = vmatpush1.msra.mxu0 0.0
    %3615 = vmatprep.subr.mxu0 0.0
    %3616 = vmatpush1.msra.mxu0 0.0
    %3617 = vmatprep.subr.mxu0 0.0
    %3618 = vmatpush1.msra.mxu0 0.0
    %3619 = vmatprep.subr.mxu0 0.0
    %3620 = vmatpush1.msra.mxu0 0.0
    %3621 = vmatprep.subr.mxu0 0.0
    %3622 = vmatpush1.msra.mxu0 0.0
    %3623 = vmatprep.subr.mxu0 0.0
    %3624 = vmatpush1.msra.mxu0 0.0
    %3625 = vmatprep.subr.mxu0 0.0
    %3626 = vmatpush1.msra.mxu0 0.0
    %3627 = vmatprep.mubr.f32.mxu0 0.0
    %3628 = vmatmul.mubr.f32.gmra.mrb[0].mxu0 %v3562
    %v3629 = vpop.f32.mrb[0].mxu0
    %v3630 = vadd.f32 %v97, %v3629
    %v3631 = vpop.f32.mrb[0].mxu0
    %3632 = vdwg.mxu0
    %v3633 = vtanh.pop %v3630
    %3634 = vmatprep.subr.mxu0 0.0
    %3635 = vmatpush1.msra.mxu0 %v76
    %3636 = vmatprep.subr.mxu0 0.0
    %3637 = vmatpush1.msra.mxu0 %v77
    %3638 = vmatprep.subr.mxu0 0.0
    %3639 = vmatpush1.msra.mxu0 %v78
    %3640 = vmatprep.subr.mxu0 0.0
    %3641 = vmatpush1.msra.mxu0 %v79
    %3642 = vmatprep.subr.mxu0 0.0
    %3643 = vmatpush1.msra.mxu0 %v80
    %3644 = vmatprep.subr.mxu0 0.0
    %3645 = vmatpush1.msra.mxu0 %v81
    %3646 = vmatprep.subr.mxu0 0.0
    %3647 = vmatpush1.msra.mxu0 %v82
    %3648 = vmatprep.subr.mxu0 0.0
    %3649 = vmatpush1.msra.mxu0 %v83
    %3650 = vmatprep.subr.mxu0 0.0
    %3651 = vmatpush1.msra.mxu0 %v84
    %3652 = vmatprep.subr.mxu0 0.0
    %3653 = vmatpush1.msra.mxu0 %v85
    %3654 = vmatprep.subr.mxu0 0.0
    %3655 = vmatpush1.msra.mxu0 %v86
    %3656 = vmatprep.subr.mxu0 0.0
    %3657 = vmatpush1.msra.mxu0 %v87
    %3658 = vmatprep.subr.mxu0 0.0
    %3659 = vmatpush1.msra.mxu0 %v88
    %3660 = vmatprep.subr.mxu0 0.0
    %3661 = vmatpush1.msra.mxu0 %v89
    %3662 = vmatprep.subr.mxu0 0.0
    %3663 = vmatpush1.msra.mxu0 %v90
    %3664 = vmatprep.subr.mxu0 0.0
    %3665 = vmatpush1.msra.mxu0 %v91
    %3666 = vmatprep.subr.mxu0 0.0
    %3667 = vmatpush1.msra.mxu0 0.0
    %3668 = vmatprep.subr.mxu0 0.0
    %3669 = vmatpush1.msra.mxu0 0.0
    %3670 = vmatprep.subr.mxu0 0.0
    %3671 = vmatpush1.msra.mxu0 0.0
    %3672 = vmatprep.subr.mxu0 0.0
    %3673 = vmatpush1.msra.mxu0 0.0
    %3674 = vmatprep.subr.mxu0 0.0
    %3675 = vmatpush1.msra.mxu0 0.0
    %3676 = vmatprep.subr.mxu0 0.0
    %3677 = vmatpush1.msra.mxu0 0.0
    %3678 = vmatprep.subr.mxu0 0.0
    %3679 = vmatpush1.msra.mxu0 0.0
    %3680 = vmatprep.subr.mxu0 0.0
    %3681 = vmatpush1.msra.mxu0 0.0
    %3682 = vmatprep.subr.mxu0 0.0
    %3683 = vmatpush1.msra.mxu0 0.0
    %3684 = vmatprep.subr.mxu0 0.0
    %3685 = vmatpush1.msra.mxu0 0.0
    %3686 = vmatprep.subr.mxu0 0.0
    %3687 = vmatpush1.msra.mxu0 0.0
    %3688 = vmatprep.subr.mxu0 0.0
    %3689 = vmatpush1.msra.mxu0 0.0
    %3690 = vmatprep.subr.mxu0 0.0
    %3691 = vmatpush1.msra.mxu0 0.0
    %3692 = vmatprep.subr.mxu0 0.0
    %3693 = vmatpush1.msra.mxu0 0.0
    %3694 = vmatprep.subr.mxu0 0.0
    %3695 = vmatpush1.msra.mxu0 0.0
    %3696 = vmatprep.subr.mxu0 0.0
    %3697 = vmatpush1.msra.mxu0 0.0
    %3698 = vmatprep.mubr.f32.mxu0 0.0
    %3699 = vmatmul.mubr.f32.gmra.mrb[0].mxu0 %v3633
    %v3700 = vpop.f32.mrb[0].mxu0
    %v3701 = vadd.f32 %v104, %v3700
    %v3702 = vpop.f32.mrb[0].mxu0
    %3703 = vdwg.mxu0
    %v3704 = vmul.f32 %v3701, 0.03125
    %v3705 = vadd.f32 %v3562, %v3704
    %3706 = vmatprep.subr.mxu0 0.0
    %3707 = vmatpush1.msra.mxu0 %v60
    %3708 = vmatprep.subr.mxu0 0.0
    %3709 = vmatpush1.msra.mxu0 %v61
    %3710 = vmatprep.subr.mxu0 0.0
    %3711 = vmatpush1.msra.mxu0 %v62
    %3712 = vmatprep.subr.mxu0 0.0
    %3713 = vmatpush1.msra.mxu0 %v63
    %3714 = vmatprep.subr.mxu0 0.0
    %3715 = vmatpush1.msra.mxu0 %v64
    %3716 = vmatprep.subr.mxu0 0.0
    %3717 = vmatpush1.msra.mxu0 %v65
    %3718 = vmatprep.subr.mxu0 0.0
    %3719 = vmatpush1.msra.mxu0 %v66
    %3720 = vmatprep.subr.mxu0 0.0
    %3721 = vmatpush1.msra.mxu0 %v67
    %3722 = vmatprep.subr.mxu0 0.0
    %3723 = vmatpush1.msra.mxu0 %v68
    %3724 = vmatprep.subr.mxu0 0.0
    %3725 = vmatpush1.msra.mxu0 %v69
    %3726 = vmatprep.subr.mxu0 0.0
    %3727 = vmatpush1.msra.mxu0 %v70
    %3728 = vmatprep.subr.mxu0 0.0
    %3729 = vmatpush1.msra.mxu0 %v71
    %3730 = vmatprep.subr.mxu0 0.0
    %3731 = vmatpush1.msra.mxu0 %v72
    %3732 = vmatprep.subr.mxu0 0.0
    %3733 = vmatpush1.msra.mxu0 %v73
    %3734 = vmatprep.subr.mxu0 0.0
    %3735 = vmatpush1.msra.mxu0 %v74
    %3736 = vmatprep.subr.mxu0 0.0
    %3737 = vmatpush1.msra.mxu0 %v75
    %3738 = vmatprep.subr.mxu0 0.0
    %3739 = vmatpush1.msra.mxu0 0.0
    %3740 = vmatprep.subr.mxu0 0.0
    %3741 = vmatpush1.msra.mxu0 0.0
    %3742 = vmatprep.subr.mxu0 0.0
    %3743 = vmatpush1.msra.mxu0 0.0
    %3744 = vmatprep.subr.mxu0 0.0
    %3745 = vmatpush1.msra.mxu0 0.0
    %3746 = vmatprep.subr.mxu0 0.0
    %3747 = vmatpush1.msra.mxu0 0.0
    %3748 = vmatprep.subr.mxu0 0.0
    %3749 = vmatpush1.msra.mxu0 0.0
    %3750 = vmatprep.subr.mxu0 0.0
    %3751 = vmatpush1.msra.mxu0 0.0
    %3752 = vmatprep.subr.mxu0 0.0
    %3753 = vmatpush1.msra.mxu0 0.0
    %3754 = vmatprep.subr.mxu0 0.0
    %3755 = vmatpush1.msra.mxu0 0.0
    %3756 = vmatprep.subr.mxu0 0.0
    %3757 = vmatpush1.msra.mxu0 0.0
    %3758 = vmatprep.subr.mxu0 0.0
    %3759 = vmatpush1.msra.mxu0 0.0
    %3760 = vmatprep.subr.mxu0 0.0
    %3761 = vmatpush1.msra.mxu0 0.0
    %3762 = vmatprep.subr.mxu0 0.0
    %3763 = vmatpush1.msra.mxu0 0.0
    %3764 = vmatprep.subr.mxu0 0.0
    %3765 = vmatpush1.msra.mxu0 0.0
    %3766 = vmatprep.subr.mxu0 0.0
    %3767 = vmatpush1.msra.mxu0 0.0
    %3768 = vmatprep.subr.mxu0 0.0
    %3769 = vmatpush1.msra.mxu0 0.0
    %3770 = vmatprep.mubr.f32.mxu0 0.0
    %3771 = vmatmul.mubr.f32.gmra.mrb[0].mxu0 %v3705
    %v3772 = vpop.f32.mrb[0].mxu0
    %v3773 = vadd.f32 %v97, %v3772
    %v3774 = vpop.f32.mrb[0].mxu0
    %3775 = vdwg.mxu0
    %v3776 = vtanh.pop %v3773
    %3777 = vmatprep.subr.mxu0 0.0
    %3778 = vmatpush1.msra.mxu0 %v76
    %3779 = vmatprep.subr.mxu0 0.0
    %3780 = vmatpush1.msra.mxu0 %v77
    %3781 = vmatprep.subr.mxu0 0.0
    %3782 = vmatpush1.msra.mxu0 %v78
    %3783 = vmatprep.subr.mxu0 0.0
    %3784 = vmatpush1.msra.mxu0 %v79
    %3785 = vmatprep.subr.mxu0 0.0
    %3786 = vmatpush1.msra.mxu0 %v80
    %3787 = vmatprep.subr.mxu0 0.0
    %3788 = vmatpush1.msra.mxu0 %v81
    %3789 = vmatprep.subr.mxu0 0.0
    %3790 = vmatpush1.msra.mxu0 %v82
    %3791 = vmatprep.subr.mxu0 0.0
    %3792 = vmatpush1.msra.mxu0 %v83
    %3793 = vmatprep.subr.mxu0 0.0
    %3794 = vmatpush1.msra.mxu0 %v84
    %3795 = vmatprep.subr.mxu0 0.0
    %3796 = vmatpush1.msra.mxu0 %v85
    %3797 = vmatprep.subr.mxu0 0.0
    %3798 = vmatpush1.msra.mxu0 %v86
    %3799 = vmatprep.subr.mxu0 0.0
    %3800 = vmatpush1.msra.mxu0 %v87
    %3801 = vmatprep.subr.mxu0 0.0
    %3802 = vmatpush1.msra.mxu0 %v88
    %3803 = vmatprep.subr.mxu0 0.0
    %3804 = vmatpush1.msra.mxu0 %v89
    %3805 = vmatprep.subr.mxu0 0.0
    %3806 = vmatpush1.msra.mxu0 %v90
    %3807 = vmatprep.subr.mxu0 0.0
    %3808 = vmatpush1.msra.mxu0 %v91
    %3809 = vmatprep.subr.mxu0 0.0
    %3810 = vmatpush1.msra.mxu0 0.0
    %3811 = vmatprep.subr.mxu0 0.0
    %3812 = vmatpush1.msra.mxu0 0.0
    %3813 = vmatprep.subr.mxu0 0.0
    %3814 = vmatpush1.msra.mxu0 0.0
    %3815 = vmatprep.subr.mxu0 0.0
    %3816 = vmatpush1.msra.mxu0 0.0
    %3817 = vmatprep.subr.mxu0 0.0
    %3818 = vmatpush1.msra.mxu0 0.0
    %3819 = vmatprep.subr.mxu0 0.0
    %3820 = vmatpush1.msra.mxu0 0.0
    %3821 = vmatprep.subr.mxu0 0.0
    %3822 = vmatpush1.msra.mxu0 0.0
    %3823 = vmatprep.subr.mxu0 0.0
    %3824 = vmatpush1.msra.mxu0 0.0
    %3825 = vmatprep.subr.mxu0 0.0
    %3826 = vmatpush1.msra.mxu0 0.0
    %3827 = vmatprep.subr.mxu0 0.0
    %3828 = vmatpush1.msra.mxu0 0.0
    %3829 = vmatprep.subr.mxu0 0.0
    %3830 = vmatpush1.msra.mxu0 0.0
    %3831 = vmatprep.subr.mxu0 0.0
    %3832 = vmatpush1.msra.mxu0 0.0
    %3833 = vmatprep.subr.mxu0 0.0
    %3834 = vmatpush1.msra.mxu0 0.0
    %3835 = vmatprep.subr.mxu0 0.0
    %3836 = vmatpush1.msra.mxu0 0.0
    %3837 = vmatprep.subr.mxu0 0.0
    %3838 = vmatpush1.msra.mxu0 0.0
    %3839 = vmatprep.subr.mxu0 0.0
    %3840 = vmatpush1.msra.mxu0 0.0
    %3841 = vmatprep.mubr.f32.mxu0 0.0
    %3842 = vmatmul.mubr.f32.gmra.mrb[0].mxu0 %v3776
    %v3843 = vpop.f32.mrb[0].mxu0
    %v3844 = vadd.f32 %v104, %v3843
    %v3845 = vpop.f32.mrb[0].mxu0
    %3846 = vdwg.mxu0
    %v3847 = vmul.f32 %v3844, 0.03125
    %v3848 = vadd.f32 %v3562, %v3847
    %3849 = vmatprep.subr.mxu0 0.0
    %3850 = vmatpush1.msra.mxu0 %v60
    %3851 = vmatprep.subr.mxu0 0.0
    %3852 = vmatpush1.msra.mxu0 %v61
    %3853 = vmatprep.subr.mxu0 0.0
    %3854 = vmatpush1.msra.mxu0 %v62
    %3855 = vmatprep.subr.mxu0 0.0
    %3856 = vmatpush1.msra.mxu0 %v63
    %3857 = vmatprep.subr.mxu0 0.0
    %3858 = vmatpush1.msra.mxu0 %v64
    %3859 = vmatprep.subr.mxu0 0.0
    %3860 = vmatpush1.msra.mxu0 %v65
    %3861 = vmatprep.subr.mxu0 0.0
    %3862 = vmatpush1.msra.mxu0 %v66
    %3863 = vmatprep.subr.mxu0 0.0
    %3864 = vmatpush1.msra.mxu0 %v67
    %3865 = vmatprep.subr.mxu0 0.0
    %3866 = vmatpush1.msra.mxu0 %v68
    %3867 = vmatprep.subr.mxu0 0.0
    %3868 = vmatpush1.msra.mxu0 %v69
    %3869 = vmatprep.subr.mxu0 0.0
    %3870 = vmatpush1.msra.mxu0 %v70
    %3871 = vmatprep.subr.mxu0 0.0
    %3872 = vmatpush1.msra.mxu0 %v71
    %3873 = vmatprep.subr.mxu0 0.0
    %3874 = vmatpush1.msra.mxu0 %v72
    %3875 = vmatprep.subr.mxu0 0.0
    %3876 = vmatpush1.msra.mxu0 %v73
    %3877 = vmatprep.subr.mxu0 0.0
    %3878 = vmatpush1.msra.mxu0 %v74
    %3879 = vmatprep.subr.mxu0 0.0
    %3880 = vmatpush1.msra.mxu0 %v75
    %3881 = vmatprep.subr.mxu0 0.0
    %3882 = vmatpush1.msra.mxu0 0.0
    %3883 = vmatprep.subr.mxu0 0.0
    %3884 = vmatpush1.msra.mxu0 0.0
    %3885 = vmatprep.subr.mxu0 0.0
    %3886 = vmatpush1.msra.mxu0 0.0
    %3887 = vmatprep.subr.mxu0 0.0
    %3888 = vmatpush1.msra.mxu0 0.0
    %3889 = vmatprep.subr.mxu0 0.0
    %3890 = vmatpush1.msra.mxu0 0.0
    %3891 = vmatprep.subr.mxu0 0.0
    %3892 = vmatpush1.msra.mxu0 0.0
    %3893 = vmatprep.subr.mxu0 0.0
    %3894 = vmatpush1.msra.mxu0 0.0
    %3895 = vmatprep.subr.mxu0 0.0
    %3896 = vmatpush1.msra.mxu0 0.0
    %3897 = vmatprep.subr.mxu0 0.0
    %3898 = vmatpush1.msra.mxu0 0.0
    %3899 = vmatprep.subr.mxu0 0.0
    %3900 = vmatpush1.msra.mxu0 0.0
    %3901 = vmatprep.subr.mxu0 0.0
    %3902 = vmatpush1.msra.mxu0 0.0
    %3903 = vmatprep.subr.mxu0 0.0
    %3904 = vmatpush1.msra.mxu0 0.0
    %3905 = vmatprep.subr.mxu0 0.0
    %3906 = vmatpush1.msra.mxu0 0.0
    %3907 = vmatprep.subr.mxu0 0.0
    %3908 = vmatpush1.msra.mxu0 0.0
    %3909 = vmatprep.subr.mxu0 0.0
    %3910 = vmatpush1.msra.mxu0 0.0
    %3911 = vmatprep.subr.mxu0 0.0
    %3912 = vmatpush1.msra.mxu0 0.0
    %3913 = vmatprep.mubr.f32.mxu0 0.0
    %3914 = vmatmul.mubr.f32.gmra.mrb[0].mxu0 %v3848
    %v3915 = vpop.f32.mrb[0].mxu0
    %v3916 = vadd.f32 %v97, %v3915
    %v3917 = vpop.f32.mrb[0].mxu0
    %3918 = vdwg.mxu0
    %v3919 = vtanh.pop %v3916
    %3920 = vmatprep.subr.mxu0 0.0
    %3921 = vmatpush1.msra.mxu0 %v76
    %3922 = vmatprep.subr.mxu0 0.0
    %3923 = vmatpush1.msra.mxu0 %v77
    %3924 = vmatprep.subr.mxu0 0.0
    %3925 = vmatpush1.msra.mxu0 %v78
    %3926 = vmatprep.subr.mxu0 0.0
    %3927 = vmatpush1.msra.mxu0 %v79
    %3928 = vmatprep.subr.mxu0 0.0
    %3929 = vmatpush1.msra.mxu0 %v80
    %3930 = vmatprep.subr.mxu0 0.0
    %3931 = vmatpush1.msra.mxu0 %v81
    %3932 = vmatprep.subr.mxu0 0.0
    %3933 = vmatpush1.msra.mxu0 %v82
    %3934 = vmatprep.subr.mxu0 0.0
    %3935 = vmatpush1.msra.mxu0 %v83
    %3936 = vmatprep.subr.mxu0 0.0
    %3937 = vmatpush1.msra.mxu0 %v84
    %3938 = vmatprep.subr.mxu0 0.0
    %3939 = vmatpush1.msra.mxu0 %v85
    %3940 = vmatprep.subr.mxu0 0.0
    %3941 = vmatpush1.msra.mxu0 %v86
    %3942 = vmatprep.subr.mxu0 0.0
    %3943 = vmatpush1.msra.mxu0 %v87
    %3944 = vmatprep.subr.mxu0 0.0
    %3945 = vmatpush1.msra.mxu0 %v88
    %3946 = vmatprep.subr.mxu0 0.0
    %3947 = vmatpush1.msra.mxu0 %v89
    %3948 = vmatprep.subr.mxu0 0.0
    %3949 = vmatpush1.msra.mxu0 %v90
    %3950 = vmatprep.subr.mxu0 0.0
    %3951 = vmatpush1.msra.mxu0 %v91
    %3952 = vmatprep.subr.mxu0 0.0
    %3953 = vmatpush1.msra.mxu0 0.0
    %3954 = vmatprep.subr.mxu0 0.0
    %3955 = vmatpush1.msra.mxu0 0.0
    %3956 = vmatprep.subr.mxu0 0.0
    %3957 = vmatpush1.msra.mxu0 0.0
    %3958 = vmatprep.subr.mxu0 0.0
    %3959 = vmatpush1.msra.mxu0 0.0
    %3960 = vmatprep.subr.mxu0 0.0
    %3961 = vmatpush1.msra.mxu0 0.0
    %3962 = vmatprep.subr.mxu0 0.0
    %3963 = vmatpush1.msra.mxu0 0.0
    %3964 = vmatprep.subr.mxu0 0.0
    %3965 = vmatpush1.msra.mxu0 0.0
    %3966 = vmatprep.subr.mxu0 0.0
    %3967 = vmatpush1.msra.mxu0 0.0
    %3968 = vmatprep.subr.mxu0 0.0
    %3969 = vmatpush1.msra.mxu0 0.0
    %3970 = vmatprep.subr.mxu0 0.0
    %3971 = vmatpush1.msra.mxu0 0.0
    %3972 = vmatprep.subr.mxu0 0.0
    %3973 = vmatpush1.msra.mxu0 0.0
    %3974 = vmatprep.subr.mxu0 0.0
    %3975 = vmatpush1.msra.mxu0 0.0
    %3976 = vmatprep.subr.mxu0 0.0
    %3977 = vmatpush1.msra.mxu0 0.0
    %3978 = vmatprep.subr.mxu0 0.0
    %3979 = vmatpush1.msra.mxu0 0.0
    %3980 = vmatprep.subr.mxu0 0.0
    %3981 = vmatpush1.msra.mxu0 0.0
    %3982 = vmatprep.subr.mxu0 0.0
    %3983 = vmatpush1.msra.mxu0 0.0
    %3984 = vmatprep.mubr.f32.mxu0 0.0
    %3985 = vmatmul.mubr.f32.gmra.mrb[0].mxu0 %v3919
    %v3986 = vpop.f32.mrb[0].mxu0
    %v3987 = vadd.f32 %v104, %v3986
    %v3988 = vpop.f32.mrb[0].mxu0
    %3989 = vdwg.mxu0
    %v3990 = vmul.f32 %v3987, 0.0625
    %v3991 = vadd.f32 %v3562, %v3990
    %3992 = vmatprep.subr.mxu0 0.0
    %3993 = vmatpush1.msra.mxu0 %v60
    %3994 = vmatprep.subr.mxu0 0.0
    %3995 = vmatpush1.msra.mxu0 %v61
    %3996 = vmatprep.subr.mxu0 0.0
    %3997 = vmatpush1.msra.mxu0 %v62
    %3998 = vmatprep.subr.mxu0 0.0
    %3999 = vmatpush1.msra.mxu0 %v63
    %4000 = vmatprep.subr.mxu0 0.0
    %4001 = vmatpush1.msra.mxu0 %v64
    %4002 = vmatprep.subr.mxu0 0.0
    %4003 = vmatpush1.msra.mxu0 %v65
    %4004 = vmatprep.subr.mxu0 0.0
    %4005 = vmatpush1.msra.mxu0 %v66
    %4006 = vmatprep.subr.mxu0 0.0
    %4007 = vmatpush1.msra.mxu0 %v67
    %4008 = vmatprep.subr.mxu0 0.0
    %4009 = vmatpush1.msra.mxu0 %v68
    %4010 = vmatprep.subr.mxu0 0.0
    %4011 = vmatpush1.msra.mxu0 %v69
    %4012 = vmatprep.subr.mxu0 0.0
    %4013 = vmatpush1.msra.mxu0 %v70
    %4014 = vmatprep.subr.mxu0 0.0
    %4015 = vmatpush1.msra.mxu0 %v71
    %4016 = vmatprep.subr.mxu0 0.0
    %4017 = vmatpush1.msra.mxu0 %v72
    %4018 = vmatprep.subr.mxu0 0.0
    %4019 = vmatpush1.msra.mxu0 %v73
    %4020 = vmatprep.subr.mxu0 0.0
    %4021 = vmatpush1.msra.mxu0 %v74
    %4022 = vmatprep.subr.mxu0 0.0
    %4023 = vmatpush1.msra.mxu0 %v75
    %4024 = vmatprep.subr.mxu0 0.0
    %4025 = vmatpush1.msra.mxu0 0.0
    %4026 = vmatprep.subr.mxu0 0.0
    %4027 = vmatpush1.msra.mxu0 0.0
    %4028 = vmatprep.subr.mxu0 0.0
    %4029 = vmatpush1.msra.mxu0 0.0
    %4030 = vmatprep.subr.mxu0 0.0
    %4031 = vmatpush1.msra.mxu0 0.0
    %4032 = vmatprep.subr.mxu0 0.0
    %4033 = vmatpush1.msra.mxu0 0.0
    %4034 = vmatprep.subr.mxu0 0.0
    %4035 = vmatpush1.msra.mxu0 0.0
    %4036 = vmatprep.subr.mxu0 0.0
    %4037 = vmatpush1.msra.mxu0 0.0
    %4038 = vmatprep.subr.mxu0 0.0
    %4039 = vmatpush1.msra.mxu0 0.0
    %4040 = vmatprep.subr.mxu0 0.0
    %4041 = vmatpush1.msra.mxu0 0.0
    %4042 = vmatprep.subr.mxu0 0.0
    %4043 = vmatpush1.msra.mxu0 0.0
    %4044 = vmatprep.subr.mxu0 0.0
    %4045 = vmatpush1.msra.mxu0 0.0
    %4046 = vmatprep.subr.mxu0 0.0
    %4047 = vmatpush1.msra.mxu0 0.0
    %4048 = vmatprep.subr.mxu0 0.0
    %4049 = vmatpush1.msra.mxu0 0.0
    %4050 = vmatprep.subr.mxu0 0.0
    %4051 = vmatpush1.msra.mxu0 0.0
    %4052 = vmatprep.subr.mxu0 0.0
    %4053 = vmatpush1.msra.mxu0 0.0
    %4054 = vmatprep.subr.mxu0 0.0
    %4055 = vmatpush1.msra.mxu0 0.0
    %4056 = vmatprep.mubr.f32.mxu0 0.0
    %4057 = vmatmul.mubr.f32.gmra.mrb[0].mxu0 %v3991
    %v4058 = vpop.f32.mrb[0].mxu0
    %v4059 = vadd.f32 %v97, %v4058
    %v4060 = vpop.f32.mrb[0].mxu0
    %4061 = vdwg.mxu0
    %v4062 = vtanh.pop %v4059
    %4063 = vmatprep.subr.mxu0 0.0
    %4064 = vmatpush1.msra.mxu0 %v76
    %4065 = vmatprep.subr.mxu0 0.0
    %4066 = vmatpush1.msra.mxu0 %v77
    %4067 = vmatprep.subr.mxu0 0.0
    %4068 = vmatpush1.msra.mxu0 %v78
    %4069 = vmatprep.subr.mxu0 0.0
    %4070 = vmatpush1.msra.mxu0 %v79
    %4071 = vmatprep.subr.mxu0 0.0
    %4072 = vmatpush1.msra.mxu0 %v80
    %4073 = vmatprep.subr.mxu0 0.0
    %4074 = vmatpush1.msra.mxu0 %v81
    %4075 = vmatprep.subr.mxu0 0.0
    %4076 = vmatpush1.msra.mxu0 %v82
    %4077 = vmatprep.subr.mxu0 0.0
    %4078 = vmatpush1.msra.mxu0 %v83
    %4079 = vmatprep.subr.mxu0 0.0
    %4080 = vmatpush1.msra.mxu0 %v84
    %4081 = vmatprep.subr.mxu0 0.0
    %4082 = vmatpush1.msra.mxu0 %v85
    %4083 = vmatprep.subr.mxu0 0.0
    %4084 = vmatpush1.msra.mxu0 %v86
    %4085 = vmatprep.subr.mxu0 0.0
    %4086 = vmatpush1.msra.mxu0 %v87
    %4087 = vmatprep.subr.mxu0 0.0
    %4088 = vmatpush1.msra.mxu0 %v88
    %4089 = vmatprep.subr.mxu0 0.0
    %4090 = vmatpush1.msra.mxu0 %v89
    %4091 = vmatprep.subr.mxu0 0.0
    %4092 = vmatpush1.msra.mxu0 %v90
    %4093 = vmatprep.subr.mxu0 0.0
    %4094 = vmatpush1.msra.mxu0 %v91
    %4095 = vmatprep.subr.mxu0 0.0
    %4096 = vmatpush1.msra.mxu0 0.0
    %4097 = vmatprep.subr.mxu0 0.0
    %4098 = vmatpush1.msra.mxu0 0.0
    %4099 = vmatprep.subr.mxu0 0.0
    %4100 = vmatpush1.msra.mxu0 0.0
    %4101 = vmatprep.subr.mxu0 0.0
    %4102 = vmatpush1.msra.mxu0 0.0
    %4103 = vmatprep.subr.mxu0 0.0
    %4104 = vmatpush1.msra.mxu0 0.0
    %4105 = vmatprep.subr.mxu0 0.0
    %4106 = vmatpush1.msra.mxu0 0.0
    %4107 = vmatprep.subr.mxu0 0.0
    %4108 = vmatpush1.msra.mxu0 0.0
    %4109 = vmatprep.subr.mxu0 0.0
    %4110 = vmatpush1.msra.mxu0 0.0
    %4111 = vmatprep.subr.mxu0 0.0
    %4112 = vmatpush1.msra.mxu0 0.0
    %4113 = vmatprep.subr.mxu0 0.0
    %4114 = vmatpush1.msra.mxu0 0.0
    %4115 = vmatprep.subr.mxu0 0.0
    %4116 = vmatpush1.msra.mxu0 0.0
    %4117 = vmatprep.subr.mxu0 0.0
    %4118 = vmatpush1.msra.mxu0 0.0
    %4119 = vmatprep.subr.mxu0 0.0
    %4120 = vmatpush1.msra.mxu0 0.0
    %4121 = vmatprep.subr.mxu0 0.0
    %4122 = vmatpush1.msra.mxu0 0.0
    %4123 = vmatprep.subr.mxu0 0.0
    %4124 = vmatpush1.msra.mxu0 0.0
    %4125 = vmatprep.subr.mxu0 0.0
    %4126 = vmatpush1.msra.mxu0 0.0
    %4127 = vmatprep.mubr.f32.mxu0 0.0
    %4128 = vmatmul.mubr.f32.gmra.mrb[0].mxu0 %v4062
    %v4129 = vpop.f32.mrb[0].mxu0
    %v4130 = vadd.f32 %v104, %v4129
    %v4131 = vpop.f32.mrb[0].mxu0
    %4132 = vdwg.mxu0
    %v4133 = vadd.f32 %v3701, %v4130
    %v4134 = vadd.f32 %v3844, %v3987
    %v4135 = vmul.f32 %v4134, 2.0
    %v4136 = vadd.f32 %v4133, %v4135
    %v4137 = vmul.f32 %v4136, 0.010416667
    %v4138 = vadd.f32 %v3562, %v4137
    %4139 = vmatprep.subr.mxu0 0.0
    %4140 = vmatpush1.msra.mxu0 %v60
    %4141 = vmatprep.subr.mxu0 0.0
    %4142 = vmatpush1.msra.mxu0 %v61
    %4143 = vmatprep.subr.mxu0 0.0
    %4144 = vmatpush1.msra.mxu0 %v62
    %4145 = vmatprep.subr.mxu0 0.0
    %4146 = vmatpush1.msra.mxu0 %v63
    %4147 = vmatprep.subr.mxu0 0.0
    %4148 = vmatpush1.msra.mxu0 %v64
    %4149 = vmatprep.subr.mxu0 0.0
    %4150 = vmatpush1.msra.mxu0 %v65
    %4151 = vmatprep.subr.mxu0 0.0
    %4152 = vmatpush1.msra.mxu0 %v66
    %4153 = vmatprep.subr.mxu0 0.0
    %4154 = vmatpush1.msra.mxu0 %v67
    %4155 = vmatprep.subr.mxu0 0.0
    %4156 = vmatpush1.msra.mxu0 %v68
    %4157 = vmatprep.subr.mxu0 0.0
    %4158 = vmatpush1.msra.mxu0 %v69
    %4159 = vmatprep.subr.mxu0 0.0
    %4160 = vmatpush1.msra.mxu0 %v70
    %4161 = vmatprep.subr.mxu0 0.0
    %4162 = vmatpush1.msra.mxu0 %v71
    %4163 = vmatprep.subr.mxu0 0.0
    %4164 = vmatpush1.msra.mxu0 %v72
    %4165 = vmatprep.subr.mxu0 0.0
    %4166 = vmatpush1.msra.mxu0 %v73
    %4167 = vmatprep.subr.mxu0 0.0
    %4168 = vmatpush1.msra.mxu0 %v74
    %4169 = vmatprep.subr.mxu0 0.0
    %4170 = vmatpush1.msra.mxu0 %v75
    %4171 = vmatprep.subr.mxu0 0.0
    %4172 = vmatpush1.msra.mxu0 0.0
    %4173 = vmatprep.subr.mxu0 0.0
    %4174 = vmatpush1.msra.mxu0 0.0
    %4175 = vmatprep.subr.mxu0 0.0
    %4176 = vmatpush1.msra.mxu0 0.0
    %4177 = vmatprep.subr.mxu0 0.0
    %4178 = vmatpush1.msra.mxu0 0.0
    %4179 = vmatprep.subr.mxu0 0.0
    %4180 = vmatpush1.msra.mxu0 0.0
    %4181 = vmatprep.subr.mxu0 0.0
    %4182 = vmatpush1.msra.mxu0 0.0
    %4183 = vmatprep.subr.mxu0 0.0
    %4184 = vmatpush1.msra.mxu0 0.0
    %4185 = vmatprep.subr.mxu0 0.0
    %4186 = vmatpush1.msra.mxu0 0.0
    %4187 = vmatprep.subr.mxu0 0.0
    %4188 = vmatpush1.msra.mxu0 0.0
    %4189 = vmatprep.subr.mxu0 0.0
    %4190 = vmatpush1.msra.mxu0 0.0
    %4191 = vmatprep.subr.mxu0 0.0
    %4192 = vmatpush1.msra.mxu0 0.0
    %4193 = vmatprep.subr.mxu0 0.0
    %4194 = vmatpush1.msra.mxu0 0.0
    %4195 = vmatprep.subr.mxu0 0.0
    %4196 = vmatpush1.msra.mxu0 0.0
    %4197 = vmatprep.subr.mxu0 0.0
    %4198 = vmatpush1.msra.mxu0 0.0
    %4199 = vmatprep.subr.mxu0 0.0
    %4200 = vmatpush1.msra.mxu0 0.0
    %4201 = vmatprep.subr.mxu0 0.0
    %4202 = vmatpush1.msra.mxu0 0.0
    %4203 = vmatprep.mubr.f32.mxu0 0.0
    %4204 = vmatmul.mubr.f32.gmra.mrb[0].mxu0 %v4138
    %v4205 = vpop.f32.mrb[0].mxu0
    %v4206 = vadd.f32 %v97, %v4205
    %v4207 = vpop.f32.mrb[0].mxu0
    %4208 = vdwg.mxu0
    %v4209 = vtanh.pop %v4206
    %4210 = vmatprep.subr.mxu0 0.0
    %4211 = vmatpush1.msra.mxu0 %v76
    %4212 = vmatprep.subr.mxu0 0.0
    %4213 = vmatpush1.msra.mxu0 %v77
    %4214 = vmatprep.subr.mxu0 0.0
    %4215 = vmatpush1.msra.mxu0 %v78
    %4216 = vmatprep.subr.mxu0 0.0
    %4217 = vmatpush1.msra.mxu0 %v79
    %4218 = vmatprep.subr.mxu0 0.0
    %4219 = vmatpush1.msra.mxu0 %v80
    %4220 = vmatprep.subr.mxu0 0.0
    %4221 = vmatpush1.msra.mxu0 %v81
    %4222 = vmatprep.subr.mxu0 0.0
    %4223 = vmatpush1.msra.mxu0 %v82
    %4224 = vmatprep.subr.mxu0 0.0
    %4225 = vmatpush1.msra.mxu0 %v83
    %4226 = vmatprep.subr.mxu0 0.0
    %4227 = vmatpush1.msra.mxu0 %v84
    %4228 = vmatprep.subr.mxu0 0.0
    %4229 = vmatpush1.msra.mxu0 %v85
    %4230 = vmatprep.subr.mxu0 0.0
    %4231 = vmatpush1.msra.mxu0 %v86
    %4232 = vmatprep.subr.mxu0 0.0
    %4233 = vmatpush1.msra.mxu0 %v87
    %4234 = vmatprep.subr.mxu0 0.0
    %4235 = vmatpush1.msra.mxu0 %v88
    %4236 = vmatprep.subr.mxu0 0.0
    %4237 = vmatpush1.msra.mxu0 %v89
    %4238 = vmatprep.subr.mxu0 0.0
    %4239 = vmatpush1.msra.mxu0 %v90
    %4240 = vmatprep.subr.mxu0 0.0
    %4241 = vmatpush1.msra.mxu0 %v91
    %4242 = vmatprep.subr.mxu0 0.0
    %4243 = vmatpush1.msra.mxu0 0.0
    %4244 = vmatprep.subr.mxu0 0.0
    %4245 = vmatpush1.msra.mxu0 0.0
    %4246 = vmatprep.subr.mxu0 0.0
    %4247 = vmatpush1.msra.mxu0 0.0
    %4248 = vmatprep.subr.mxu0 0.0
    %4249 = vmatpush1.msra.mxu0 0.0
    %4250 = vmatprep.subr.mxu0 0.0
    %4251 = vmatpush1.msra.mxu0 0.0
    %4252 = vmatprep.subr.mxu0 0.0
    %4253 = vmatpush1.msra.mxu0 0.0
    %4254 = vmatprep.subr.mxu0 0.0
    %4255 = vmatpush1.msra.mxu0 0.0
    %4256 = vmatprep.subr.mxu0 0.0
    %4257 = vmatpush1.msra.mxu0 0.0
    %4258 = vmatprep.subr.mxu0 0.0
    %4259 = vmatpush1.msra.mxu0 0.0
    %4260 = vmatprep.subr.mxu0 0.0
    %4261 = vmatpush1.msra.mxu0 0.0
    %4262 = vmatprep.subr.mxu0 0.0
    %4263 = vmatpush1.msra.mxu0 0.0
    %4264 = vmatprep.subr.mxu0 0.0
    %4265 = vmatpush1.msra.mxu0 0.0
    %4266 = vmatprep.subr.mxu0 0.0
    %4267 = vmatpush1.msra.mxu0 0.0
    %4268 = vmatprep.subr.mxu0 0.0
    %4269 = vmatpush1.msra.mxu0 0.0
    %4270 = vmatprep.subr.mxu0 0.0
    %4271 = vmatpush1.msra.mxu0 0.0
    %4272 = vmatprep.subr.mxu0 0.0
    %4273 = vmatpush1.msra.mxu0 0.0
    %4274 = vmatprep.mubr.f32.mxu0 0.0
    %4275 = vmatmul.mubr.f32.gmra.mrb[0].mxu0 %v4209
    %v4276 = vpop.f32.mrb[0].mxu0
    %v4277 = vadd.f32 %v104, %v4276
    %v4278 = vpop.f32.mrb[0].mxu0
    %4279 = vdwg.mxu0
    %v4280 = vmul.f32 %v4277, 0.03125
    %v4281 = vadd.f32 %v4138, %v4280
    %4282 = vmatprep.subr.mxu0 0.0
    %4283 = vmatpush1.msra.mxu0 %v60
    %4284 = vmatprep.subr.mxu0 0.0
    %4285 = vmatpush1.msra.mxu0 %v61
    %4286 = vmatprep.subr.mxu0 0.0
    %4287 = vmatpush1.msra.mxu0 %v62
    %4288 = vmatprep.subr.mxu0 0.0
    %4289 = vmatpush1.msra.mxu0 %v63
    %4290 = vmatprep.subr.mxu0 0.0
    %4291 = vmatpush1.msra.mxu0 %v64
    %4292 = vmatprep.subr.mxu0 0.0
    %4293 = vmatpush1.msra.mxu0 %v65
    %4294 = vmatprep.subr.mxu0 0.0
    %4295 = vmatpush1.msra.mxu0 %v66
    %4296 = vmatprep.subr.mxu0 0.0
    %4297 = vmatpush1.msra.mxu0 %v67
    %4298 = vmatprep.subr.mxu0 0.0
    %4299 = vmatpush1.msra.mxu0 %v68
    %4300 = vmatprep.subr.mxu0 0.0
    %4301 = vmatpush1.msra.mxu0 %v69
    %4302 = vmatprep.subr.mxu0 0.0
    %4303 = vmatpush1.msra.mxu0 %v70
    %4304 = vmatprep.subr.mxu0 0.0
    %4305 = vmatpush1.msra.mxu0 %v71
    %4306 = vmatprep.subr.mxu0 0.0
    %4307 = vmatpush1.msra.mxu0 %v72
    %4308 = vmatprep.subr.mxu0 0.0
    %4309 = vmatpush1.msra.mxu0 %v73
    %4310 = vmatprep.subr.mxu0 0.0
    %4311 = vmatpush1.msra.mxu0 %v74
    %4312 = vmatprep.subr.mxu0 0.0
    %4313 = vmatpush1.msra.mxu0 %v75
    %4314 = vmatprep.subr.mxu0 0.0
    %4315 = vmatpush1.msra.mxu0 0.0
    %4316 = vmatprep.subr.mxu0 0.0
    %4317 = vmatpush1.msra.mxu0 0.0
    %4318 = vmatprep.subr.mxu0 0.0
    %4319 = vmatpush1.msra.mxu0 0.0
    %4320 = vmatprep.subr.mxu0 0.0
    %4321 = vmatpush1.msra.mxu0 0.0
    %4322 = vmatprep.subr.mxu0 0.0
    %4323 = vmatpush1.msra.mxu0 0.0
    %4324 = vmatprep.subr.mxu0 0.0
    %4325 = vmatpush1.msra.mxu0 0.0
    %4326 = vmatprep.subr.mxu0 0.0
    %4327 = vmatpush1.msra.mxu0 0.0
    %4328 = vmatprep.subr.mxu0 0.0
    %4329 = vmatpush1.msra.mxu0 0.0
    %4330 = vmatprep.subr.mxu0 0.0
    %4331 = vmatpush1.msra.mxu0 0.0
    %4332 = vmatprep.subr.mxu0 0.0
    %4333 = vmatpush1.msra.mxu0 0.0
    %4334 = vmatprep.subr.mxu0 0.0
    %4335 = vmatpush1.msra.mxu0 0.0
    %4336 = vmatprep.subr.mxu0 0.0
    %4337 = vmatpush1.msra.mxu0 0.0
    %4338 = vmatprep.subr.mxu0 0.0
    %4339 = vmatpush1.msra.mxu0 0.0
    %4340 = vmatprep.subr.mxu0 0.0
    %4341 = vmatpush1.msra.mxu0 0.0
    %4342 = vmatprep.subr.mxu0 0.0
    %4343 = vmatpush1.msra.mxu0 0.0
    %4344 = vmatprep.subr.mxu0 0.0
    %4345 = vmatpush1.msra.mxu0 0.0
    %4346 = vmatprep.mubr.f32.mxu0 0.0
    %4347 = vmatmul.mubr.f32.gmra.mrb[0].mxu0 %v4281
    %v4348 = vpop.f32.mrb[0].mxu0
    %v4349 = vadd.f32 %v97, %v4348
    %v4350 = vpop.f32.mrb[0].mxu0
    %4351 = vdwg.mxu0
    %v4352 = vtanh.pop %v4349
    %4353 = vmatprep.subr.mxu0 0.0
    %4354 = vmatpush1.msra.mxu0 %v76
    %4355 = vmatprep.subr.mxu0 0.0
    %4356 = vmatpush1.msra.mxu0 %v77
    %4357 = vmatprep.subr.mxu0 0.0
    %4358 = vmatpush1.msra.mxu0 %v78
    %4359 = vmatprep.subr.mxu0 0.0
    %4360 = vmatpush1.msra.mxu0 %v79
    %4361 = vmatprep.subr.mxu0 0.0
    %4362 = vmatpush1.msra.mxu0 %v80
    %4363 = vmatprep.subr.mxu0 0.0
    %4364 = vmatpush1.msra.mxu0 %v81
    %4365 = vmatprep.subr.mxu0 0.0
    %4366 = vmatpush1.msra.mxu0 %v82
    %4367 = vmatprep.subr.mxu0 0.0
    %4368 = vmatpush1.msra.mxu0 %v83
    %4369 = vmatprep.subr.mxu0 0.0
    %4370 = vmatpush1.msra.mxu0 %v84
    %4371 = vmatprep.subr.mxu0 0.0
    %4372 = vmatpush1.msra.mxu0 %v85
    %4373 = vmatprep.subr.mxu0 0.0
    %4374 = vmatpush1.msra.mxu0 %v86
    %4375 = vmatprep.subr.mxu0 0.0
    %4376 = vmatpush1.msra.mxu0 %v87
    %4377 = vmatprep.subr.mxu0 0.0
    %4378 = vmatpush1.msra.mxu0 %v88
    %4379 = vmatprep.subr.mxu0 0.0
    %4380 = vmatpush1.msra.mxu0 %v89
    %4381 = vmatprep.subr.mxu0 0.0
    %4382 = vmatpush1.msra.mxu0 %v90
    %4383 = vmatprep.subr.mxu0 0.0
    %4384 = vmatpush1.msra.mxu0 %v91
    %4385 = vmatprep.subr.mxu0 0.0
    %4386 = vmatpush1.msra.mxu0 0.0
    %4387 = vmatprep.subr.mxu0 0.0
    %4388 = vmatpush1.msra.mxu0 0.0
    %4389 = vmatprep.subr.mxu0 0.0
    %4390 = vmatpush1.msra.mxu0 0.0
    %4391 = vmatprep.subr.mxu0 0.0
    %4392 = vmatpush1.msra.mxu0 0.0
    %4393 = vmatprep.subr.mxu0 0.0
    %4394 = vmatpush1.msra.mxu0 0.0
    %4395 = vmatprep.subr.mxu0 0.0
    %4396 = vmatpush1.msra.mxu0 0.0
    %4397 = vmatprep.subr.mxu0 0.0
    %4398 = vmatpush1.msra.mxu0 0.0
    %4399 = vmatprep.subr.mxu0 0.0
    %4400 = vmatpush1.msra.mxu0 0.0
    %4401 = vmatprep.subr.mxu0 0.0
    %4402 = vmatpush1.msra.mxu0 0.0
    %4403 = vmatprep.subr.mxu0 0.0
    %4404 = vmatpush1.msra.mxu0 0.0
    %4405 = vmatprep.subr.mxu0 0.0
    %4406 = vmatpush1.msra.mxu0 0.0
    %4407 = vmatprep.subr.mxu0 0.0
    %4408 = vmatpush1.msra.mxu0 0.0
    %4409 = vmatprep.subr.mxu0 0.0
    %4410 = vmatpush1.msra.mxu0 0.0
    %4411 = vmatprep.subr.mxu0 0.0
    %4412 = vmatpush1.msra.mxu0 0.0
    %4413 = vmatprep.subr.mxu0 0.0
    %4414 = vmatpush1.msra.mxu0 0.0
    %4415 = vmatprep.subr.mxu0 0.0
    %4416 = vmatpush1.msra.mxu0 0.0
    %4417 = vmatprep.mubr.f32.mxu0 0.0
    %4418 = vmatmul.mubr.f32.gmra.mrb[0].mxu0 %v4352
    %v4419 = vpop.f32.mrb[0].mxu0
    %v4420 = vadd.f32 %v104, %v4419
    %v4421 = vpop.f32.mrb[0].mxu0
    %4422 = vdwg.mxu0
    %v4423 = vmul.f32 %v4420, 0.03125
    %v4424 = vadd.f32 %v4138, %v4423
    %4425 = vmatprep.subr.mxu0 0.0
    %4426 = vmatpush1.msra.mxu0 %v60
    %4427 = vmatprep.subr.mxu0 0.0
    %4428 = vmatpush1.msra.mxu0 %v61
    %4429 = vmatprep.subr.mxu0 0.0
    %4430 = vmatpush1.msra.mxu0 %v62
    %4431 = vmatprep.subr.mxu0 0.0
    %4432 = vmatpush1.msra.mxu0 %v63
    %4433 = vmatprep.subr.mxu0 0.0
    %4434 = vmatpush1.msra.mxu0 %v64
    %4435 = vmatprep.subr.mxu0 0.0
    %4436 = vmatpush1.msra.mxu0 %v65
    %4437 = vmatprep.subr.mxu0 0.0
    %4438 = vmatpush1.msra.mxu0 %v66
    %4439 = vmatprep.subr.mxu0 0.0
    %4440 = vmatpush1.msra.mxu0 %v67
    %4441 = vmatprep.subr.mxu0 0.0
    %4442 = vmatpush1.msra.mxu0 %v68
    %4443 = vmatprep.subr.mxu0 0.0
    %4444 = vmatpush1.msra.mxu0 %v69
    %4445 = vmatprep.subr.mxu0 0.0
    %4446 = vmatpush1.msra.mxu0 %v70
    %4447 = vmatprep.subr.mxu0 0.0
    %4448 = vmatpush1.msra.mxu0 %v71
    %4449 = vmatprep.subr.mxu0 0.0
    %4450 = vmatpush1.msra.mxu0 %v72
    %4451 = vmatprep.subr.mxu0 0.0
    %4452 = vmatpush1.msra.mxu0 %v73
    %4453 = vmatprep.subr.mxu0 0.0
    %4454 = vmatpush1.msra.mxu0 %v74
    %4455 = vmatprep.subr.mxu0 0.0
    %4456 = vmatpush1.msra.mxu0 %v75
    %4457 = vmatprep.subr.mxu0 0.0
    %4458 = vmatpush1.msra.mxu0 0.0
    %4459 = vmatprep.subr.mxu0 0.0
    %4460 = vmatpush1.msra.mxu0 0.0
    %4461 = vmatprep.subr.mxu0 0.0
    %4462 = vmatpush1.msra.mxu0 0.0
    %4463 = vmatprep.subr.mxu0 0.0
    %4464 = vmatpush1.msra.mxu0 0.0
    %4465 = vmatprep.subr.mxu0 0.0
    %4466 = vmatpush1.msra.mxu0 0.0
    %4467 = vmatprep.subr.mxu0 0.0
    %4468 = vmatpush1.msra.mxu0 0.0
    %4469 = vmatprep.subr.mxu0 0.0
    %4470 = vmatpush1.msra.mxu0 0.0
    %4471 = vmatprep.subr.mxu0 0.0
    %4472 = vmatpush1.msra.mxu0 0.0
    %4473 = vmatprep.subr.mxu0 0.0
    %4474 = vmatpush1.msra.mxu0 0.0
    %4475 = vmatprep.subr.mxu0 0.0
    %4476 = vmatpush1.msra.mxu0 0.0
    %4477 = vmatprep.subr.mxu0 0.0
    %4478 = vmatpush1.msra.mxu0 0.0
    %4479 = vmatprep.subr.mxu0 0.0
    %4480 = vmatpush1.msra.mxu0 0.0
    %4481 = vmatprep.subr.mxu0 0.0
    %4482 = vmatpush1.msra.mxu0 0.0
    %4483 = vmatprep.subr.mxu0 0.0
    %4484 = vmatpush1.msra.mxu0 0.0
    %4485 = vmatprep.subr.mxu0 0.0
    %4486 = vmatpush1.msra.mxu0 0.0
    %4487 = vmatprep.subr.mxu0 0.0
    %4488 = vmatpush1.msra.mxu0 0.0
    %4489 = vmatprep.mubr.f32.mxu0 0.0
    %4490 = vmatmul.mubr.f32.gmra.mrb[0].mxu0 %v4424
    %v4491 = vpop.f32.mrb[0].mxu0
    %v4492 = vadd.f32 %v97, %v4491
    %v4493 = vpop.f32.mrb[0].mxu0
    %4494 = vdwg.mxu0
    %v4495 = vtanh.pop %v4492
    %4496 = vmatprep.subr.mxu0 0.0
    %4497 = vmatpush1.msra.mxu0 %v76
    %4498 = vmatprep.subr.mxu0 0.0
    %4499 = vmatpush1.msra.mxu0 %v77
    %4500 = vmatprep.subr.mxu0 0.0
    %4501 = vmatpush1.msra.mxu0 %v78
    %4502 = vmatprep.subr.mxu0 0.0
    %4503 = vmatpush1.msra.mxu0 %v79
    %4504 = vmatprep.subr.mxu0 0.0
    %4505 = vmatpush1.msra.mxu0 %v80
    %4506 = vmatprep.subr.mxu0 0.0
    %4507 = vmatpush1.msra.mxu0 %v81
    %4508 = vmatprep.subr.mxu0 0.0
    %4509 = vmatpush1.msra.mxu0 %v82
    %4510 = vmatprep.subr.mxu0 0.0
    %4511 = vmatpush1.msra.mxu0 %v83
    %4512 = vmatprep.subr.mxu0 0.0
    %4513 = vmatpush1.msra.mxu0 %v84
    %4514 = vmatprep.subr.mxu0 0.0
    %4515 = vmatpush1.msra.mxu0 %v85
    %4516 = vmatprep.subr.mxu0 0.0
    %4517 = vmatpush1.msra.mxu0 %v86
    %4518 = vmatprep.subr.mxu0 0.0
    %4519 = vmatpush1.msra.mxu0 %v87
    %4520 = vmatprep.subr.mxu0 0.0
    %4521 = vmatpush1.msra.mxu0 %v88
    %4522 = vmatprep.subr.mxu0 0.0
    %4523 = vmatpush1.msra.mxu0 %v89
    %4524 = vmatprep.subr.mxu0 0.0
    %4525 = vmatpush1.msra.mxu0 %v90
    %4526 = vmatprep.subr.mxu0 0.0
    %4527 = vmatpush1.msra.mxu0 %v91
    %4528 = vmatprep.subr.mxu0 0.0
    %4529 = vmatpush1.msra.mxu0 0.0
    %4530 = vmatprep.subr.mxu0 0.0
    %4531 = vmatpush1.msra.mxu0 0.0
    %4532 = vmatprep.subr.mxu0 0.0
    %4533 = vmatpush1.msra.mxu0 0.0
    %4534 = vmatprep.subr.mxu0 0.0
    %4535 = vmatpush1.msra.mxu0 0.0
    %4536 = vmatprep.subr.mxu0 0.0
    %4537 = vmatpush1.msra.mxu0 0.0
    %4538 = vmatprep.subr.mxu0 0.0
    %4539 = vmatpush1.msra.mxu0 0.0
    %4540 = vmatprep.subr.mxu0 0.0
    %4541 = vmatpush1.msra.mxu0 0.0
    %4542 = vmatprep.subr.mxu0 0.0
    %4543 = vmatpush1.msra.mxu0 0.0
    %4544 = vmatprep.subr.mxu0 0.0
    %4545 = vmatpush1.msra.mxu0 0.0
    %4546 = vmatprep.subr.mxu0 0.0
    %4547 = vmatpush1.msra.mxu0 0.0
    %4548 = vmatprep.subr.mxu0 0.0
    %4549 = vmatpush1.msra.mxu0 0.0
    %4550 = vmatprep.subr.mxu0 0.0
    %4551 = vmatpush1.msra.mxu0 0.0
    %4552 = vmatprep.subr.mxu0 0.0
    %4553 = vmatpush1.msra.mxu0 0.0
    %4554 = vmatprep.subr.mxu0 0.0
    %4555 = vmatpush1.msra.mxu0 0.0
    %4556 = vmatprep.subr.mxu0 0.0
    %4557 = vmatpush1.msra.mxu0 0.0
    %4558 = vmatprep.subr.mxu0 0.0
    %4559 = vmatpush1.msra.mxu0 0.0
    %4560 = vmatprep.mubr.f32.mxu0 0.0
    %4561 = vmatmul.mubr.f32.gmra.mrb[0].mxu0 %v4495
    %v4562 = vpop.f32.mrb[0].mxu0
    %v4563 = vadd.f32 %v104, %v4562
    %v4564 = vpop.f32.mrb[0].mxu0
    %4565 = vdwg.mxu0
    %v4566 = vmul.f32 %v4563, 0.0625
    %v4567 = vadd.f32 %v4138, %v4566
    %4568 = vmatprep.subr.mxu0 0.0
    %4569 = vmatpush1.msra.mxu0 %v60
    %4570 = vmatprep.subr.mxu0 0.0
    %4571 = vmatpush1.msra.mxu0 %v61
    %4572 = vmatprep.subr.mxu0 0.0
    %4573 = vmatpush1.msra.mxu0 %v62
    %4574 = vmatprep.subr.mxu0 0.0
    %4575 = vmatpush1.msra.mxu0 %v63
    %4576 = vmatprep.subr.mxu0 0.0
    %4577 = vmatpush1.msra.mxu0 %v64
    %4578 = vmatprep.subr.mxu0 0.0
    %4579 = vmatpush1.msra.mxu0 %v65
    %4580 = vmatprep.subr.mxu0 0.0
    %4581 = vmatpush1.msra.mxu0 %v66
    %4582 = vmatprep.subr.mxu0 0.0
    %4583 = vmatpush1.msra.mxu0 %v67
    %4584 = vmatprep.subr.mxu0 0.0
    %4585 = vmatpush1.msra.mxu0 %v68
    %4586 = vmatprep.subr.mxu0 0.0
    %4587 = vmatpush1.msra.mxu0 %v69
    %4588 = vmatprep.subr.mxu0 0.0
    %4589 = vmatpush1.msra.mxu0 %v70
    %4590 = vmatprep.subr.mxu0 0.0
    %4591 = vmatpush1.msra.mxu0 %v71
    %4592 = vmatprep.subr.mxu0 0.0
    %4593 = vmatpush1.msra.mxu0 %v72
    %4594 = vmatprep.subr.mxu0 0.0
    %4595 = vmatpush1.msra.mxu0 %v73
    %4596 = vmatprep.subr.mxu0 0.0
    %4597 = vmatpush1.msra.mxu0 %v74
    %4598 = vmatprep.subr.mxu0 0.0
    %4599 = vmatpush1.msra.mxu0 %v75
    %4600 = vmatprep.subr.mxu0 0.0
    %4601 = vmatpush1.msra.mxu0 0.0
    %4602 = vmatprep.subr.mxu0 0.0
    %4603 = vmatpush1.msra.mxu0 0.0
    %4604 = vmatprep.subr.mxu0 0.0
    %4605 = vmatpush1.msra.mxu0 0.0
    %4606 = vmatprep.subr.mxu0 0.0
    %4607 = vmatpush1.msra.mxu0 0.0
    %4608 = vmatprep.subr.mxu0 0.0
    %4609 = vmatpush1.msra.mxu0 0.0
    %4610 = vmatprep.subr.mxu0 0.0
    %4611 = vmatpush1.msra.mxu0 0.0
    %4612 = vmatprep.subr.mxu0 0.0
    %4613 = vmatpush1.msra.mxu0 0.0
    %4614 = vmatprep.subr.mxu0 0.0
    %4615 = vmatpush1.msra.mxu0 0.0
    %4616 = vmatprep.subr.mxu0 0.0
    %4617 = vmatpush1.msra.mxu0 0.0
    %4618 = vmatprep.subr.mxu0 0.0
    %4619 = vmatpush1.msra.mxu0 0.0
    %4620 = vmatprep.subr.mxu0 0.0
    %4621 = vmatpush1.msra.mxu0 0.0
    %4622 = vmatprep.subr.mxu0 0.0
    %4623 = vmatpush1.msra.mxu0 0.0
    %4624 = vmatprep.subr.mxu0 0.0
    %4625 = vmatpush1.msra.mxu0 0.0
    %4626 = vmatprep.subr.mxu0 0.0
    %4627 = vmatpush1.msra.mxu0 0.0
    %4628 = vmatprep.subr.mxu0 0.0
    %4629 = vmatpush1.msra.mxu0 0.0
    %4630 = vmatprep.subr.mxu0 0.0
    %4631 = vmatpush1.msra.mxu0 0.0
    %4632 = vmatprep.mubr.f32.mxu0 0.0
    %4633 = vmatmul.mubr.f32.gmra.mrb[0].mxu0 %v4567
    %v4634 = vpop.f32.mrb[0].mxu0
    %v4635 = vadd.f32 %v97, %v4634
    %v4636 = vpop.f32.mrb[0].mxu0
    %4637 = vdwg.mxu0
    %v4638 = vtanh.pop %v4635
    %4639 = vmatprep.subr.mxu0 0.0
    %4640 = vmatpush1.msra.mxu0 %v76
    %4641 = vmatprep.subr.mxu0 0.0
    %4642 = vmatpush1.msra.mxu0 %v77
    %4643 = vmatprep.subr.mxu0 0.0
    %4644 = vmatpush1.msra.mxu0 %v78
    %4645 = vmatprep.subr.mxu0 0.0
    %4646 = vmatpush1.msra.mxu0 %v79
    %4647 = vmatprep.subr.mxu0 0.0
    %4648 = vmatpush1.msra.mxu0 %v80
    %4649 = vmatprep.subr.mxu0 0.0
    %4650 = vmatpush1.msra.mxu0 %v81
    %4651 = vmatprep.subr.mxu0 0.0
    %4652 = vmatpush1.msra.mxu0 %v82
    %4653 = vmatprep.subr.mxu0 0.0
    %4654 = vmatpush1.msra.mxu0 %v83
    %4655 = vmatprep.subr.mxu0 0.0
    %4656 = vmatpush1.msra.mxu0 %v84
    %4657 = vmatprep.subr.mxu0 0.0
    %4658 = vmatpush1.msra.mxu0 %v85
    %4659 = vmatprep.subr.mxu0 0.0
    %4660 = vmatpush1.msra.mxu0 %v86
    %4661 = vmatprep.subr.mxu0 0.0
    %4662 = vmatpush1.msra.mxu0 %v87
    %4663 = vmatprep.subr.mxu0 0.0
    %4664 = vmatpush1.msra.mxu0 %v88
    %4665 = vmatprep.subr.mxu0 0.0
    %4666 = vmatpush1.msra.mxu0 %v89
    %4667 = vmatprep.subr.mxu0 0.0
    %4668 = vmatpush1.msra.mxu0 %v90
    %4669 = vmatprep.subr.mxu0 0.0
    %4670 = vmatpush1.msra.mxu0 %v91
    %4671 = vmatprep.subr.mxu0 0.0
    %4672 = vmatpush1.msra.mxu0 0.0
    %4673 = vmatprep.subr.mxu0 0.0
    %4674 = vmatpush1.msra.mxu0 0.0
    %4675 = vmatprep.subr.mxu0 0.0
    %4676 = vmatpush1.msra.mxu0 0.0
    %4677 = vmatprep.subr.mxu0 0.0
    %4678 = vmatpush1.msra.mxu0 0.0
    %4679 = vmatprep.subr.mxu0 0.0
    %4680 = vmatpush1.msra.mxu0 0.0
    %4681 = vmatprep.subr.mxu0 0.0
    %4682 = vmatpush1.msra.mxu0 0.0
    %4683 = vmatprep.subr.mxu0 0.0
    %4684 = vmatpush1.msra.mxu0 0.0
    %4685 = vmatprep.subr.mxu0 0.0
    %4686 = vmatpush1.msra.mxu0 0.0
    %4687 = vmatprep.subr.mxu0 0.0
    %4688 = vmatpush1.msra.mxu0 0.0
    %4689 = vmatprep.subr.mxu0 0.0
    %4690 = vmatpush1.msra.mxu0 0.0
    %4691 = vmatprep.subr.mxu0 0.0
    %4692 = vmatpush1.msra.mxu0 0.0
    %4693 = vmatprep.subr.mxu0 0.0
    %4694 = vmatpush1.msra.mxu0 0.0
    %4695 = vmatprep.subr.mxu0 0.0
    %4696 = vmatpush1.msra.mxu0 0.0
    %4697 = vmatprep.subr.mxu0 0.0
    %4698 = vmatpush1.msra.mxu0 0.0
    %4699 = vmatprep.subr.mxu0 0.0
    %4700 = vmatpush1.msra.mxu0 0.0
    %4701 = vmatprep.subr.mxu0 0.0
    %4702 = vmatpush1.msra.mxu0 0.0
    %4703 = vmatprep.mubr.f32.mxu0 0.0
    %4704 = vmatmul.mubr.f32.gmra.mrb[0].mxu0 %v4638
    %v4705 = vpop.f32.mrb[0].mxu0
    %v4706 = vadd.f32 %v104, %v4705
    %v4707 = vpop.f32.mrb[0].mxu0
    %4708 = vdwg.mxu0
    %v4709 = vadd.f32 %v4277, %v4706
    %v4710 = vadd.f32 %v4420, %v4563
    %v4711 = vmul.f32 %v4710, 2.0
    %v4712 = vadd.f32 %v4709, %v4711
    %v4713 = vmul.f32 %v4712, 0.010416667
    %v4714 = vadd.f32 %v4138, %v4713
    %4715 = vmatprep.subr.mxu0 0.0
    %4716 = vmatpush1.msra.mxu0 %v60
    %4717 = vmatprep.subr.mxu0 0.0
    %4718 = vmatpush1.msra.mxu0 %v61
    %4719 = vmatprep.subr.mxu0 0.0
    %4720 = vmatpush1.msra.mxu0 %v62
    %4721 = vmatprep.subr.mxu0 0.0
    %4722 = vmatpush1.msra.mxu0 %v63
    %4723 = vmatprep.subr.mxu0 0.0
    %4724 = vmatpush1.msra.mxu0 %v64
    %4725 = vmatprep.subr.mxu0 0.0
    %4726 = vmatpush1.msra.mxu0 %v65
    %4727 = vmatprep.subr.mxu0 0.0
    %4728 = vmatpush1.msra.mxu0 %v66
    %4729 = vmatprep.subr.mxu0 0.0
    %4730 = vmatpush1.msra.mxu0 %v67
    %4731 = vmatprep.subr.mxu0 0.0
    %4732 = vmatpush1.msra.mxu0 %v68
    %4733 = vmatprep.subr.mxu0 0.0
    %4734 = vmatpush1.msra.mxu0 %v69
    %4735 = vmatprep.subr.mxu0 0.0
    %4736 = vmatpush1.msra.mxu0 %v70
    %4737 = vmatprep.subr.mxu0 0.0
    %4738 = vmatpush1.msra.mxu0 %v71
    %4739 = vmatprep.subr.mxu0 0.0
    %4740 = vmatpush1.msra.mxu0 %v72
    %4741 = vmatprep.subr.mxu0 0.0
    %4742 = vmatpush1.msra.mxu0 %v73
    %4743 = vmatprep.subr.mxu0 0.0
    %4744 = vmatpush1.msra.mxu0 %v74
    %4745 = vmatprep.subr.mxu0 0.0
    %4746 = vmatpush1.msra.mxu0 %v75
    %4747 = vmatprep.subr.mxu0 0.0
    %4748 = vmatpush1.msra.mxu0 0.0
    %4749 = vmatprep.subr.mxu0 0.0
    %4750 = vmatpush1.msra.mxu0 0.0
    %4751 = vmatprep.subr.mxu0 0.0
    %4752 = vmatpush1.msra.mxu0 0.0
    %4753 = vmatprep.subr.mxu0 0.0
    %4754 = vmatpush1.msra.mxu0 0.0
    %4755 = vmatprep.subr.mxu0 0.0
    %4756 = vmatpush1.msra.mxu0 0.0
    %4757 = vmatprep.subr.mxu0 0.0
    %4758 = vmatpush1.msra.mxu0 0.0
    %4759 = vmatprep.subr.mxu0 0.0
    %4760 = vmatpush1.msra.mxu0 0.0
    %4761 = vmatprep.subr.mxu0 0.0
    %4762 = vmatpush1.msra.mxu0 0.0
    %4763 = vmatprep.subr.mxu0 0.0
    %4764 = vmatpush1.msra.mxu0 0.0
    %4765 = vmatprep.subr.mxu0 0.0
    %4766 = vmatpush1.msra.mxu0 0.0
    %4767 = vmatprep.subr.mxu0 0.0
    %4768 = vmatpush1.msra.mxu0 0.0
    %4769 = vmatprep.subr.mxu0 0.0
    %4770 = vmatpush1.msra.mxu0 0.0
    %4771 = vmatprep.subr.mxu0 0.0
    %4772 = vmatpush1.msra.mxu0 0.0
    %4773 = vmatprep.subr.mxu0 0.0
    %4774 = vmatpush1.msra.mxu0 0.0
    %4775 = vmatprep.subr.mxu0 0.0
    %4776 = vmatpush1.msra.mxu0 0.0
    %4777 = vmatprep.subr.mxu0 0.0
    %4778 = vmatpush1.msra.mxu0 0.0
    %4779 = vmatprep.mubr.f32.mxu0 0.0
    %4780 = vmatmul.mubr.f32.gmra.mrb[0].mxu0 %v4714
    %v4781 = vpop.f32.mrb[0].mxu0
    %v4782 = vadd.f32 %v97, %v4781
    %v4783 = vpop.f32.mrb[0].mxu0
    %4784 = vdwg.mxu0
    %v4785 = vtanh.pop %v4782
    %4786 = vmatprep.subr.mxu0 0.0
    %4787 = vmatpush1.msra.mxu0 %v76
    %4788 = vmatprep.subr.mxu0 0.0
    %4789 = vmatpush1.msra.mxu0 %v77
    %4790 = vmatprep.subr.mxu0 0.0
    %4791 = vmatpush1.msra.mxu0 %v78
    %4792 = vmatprep.subr.mxu0 0.0
    %4793 = vmatpush1.msra.mxu0 %v79
    %4794 = vmatprep.subr.mxu0 0.0
    %4795 = vmatpush1.msra.mxu0 %v80
    %4796 = vmatprep.subr.mxu0 0.0
    %4797 = vmatpush1.msra.mxu0 %v81
    %4798 = vmatprep.subr.mxu0 0.0
    %4799 = vmatpush1.msra.mxu0 %v82
    %4800 = vmatprep.subr.mxu0 0.0
    %4801 = vmatpush1.msra.mxu0 %v83
    %4802 = vmatprep.subr.mxu0 0.0
    %4803 = vmatpush1.msra.mxu0 %v84
    %4804 = vmatprep.subr.mxu0 0.0
    %4805 = vmatpush1.msra.mxu0 %v85
    %4806 = vmatprep.subr.mxu0 0.0
    %4807 = vmatpush1.msra.mxu0 %v86
    %4808 = vmatprep.subr.mxu0 0.0
    %4809 = vmatpush1.msra.mxu0 %v87
    %4810 = vmatprep.subr.mxu0 0.0
    %4811 = vmatpush1.msra.mxu0 %v88
    %4812 = vmatprep.subr.mxu0 0.0
    %4813 = vmatpush1.msra.mxu0 %v89
    %4814 = vmatprep.subr.mxu0 0.0
    %4815 = vmatpush1.msra.mxu0 %v90
    %4816 = vmatprep.subr.mxu0 0.0
    %4817 = vmatpush1.msra.mxu0 %v91
    %4818 = vmatprep.subr.mxu0 0.0
    %4819 = vmatpush1.msra.mxu0 0.0
    %4820 = vmatprep.subr.mxu0 0.0
    %4821 = vmatpush1.msra.mxu0 0.0
    %4822 = vmatprep.subr.mxu0 0.0
    %4823 = vmatpush1.msra.mxu0 0.0
    %4824 = vmatprep.subr.mxu0 0.0
    %4825 = vmatpush1.msra.mxu0 0.0
    %4826 = vmatprep.subr.mxu0 0.0
    %4827 = vmatpush1.msra.mxu0 0.0
    %4828 = vmatprep.subr.mxu0 0.0
    %4829 = vmatpush1.msra.mxu0 0.0
    %4830 = vmatprep.subr.mxu0 0.0
    %4831 = vmatpush1.msra.mxu0 0.0
    %4832 = vmatprep.subr.mxu0 0.0
    %4833 = vmatpush1.msra.mxu0 0.0
    %4834 = vmatprep.subr.mxu0 0.0
    %4835 = vmatpush1.msra.mxu0 0.0
    %4836 = vmatprep.subr.mxu0 0.0
    %4837 = vmatpush1.msra.mxu0 0.0
    %4838 = vmatprep.subr.mxu0 0.0
    %4839 = vmatpush1.msra.mxu0 0.0
    %4840 = vmatprep.subr.mxu0 0.0
    %4841 = vmatpush1.msra.mxu0 0.0
    %4842 = vmatprep.subr.mxu0 0.0
    %4843 = vmatpush1.msra.mxu0 0.0
    %4844 = vmatprep.subr.mxu0 0.0
    %4845 = vmatpush1.msra.mxu0 0.0
    %4846 = vmatprep.subr.mxu0 0.0
    %4847 = vmatpush1.msra.mxu0 0.0
    %4848 = vmatprep.subr.mxu0 0.0
    %4849 = vmatpush1.msra.mxu0 0.0
    %4850 = vmatprep.mubr.f32.mxu0 0.0
    %4851 = vmatmul.mubr.f32.gmra.mrb[0].mxu0 %v4785
    %v4852 = vpop.f32.mrb[0].mxu0
    %v4853 = vadd.f32 %v104, %v4852
    %v4854 = vpop.f32.mrb[0].mxu0
    %4855 = vdwg.mxu0
    %v4856 = vmul.f32 %v4853, 0.03125
    %v4857 = vadd.f32 %v4714, %v4856
    %4858 = vmatprep.subr.mxu0 0.0
    %4859 = vmatpush1.msra.mxu0 %v60
    %4860 = vmatprep.subr.mxu0 0.0
    %4861 = vmatpush1.msra.mxu0 %v61
    %4862 = vmatprep.subr.mxu0 0.0
    %4863 = vmatpush1.msra.mxu0 %v62
    %4864 = vmatprep.subr.mxu0 0.0
    %4865 = vmatpush1.msra.mxu0 %v63
    %4866 = vmatprep.subr.mxu0 0.0
    %4867 = vmatpush1.msra.mxu0 %v64
    %4868 = vmatprep.subr.mxu0 0.0
    %4869 = vmatpush1.msra.mxu0 %v65
    %4870 = vmatprep.subr.mxu0 0.0
    %4871 = vmatpush1.msra.mxu0 %v66
    %4872 = vmatprep.subr.mxu0 0.0
    %4873 = vmatpush1.msra.mxu0 %v67
    %4874 = vmatprep.subr.mxu0 0.0
    %4875 = vmatpush1.msra.mxu0 %v68
    %4876 = vmatprep.subr.mxu0 0.0
    %4877 = vmatpush1.msra.mxu0 %v69
    %4878 = vmatprep.subr.mxu0 0.0
    %4879 = vmatpush1.msra.mxu0 %v70
    %4880 = vmatprep.subr.mxu0 0.0
    %4881 = vmatpush1.msra.mxu0 %v71
    %4882 = vmatprep.subr.mxu0 0.0
    %4883 = vmatpush1.msra.mxu0 %v72
    %4884 = vmatprep.subr.mxu0 0.0
    %4885 = vmatpush1.msra.mxu0 %v73
    %4886 = vmatprep.subr.mxu0 0.0
    %4887 = vmatpush1.msra.mxu0 %v74
    %4888 = vmatprep.subr.mxu0 0.0
    %4889 = vmatpush1.msra.mxu0 %v75
    %4890 = vmatprep.subr.mxu0 0.0
    %4891 = vmatpush1.msra.mxu0 0.0
    %4892 = vmatprep.subr.mxu0 0.0
    %4893 = vmatpush1.msra.mxu0 0.0
    %4894 = vmatprep.subr.mxu0 0.0
    %4895 = vmatpush1.msra.mxu0 0.0
    %4896 = vmatprep.subr.mxu0 0.0
    %4897 = vmatpush1.msra.mxu0 0.0
    %4898 = vmatprep.subr.mxu0 0.0
    %4899 = vmatpush1.msra.mxu0 0.0
    %4900 = vmatprep.subr.mxu0 0.0
    %4901 = vmatpush1.msra.mxu0 0.0
    %4902 = vmatprep.subr.mxu0 0.0
    %4903 = vmatpush1.msra.mxu0 0.0
    %4904 = vmatprep.subr.mxu0 0.0
    %4905 = vmatpush1.msra.mxu0 0.0
    %4906 = vmatprep.subr.mxu0 0.0
    %4907 = vmatpush1.msra.mxu0 0.0
    %4908 = vmatprep.subr.mxu0 0.0
    %4909 = vmatpush1.msra.mxu0 0.0
    %4910 = vmatprep.subr.mxu0 0.0
    %4911 = vmatpush1.msra.mxu0 0.0
    %4912 = vmatprep.subr.mxu0 0.0
    %4913 = vmatpush1.msra.mxu0 0.0
    %4914 = vmatprep.subr.mxu0 0.0
    %4915 = vmatpush1.msra.mxu0 0.0
    %4916 = vmatprep.subr.mxu0 0.0
    %4917 = vmatpush1.msra.mxu0 0.0
    %4918 = vmatprep.subr.mxu0 0.0
    %4919 = vmatpush1.msra.mxu0 0.0
    %4920 = vmatprep.subr.mxu0 0.0
    %4921 = vmatpush1.msra.mxu0 0.0
    %4922 = vmatprep.mubr.f32.mxu0 0.0
    %4923 = vmatmul.mubr.f32.gmra.mrb[0].mxu0 %v4857
    %v4924 = vpop.f32.mrb[0].mxu0
    %v4925 = vadd.f32 %v97, %v4924
    %v4926 = vpop.f32.mrb[0].mxu0
    %4927 = vdwg.mxu0
    %v4928 = vtanh.pop %v4925
    %4929 = vmatprep.subr.mxu0 0.0
    %4930 = vmatpush1.msra.mxu0 %v76
    %4931 = vmatprep.subr.mxu0 0.0
    %4932 = vmatpush1.msra.mxu0 %v77
    %4933 = vmatprep.subr.mxu0 0.0
    %4934 = vmatpush1.msra.mxu0 %v78
    %4935 = vmatprep.subr.mxu0 0.0
    %4936 = vmatpush1.msra.mxu0 %v79
    %4937 = vmatprep.subr.mxu0 0.0
    %4938 = vmatpush1.msra.mxu0 %v80
    %4939 = vmatprep.subr.mxu0 0.0
    %4940 = vmatpush1.msra.mxu0 %v81
    %4941 = vmatprep.subr.mxu0 0.0
    %4942 = vmatpush1.msra.mxu0 %v82
    %4943 = vmatprep.subr.mxu0 0.0
    %4944 = vmatpush1.msra.mxu0 %v83
    %4945 = vmatprep.subr.mxu0 0.0
    %4946 = vmatpush1.msra.mxu0 %v84
    %4947 = vmatprep.subr.mxu0 0.0
    %4948 = vmatpush1.msra.mxu0 %v85
    %4949 = vmatprep.subr.mxu0 0.0
    %4950 = vmatpush1.msra.mxu0 %v86
    %4951 = vmatprep.subr.mxu0 0.0
    %4952 = vmatpush1.msra.mxu0 %v87
    %4953 = vmatprep.subr.mxu0 0.0
    %4954 = vmatpush1.msra.mxu0 %v88
    %4955 = vmatprep.subr.mxu0 0.0
    %4956 = vmatpush1.msra.mxu0 %v89
    %4957 = vmatprep.subr.mxu0 0.0
    %4958 = vmatpush1.msra.mxu0 %v90
    %4959 = vmatprep.subr.mxu0 0.0
    %4960 = vmatpush1.msra.mxu0 %v91
    %4961 = vmatprep.subr.mxu0 0.0
    %4962 = vmatpush1.msra.mxu0 0.0
    %4963 = vmatprep.subr.mxu0 0.0
    %4964 = vmatpush1.msra.mxu0 0.0
    %4965 = vmatprep.subr.mxu0 0.0
    %4966 = vmatpush1.msra.mxu0 0.0
    %4967 = vmatprep.subr.mxu0 0.0
    %4968 = vmatpush1.msra.mxu0 0.0
    %4969 = vmatprep.subr.mxu0 0.0
    %4970 = vmatpush1.msra.mxu0 0.0
    %4971 = vmatprep.subr.mxu0 0.0
    %4972 = vmatpush1.msra.mxu0 0.0
    %4973 = vmatprep.subr.mxu0 0.0
    %4974 = vmatpush1.msra.mxu0 0.0
    %4975 = vmatprep.subr.mxu0 0.0
    %4976 = vmatpush1.msra.mxu0 0.0
    %4977 = vmatprep.subr.mxu0 0.0
    %4978 = vmatpush1.msra.mxu0 0.0
    %4979 = vmatprep.subr.mxu0 0.0
    %4980 = vmatpush1.msra.mxu0 0.0
    %4981 = vmatprep.subr.mxu0 0.0
    %4982 = vmatpush1.msra.mxu0 0.0
    %4983 = vmatprep.subr.mxu0 0.0
    %4984 = vmatpush1.msra.mxu0 0.0
    %4985 = vmatprep.subr.mxu0 0.0
    %4986 = vmatpush1.msra.mxu0 0.0
    %4987 = vmatprep.subr.mxu0 0.0
    %4988 = vmatpush1.msra.mxu0 0.0
    %4989 = vmatprep.subr.mxu0 0.0
    %4990 = vmatpush1.msra.mxu0 0.0
    %4991 = vmatprep.subr.mxu0 0.0
    %4992 = vmatpush1.msra.mxu0 0.0
    %4993 = vmatprep.mubr.f32.mxu0 0.0
    %4994 = vmatmul.mubr.f32.gmra.mrb[0].mxu0 %v4928
    %v4995 = vpop.f32.mrb[0].mxu0
    %v4996 = vadd.f32 %v104, %v4995
    %v4997 = vpop.f32.mrb[0].mxu0
    %4998 = vdwg.mxu0
    %v4999 = vmul.f32 %v4996, 0.03125
    %v5000 = vadd.f32 %v4714, %v4999
    %5001 = vmatprep.subr.mxu0 0.0
    %5002 = vmatpush1.msra.mxu0 %v60
    %5003 = vmatprep.subr.mxu0 0.0
    %5004 = vmatpush1.msra.mxu0 %v61
    %5005 = vmatprep.subr.mxu0 0.0
    %5006 = vmatpush1.msra.mxu0 %v62
    %5007 = vmatprep.subr.mxu0 0.0
    %5008 = vmatpush1.msra.mxu0 %v63
    %5009 = vmatprep.subr.mxu0 0.0
    %5010 = vmatpush1.msra.mxu0 %v64
    %5011 = vmatprep.subr.mxu0 0.0
    %5012 = vmatpush1.msra.mxu0 %v65
    %5013 = vmatprep.subr.mxu0 0.0
    %5014 = vmatpush1.msra.mxu0 %v66
    %5015 = vmatprep.subr.mxu0 0.0
    %5016 = vmatpush1.msra.mxu0 %v67
    %5017 = vmatprep.subr.mxu0 0.0
    %5018 = vmatpush1.msra.mxu0 %v68
    %5019 = vmatprep.subr.mxu0 0.0
    %5020 = vmatpush1.msra.mxu0 %v69
    %5021 = vmatprep.subr.mxu0 0.0
    %5022 = vmatpush1.msra.mxu0 %v70
    %5023 = vmatprep.subr.mxu0 0.0
    %5024 = vmatpush1.msra.mxu0 %v71
    %5025 = vmatprep.subr.mxu0 0.0
    %5026 = vmatpush1.msra.mxu0 %v72
    %5027 = vmatprep.subr.mxu0 0.0
    %5028 = vmatpush1.msra.mxu0 %v73
    %5029 = vmatprep.subr.mxu0 0.0
    %5030 = vmatpush1.msra.mxu0 %v74
    %5031 = vmatprep.subr.mxu0 0.0
    %5032 = vmatpush1.msra.mxu0 %v75
    %5033 = vmatprep.subr.mxu0 0.0
    %5034 = vmatpush1.msra.mxu0 0.0
    %5035 = vmatprep.subr.mxu0 0.0
    %5036 = vmatpush1.msra.mxu0 0.0
    %5037 = vmatprep.subr.mxu0 0.0
    %5038 = vmatpush1.msra.mxu0 0.0
    %5039 = vmatprep.subr.mxu0 0.0
    %5040 = vmatpush1.msra.mxu0 0.0
    %5041 = vmatprep.subr.mxu0 0.0
    %5042 = vmatpush1.msra.mxu0 0.0
    %5043 = vmatprep.subr.mxu0 0.0
    %5044 = vmatpush1.msra.mxu0 0.0
    %5045 = vmatprep.subr.mxu0 0.0
    %5046 = vmatpush1.msra.mxu0 0.0
    %5047 = vmatprep.subr.mxu0 0.0
    %5048 = vmatpush1.msra.mxu0 0.0
    %5049 = vmatprep.subr.mxu0 0.0
    %5050 = vmatpush1.msra.mxu0 0.0
    %5051 = vmatprep.subr.mxu0 0.0
    %5052 = vmatpush1.msra.mxu0 0.0
    %5053 = vmatprep.subr.mxu0 0.0
    %5054 = vmatpush1.msra.mxu0 0.0
    %5055 = vmatprep.subr.mxu0 0.0
    %5056 = vmatpush1.msra.mxu0 0.0
    %5057 = vmatprep.subr.mxu0 0.0
    %5058 = vmatpush1.msra.mxu0 0.0
    %5059 = vmatprep.subr.mxu0 0.0
    %5060 = vmatpush1.msra.mxu0 0.0
    %5061 = vmatprep.subr.mxu0 0.0
    %5062 = vmatpush1.msra.mxu0 0.0
    %5063 = vmatprep.subr.mxu0 0.0
    %5064 = vmatpush1.msra.mxu0 0.0
    %5065 = vmatprep.mubr.f32.mxu0 0.0
    %5066 = vmatmul.mubr.f32.gmra.mrb[0].mxu0 %v5000
    %v5067 = vpop.f32.mrb[0].mxu0
    %v5068 = vadd.f32 %v97, %v5067
    %v5069 = vpop.f32.mrb[0].mxu0
    %5070 = vdwg.mxu0
    %v5071 = vtanh.pop %v5068
    %5072 = vmatprep.subr.mxu0 0.0
    %5073 = vmatpush1.msra.mxu0 %v76
    %5074 = vmatprep.subr.mxu0 0.0
    %5075 = vmatpush1.msra.mxu0 %v77
    %5076 = vmatprep.subr.mxu0 0.0
    %5077 = vmatpush1.msra.mxu0 %v78
    %5078 = vmatprep.subr.mxu0 0.0
    %5079 = vmatpush1.msra.mxu0 %v79
    %5080 = vmatprep.subr.mxu0 0.0
    %5081 = vmatpush1.msra.mxu0 %v80
    %5082 = vmatprep.subr.mxu0 0.0
    %5083 = vmatpush1.msra.mxu0 %v81
    %5084 = vmatprep.subr.mxu0 0.0
    %5085 = vmatpush1.msra.mxu0 %v82
    %5086 = vmatprep.subr.mxu0 0.0
    %5087 = vmatpush1.msra.mxu0 %v83
    %5088 = vmatprep.subr.mxu0 0.0
    %5089 = vmatpush1.msra.mxu0 %v84
    %5090 = vmatprep.subr.mxu0 0.0
    %5091 = vmatpush1.msra.mxu0 %v85
    %5092 = vmatprep.subr.mxu0 0.0
    %5093 = vmatpush1.msra.mxu0 %v86
    %5094 = vmatprep.subr.mxu0 0.0
    %5095 = vmatpush1.msra.mxu0 %v87
    %5096 = vmatprep.subr.mxu0 0.0
    %5097 = vmatpush1.msra.mxu0 %v88
    %5098 = vmatprep.subr.mxu0 0.0
    %5099 = vmatpush1.msra.mxu0 %v89
    %5100 = vmatprep.subr.mxu0 0.0
    %5101 = vmatpush1.msra.mxu0 %v90
    %5102 = vmatprep.subr.mxu0 0.0
    %5103 = vmatpush1.msra.mxu0 %v91
    %5104 = vmatprep.subr.mxu0 0.0
    %5105 = vmatpush1.msra.mxu0 0.0
    %5106 = vmatprep.subr.mxu0 0.0
    %5107 = vmatpush1.msra.mxu0 0.0
    %5108 = vmatprep.subr.mxu0 0.0
    %5109 = vmatpush1.msra.mxu0 0.0
    %5110 = vmatprep.subr.mxu0 0.0
    %5111 = vmatpush1.msra.mxu0 0.0
    %5112 = vmatprep.subr.mxu0 0.0
    %5113 = vmatpush1.msra.mxu0 0.0
    %5114 = vmatprep.subr.mxu0 0.0
    %5115 = vmatpush1.msra.mxu0 0.0
    %5116 = vmatprep.subr.mxu0 0.0
    %5117 = vmatpush1.msra.mxu0 0.0
    %5118 = vmatprep.subr.mxu0 0.0
    %5119 = vmatpush1.msra.mxu0 0.0
    %5120 = vmatprep.subr.mxu0 0.0
    %5121 = vmatpush1.msra.mxu0 0.0
    %5122 = vmatprep.subr.mxu0 0.0
    %5123 = vmatpush1.msra.mxu0 0.0
    %5124 = vmatprep.subr.mxu0 0.0
    %5125 = vmatpush1.msra.mxu0 0.0
    %5126 = vmatprep.subr.mxu0 0.0
    %5127 = vmatpush1.msra.mxu0 0.0
    %5128 = vmatprep.subr.mxu0 0.0
    %5129 = vmatpush1.msra.mxu0 0.0
    %5130 = vmatprep.subr.mxu0 0.0
    %5131 = vmatpush1.msra.mxu0 0.0
    %5132 = vmatprep.subr.mxu0 0.0
    %5133 = vmatpush1.msra.mxu0 0.0
    %5134 = vmatprep.subr.mxu0 0.0
    %5135 = vmatpush1.msra.mxu0 0.0
    %5136 = vmatprep.mubr.f32.mxu0 0.0
    %5137 = vmatmul.mubr.f32.gmra.mrb[0].mxu0 %v5071
    %v5138 = vpop.f32.mrb[0].mxu0
    %v5139 = vadd.f32 %v104, %v5138
    %v5140 = vpop.f32.mrb[0].mxu0
    %5141 = vdwg.mxu0
    %v5142 = vmul.f32 %v5139, 0.0625
    %v5143 = vadd.f32 %v4714, %v5142
    %5144 = vmatprep.subr.mxu0 0.0
    %5145 = vmatpush1.msra.mxu0 %v60
    %5146 = vmatprep.subr.mxu0 0.0
    %5147 = vmatpush1.msra.mxu0 %v61
    %5148 = vmatprep.subr.mxu0 0.0
    %5149 = vmatpush1.msra.mxu0 %v62
    %5150 = vmatprep.subr.mxu0 0.0
    %5151 = vmatpush1.msra.mxu0 %v63
    %5152 = vmatprep.subr.mxu0 0.0
    %5153 = vmatpush1.msra.mxu0 %v64
    %5154 = vmatprep.subr.mxu0 0.0
    %5155 = vmatpush1.msra.mxu0 %v65
    %5156 = vmatprep.subr.mxu0 0.0
    %5157 = vmatpush1.msra.mxu0 %v66
    %5158 = vmatprep.subr.mxu0 0.0
    %5159 = vmatpush1.msra.mxu0 %v67
    %5160 = vmatprep.subr.mxu0 0.0
    %5161 = vmatpush1.msra.mxu0 %v68
    %5162 = vmatprep.subr.mxu0 0.0
    %5163 = vmatpush1.msra.mxu0 %v69
    %5164 = vmatprep.subr.mxu0 0.0
    %5165 = vmatpush1.msra.mxu0 %v70
    %5166 = vmatprep.subr.mxu0 0.0
    %5167 = vmatpush1.msra.mxu0 %v71
    %5168 = vmatprep.subr.mxu0 0.0
    %5169 = vmatpush1.msra.mxu0 %v72
    %5170 = vmatprep.subr.mxu0 0.0
    %5171 = vmatpush1.msra.mxu0 %v73
    %5172 = vmatprep.subr.mxu0 0.0
    %5173 = vmatpush1.msra.mxu0 %v74
    %5174 = vmatprep.subr.mxu0 0.0
    %5175 = vmatpush1.msra.mxu0 %v75
    %5176 = vmatprep.subr.mxu0 0.0
    %5177 = vmatpush1.msra.mxu0 0.0
    %5178 = vmatprep.subr.mxu0 0.0
    %5179 = vmatpush1.msra.mxu0 0.0
    %5180 = vmatprep.subr.mxu0 0.0
    %5181 = vmatpush1.msra.mxu0 0.0
    %5182 = vmatprep.subr.mxu0 0.0
    %5183 = vmatpush1.msra.mxu0 0.0
    %5184 = vmatprep.subr.mxu0 0.0
    %5185 = vmatpush1.msra.mxu0 0.0
    %5186 = vmatprep.subr.mxu0 0.0
    %5187 = vmatpush1.msra.mxu0 0.0
    %5188 = vmatprep.subr.mxu0 0.0
    %5189 = vmatpush1.msra.mxu0 0.0
    %5190 = vmatprep.subr.mxu0 0.0
    %5191 = vmatpush1.msra.mxu0 0.0
    %5192 = vmatprep.subr.mxu0 0.0
    %5193 = vmatpush1.msra.mxu0 0.0
    %5194 = vmatprep.subr.mxu0 0.0
    %5195 = vmatpush1.msra.mxu0 0.0
    %5196 = vmatprep.subr.mxu0 0.0
    %5197 = vmatpush1.msra.mxu0 0.0
    %5198 = vmatprep.subr.mxu0 0.0
    %5199 = vmatpush1.msra.mxu0 0.0
    %5200 = vmatprep.subr.mxu0 0.0
    %5201 = vmatpush1.msra.mxu0 0.0
    %5202 = vmatprep.subr.mxu0 0.0
    %5203 = vmatpush1.msra.mxu0 0.0
    %5204 = vmatprep.subr.mxu0 0.0
    %5205 = vmatpush1.msra.mxu0 0.0
    %5206 = vmatprep.subr.mxu0 0.0
    %5207 = vmatpush1.msra.mxu0 0.0
    %5208 = vmatprep.mubr.f32.mxu0 0.0
    %5209 = vmatmul.mubr.f32.gmra.mrb[0].mxu0 %v5143
    %v5210 = vpop.f32.mrb[0].mxu0
    %v5211 = vadd.f32 %v97, %v5210
    %v5212 = vpop.f32.mrb[0].mxu0
    %5213 = vdwg.mxu0
    %v5214 = vtanh.pop %v5211
    %5215 = vmatprep.subr.mxu0 0.0
    %5216 = vmatpush1.msra.mxu0 %v76
    %5217 = vmatprep.subr.mxu0 0.0
    %5218 = vmatpush1.msra.mxu0 %v77
    %5219 = vmatprep.subr.mxu0 0.0
    %5220 = vmatpush1.msra.mxu0 %v78
    %5221 = vmatprep.subr.mxu0 0.0
    %5222 = vmatpush1.msra.mxu0 %v79
    %5223 = vmatprep.subr.mxu0 0.0
    %5224 = vmatpush1.msra.mxu0 %v80
    %5225 = vmatprep.subr.mxu0 0.0
    %5226 = vmatpush1.msra.mxu0 %v81
    %5227 = vmatprep.subr.mxu0 0.0
    %5228 = vmatpush1.msra.mxu0 %v82
    %5229 = vmatprep.subr.mxu0 0.0
    %5230 = vmatpush1.msra.mxu0 %v83
    %5231 = vmatprep.subr.mxu0 0.0
    %5232 = vmatpush1.msra.mxu0 %v84
    %5233 = vmatprep.subr.mxu0 0.0
    %5234 = vmatpush1.msra.mxu0 %v85
    %5235 = vmatprep.subr.mxu0 0.0
    %5236 = vmatpush1.msra.mxu0 %v86
    %5237 = vmatprep.subr.mxu0 0.0
    %5238 = vmatpush1.msra.mxu0 %v87
    %5239 = vmatprep.subr.mxu0 0.0
    %5240 = vmatpush1.msra.mxu0 %v88
    %5241 = vmatprep.subr.mxu0 0.0
    %5242 = vmatpush1.msra.mxu0 %v89
    %5243 = vmatprep.subr.mxu0 0.0
    %5244 = vmatpush1.msra.mxu0 %v90
    %5245 = vmatprep.subr.mxu0 0.0
    %5246 = vmatpush1.msra.mxu0 %v91
    %5247 = vmatprep.subr.mxu0 0.0
    %5248 = vmatpush1.msra.mxu0 0.0
    %5249 = vmatprep.subr.mxu0 0.0
    %5250 = vmatpush1.msra.mxu0 0.0
    %5251 = vmatprep.subr.mxu0 0.0
    %5252 = vmatpush1.msra.mxu0 0.0
    %5253 = vmatprep.subr.mxu0 0.0
    %5254 = vmatpush1.msra.mxu0 0.0
    %5255 = vmatprep.subr.mxu0 0.0
    %5256 = vmatpush1.msra.mxu0 0.0
    %5257 = vmatprep.subr.mxu0 0.0
    %5258 = vmatpush1.msra.mxu0 0.0
    %5259 = vmatprep.subr.mxu0 0.0
    %5260 = vmatpush1.msra.mxu0 0.0
    %5261 = vmatprep.subr.mxu0 0.0
    %5262 = vmatpush1.msra.mxu0 0.0
    %5263 = vmatprep.subr.mxu0 0.0
    %5264 = vmatpush1.msra.mxu0 0.0
    %5265 = vmatprep.subr.mxu0 0.0
    %5266 = vmatpush1.msra.mxu0 0.0
    %5267 = vmatprep.subr.mxu0 0.0
    %5268 = vmatpush1.msra.mxu0 0.0
    %5269 = vmatprep.subr.mxu0 0.0
    %5270 = vmatpush1.msra.mxu0 0.0
    %5271 = vmatprep.subr.mxu0 0.0
    %5272 = vmatpush1.msra.mxu0 0.0
    %5273 = vmatprep.subr.mxu0 0.0
    %5274 = vmatpush1.msra.mxu0 0.0
    %5275 = vmatprep.subr.mxu0 0.0
    %5276 = vmatpush1.msra.mxu0 0.0
    %5277 = vmatprep.subr.mxu0 0.0
    %5278 = vmatpush1.msra.mxu0 0.0
    %5279 = vmatprep.mubr.f32.mxu0 0.0
    %5280 = vmatmul.mubr.f32.gmra.mrb[0].mxu0 %v5214
    %v5281 = vpop.f32.mrb[0].mxu0
    %v5282 = vadd.f32 %v104, %v5281
    %v5283 = vpop.f32.mrb[0].mxu0
    %5284 = vdwg.mxu0
    %v5285 = vadd.f32 %v4853, %v5282
    %v5286 = vadd.f32 %v4996, %v5139
    %v5287 = vmul.f32 %v5286, 2.0
    %v5288 = vadd.f32 %v5285, %v5287
    %v5289 = vmul.f32 %v5288, 0.010416667
    %v5290 = vadd.f32 %v4714, %v5289
    %5291 = vmatprep.subr.mxu0 0.0
    %5292 = vmatpush1.msra.mxu0 %v60
    %5293 = vmatprep.subr.mxu0 0.0
    %5294 = vmatpush1.msra.mxu0 %v61
    %5295 = vmatprep.subr.mxu0 0.0
    %5296 = vmatpush1.msra.mxu0 %v62
    %5297 = vmatprep.subr.mxu0 0.0
    %5298 = vmatpush1.msra.mxu0 %v63
    %5299 = vmatprep.subr.mxu0 0.0
    %5300 = vmatpush1.msra.mxu0 %v64
    %5301 = vmatprep.subr.mxu0 0.0
    %5302 = vmatpush1.msra.mxu0 %v65
    %5303 = vmatprep.subr.mxu0 0.0
    %5304 = vmatpush1.msra.mxu0 %v66
    %5305 = vmatprep.subr.mxu0 0.0
    %5306 = vmatpush1.msra.mxu0 %v67
    %5307 = vmatprep.subr.mxu0 0.0
    %5308 = vmatpush1.msra.mxu0 %v68
    %5309 = vmatprep.subr.mxu0 0.0
    %5310 = vmatpush1.msra.mxu0 %v69
    %5311 = vmatprep.subr.mxu0 0.0
    %5312 = vmatpush1.msra.mxu0 %v70
    %5313 = vmatprep.subr.mxu0 0.0
    %5314 = vmatpush1.msra.mxu0 %v71
    %5315 = vmatprep.subr.mxu0 0.0
    %5316 = vmatpush1.msra.mxu0 %v72
    %5317 = vmatprep.subr.mxu0 0.0
    %5318 = vmatpush1.msra.mxu0 %v73
    %5319 = vmatprep.subr.mxu0 0.0
    %5320 = vmatpush1.msra.mxu0 %v74
    %5321 = vmatprep.subr.mxu0 0.0
    %5322 = vmatpush1.msra.mxu0 %v75
    %5323 = vmatprep.subr.mxu0 0.0
    %5324 = vmatpush1.msra.mxu0 0.0
    %5325 = vmatprep.subr.mxu0 0.0
    %5326 = vmatpush1.msra.mxu0 0.0
    %5327 = vmatprep.subr.mxu0 0.0
    %5328 = vmatpush1.msra.mxu0 0.0
    %5329 = vmatprep.subr.mxu0 0.0
    %5330 = vmatpush1.msra.mxu0 0.0
    %5331 = vmatprep.subr.mxu0 0.0
    %5332 = vmatpush1.msra.mxu0 0.0
    %5333 = vmatprep.subr.mxu0 0.0
    %5334 = vmatpush1.msra.mxu0 0.0
    %5335 = vmatprep.subr.mxu0 0.0
    %5336 = vmatpush1.msra.mxu0 0.0
    %5337 = vmatprep.subr.mxu0 0.0
    %5338 = vmatpush1.msra.mxu0 0.0
    %5339 = vmatprep.subr.mxu0 0.0
    %5340 = vmatpush1.msra.mxu0 0.0
    %5341 = vmatprep.subr.mxu0 0.0
    %5342 = vmatpush1.msra.mxu0 0.0
    %5343 = vmatprep.subr.mxu0 0.0
    %5344 = vmatpush1.msra.mxu0 0.0
    %5345 = vmatprep.subr.mxu0 0.0
    %5346 = vmatpush1.msra.mxu0 0.0
    %5347 = vmatprep.subr.mxu0 0.0
    %5348 = vmatpush1.msra.mxu0 0.0
    %5349 = vmatprep.subr.mxu0 0.0
    %5350 = vmatpush1.msra.mxu0 0.0
    %5351 = vmatprep.subr.mxu0 0.0
    %5352 = vmatpush1.msra.mxu0 0.0
    %5353 = vmatprep.subr.mxu0 0.0
    %5354 = vmatpush1.msra.mxu0 0.0
    %5355 = vmatprep.mubr.f32.mxu0 0.0
    %5356 = vmatmul.mubr.f32.gmra.mrb[0].mxu0 %v5290
    %v5357 = vpop.f32.mrb[0].mxu0
    %v5358 = vadd.f32 %v97, %v5357
    %v5359 = vpop.f32.mrb[0].mxu0
    %5360 = vdwg.mxu0
    %v5361 = vtanh.pop %v5358
    %5362 = vmatprep.subr.mxu0 0.0
    %5363 = vmatpush1.msra.mxu0 %v76
    %5364 = vmatprep.subr.mxu0 0.0
    %5365 = vmatpush1.msra.mxu0 %v77
    %5366 = vmatprep.subr.mxu0 0.0
    %5367 = vmatpush1.msra.mxu0 %v78
    %5368 = vmatprep.subr.mxu0 0.0
    %5369 = vmatpush1.msra.mxu0 %v79
    %5370 = vmatprep.subr.mxu0 0.0
    %5371 = vmatpush1.msra.mxu0 %v80
    %5372 = vmatprep.subr.mxu0 0.0
    %5373 = vmatpush1.msra.mxu0 %v81
    %5374 = vmatprep.subr.mxu0 0.0
    %5375 = vmatpush1.msra.mxu0 %v82
    %5376 = vmatprep.subr.mxu0 0.0
    %5377 = vmatpush1.msra.mxu0 %v83
    %5378 = vmatprep.subr.mxu0 0.0
    %5379 = vmatpush1.msra.mxu0 %v84
    %5380 = vmatprep.subr.mxu0 0.0
    %5381 = vmatpush1.msra.mxu0 %v85
    %5382 = vmatprep.subr.mxu0 0.0
    %5383 = vmatpush1.msra.mxu0 %v86
    %5384 = vmatprep.subr.mxu0 0.0
    %5385 = vmatpush1.msra.mxu0 %v87
    %5386 = vmatprep.subr.mxu0 0.0
    %5387 = vmatpush1.msra.mxu0 %v88
    %5388 = vmatprep.subr.mxu0 0.0
    %5389 = vmatpush1.msra.mxu0 %v89
    %5390 = vmatprep.subr.mxu0 0.0
    %5391 = vmatpush1.msra.mxu0 %v90
    %5392 = vmatprep.subr.mxu0 0.0
    %5393 = vmatpush1.msra.mxu0 %v91
    %5394 = vmatprep.subr.mxu0 0.0
    %5395 = vmatpush1.msra.mxu0 0.0
    %5396 = vmatprep.subr.mxu0 0.0
    %5397 = vmatpush1.msra.mxu0 0.0
    %5398 = vmatprep.subr.mxu0 0.0
    %5399 = vmatpush1.msra.mxu0 0.0
    %5400 = vmatprep.subr.mxu0 0.0
    %5401 = vmatpush1.msra.mxu0 0.0
    %5402 = vmatprep.subr.mxu0 0.0
    %5403 = vmatpush1.msra.mxu0 0.0
    %5404 = vmatprep.subr.mxu0 0.0
    %5405 = vmatpush1.msra.mxu0 0.0
    %5406 = vmatprep.subr.mxu0 0.0
    %5407 = vmatpush1.msra.mxu0 0.0
    %5408 = vmatprep.subr.mxu0 0.0
    %5409 = vmatpush1.msra.mxu0 0.0
    %5410 = vmatprep.subr.mxu0 0.0
    %5411 = vmatpush1.msra.mxu0 0.0
    %5412 = vmatprep.subr.mxu0 0.0
    %5413 = vmatpush1.msra.mxu0 0.0
    %5414 = vmatprep.subr.mxu0 0.0
    %5415 = vmatpush1.msra.mxu0 0.0
    %5416 = vmatprep.subr.mxu0 0.0
    %5417 = vmatpush1.msra.mxu0 0.0
    %5418 = vmatprep.subr.mxu0 0.0
    %5419 = vmatpush1.msra.mxu0 0.0
    %5420 = vmatprep.subr.mxu0 0.0
    %5421 = vmatpush1.msra.mxu0 0.0
    %5422 = vmatprep.subr.mxu0 0.0
    %5423 = vmatpush1.msra.mxu0 0.0
    %5424 = vmatprep.subr.mxu0 0.0
    %5425 = vmatpush1.msra.mxu0 0.0
    %5426 = vmatprep.mubr.f32.mxu0 0.0
    %5427 = vmatmul.mubr.f32.gmra.mrb[0].mxu0 %v5361
    %v5428 = vpop.f32.mrb[0].mxu0
    %v5429 = vadd.f32 %v104, %v5428
    %v5430 = vpop.f32.mrb[0].mxu0
    %5431 = vdwg.mxu0
    %v5432 = vmul.f32 %v5429, 0.03125
    %v5433 = vadd.f32 %v5290, %v5432
    %5434 = vmatprep.subr.mxu0 0.0
    %5435 = vmatpush1.msra.mxu0 %v60
    %5436 = vmatprep.subr.mxu0 0.0
    %5437 = vmatpush1.msra.mxu0 %v61
    %5438 = vmatprep.subr.mxu0 0.0
    %5439 = vmatpush1.msra.mxu0 %v62
    %5440 = vmatprep.subr.mxu0 0.0
    %5441 = vmatpush1.msra.mxu0 %v63
    %5442 = vmatprep.subr.mxu0 0.0
    %5443 = vmatpush1.msra.mxu0 %v64
    %5444 = vmatprep.subr.mxu0 0.0
    %5445 = vmatpush1.msra.mxu0 %v65
    %5446 = vmatprep.subr.mxu0 0.0
    %5447 = vmatpush1.msra.mxu0 %v66
    %5448 = vmatprep.subr.mxu0 0.0
    %5449 = vmatpush1.msra.mxu0 %v67
    %5450 = vmatprep.subr.mxu0 0.0
    %5451 = vmatpush1.msra.mxu0 %v68
    %5452 = vmatprep.subr.mxu0 0.0
    %5453 = vmatpush1.msra.mxu0 %v69
    %5454 = vmatprep.subr.mxu0 0.0
    %5455 = vmatpush1.msra.mxu0 %v70
    %5456 = vmatprep.subr.mxu0 0.0
    %5457 = vmatpush1.msra.mxu0 %v71
    %5458 = vmatprep.subr.mxu0 0.0
    %5459 = vmatpush1.msra.mxu0 %v72
    %5460 = vmatprep.subr.mxu0 0.0
    %5461 = vmatpush1.msra.mxu0 %v73
    %5462 = vmatprep.subr.mxu0 0.0
    %5463 = vmatpush1.msra.mxu0 %v74
    %5464 = vmatprep.subr.mxu0 0.0
    %5465 = vmatpush1.msra.mxu0 %v75
    %5466 = vmatprep.subr.mxu0 0.0
    %5467 = vmatpush1.msra.mxu0 0.0
    %5468 = vmatprep.subr.mxu0 0.0
    %5469 = vmatpush1.msra.mxu0 0.0
    %5470 = vmatprep.subr.mxu0 0.0
    %5471 = vmatpush1.msra.mxu0 0.0
    %5472 = vmatprep.subr.mxu0 0.0
    %5473 = vmatpush1.msra.mxu0 0.0
    %5474 = vmatprep.subr.mxu0 0.0
    %5475 = vmatpush1.msra.mxu0 0.0
    %5476 = vmatprep.subr.mxu0 0.0
    %5477 = vmatpush1.msra.mxu0 0.0
    %5478 = vmatprep.subr.mxu0 0.0
    %5479 = vmatpush1.msra.mxu0 0.0
    %5480 = vmatprep.subr.mxu0 0.0
    %5481 = vmatpush1.msra.mxu0 0.0
    %5482 = vmatprep.subr.mxu0 0.0
    %5483 = vmatpush1.msra.mxu0 0.0
    %5484 = vmatprep.subr.mxu0 0.0
    %5485 = vmatpush1.msra.mxu0 0.0
    %5486 = vmatprep.subr.mxu0 0.0
    %5487 = vmatpush1.msra.mxu0 0.0
    %5488 = vmatprep.subr.mxu0 0.0
    %5489 = vmatpush1.msra.mxu0 0.0
    %5490 = vmatprep.subr.mxu0 0.0
    %5491 = vmatpush1.msra.mxu0 0.0
    %5492 = vmatprep.subr.mxu0 0.0
    %5493 = vmatpush1.msra.mxu0 0.0
    %5494 = vmatprep.subr.mxu0 0.0
    %5495 = vmatpush1.msra.mxu0 0.0
    %5496 = vmatprep.subr.mxu0 0.0
    %5497 = vmatpush1.msra.mxu0 0.0
    %5498 = vmatprep.mubr.f32.mxu0 0.0
    %5499 = vmatmul.mubr.f32.gmra.mrb[0].mxu0 %v5433
    %v5500 = vpop.f32.mrb[0].mxu0
    %v5501 = vadd.f32 %v97, %v5500
    %v5502 = vpop.f32.mrb[0].mxu0
    %5503 = vdwg.mxu0
    %v5504 = vtanh.pop %v5501
    %5505 = vmatprep.subr.mxu0 0.0
    %5506 = vmatpush1.msra.mxu0 %v76
    %5507 = vmatprep.subr.mxu0 0.0
    %5508 = vmatpush1.msra.mxu0 %v77
    %5509 = vmatprep.subr.mxu0 0.0
    %5510 = vmatpush1.msra.mxu0 %v78
    %5511 = vmatprep.subr.mxu0 0.0
    %5512 = vmatpush1.msra.mxu0 %v79
    %5513 = vmatprep.subr.mxu0 0.0
    %5514 = vmatpush1.msra.mxu0 %v80
    %5515 = vmatprep.subr.mxu0 0.0
    %5516 = vmatpush1.msra.mxu0 %v81
    %5517 = vmatprep.subr.mxu0 0.0
    %5518 = vmatpush1.msra.mxu0 %v82
    %5519 = vmatprep.subr.mxu0 0.0
    %5520 = vmatpush1.msra.mxu0 %v83
    %5521 = vmatprep.subr.mxu0 0.0
    %5522 = vmatpush1.msra.mxu0 %v84
    %5523 = vmatprep.subr.mxu0 0.0
    %5524 = vmatpush1.msra.mxu0 %v85
    %5525 = vmatprep.subr.mxu0 0.0
    %5526 = vmatpush1.msra.mxu0 %v86
    %5527 = vmatprep.subr.mxu0 0.0
    %5528 = vmatpush1.msra.mxu0 %v87
    %5529 = vmatprep.subr.mxu0 0.0
    %5530 = vmatpush1.msra.mxu0 %v88
    %5531 = vmatprep.subr.mxu0 0.0
    %5532 = vmatpush1.msra.mxu0 %v89
    %5533 = vmatprep.subr.mxu0 0.0
    %5534 = vmatpush1.msra.mxu0 %v90
    %5535 = vmatprep.subr.mxu0 0.0
    %5536 = vmatpush1.msra.mxu0 %v91
    %5537 = vmatprep.subr.mxu0 0.0
    %5538 = vmatpush1.msra.mxu0 0.0
    %5539 = vmatprep.subr.mxu0 0.0
    %5540 = vmatpush1.msra.mxu0 0.0
    %5541 = vmatprep.subr.mxu0 0.0
    %5542 = vmatpush1.msra.mxu0 0.0
    %5543 = vmatprep.subr.mxu0 0.0
    %5544 = vmatpush1.msra.mxu0 0.0
    %5545 = vmatprep.subr.mxu0 0.0
    %5546 = vmatpush1.msra.mxu0 0.0
    %5547 = vmatprep.subr.mxu0 0.0
    %5548 = vmatpush1.msra.mxu0 0.0
    %5549 = vmatprep.subr.mxu0 0.0
    %5550 = vmatpush1.msra.mxu0 0.0
    %5551 = vmatprep.subr.mxu0 0.0
    %5552 = vmatpush1.msra.mxu0 0.0
    %5553 = vmatprep.subr.mxu0 0.0
    %5554 = vmatpush1.msra.mxu0 0.0
    %5555 = vmatprep.subr.mxu0 0.0
    %5556 = vmatpush1.msra.mxu0 0.0
    %5557 = vmatprep.subr.mxu0 0.0
    %5558 = vmatpush1.msra.mxu0 0.0
    %5559 = vmatprep.subr.mxu0 0.0
    %5560 = vmatpush1.msra.mxu0 0.0
    %5561 = vmatprep.subr.mxu0 0.0
    %5562 = vmatpush1.msra.mxu0 0.0
    %5563 = vmatprep.subr.mxu0 0.0
    %5564 = vmatpush1.msra.mxu0 0.0
    %5565 = vmatprep.subr.mxu0 0.0
    %5566 = vmatpush1.msra.mxu0 0.0
    %5567 = vmatprep.subr.mxu0 0.0
    %5568 = vmatpush1.msra.mxu0 0.0
    %5569 = vmatprep.mubr.f32.mxu0 0.0
    %5570 = vmatmul.mubr.f32.gmra.mrb[0].mxu0 %v5504
    %v5571 = vpop.f32.mrb[0].mxu0
    %v5572 = vadd.f32 %v104, %v5571
    %v5573 = vpop.f32.mrb[0].mxu0
    %5574 = vdwg.mxu0
    %v5575 = vmul.f32 %v5572, 0.03125
    %v5576 = vadd.f32 %v5290, %v5575
    %5577 = vmatprep.subr.mxu0 0.0
    %5578 = vmatpush1.msra.mxu0 %v60
    %5579 = vmatprep.subr.mxu0 0.0
    %5580 = vmatpush1.msra.mxu0 %v61
    %5581 = vmatprep.subr.mxu0 0.0
    %5582 = vmatpush1.msra.mxu0 %v62
    %5583 = vmatprep.subr.mxu0 0.0
    %5584 = vmatpush1.msra.mxu0 %v63
    %5585 = vmatprep.subr.mxu0 0.0
    %5586 = vmatpush1.msra.mxu0 %v64
    %5587 = vmatprep.subr.mxu0 0.0
    %5588 = vmatpush1.msra.mxu0 %v65
    %5589 = vmatprep.subr.mxu0 0.0
    %5590 = vmatpush1.msra.mxu0 %v66
    %5591 = vmatprep.subr.mxu0 0.0
    %5592 = vmatpush1.msra.mxu0 %v67
    %5593 = vmatprep.subr.mxu0 0.0
    %5594 = vmatpush1.msra.mxu0 %v68
    %5595 = vmatprep.subr.mxu0 0.0
    %5596 = vmatpush1.msra.mxu0 %v69
    %5597 = vmatprep.subr.mxu0 0.0
    %5598 = vmatpush1.msra.mxu0 %v70
    %5599 = vmatprep.subr.mxu0 0.0
    %5600 = vmatpush1.msra.mxu0 %v71
    %5601 = vmatprep.subr.mxu0 0.0
    %5602 = vmatpush1.msra.mxu0 %v72
    %5603 = vmatprep.subr.mxu0 0.0
    %5604 = vmatpush1.msra.mxu0 %v73
    %5605 = vmatprep.subr.mxu0 0.0
    %5606 = vmatpush1.msra.mxu0 %v74
    %5607 = vmatprep.subr.mxu0 0.0
    %5608 = vmatpush1.msra.mxu0 %v75
    %5609 = vmatprep.subr.mxu0 0.0
    %5610 = vmatpush1.msra.mxu0 0.0
    %5611 = vmatprep.subr.mxu0 0.0
    %5612 = vmatpush1.msra.mxu0 0.0
    %5613 = vmatprep.subr.mxu0 0.0
    %5614 = vmatpush1.msra.mxu0 0.0
    %5615 = vmatprep.subr.mxu0 0.0
    %5616 = vmatpush1.msra.mxu0 0.0
    %5617 = vmatprep.subr.mxu0 0.0
    %5618 = vmatpush1.msra.mxu0 0.0
    %5619 = vmatprep.subr.mxu0 0.0
    %5620 = vmatpush1.msra.mxu0 0.0
    %5621 = vmatprep.subr.mxu0 0.0
    %5622 = vmatpush1.msra.mxu0 0.0
    %5623 = vmatprep.subr.mxu0 0.0
    %5624 = vmatpush1.msra.mxu0 0.0
    %5625 = vmatprep.subr.mxu0 0.0
    %5626 = vmatpush1.msra.mxu0 0.0
    %5627 = vmatprep.subr.mxu0 0.0
    %5628 = vmatpush1.msra.mxu0 0.0
    %5629 = vmatprep.subr.mxu0 0.0
    %5630 = vmatpush1.msra.mxu0 0.0
    %5631 = vmatprep.subr.mxu0 0.0
    %5632 = vmatpush1.msra.mxu0 0.0
    %5633 = vmatprep.subr.mxu0 0.0
    %5634 = vmatpush1.msra.mxu0 0.0
    %5635 = vmatprep.subr.mxu0 0.0
    %5636 = vmatpush1.msra.mxu0 0.0
    %5637 = vmatprep.subr.mxu0 0.0
    %5638 = vmatpush1.msra.mxu0 0.0
    %5639 = vmatprep.subr.mxu0 0.0
    %5640 = vmatpush1.msra.mxu0 0.0
    %5641 = vmatprep.mubr.f32.mxu0 0.0
    %5642 = vmatmul.mubr.f32.gmra.mrb[0].mxu0 %v5576
    %v5643 = vpop.f32.mrb[0].mxu0
    %v5644 = vadd.f32 %v97, %v5643
    %v5645 = vpop.f32.mrb[0].mxu0
    %5646 = vdwg.mxu0
    %v5647 = vtanh.pop %v5644
    %5648 = vmatprep.subr.mxu0 0.0
    %5649 = vmatpush1.msra.mxu0 %v76
    %5650 = vmatprep.subr.mxu0 0.0
    %5651 = vmatpush1.msra.mxu0 %v77
    %5652 = vmatprep.subr.mxu0 0.0
    %5653 = vmatpush1.msra.mxu0 %v78
    %5654 = vmatprep.subr.mxu0 0.0
    %5655 = vmatpush1.msra.mxu0 %v79
    %5656 = vmatprep.subr.mxu0 0.0
    %5657 = vmatpush1.msra.mxu0 %v80
    %5658 = vmatprep.subr.mxu0 0.0
    %5659 = vmatpush1.msra.mxu0 %v81
    %5660 = vmatprep.subr.mxu0 0.0
    %5661 = vmatpush1.msra.mxu0 %v82
    %5662 = vmatprep.subr.mxu0 0.0
    %5663 = vmatpush1.msra.mxu0 %v83
    %5664 = vmatprep.subr.mxu0 0.0
    %5665 = vmatpush1.msra.mxu0 %v84
    %5666 = vmatprep.subr.mxu0 0.0
    %5667 = vmatpush1.msra.mxu0 %v85
    %5668 = vmatprep.subr.mxu0 0.0
    %5669 = vmatpush1.msra.mxu0 %v86
    %5670 = vmatprep.subr.mxu0 0.0
    %5671 = vmatpush1.msra.mxu0 %v87
    %5672 = vmatprep.subr.mxu0 0.0
    %5673 = vmatpush1.msra.mxu0 %v88
    %5674 = vmatprep.subr.mxu0 0.0
    %5675 = vmatpush1.msra.mxu0 %v89
    %5676 = vmatprep.subr.mxu0 0.0
    %5677 = vmatpush1.msra.mxu0 %v90
    %5678 = vmatprep.subr.mxu0 0.0
    %5679 = vmatpush1.msra.mxu0 %v91
    %5680 = vmatprep.subr.mxu0 0.0
    %5681 = vmatpush1.msra.mxu0 0.0
    %5682 = vmatprep.subr.mxu0 0.0
    %5683 = vmatpush1.msra.mxu0 0.0
    %5684 = vmatprep.subr.mxu0 0.0
    %5685 = vmatpush1.msra.mxu0 0.0
    %5686 = vmatprep.subr.mxu0 0.0
    %5687 = vmatpush1.msra.mxu0 0.0
    %5688 = vmatprep.subr.mxu0 0.0
    %5689 = vmatpush1.msra.mxu0 0.0
    %5690 = vmatprep.subr.mxu0 0.0
    %5691 = vmatpush1.msra.mxu0 0.0
    %5692 = vmatprep.subr.mxu0 0.0
    %5693 = vmatpush1.msra.mxu0 0.0
    %5694 = vmatprep.subr.mxu0 0.0
    %5695 = vmatpush1.msra.mxu0 0.0
    %5696 = vmatprep.subr.mxu0 0.0
    %5697 = vmatpush1.msra.mxu0 0.0
    %5698 = vmatprep.subr.mxu0 0.0
    %5699 = vmatpush1.msra.mxu0 0.0
    %5700 = vmatprep.subr.mxu0 0.0
    %5701 = vmatpush1.msra.mxu0 0.0
    %5702 = vmatprep.subr.mxu0 0.0
    %5703 = vmatpush1.msra.mxu0 0.0
    %5704 = vmatprep.subr.mxu0 0.0
    %5705 = vmatpush1.msra.mxu0 0.0
    %5706 = vmatprep.subr.mxu0 0.0
    %5707 = vmatpush1.msra.mxu0 0.0
    %5708 = vmatprep.subr.mxu0 0.0
    %5709 = vmatpush1.msra.mxu0 0.0
    %5710 = vmatprep.subr.mxu0 0.0
    %5711 = vmatpush1.msra.mxu0 0.0
    %5712 = vmatprep.mubr.f32.mxu0 0.0
    %5713 = vmatmul.mubr.f32.gmra.mrb[0].mxu0 %v5647
    %v5714 = vpop.f32.mrb[0].mxu0
    %v5715 = vadd.f32 %v104, %v5714
    %v5716 = vpop.f32.mrb[0].mxu0
    %5717 = vdwg.mxu0
    %v5718 = vmul.f32 %v5715, 0.0625
    %v5719 = vadd.f32 %v5290, %v5718
    %5720 = vmatprep.subr.mxu0 0.0
    %5721 = vmatpush1.msra.mxu0 %v60
    %5722 = vmatprep.subr.mxu0 0.0
    %5723 = vmatpush1.msra.mxu0 %v61
    %5724 = vmatprep.subr.mxu0 0.0
    %5725 = vmatpush1.msra.mxu0 %v62
    %5726 = vmatprep.subr.mxu0 0.0
    %5727 = vmatpush1.msra.mxu0 %v63
    %5728 = vmatprep.subr.mxu0 0.0
    %5729 = vmatpush1.msra.mxu0 %v64
    %5730 = vmatprep.subr.mxu0 0.0
    %5731 = vmatpush1.msra.mxu0 %v65
    %5732 = vmatprep.subr.mxu0 0.0
    %5733 = vmatpush1.msra.mxu0 %v66
    %5734 = vmatprep.subr.mxu0 0.0
    %5735 = vmatpush1.msra.mxu0 %v67
    %5736 = vmatprep.subr.mxu0 0.0
    %5737 = vmatpush1.msra.mxu0 %v68
    %5738 = vmatprep.subr.mxu0 0.0
    %5739 = vmatpush1.msra.mxu0 %v69
    %5740 = vmatprep.subr.mxu0 0.0
    %5741 = vmatpush1.msra.mxu0 %v70
    %5742 = vmatprep.subr.mxu0 0.0
    %5743 = vmatpush1.msra.mxu0 %v71
    %5744 = vmatprep.subr.mxu0 0.0
    %5745 = vmatpush1.msra.mxu0 %v72
    %5746 = vmatprep.subr.mxu0 0.0
    %5747 = vmatpush1.msra.mxu0 %v73
    %5748 = vmatprep.subr.mxu0 0.0
    %5749 = vmatpush1.msra.mxu0 %v74
    %5750 = vmatprep.subr.mxu0 0.0
    %5751 = vmatpush1.msra.mxu0 %v75
    %5752 = vmatprep.subr.mxu0 0.0
    %5753 = vmatpush1.msra.mxu0 0.0
    %5754 = vmatprep.subr.mxu0 0.0
    %5755 = vmatpush1.msra.mxu0 0.0
    %5756 = vmatprep.subr.mxu0 0.0
    %5757 = vmatpush1.msra.mxu0 0.0
    %5758 = vmatprep.subr.mxu0 0.0
    %5759 = vmatpush1.msra.mxu0 0.0
    %5760 = vmatprep.subr.mxu0 0.0
    %5761 = vmatpush1.msra.mxu0 0.0
    %5762 = vmatprep.subr.mxu0 0.0
    %5763 = vmatpush1.msra.mxu0 0.0
    %5764 = vmatprep.subr.mxu0 0.0
    %5765 = vmatpush1.msra.mxu0 0.0
    %5766 = vmatprep.subr.mxu0 0.0
    %5767 = vmatpush1.msra.mxu0 0.0
    %5768 = vmatprep.subr.mxu0 0.0
    %5769 = vmatpush1.msra.mxu0 0.0
    %5770 = vmatprep.subr.mxu0 0.0
    %5771 = vmatpush1.msra.mxu0 0.0
    %5772 = vmatprep.subr.mxu0 0.0
    %5773 = vmatpush1.msra.mxu0 0.0
    %5774 = vmatprep.subr.mxu0 0.0
    %5775 = vmatpush1.msra.mxu0 0.0
    %5776 = vmatprep.subr.mxu0 0.0
    %5777 = vmatpush1.msra.mxu0 0.0
    %5778 = vmatprep.subr.mxu0 0.0
    %5779 = vmatpush1.msra.mxu0 0.0
    %5780 = vmatprep.subr.mxu0 0.0
    %5781 = vmatpush1.msra.mxu0 0.0
    %5782 = vmatprep.subr.mxu0 0.0
    %5783 = vmatpush1.msra.mxu0 0.0
    %5784 = vmatprep.mubr.f32.mxu0 0.0
    %5785 = vmatmul.mubr.f32.gmra.mrb[0].mxu0 %v5719
    %v5786 = vpop.f32.mrb[0].mxu0
    %v5787 = vadd.f32 %v97, %v5786
    %v5788 = vpop.f32.mrb[0].mxu0
    %5789 = vdwg.mxu0
    %v5790 = vtanh.pop %v5787
    %5791 = vmatprep.subr.mxu0 0.0
    %5792 = vmatpush1.msra.mxu0 %v76
    %5793 = vmatprep.subr.mxu0 0.0
    %5794 = vmatpush1.msra.mxu0 %v77
    %5795 = vmatprep.subr.mxu0 0.0
    %5796 = vmatpush1.msra.mxu0 %v78
    %5797 = vmatprep.subr.mxu0 0.0
    %5798 = vmatpush1.msra.mxu0 %v79
    %5799 = vmatprep.subr.mxu0 0.0
    %5800 = vmatpush1.msra.mxu0 %v80
    %5801 = vmatprep.subr.mxu0 0.0
    %5802 = vmatpush1.msra.mxu0 %v81
    %5803 = vmatprep.subr.mxu0 0.0
    %5804 = vmatpush1.msra.mxu0 %v82
    %5805 = vmatprep.subr.mxu0 0.0
    %5806 = vmatpush1.msra.mxu0 %v83
    %5807 = vmatprep.subr.mxu0 0.0
    %5808 = vmatpush1.msra.mxu0 %v84
    %5809 = vmatprep.subr.mxu0 0.0
    %5810 = vmatpush1.msra.mxu0 %v85
    %5811 = vmatprep.subr.mxu0 0.0
    %5812 = vmatpush1.msra.mxu0 %v86
    %5813 = vmatprep.subr.mxu0 0.0
    %5814 = vmatpush1.msra.mxu0 %v87
    %5815 = vmatprep.subr.mxu0 0.0
    %5816 = vmatpush1.msra.mxu0 %v88
    %5817 = vmatprep.subr.mxu0 0.0
    %5818 = vmatpush1.msra.mxu0 %v89
    %5819 = vmatprep.subr.mxu0 0.0
    %5820 = vmatpush1.msra.mxu0 %v90
    %5821 = vmatprep.subr.mxu0 0.0
    %5822 = vmatpush1.msra.mxu0 %v91
    %5823 = vmatprep.subr.mxu0 0.0
    %5824 = vmatpush1.msra.mxu0 0.0
    %5825 = vmatprep.subr.mxu0 0.0
    %5826 = vmatpush1.msra.mxu0 0.0
    %5827 = vmatprep.subr.mxu0 0.0
    %5828 = vmatpush1.msra.mxu0 0.0
    %5829 = vmatprep.subr.mxu0 0.0
    %5830 = vmatpush1.msra.mxu0 0.0
    %5831 = vmatprep.subr.mxu0 0.0
    %5832 = vmatpush1.msra.mxu0 0.0
    %5833 = vmatprep.subr.mxu0 0.0
    %5834 = vmatpush1.msra.mxu0 0.0
    %5835 = vmatprep.subr.mxu0 0.0
    %5836 = vmatpush1.msra.mxu0 0.0
    %5837 = vmatprep.subr.mxu0 0.0
    %5838 = vmatpush1.msra.mxu0 0.0
    %5839 = vmatprep.subr.mxu0 0.0
    %5840 = vmatpush1.msra.mxu0 0.0
    %5841 = vmatprep.subr.mxu0 0.0
    %5842 = vmatpush1.msra.mxu0 0.0
    %5843 = vmatprep.subr.mxu0 0.0
    %5844 = vmatpush1.msra.mxu0 0.0
    %5845 = vmatprep.subr.mxu0 0.0
    %5846 = vmatpush1.msra.mxu0 0.0
    %5847 = vmatprep.subr.mxu0 0.0
    %5848 = vmatpush1.msra.mxu0 0.0
    %5849 = vmatprep.subr.mxu0 0.0
    %5850 = vmatpush1.msra.mxu0 0.0
    %5851 = vmatprep.subr.mxu0 0.0
    %5852 = vmatpush1.msra.mxu0 0.0
    %5853 = vmatprep.subr.mxu0 0.0
    %5854 = vmatpush1.msra.mxu0 0.0
    %5855 = vmatprep.mubr.f32.mxu0 0.0
    %5856 = vmatmul.mubr.f32.gmra.mrb[0].mxu0 %v5790
    %v5857 = vpop.f32.mrb[0].mxu0
    %v5858 = vadd.f32 %v104, %v5857
    %v5859 = vpop.f32.mrb[0].mxu0
    %5860 = vdwg.mxu0
    %v5861 = vadd.f32 %v5429, %v5858
    %v5862 = vadd.f32 %v5572, %v5715
    %v5863 = vmul.f32 %v5862, 2.0
    %v5864 = vadd.f32 %v5861, %v5863
    %v5865 = vmul.f32 %v5864, 0.010416667
    %v5866 = vadd.f32 %v5290, %v5865
    %5867 = vmatprep.subr.mxu0 0.0
    %5868 = vmatpush1.msra.mxu0 %v60
    %5869 = vmatprep.subr.mxu0 0.0
    %5870 = vmatpush1.msra.mxu0 %v61
    %5871 = vmatprep.subr.mxu0 0.0
    %5872 = vmatpush1.msra.mxu0 %v62
    %5873 = vmatprep.subr.mxu0 0.0
    %5874 = vmatpush1.msra.mxu0 %v63
    %5875 = vmatprep.subr.mxu0 0.0
    %5876 = vmatpush1.msra.mxu0 %v64
    %5877 = vmatprep.subr.mxu0 0.0
    %5878 = vmatpush1.msra.mxu0 %v65
    %5879 = vmatprep.subr.mxu0 0.0
    %5880 = vmatpush1.msra.mxu0 %v66
    %5881 = vmatprep.subr.mxu0 0.0
    %5882 = vmatpush1.msra.mxu0 %v67
    %5883 = vmatprep.subr.mxu0 0.0
    %5884 = vmatpush1.msra.mxu0 %v68
    %5885 = vmatprep.subr.mxu0 0.0
    %5886 = vmatpush1.msra.mxu0 %v69
    %5887 = vmatprep.subr.mxu0 0.0
    %5888 = vmatpush1.msra.mxu0 %v70
    %5889 = vmatprep.subr.mxu0 0.0
    %5890 = vmatpush1.msra.mxu0 %v71
    %5891 = vmatprep.subr.mxu0 0.0
    %5892 = vmatpush1.msra.mxu0 %v72
    %5893 = vmatprep.subr.mxu0 0.0
    %5894 = vmatpush1.msra.mxu0 %v73
    %5895 = vmatprep.subr.mxu0 0.0
    %5896 = vmatpush1.msra.mxu0 %v74
    %5897 = vmatprep.subr.mxu0 0.0
    %5898 = vmatpush1.msra.mxu0 %v75
    %5899 = vmatprep.subr.mxu0 0.0
    %5900 = vmatpush1.msra.mxu0 0.0
    %5901 = vmatprep.subr.mxu0 0.0
    %5902 = vmatpush1.msra.mxu0 0.0
    %5903 = vmatprep.subr.mxu0 0.0
    %5904 = vmatpush1.msra.mxu0 0.0
    %5905 = vmatprep.subr.mxu0 0.0
    %5906 = vmatpush1.msra.mxu0 0.0
    %5907 = vmatprep.subr.mxu0 0.0
    %5908 = vmatpush1.msra.mxu0 0.0
    %5909 = vmatprep.subr.mxu0 0.0
    %5910 = vmatpush1.msra.mxu0 0.0
    %5911 = vmatprep.subr.mxu0 0.0
    %5912 = vmatpush1.msra.mxu0 0.0
    %5913 = vmatprep.subr.mxu0 0.0
    %5914 = vmatpush1.msra.mxu0 0.0
    %5915 = vmatprep.subr.mxu0 0.0
    %5916 = vmatpush1.msra.mxu0 0.0
    %5917 = vmatprep.subr.mxu0 0.0
    %5918 = vmatpush1.msra.mxu0 0.0
    %5919 = vmatprep.subr.mxu0 0.0
    %5920 = vmatpush1.msra.mxu0 0.0
    %5921 = vmatprep.subr.mxu0 0.0
    %5922 = vmatpush1.msra.mxu0 0.0
    %5923 = vmatprep.subr.mxu0 0.0
    %5924 = vmatpush1.msra.mxu0 0.0
    %5925 = vmatprep.subr.mxu0 0.0
    %5926 = vmatpush1.msra.mxu0 0.0
    %5927 = vmatprep.subr.mxu0 0.0
    %5928 = vmatpush1.msra.mxu0 0.0
    %5929 = vmatprep.subr.mxu0 0.0
    %5930 = vmatpush1.msra.mxu0 0.0
    %5931 = vmatprep.mubr.f32.mxu0 0.0
    %5932 = vmatmul.mubr.f32.gmra.mrb[0].mxu0 %v5866
    %v5933 = vpop.f32.mrb[0].mxu0
    %v5934 = vadd.f32 %v97, %v5933
    %v5935 = vpop.f32.mrb[0].mxu0
    %5936 = vdwg.mxu0
    %v5937 = vtanh.pop %v5934
    %5938 = vmatprep.subr.mxu0 0.0
    %5939 = vmatpush1.msra.mxu0 %v76
    %5940 = vmatprep.subr.mxu0 0.0
    %5941 = vmatpush1.msra.mxu0 %v77
    %5942 = vmatprep.subr.mxu0 0.0
    %5943 = vmatpush1.msra.mxu0 %v78
    %5944 = vmatprep.subr.mxu0 0.0
    %5945 = vmatpush1.msra.mxu0 %v79
    %5946 = vmatprep.subr.mxu0 0.0
    %5947 = vmatpush1.msra.mxu0 %v80
    %5948 = vmatprep.subr.mxu0 0.0
    %5949 = vmatpush1.msra.mxu0 %v81
    %5950 = vmatprep.subr.mxu0 0.0
    %5951 = vmatpush1.msra.mxu0 %v82
    %5952 = vmatprep.subr.mxu0 0.0
    %5953 = vmatpush1.msra.mxu0 %v83
    %5954 = vmatprep.subr.mxu0 0.0
    %5955 = vmatpush1.msra.mxu0 %v84
    %5956 = vmatprep.subr.mxu0 0.0
    %5957 = vmatpush1.msra.mxu0 %v85
    %5958 = vmatprep.subr.mxu0 0.0
    %5959 = vmatpush1.msra.mxu0 %v86
    %5960 = vmatprep.subr.mxu0 0.0
    %5961 = vmatpush1.msra.mxu0 %v87
    %5962 = vmatprep.subr.mxu0 0.0
    %5963 = vmatpush1.msra.mxu0 %v88
    %5964 = vmatprep.subr.mxu0 0.0
    %5965 = vmatpush1.msra.mxu0 %v89
    %5966 = vmatprep.subr.mxu0 0.0
    %5967 = vmatpush1.msra.mxu0 %v90
    %5968 = vmatprep.subr.mxu0 0.0
    %5969 = vmatpush1.msra.mxu0 %v91
    %5970 = vmatprep.subr.mxu0 0.0
    %5971 = vmatpush1.msra.mxu0 0.0
    %5972 = vmatprep.subr.mxu0 0.0
    %5973 = vmatpush1.msra.mxu0 0.0
    %5974 = vmatprep.subr.mxu0 0.0
    %5975 = vmatpush1.msra.mxu0 0.0
    %5976 = vmatprep.subr.mxu0 0.0
    %5977 = vmatpush1.msra.mxu0 0.0
    %5978 = vmatprep.subr.mxu0 0.0
    %5979 = vmatpush1.msra.mxu0 0.0
    %5980 = vmatprep.subr.mxu0 0.0
    %5981 = vmatpush1.msra.mxu0 0.0
    %5982 = vmatprep.subr.mxu0 0.0
    %5983 = vmatpush1.msra.mxu0 0.0
    %5984 = vmatprep.subr.mxu0 0.0
    %5985 = vmatpush1.msra.mxu0 0.0
    %5986 = vmatprep.subr.mxu0 0.0
    %5987 = vmatpush1.msra.mxu0 0.0
    %5988 = vmatprep.subr.mxu0 0.0
    %5989 = vmatpush1.msra.mxu0 0.0
    %5990 = vmatprep.subr.mxu0 0.0
    %5991 = vmatpush1.msra.mxu0 0.0
    %5992 = vmatprep.subr.mxu0 0.0
    %5993 = vmatpush1.msra.mxu0 0.0
    %5994 = vmatprep.subr.mxu0 0.0
    %5995 = vmatpush1.msra.mxu0 0.0
    %5996 = vmatprep.subr.mxu0 0.0
    %5997 = vmatpush1.msra.mxu0 0.0
    %5998 = vmatprep.subr.mxu0 0.0
    %5999 = vmatpush1.msra.mxu0 0.0
    %6000 = vmatprep.subr.mxu0 0.0
    %6001 = vmatpush1.msra.mxu0 0.0
    %6002 = vmatprep.mubr.f32.mxu0 0.0
    %6003 = vmatmul.mubr.f32.gmra.mrb[0].mxu0 %v5937
    %v6004 = vpop.f32.mrb[0].mxu0
    %v6005 = vadd.f32 %v104, %v6004
    %v6006 = vpop.f32.mrb[0].mxu0
    %6007 = vdwg.mxu0
    %v6008 = vmul.f32 %v6005, 0.03125
    %v6009 = vadd.f32 %v5866, %v6008
    %6010 = vmatprep.subr.mxu0 0.0
    %6011 = vmatpush1.msra.mxu0 %v60
    %6012 = vmatprep.subr.mxu0 0.0
    %6013 = vmatpush1.msra.mxu0 %v61
    %6014 = vmatprep.subr.mxu0 0.0
    %6015 = vmatpush1.msra.mxu0 %v62
    %6016 = vmatprep.subr.mxu0 0.0
    %6017 = vmatpush1.msra.mxu0 %v63
    %6018 = vmatprep.subr.mxu0 0.0
    %6019 = vmatpush1.msra.mxu0 %v64
    %6020 = vmatprep.subr.mxu0 0.0
    %6021 = vmatpush1.msra.mxu0 %v65
    %6022 = vmatprep.subr.mxu0 0.0
    %6023 = vmatpush1.msra.mxu0 %v66
    %6024 = vmatprep.subr.mxu0 0.0
    %6025 = vmatpush1.msra.mxu0 %v67
    %6026 = vmatprep.subr.mxu0 0.0
    %6027 = vmatpush1.msra.mxu0 %v68
    %6028 = vmatprep.subr.mxu0 0.0
    %6029 = vmatpush1.msra.mxu0 %v69
    %6030 = vmatprep.subr.mxu0 0.0
    %6031 = vmatpush1.msra.mxu0 %v70
    %6032 = vmatprep.subr.mxu0 0.0
    %6033 = vmatpush1.msra.mxu0 %v71
    %6034 = vmatprep.subr.mxu0 0.0
    %6035 = vmatpush1.msra.mxu0 %v72
    %6036 = vmatprep.subr.mxu0 0.0
    %6037 = vmatpush1.msra.mxu0 %v73
    %6038 = vmatprep.subr.mxu0 0.0
    %6039 = vmatpush1.msra.mxu0 %v74
    %6040 = vmatprep.subr.mxu0 0.0
    %6041 = vmatpush1.msra.mxu0 %v75
    %6042 = vmatprep.subr.mxu0 0.0
    %6043 = vmatpush1.msra.mxu0 0.0
    %6044 = vmatprep.subr.mxu0 0.0
    %6045 = vmatpush1.msra.mxu0 0.0
    %6046 = vmatprep.subr.mxu0 0.0
    %6047 = vmatpush1.msra.mxu0 0.0
    %6048 = vmatprep.subr.mxu0 0.0
    %6049 = vmatpush1.msra.mxu0 0.0
    %6050 = vmatprep.subr.mxu0 0.0
    %6051 = vmatpush1.msra.mxu0 0.0
    %6052 = vmatprep.subr.mxu0 0.0
    %6053 = vmatpush1.msra.mxu0 0.0
    %6054 = vmatprep.subr.mxu0 0.0
    %6055 = vmatpush1.msra.mxu0 0.0
    %6056 = vmatprep.subr.mxu0 0.0
    %6057 = vmatpush1.msra.mxu0 0.0
    %6058 = vmatprep.subr.mxu0 0.0
    %6059 = vmatpush1.msra.mxu0 0.0
    %6060 = vmatprep.subr.mxu0 0.0
    %6061 = vmatpush1.msra.mxu0 0.0
    %6062 = vmatprep.subr.mxu0 0.0
    %6063 = vmatpush1.msra.mxu0 0.0
    %6064 = vmatprep.subr.mxu0 0.0
    %6065 = vmatpush1.msra.mxu0 0.0
    %6066 = vmatprep.subr.mxu0 0.0
    %6067 = vmatpush1.msra.mxu0 0.0
    %6068 = vmatprep.subr.mxu0 0.0
    %6069 = vmatpush1.msra.mxu0 0.0
    %6070 = vmatprep.subr.mxu0 0.0
    %6071 = vmatpush1.msra.mxu0 0.0
    %6072 = vmatprep.subr.mxu0 0.0
    %6073 = vmatpush1.msra.mxu0 0.0
    %6074 = vmatprep.mubr.f32.mxu0 0.0
    %6075 = vmatmul.mubr.f32.gmra.mrb[0].mxu0 %v6009
    %v6076 = vpop.f32.mrb[0].mxu0
    %v6077 = vadd.f32 %v97, %v6076
    %v6078 = vpop.f32.mrb[0].mxu0
    %6079 = vdwg.mxu0
    %v6080 = vtanh.pop %v6077
    %6081 = vmatprep.subr.mxu0 0.0
    %6082 = vmatpush1.msra.mxu0 %v76
    %6083 = vmatprep.subr.mxu0 0.0
    %6084 = vmatpush1.msra.mxu0 %v77
    %6085 = vmatprep.subr.mxu0 0.0
    %6086 = vmatpush1.msra.mxu0 %v78
    %6087 = vmatprep.subr.mxu0 0.0
    %6088 = vmatpush1.msra.mxu0 %v79
    %6089 = vmatprep.subr.mxu0 0.0
    %6090 = vmatpush1.msra.mxu0 %v80
    %6091 = vmatprep.subr.mxu0 0.0
    %6092 = vmatpush1.msra.mxu0 %v81
    %6093 = vmatprep.subr.mxu0 0.0
    %6094 = vmatpush1.msra.mxu0 %v82
    %6095 = vmatprep.subr.mxu0 0.0
    %6096 = vmatpush1.msra.mxu0 %v83
    %6097 = vmatprep.subr.mxu0 0.0
    %6098 = vmatpush1.msra.mxu0 %v84
    %6099 = vmatprep.subr.mxu0 0.0
    %6100 = vmatpush1.msra.mxu0 %v85
    %6101 = vmatprep.subr.mxu0 0.0
    %6102 = vmatpush1.msra.mxu0 %v86
    %6103 = vmatprep.subr.mxu0 0.0
    %6104 = vmatpush1.msra.mxu0 %v87
    %6105 = vmatprep.subr.mxu0 0.0
    %6106 = vmatpush1.msra.mxu0 %v88
    %6107 = vmatprep.subr.mxu0 0.0
    %6108 = vmatpush1.msra.mxu0 %v89
    %6109 = vmatprep.subr.mxu0 0.0
    %6110 = vmatpush1.msra.mxu0 %v90
    %6111 = vmatprep.subr.mxu0 0.0
    %6112 = vmatpush1.msra.mxu0 %v91
    %6113 = vmatprep.subr.mxu0 0.0
    %6114 = vmatpush1.msra.mxu0 0.0
    %6115 = vmatprep.subr.mxu0 0.0
    %6116 = vmatpush1.msra.mxu0 0.0
    %6117 = vmatprep.subr.mxu0 0.0
    %6118 = vmatpush1.msra.mxu0 0.0
    %6119 = vmatprep.subr.mxu0 0.0
    %6120 = vmatpush1.msra.mxu0 0.0
    %6121 = vmatprep.subr.mxu0 0.0
    %6122 = vmatpush1.msra.mxu0 0.0
    %6123 = vmatprep.subr.mxu0 0.0
    %6124 = vmatpush1.msra.mxu0 0.0
    %6125 = vmatprep.subr.mxu0 0.0
    %6126 = vmatpush1.msra.mxu0 0.0
    %6127 = vmatprep.subr.mxu0 0.0
    %6128 = vmatpush1.msra.mxu0 0.0
    %6129 = vmatprep.subr.mxu0 0.0
    %6130 = vmatpush1.msra.mxu0 0.0
    %6131 = vmatprep.subr.mxu0 0.0
    %6132 = vmatpush1.msra.mxu0 0.0
    %6133 = vmatprep.subr.mxu0 0.0
    %6134 = vmatpush1.msra.mxu0 0.0
    %6135 = vmatprep.subr.mxu0 0.0
    %6136 = vmatpush1.msra.mxu0 0.0
    %6137 = vmatprep.subr.mxu0 0.0
    %6138 = vmatpush1.msra.mxu0 0.0
    %6139 = vmatprep.subr.mxu0 0.0
    %6140 = vmatpush1.msra.mxu0 0.0
    %6141 = vmatprep.subr.mxu0 0.0
    %6142 = vmatpush1.msra.mxu0 0.0
    %6143 = vmatprep.subr.mxu0 0.0
    %6144 = vmatpush1.msra.mxu0 0.0
    %6145 = vmatprep.mubr.f32.mxu0 0.0
    %6146 = vmatmul.mubr.f32.gmra.mrb[0].mxu0 %v6080
    %v6147 = vpop.f32.mrb[0].mxu0
    %v6148 = vadd.f32 %v104, %v6147
    %v6149 = vpop.f32.mrb[0].mxu0
    %6150 = vdwg.mxu0
    %v6151 = vmul.f32 %v6148, 0.03125
    %v6152 = vadd.f32 %v5866, %v6151
    %6153 = vmatprep.subr.mxu0 0.0
    %6154 = vmatpush1.msra.mxu0 %v60
    %6155 = vmatprep.subr.mxu0 0.0
    %6156 = vmatpush1.msra.mxu0 %v61
    %6157 = vmatprep.subr.mxu0 0.0
    %6158 = vmatpush1.msra.mxu0 %v62
    %6159 = vmatprep.subr.mxu0 0.0
    %6160 = vmatpush1.msra.mxu0 %v63
    %6161 = vmatprep.subr.mxu0 0.0
    %6162 = vmatpush1.msra.mxu0 %v64
    %6163 = vmatprep.subr.mxu0 0.0
    %6164 = vmatpush1.msra.mxu0 %v65
    %6165 = vmatprep.subr.mxu0 0.0
    %6166 = vmatpush1.msra.mxu0 %v66
    %6167 = vmatprep.subr.mxu0 0.0
    %6168 = vmatpush1.msra.mxu0 %v67
    %6169 = vmatprep.subr.mxu0 0.0
    %6170 = vmatpush1.msra.mxu0 %v68
    %6171 = vmatprep.subr.mxu0 0.0
    %6172 = vmatpush1.msra.mxu0 %v69
    %6173 = vmatprep.subr.mxu0 0.0
    %6174 = vmatpush1.msra.mxu0 %v70
    %6175 = vmatprep.subr.mxu0 0.0
    %6176 = vmatpush1.msra.mxu0 %v71
    %6177 = vmatprep.subr.mxu0 0.0
    %6178 = vmatpush1.msra.mxu0 %v72
    %6179 = vmatprep.subr.mxu0 0.0
    %6180 = vmatpush1.msra.mxu0 %v73
    %6181 = vmatprep.subr.mxu0 0.0
    %6182 = vmatpush1.msra.mxu0 %v74
    %6183 = vmatprep.subr.mxu0 0.0
    %6184 = vmatpush1.msra.mxu0 %v75
    %6185 = vmatprep.subr.mxu0 0.0
    %6186 = vmatpush1.msra.mxu0 0.0
    %6187 = vmatprep.subr.mxu0 0.0
    %6188 = vmatpush1.msra.mxu0 0.0
    %6189 = vmatprep.subr.mxu0 0.0
    %6190 = vmatpush1.msra.mxu0 0.0
    %6191 = vmatprep.subr.mxu0 0.0
    %6192 = vmatpush1.msra.mxu0 0.0
    %6193 = vmatprep.subr.mxu0 0.0
    %6194 = vmatpush1.msra.mxu0 0.0
    %6195 = vmatprep.subr.mxu0 0.0
    %6196 = vmatpush1.msra.mxu0 0.0
    %6197 = vmatprep.subr.mxu0 0.0
    %6198 = vmatpush1.msra.mxu0 0.0
    %6199 = vmatprep.subr.mxu0 0.0
    %6200 = vmatpush1.msra.mxu0 0.0
    %6201 = vmatprep.subr.mxu0 0.0
    %6202 = vmatpush1.msra.mxu0 0.0
    %6203 = vmatprep.subr.mxu0 0.0
    %6204 = vmatpush1.msra.mxu0 0.0
    %6205 = vmatprep.subr.mxu0 0.0
    %6206 = vmatpush1.msra.mxu0 0.0
    %6207 = vmatprep.subr.mxu0 0.0
    %6208 = vmatpush1.msra.mxu0 0.0
    %6209 = vmatprep.subr.mxu0 0.0
    %6210 = vmatpush1.msra.mxu0 0.0
    %6211 = vmatprep.subr.mxu0 0.0
    %6212 = vmatpush1.msra.mxu0 0.0
    %6213 = vmatprep.subr.mxu0 0.0
    %6214 = vmatpush1.msra.mxu0 0.0
    %6215 = vmatprep.subr.mxu0 0.0
    %6216 = vmatpush1.msra.mxu0 0.0
    %6217 = vmatprep.mubr.f32.mxu0 0.0
    %6218 = vmatmul.mubr.f32.gmra.mrb[0].mxu0 %v6152
    %v6219 = vpop.f32.mrb[0].mxu0
    %v6220 = vadd.f32 %v97, %v6219
    %v6221 = vpop.f32.mrb[0].mxu0
    %6222 = vdwg.mxu0
    %v6223 = vtanh.pop %v6220
    %6224 = vmatprep.subr.mxu0 0.0
    %6225 = vmatpush1.msra.mxu0 %v76
    %6226 = vmatprep.subr.mxu0 0.0
    %6227 = vmatpush1.msra.mxu0 %v77
    %6228 = vmatprep.subr.mxu0 0.0
    %6229 = vmatpush1.msra.mxu0 %v78
    %6230 = vmatprep.subr.mxu0 0.0
    %6231 = vmatpush1.msra.mxu0 %v79
    %6232 = vmatprep.subr.mxu0 0.0
    %6233 = vmatpush1.msra.mxu0 %v80
    %6234 = vmatprep.subr.mxu0 0.0
    %6235 = vmatpush1.msra.mxu0 %v81
    %6236 = vmatprep.subr.mxu0 0.0
    %6237 = vmatpush1.msra.mxu0 %v82
    %6238 = vmatprep.subr.mxu0 0.0
    %6239 = vmatpush1.msra.mxu0 %v83
    %6240 = vmatprep.subr.mxu0 0.0
    %6241 = vmatpush1.msra.mxu0 %v84
    %6242 = vmatprep.subr.mxu0 0.0
    %6243 = vmatpush1.msra.mxu0 %v85
    %6244 = vmatprep.subr.mxu0 0.0
    %6245 = vmatpush1.msra.mxu0 %v86
    %6246 = vmatprep.subr.mxu0 0.0
    %6247 = vmatpush1.msra.mxu0 %v87
    %6248 = vmatprep.subr.mxu0 0.0
    %6249 = vmatpush1.msra.mxu0 %v88
    %6250 = vmatprep.subr.mxu0 0.0
    %6251 = vmatpush1.msra.mxu0 %v89
    %6252 = vmatprep.subr.mxu0 0.0
    %6253 = vmatpush1.msra.mxu0 %v90
    %6254 = vmatprep.subr.mxu0 0.0
    %6255 = vmatpush1.msra.mxu0 %v91
    %6256 = vmatprep.subr.mxu0 0.0
    %6257 = vmatpush1.msra.mxu0 0.0
    %6258 = vmatprep.subr.mxu0 0.0
    %6259 = vmatpush1.msra.mxu0 0.0
    %6260 = vmatprep.subr.mxu0 0.0
    %6261 = vmatpush1.msra.mxu0 0.0
    %6262 = vmatprep.subr.mxu0 0.0
    %6263 = vmatpush1.msra.mxu0 0.0
    %6264 = vmatprep.subr.mxu0 0.0
    %6265 = vmatpush1.msra.mxu0 0.0
    %6266 = vmatprep.subr.mxu0 0.0
    %6267 = vmatpush1.msra.mxu0 0.0
    %6268 = vmatprep.subr.mxu0 0.0
    %6269 = vmatpush1.msra.mxu0 0.0
    %6270 = vmatprep.subr.mxu0 0.0
    %6271 = vmatpush1.msra.mxu0 0.0
    %6272 = vmatprep.subr.mxu0 0.0
    %6273 = vmatpush1.msra.mxu0 0.0
    %6274 = vmatprep.subr.mxu0 0.0
    %6275 = vmatpush1.msra.mxu0 0.0
    %6276 = vmatprep.subr.mxu0 0.0
    %6277 = vmatpush1.msra.mxu0 0.0
    %6278 = vmatprep.subr.mxu0 0.0
    %6279 = vmatpush1.msra.mxu0 0.0
    %6280 = vmatprep.subr.mxu0 0.0
    %6281 = vmatpush1.msra.mxu0 0.0
    %6282 = vmatprep.subr.mxu0 0.0
    %6283 = vmatpush1.msra.mxu0 0.0
    %6284 = vmatprep.subr.mxu0 0.0
    %6285 = vmatpush1.msra.mxu0 0.0
    %6286 = vmatprep.subr.mxu0 0.0
    %6287 = vmatpush1.msra.mxu0 0.0
    %6288 = vmatprep.mubr.f32.mxu0 0.0
    %6289 = vmatmul.mubr.f32.gmra.mrb[0].mxu0 %v6223
    %v6290 = vpop.f32.mrb[0].mxu0
    %v6291 = vadd.f32 %v104, %v6290
    %v6292 = vpop.f32.mrb[0].mxu0
    %6293 = vdwg.mxu0
    %v6294 = vmul.f32 %v6291, 0.0625
    %v6295 = vadd.f32 %v5866, %v6294
    %6296 = vmatprep.subr.mxu0 0.0
    %6297 = vmatpush1.msra.mxu0 %v60
    %6298 = vmatprep.subr.mxu0 0.0
    %6299 = vmatpush1.msra.mxu0 %v61
    %6300 = vmatprep.subr.mxu0 0.0
    %6301 = vmatpush1.msra.mxu0 %v62
    %6302 = vmatprep.subr.mxu0 0.0
    %6303 = vmatpush1.msra.mxu0 %v63
    %6304 = vmatprep.subr.mxu0 0.0
    %6305 = vmatpush1.msra.mxu0 %v64
    %6306 = vmatprep.subr.mxu0 0.0
    %6307 = vmatpush1.msra.mxu0 %v65
    %6308 = vmatprep.subr.mxu0 0.0
    %6309 = vmatpush1.msra.mxu0 %v66
    %6310 = vmatprep.subr.mxu0 0.0
    %6311 = vmatpush1.msra.mxu0 %v67
    %6312 = vmatprep.subr.mxu0 0.0
    %6313 = vmatpush1.msra.mxu0 %v68
    %6314 = vmatprep.subr.mxu0 0.0
    %6315 = vmatpush1.msra.mxu0 %v69
    %6316 = vmatprep.subr.mxu0 0.0
    %6317 = vmatpush1.msra.mxu0 %v70
    %6318 = vmatprep.subr.mxu0 0.0
    %6319 = vmatpush1.msra.mxu0 %v71
    %6320 = vmatprep.subr.mxu0 0.0
    %6321 = vmatpush1.msra.mxu0 %v72
    %6322 = vmatprep.subr.mxu0 0.0
    %6323 = vmatpush1.msra.mxu0 %v73
    %6324 = vmatprep.subr.mxu0 0.0
    %6325 = vmatpush1.msra.mxu0 %v74
    %6326 = vmatprep.subr.mxu0 0.0
    %6327 = vmatpush1.msra.mxu0 %v75
    %6328 = vmatprep.subr.mxu0 0.0
    %6329 = vmatpush1.msra.mxu0 0.0
    %6330 = vmatprep.subr.mxu0 0.0
    %6331 = vmatpush1.msra.mxu0 0.0
    %6332 = vmatprep.subr.mxu0 0.0
    %6333 = vmatpush1.msra.mxu0 0.0
    %6334 = vmatprep.subr.mxu0 0.0
    %6335 = vmatpush1.msra.mxu0 0.0
    %6336 = vmatprep.subr.mxu0 0.0
    %6337 = vmatpush1.msra.mxu0 0.0
    %6338 = vmatprep.subr.mxu0 0.0
    %6339 = vmatpush1.msra.mxu0 0.0
    %6340 = vmatprep.subr.mxu0 0.0
    %6341 = vmatpush1.msra.mxu0 0.0
    %6342 = vmatprep.subr.mxu0 0.0
    %6343 = vmatpush1.msra.mxu0 0.0
    %6344 = vmatprep.subr.mxu0 0.0
    %6345 = vmatpush1.msra.mxu0 0.0
    %6346 = vmatprep.subr.mxu0 0.0
    %6347 = vmatpush1.msra.mxu0 0.0
    %6348 = vmatprep.subr.mxu0 0.0
    %6349 = vmatpush1.msra.mxu0 0.0
    %6350 = vmatprep.subr.mxu0 0.0
    %6351 = vmatpush1.msra.mxu0 0.0
    %6352 = vmatprep.subr.mxu0 0.0
    %6353 = vmatpush1.msra.mxu0 0.0
    %6354 = vmatprep.subr.mxu0 0.0
    %6355 = vmatpush1.msra.mxu0 0.0
    %6356 = vmatprep.subr.mxu0 0.0
    %6357 = vmatpush1.msra.mxu0 0.0
    %6358 = vmatprep.subr.mxu0 0.0
    %6359 = vmatpush1.msra.mxu0 0.0
    %6360 = vmatprep.mubr.f32.mxu0 0.0
    %6361 = vmatmul.mubr.f32.gmra.mrb[0].mxu0 %v6295
    %v6362 = vpop.f32.mrb[0].mxu0
    %v6363 = vadd.f32 %v97, %v6362
    %v6364 = vpop.f32.mrb[0].mxu0
    %6365 = vdwg.mxu0
    %v6366 = vtanh.pop %v6363
    %6367 = vmatprep.subr.mxu0 0.0
    %6368 = vmatpush1.msra.mxu0 %v76
    %6369 = vmatprep.subr.mxu0 0.0
    %6370 = vmatpush1.msra.mxu0 %v77
    %6371 = vmatprep.subr.mxu0 0.0
    %6372 = vmatpush1.msra.mxu0 %v78
    %6373 = vmatprep.subr.mxu0 0.0
    %6374 = vmatpush1.msra.mxu0 %v79
    %6375 = vmatprep.subr.mxu0 0.0
    %6376 = vmatpush1.msra.mxu0 %v80
    %6377 = vmatprep.subr.mxu0 0.0
    %6378 = vmatpush1.msra.mxu0 %v81
    %6379 = vmatprep.subr.mxu0 0.0
    %6380 = vmatpush1.msra.mxu0 %v82
    %6381 = vmatprep.subr.mxu0 0.0
    %6382 = vmatpush1.msra.mxu0 %v83
    %6383 = vmatprep.subr.mxu0 0.0
    %6384 = vmatpush1.msra.mxu0 %v84
    %6385 = vmatprep.subr.mxu0 0.0
    %6386 = vmatpush1.msra.mxu0 %v85
    %6387 = vmatprep.subr.mxu0 0.0
    %6388 = vmatpush1.msra.mxu0 %v86
    %6389 = vmatprep.subr.mxu0 0.0
    %6390 = vmatpush1.msra.mxu0 %v87
    %6391 = vmatprep.subr.mxu0 0.0
    %6392 = vmatpush1.msra.mxu0 %v88
    %6393 = vmatprep.subr.mxu0 0.0
    %6394 = vmatpush1.msra.mxu0 %v89
    %6395 = vmatprep.subr.mxu0 0.0
    %6396 = vmatpush1.msra.mxu0 %v90
    %6397 = vmatprep.subr.mxu0 0.0
    %6398 = vmatpush1.msra.mxu0 %v91
    %6399 = vmatprep.subr.mxu0 0.0
    %6400 = vmatpush1.msra.mxu0 0.0
    %6401 = vmatprep.subr.mxu0 0.0
    %6402 = vmatpush1.msra.mxu0 0.0
    %6403 = vmatprep.subr.mxu0 0.0
    %6404 = vmatpush1.msra.mxu0 0.0
    %6405 = vmatprep.subr.mxu0 0.0
    %6406 = vmatpush1.msra.mxu0 0.0
    %6407 = vmatprep.subr.mxu0 0.0
    %6408 = vmatpush1.msra.mxu0 0.0
    %6409 = vmatprep.subr.mxu0 0.0
    %6410 = vmatpush1.msra.mxu0 0.0
    %6411 = vmatprep.subr.mxu0 0.0
    %6412 = vmatpush1.msra.mxu0 0.0
    %6413 = vmatprep.subr.mxu0 0.0
    %6414 = vmatpush1.msra.mxu0 0.0
    %6415 = vmatprep.subr.mxu0 0.0
    %6416 = vmatpush1.msra.mxu0 0.0
    %6417 = vmatprep.subr.mxu0 0.0
    %6418 = vmatpush1.msra.mxu0 0.0
    %6419 = vmatprep.subr.mxu0 0.0
    %6420 = vmatpush1.msra.mxu0 0.0
    %6421 = vmatprep.subr.mxu0 0.0
    %6422 = vmatpush1.msra.mxu0 0.0
    %6423 = vmatprep.subr.mxu0 0.0
    %6424 = vmatpush1.msra.mxu0 0.0
    %6425 = vmatprep.subr.mxu0 0.0
    %6426 = vmatpush1.msra.mxu0 0.0
    %6427 = vmatprep.subr.mxu0 0.0
    %6428 = vmatpush1.msra.mxu0 0.0
    %6429 = vmatprep.subr.mxu0 0.0
    %6430 = vmatpush1.msra.mxu0 0.0
    %6431 = vmatprep.mubr.f32.mxu0 0.0
    %6432 = vmatmul.mubr.f32.gmra.mrb[0].mxu0 %v6366
    %v6433 = vpop.f32.mrb[0].mxu0
    %v6434 = vadd.f32 %v104, %v6433
    %v6435 = vpop.f32.mrb[0].mxu0
    %6436 = vdwg.mxu0
    %v6437 = vadd.f32 %v6005, %v6434
    %v6438 = vadd.f32 %v6148, %v6291
    %v6439 = vmul.f32 %v6438, 2.0
    %v6440 = vadd.f32 %v6437, %v6439
    %v6441 = vmul.f32 %v6440, 0.010416667
    %v6442 = vadd.f32 %v5866, %v6441
    %6443 = vmatprep.subr.mxu0 0.0
    %6444 = vmatpush1.msra.mxu0 %v60
    %6445 = vmatprep.subr.mxu0 0.0
    %6446 = vmatpush1.msra.mxu0 %v61
    %6447 = vmatprep.subr.mxu0 0.0
    %6448 = vmatpush1.msra.mxu0 %v62
    %6449 = vmatprep.subr.mxu0 0.0
    %6450 = vmatpush1.msra.mxu0 %v63
    %6451 = vmatprep.subr.mxu0 0.0
    %6452 = vmatpush1.msra.mxu0 %v64
    %6453 = vmatprep.subr.mxu0 0.0
    %6454 = vmatpush1.msra.mxu0 %v65
    %6455 = vmatprep.subr.mxu0 0.0
    %6456 = vmatpush1.msra.mxu0 %v66
    %6457 = vmatprep.subr.mxu0 0.0
    %6458 = vmatpush1.msra.mxu0 %v67
    %6459 = vmatprep.subr.mxu0 0.0
    %6460 = vmatpush1.msra.mxu0 %v68
    %6461 = vmatprep.subr.mxu0 0.0
    %6462 = vmatpush1.msra.mxu0 %v69
    %6463 = vmatprep.subr.mxu0 0.0
    %6464 = vmatpush1.msra.mxu0 %v70
    %6465 = vmatprep.subr.mxu0 0.0
    %6466 = vmatpush1.msra.mxu0 %v71
    %6467 = vmatprep.subr.mxu0 0.0
    %6468 = vmatpush1.msra.mxu0 %v72
    %6469 = vmatprep.subr.mxu0 0.0
    %6470 = vmatpush1.msra.mxu0 %v73
    %6471 = vmatprep.subr.mxu0 0.0
    %6472 = vmatpush1.msra.mxu0 %v74
    %6473 = vmatprep.subr.mxu0 0.0
    %6474 = vmatpush1.msra.mxu0 %v75
    %6475 = vmatprep.subr.mxu0 0.0
    %6476 = vmatpush1.msra.mxu0 0.0
    %6477 = vmatprep.subr.mxu0 0.0
    %6478 = vmatpush1.msra.mxu0 0.0
    %6479 = vmatprep.subr.mxu0 0.0
    %6480 = vmatpush1.msra.mxu0 0.0
    %6481 = vmatprep.subr.mxu0 0.0
    %6482 = vmatpush1.msra.mxu0 0.0
    %6483 = vmatprep.subr.mxu0 0.0
    %6484 = vmatpush1.msra.mxu0 0.0
    %6485 = vmatprep.subr.mxu0 0.0
    %6486 = vmatpush1.msra.mxu0 0.0
    %6487 = vmatprep.subr.mxu0 0.0
    %6488 = vmatpush1.msra.mxu0 0.0
    %6489 = vmatprep.subr.mxu0 0.0
    %6490 = vmatpush1.msra.mxu0 0.0
    %6491 = vmatprep.subr.mxu0 0.0
    %6492 = vmatpush1.msra.mxu0 0.0
    %6493 = vmatprep.subr.mxu0 0.0
    %6494 = vmatpush1.msra.mxu0 0.0
    %6495 = vmatprep.subr.mxu0 0.0
    %6496 = vmatpush1.msra.mxu0 0.0
    %6497 = vmatprep.subr.mxu0 0.0
    %6498 = vmatpush1.msra.mxu0 0.0
    %6499 = vmatprep.subr.mxu0 0.0
    %6500 = vmatpush1.msra.mxu0 0.0
    %6501 = vmatprep.subr.mxu0 0.0
    %6502 = vmatpush1.msra.mxu0 0.0
    %6503 = vmatprep.subr.mxu0 0.0
    %6504 = vmatpush1.msra.mxu0 0.0
    %6505 = vmatprep.subr.mxu0 0.0
    %6506 = vmatpush1.msra.mxu0 0.0
    %6507 = vmatprep.mubr.f32.mxu0 0.0
    %6508 = vmatmul.mubr.f32.gmra.mrb[0].mxu0 %v6442
    %v6509 = vpop.f32.mrb[0].mxu0
    %v6510 = vadd.f32 %v97, %v6509
    %v6511 = vpop.f32.mrb[0].mxu0
    %6512 = vdwg.mxu0
    %v6513 = vtanh.pop %v6510
    %6514 = vmatprep.subr.mxu0 0.0
    %6515 = vmatpush1.msra.mxu0 %v76
    %6516 = vmatprep.subr.mxu0 0.0
    %6517 = vmatpush1.msra.mxu0 %v77
    %6518 = vmatprep.subr.mxu0 0.0
    %6519 = vmatpush1.msra.mxu0 %v78
    %6520 = vmatprep.subr.mxu0 0.0
    %6521 = vmatpush1.msra.mxu0 %v79
    %6522 = vmatprep.subr.mxu0 0.0
    %6523 = vmatpush1.msra.mxu0 %v80
    %6524 = vmatprep.subr.mxu0 0.0
    %6525 = vmatpush1.msra.mxu0 %v81
    %6526 = vmatprep.subr.mxu0 0.0
    %6527 = vmatpush1.msra.mxu0 %v82
    %6528 = vmatprep.subr.mxu0 0.0
    %6529 = vmatpush1.msra.mxu0 %v83
    %6530 = vmatprep.subr.mxu0 0.0
    %6531 = vmatpush1.msra.mxu0 %v84
    %6532 = vmatprep.subr.mxu0 0.0
    %6533 = vmatpush1.msra.mxu0 %v85
    %6534 = vmatprep.subr.mxu0 0.0
    %6535 = vmatpush1.msra.mxu0 %v86
    %6536 = vmatprep.subr.mxu0 0.0
    %6537 = vmatpush1.msra.mxu0 %v87
    %6538 = vmatprep.subr.mxu0 0.0
    %6539 = vmatpush1.msra.mxu0 %v88
    %6540 = vmatprep.subr.mxu0 0.0
    %6541 = vmatpush1.msra.mxu0 %v89
    %6542 = vmatprep.subr.mxu0 0.0
    %6543 = vmatpush1.msra.mxu0 %v90
    %6544 = vmatprep.subr.mxu0 0.0
    %6545 = vmatpush1.msra.mxu0 %v91
    %6546 = vmatprep.subr.mxu0 0.0
    %6547 = vmatpush1.msra.mxu0 0.0
    %6548 = vmatprep.subr.mxu0 0.0
    %6549 = vmatpush1.msra.mxu0 0.0
    %6550 = vmatprep.subr.mxu0 0.0
    %6551 = vmatpush1.msra.mxu0 0.0
    %6552 = vmatprep.subr.mxu0 0.0
    %6553 = vmatpush1.msra.mxu0 0.0
    %6554 = vmatprep.subr.mxu0 0.0
    %6555 = vmatpush1.msra.mxu0 0.0
    %6556 = vmatprep.subr.mxu0 0.0
    %6557 = vmatpush1.msra.mxu0 0.0
    %6558 = vmatprep.subr.mxu0 0.0
    %6559 = vmatpush1.msra.mxu0 0.0
    %6560 = vmatprep.subr.mxu0 0.0
    %6561 = vmatpush1.msra.mxu0 0.0
    %6562 = vmatprep.subr.mxu0 0.0
    %6563 = vmatpush1.msra.mxu0 0.0
    %6564 = vmatprep.subr.mxu0 0.0
    %6565 = vmatpush1.msra.mxu0 0.0
    %6566 = vmatprep.subr.mxu0 0.0
    %6567 = vmatpush1.msra.mxu0 0.0
    %6568 = vmatprep.subr.mxu0 0.0
    %6569 = vmatpush1.msra.mxu0 0.0
    %6570 = vmatprep.subr.mxu0 0.0
    %6571 = vmatpush1.msra.mxu0 0.0
    %6572 = vmatprep.subr.mxu0 0.0
    %6573 = vmatpush1.msra.mxu0 0.0
    %6574 = vmatprep.subr.mxu0 0.0
    %6575 = vmatpush1.msra.mxu0 0.0
    %6576 = vmatprep.subr.mxu0 0.0
    %6577 = vmatpush1.msra.mxu0 0.0
    %6578 = vmatprep.mubr.f32.mxu0 0.0
    %6579 = vmatmul.mubr.f32.gmra.mrb[0].mxu0 %v6513
    %v6580 = vpop.f32.mrb[0].mxu0
    %v6581 = vadd.f32 %v104, %v6580
    %v6582 = vpop.f32.mrb[0].mxu0
    %6583 = vdwg.mxu0
    %v6584 = vmul.f32 %v6581, 0.03125
    %v6585 = vadd.f32 %v6442, %v6584
    %6586 = vmatprep.subr.mxu0 0.0
    %6587 = vmatpush1.msra.mxu0 %v60
    %6588 = vmatprep.subr.mxu0 0.0
    %6589 = vmatpush1.msra.mxu0 %v61
    %6590 = vmatprep.subr.mxu0 0.0
    %6591 = vmatpush1.msra.mxu0 %v62
    %6592 = vmatprep.subr.mxu0 0.0
    %6593 = vmatpush1.msra.mxu0 %v63
    %6594 = vmatprep.subr.mxu0 0.0
    %6595 = vmatpush1.msra.mxu0 %v64
    %6596 = vmatprep.subr.mxu0 0.0
    %6597 = vmatpush1.msra.mxu0 %v65
    %6598 = vmatprep.subr.mxu0 0.0
    %6599 = vmatpush1.msra.mxu0 %v66
    %6600 = vmatprep.subr.mxu0 0.0
    %6601 = vmatpush1.msra.mxu0 %v67
    %6602 = vmatprep.subr.mxu0 0.0
    %6603 = vmatpush1.msra.mxu0 %v68
    %6604 = vmatprep.subr.mxu0 0.0
    %6605 = vmatpush1.msra.mxu0 %v69
    %6606 = vmatprep.subr.mxu0 0.0
    %6607 = vmatpush1.msra.mxu0 %v70
    %6608 = vmatprep.subr.mxu0 0.0
    %6609 = vmatpush1.msra.mxu0 %v71
    %6610 = vmatprep.subr.mxu0 0.0
    %6611 = vmatpush1.msra.mxu0 %v72
    %6612 = vmatprep.subr.mxu0 0.0
    %6613 = vmatpush1.msra.mxu0 %v73
    %6614 = vmatprep.subr.mxu0 0.0
    %6615 = vmatpush1.msra.mxu0 %v74
    %6616 = vmatprep.subr.mxu0 0.0
    %6617 = vmatpush1.msra.mxu0 %v75
    %6618 = vmatprep.subr.mxu0 0.0
    %6619 = vmatpush1.msra.mxu0 0.0
    %6620 = vmatprep.subr.mxu0 0.0
    %6621 = vmatpush1.msra.mxu0 0.0
    %6622 = vmatprep.subr.mxu0 0.0
    %6623 = vmatpush1.msra.mxu0 0.0
    %6624 = vmatprep.subr.mxu0 0.0
    %6625 = vmatpush1.msra.mxu0 0.0
    %6626 = vmatprep.subr.mxu0 0.0
    %6627 = vmatpush1.msra.mxu0 0.0
    %6628 = vmatprep.subr.mxu0 0.0
    %6629 = vmatpush1.msra.mxu0 0.0
    %6630 = vmatprep.subr.mxu0 0.0
    %6631 = vmatpush1.msra.mxu0 0.0
    %6632 = vmatprep.subr.mxu0 0.0
    %6633 = vmatpush1.msra.mxu0 0.0
    %6634 = vmatprep.subr.mxu0 0.0
    %6635 = vmatpush1.msra.mxu0 0.0
    %6636 = vmatprep.subr.mxu0 0.0
    %6637 = vmatpush1.msra.mxu0 0.0
    %6638 = vmatprep.subr.mxu0 0.0
    %6639 = vmatpush1.msra.mxu0 0.0
    %6640 = vmatprep.subr.mxu0 0.0
    %6641 = vmatpush1.msra.mxu0 0.0
    %6642 = vmatprep.subr.mxu0 0.0
    %6643 = vmatpush1.msra.mxu0 0.0
    %6644 = vmatprep.subr.mxu0 0.0
    %6645 = vmatpush1.msra.mxu0 0.0
    %6646 = vmatprep.subr.mxu0 0.0
    %6647 = vmatpush1.msra.mxu0 0.0
    %6648 = vmatprep.subr.mxu0 0.0
    %6649 = vmatpush1.msra.mxu0 0.0
    %6650 = vmatprep.mubr.f32.mxu0 0.0
    %6651 = vmatmul.mubr.f32.gmra.mrb[0].mxu0 %v6585
    %v6652 = vpop.f32.mrb[0].mxu0
    %v6653 = vadd.f32 %v97, %v6652
    %v6654 = vpop.f32.mrb[0].mxu0
    %6655 = vdwg.mxu0
    %v6656 = vtanh.pop %v6653
    %6657 = vmatprep.subr.mxu0 0.0
    %6658 = vmatpush1.msra.mxu0 %v76
    %6659 = vmatprep.subr.mxu0 0.0
    %6660 = vmatpush1.msra.mxu0 %v77
    %6661 = vmatprep.subr.mxu0 0.0
    %6662 = vmatpush1.msra.mxu0 %v78
    %6663 = vmatprep.subr.mxu0 0.0
    %6664 = vmatpush1.msra.mxu0 %v79
    %6665 = vmatprep.subr.mxu0 0.0
    %6666 = vmatpush1.msra.mxu0 %v80
    %6667 = vmatprep.subr.mxu0 0.0
    %6668 = vmatpush1.msra.mxu0 %v81
    %6669 = vmatprep.subr.mxu0 0.0
    %6670 = vmatpush1.msra.mxu0 %v82
    %6671 = vmatprep.subr.mxu0 0.0
    %6672 = vmatpush1.msra.mxu0 %v83
    %6673 = vmatprep.subr.mxu0 0.0
    %6674 = vmatpush1.msra.mxu0 %v84
    %6675 = vmatprep.subr.mxu0 0.0
    %6676 = vmatpush1.msra.mxu0 %v85
    %6677 = vmatprep.subr.mxu0 0.0
    %6678 = vmatpush1.msra.mxu0 %v86
    %6679 = vmatprep.subr.mxu0 0.0
    %6680 = vmatpush1.msra.mxu0 %v87
    %6681 = vmatprep.subr.mxu0 0.0
    %6682 = vmatpush1.msra.mxu0 %v88
    %6683 = vmatprep.subr.mxu0 0.0
    %6684 = vmatpush1.msra.mxu0 %v89
    %6685 = vmatprep.subr.mxu0 0.0
    %6686 = vmatpush1.msra.mxu0 %v90
    %6687 = vmatprep.subr.mxu0 0.0
    %6688 = vmatpush1.msra.mxu0 %v91
    %6689 = vmatprep.subr.mxu0 0.0
    %6690 = vmatpush1.msra.mxu0 0.0
    %6691 = vmatprep.subr.mxu0 0.0
    %6692 = vmatpush1.msra.mxu0 0.0
    %6693 = vmatprep.subr.mxu0 0.0
    %6694 = vmatpush1.msra.mxu0 0.0
    %6695 = vmatprep.subr.mxu0 0.0
    %6696 = vmatpush1.msra.mxu0 0.0
    %6697 = vmatprep.subr.mxu0 0.0
    %6698 = vmatpush1.msra.mxu0 0.0
    %6699 = vmatprep.subr.mxu0 0.0
    %6700 = vmatpush1.msra.mxu0 0.0
    %6701 = vmatprep.subr.mxu0 0.0
    %6702 = vmatpush1.msra.mxu0 0.0
    %6703 = vmatprep.subr.mxu0 0.0
    %6704 = vmatpush1.msra.mxu0 0.0
    %6705 = vmatprep.subr.mxu0 0.0
    %6706 = vmatpush1.msra.mxu0 0.0
    %6707 = vmatprep.subr.mxu0 0.0
    %6708 = vmatpush1.msra.mxu0 0.0
    %6709 = vmatprep.subr.mxu0 0.0
    %6710 = vmatpush1.msra.mxu0 0.0
    %6711 = vmatprep.subr.mxu0 0.0
    %6712 = vmatpush1.msra.mxu0 0.0
    %6713 = vmatprep.subr.mxu0 0.0
    %6714 = vmatpush1.msra.mxu0 0.0
    %6715 = vmatprep.subr.mxu0 0.0
    %6716 = vmatpush1.msra.mxu0 0.0
    %6717 = vmatprep.subr.mxu0 0.0
    %6718 = vmatpush1.msra.mxu0 0.0
    %6719 = vmatprep.subr.mxu0 0.0
    %6720 = vmatpush1.msra.mxu0 0.0
    %6721 = vmatprep.mubr.f32.mxu0 0.0
    %6722 = vmatmul.mubr.f32.gmra.mrb[0].mxu0 %v6656
    %v6723 = vpop.f32.mrb[0].mxu0
    %v6724 = vadd.f32 %v104, %v6723
    %v6725 = vpop.f32.mrb[0].mxu0
    %6726 = vdwg.mxu0
    %v6727 = vmul.f32 %v6724, 0.03125
    %v6728 = vadd.f32 %v6442, %v6727
    %6729 = vmatprep.subr.mxu0 0.0
    %6730 = vmatpush1.msra.mxu0 %v60
    %6731 = vmatprep.subr.mxu0 0.0
    %6732 = vmatpush1.msra.mxu0 %v61
    %6733 = vmatprep.subr.mxu0 0.0
    %6734 = vmatpush1.msra.mxu0 %v62
    %6735 = vmatprep.subr.mxu0 0.0
    %6736 = vmatpush1.msra.mxu0 %v63
    %6737 = vmatprep.subr.mxu0 0.0
    %6738 = vmatpush1.msra.mxu0 %v64
    %6739 = vmatprep.subr.mxu0 0.0
    %6740 = vmatpush1.msra.mxu0 %v65
    %6741 = vmatprep.subr.mxu0 0.0
    %6742 = vmatpush1.msra.mxu0 %v66
    %6743 = vmatprep.subr.mxu0 0.0
    %6744 = vmatpush1.msra.mxu0 %v67
    %6745 = vmatprep.subr.mxu0 0.0
    %6746 = vmatpush1.msra.mxu0 %v68
    %6747 = vmatprep.subr.mxu0 0.0
    %6748 = vmatpush1.msra.mxu0 %v69
    %6749 = vmatprep.subr.mxu0 0.0
    %6750 = vmatpush1.msra.mxu0 %v70
    %6751 = vmatprep.subr.mxu0 0.0
    %6752 = vmatpush1.msra.mxu0 %v71
    %6753 = vmatprep.subr.mxu0 0.0
    %6754 = vmatpush1.msra.mxu0 %v72
    %6755 = vmatprep.subr.mxu0 0.0
    %6756 = vmatpush1.msra.mxu0 %v73
    %6757 = vmatprep.subr.mxu0 0.0
    %6758 = vmatpush1.msra.mxu0 %v74
    %6759 = vmatprep.subr.mxu0 0.0
    %6760 = vmatpush1.msra.mxu0 %v75
    %6761 = vmatprep.subr.mxu0 0.0
    %6762 = vmatpush1.msra.mxu0 0.0
    %6763 = vmatprep.subr.mxu0 0.0
    %6764 = vmatpush1.msra.mxu0 0.0
    %6765 = vmatprep.subr.mxu0 0.0
    %6766 = vmatpush1.msra.mxu0 0.0
    %6767 = vmatprep.subr.mxu0 0.0
    %6768 = vmatpush1.msra.mxu0 0.0
    %6769 = vmatprep.subr.mxu0 0.0
    %6770 = vmatpush1.msra.mxu0 0.0
    %6771 = vmatprep.subr.mxu0 0.0
    %6772 = vmatpush1.msra.mxu0 0.0
    %6773 = vmatprep.subr.mxu0 0.0
    %6774 = vmatpush1.msra.mxu0 0.0
    %6775 = vmatprep.subr.mxu0 0.0
    %6776 = vmatpush1.msra.mxu0 0.0
    %6777 = vmatprep.subr.mxu0 0.0
    %6778 = vmatpush1.msra.mxu0 0.0
    %6779 = vmatprep.subr.mxu0 0.0
    %6780 = vmatpush1.msra.mxu0 0.0
    %6781 = vmatprep.subr.mxu0 0.0
    %6782 = vmatpush1.msra.mxu0 0.0
    %6783 = vmatprep.subr.mxu0 0.0
    %6784 = vmatpush1.msra.mxu0 0.0
    %6785 = vmatprep.subr.mxu0 0.0
    %6786 = vmatpush1.msra.mxu0 0.0
    %6787 = vmatprep.subr.mxu0 0.0
    %6788 = vmatpush1.msra.mxu0 0.0
    %6789 = vmatprep.subr.mxu0 0.0
    %6790 = vmatpush1.msra.mxu0 0.0
    %6791 = vmatprep.subr.mxu0 0.0
    %6792 = vmatpush1.msra.mxu0 0.0
    %6793 = vmatprep.mubr.f32.mxu0 0.0
    %6794 = vmatmul.mubr.f32.gmra.mrb[0].mxu0 %v6728
    %v6795 = vpop.f32.mrb[0].mxu0
    %v6796 = vadd.f32 %v97, %v6795
    %v6797 = vpop.f32.mrb[0].mxu0
    %6798 = vdwg.mxu0
    %v6799 = vtanh.pop %v6796
    %6800 = vmatprep.subr.mxu0 0.0
    %6801 = vmatpush1.msra.mxu0 %v76
    %6802 = vmatprep.subr.mxu0 0.0
    %6803 = vmatpush1.msra.mxu0 %v77
    %6804 = vmatprep.subr.mxu0 0.0
    %6805 = vmatpush1.msra.mxu0 %v78
    %6806 = vmatprep.subr.mxu0 0.0
    %6807 = vmatpush1.msra.mxu0 %v79
    %6808 = vmatprep.subr.mxu0 0.0
    %6809 = vmatpush1.msra.mxu0 %v80
    %6810 = vmatprep.subr.mxu0 0.0
    %6811 = vmatpush1.msra.mxu0 %v81
    %6812 = vmatprep.subr.mxu0 0.0
    %6813 = vmatpush1.msra.mxu0 %v82
    %6814 = vmatprep.subr.mxu0 0.0
    %6815 = vmatpush1.msra.mxu0 %v83
    %6816 = vmatprep.subr.mxu0 0.0
    %6817 = vmatpush1.msra.mxu0 %v84
    %6818 = vmatprep.subr.mxu0 0.0
    %6819 = vmatpush1.msra.mxu0 %v85
    %6820 = vmatprep.subr.mxu0 0.0
    %6821 = vmatpush1.msra.mxu0 %v86
    %6822 = vmatprep.subr.mxu0 0.0
    %6823 = vmatpush1.msra.mxu0 %v87
    %6824 = vmatprep.subr.mxu0 0.0
    %6825 = vmatpush1.msra.mxu0 %v88
    %6826 = vmatprep.subr.mxu0 0.0
    %6827 = vmatpush1.msra.mxu0 %v89
    %6828 = vmatprep.subr.mxu0 0.0
    %6829 = vmatpush1.msra.mxu0 %v90
    %6830 = vmatprep.subr.mxu0 0.0
    %6831 = vmatpush1.msra.mxu0 %v91
    %6832 = vmatprep.subr.mxu0 0.0
    %6833 = vmatpush1.msra.mxu0 0.0
    %6834 = vmatprep.subr.mxu0 0.0
    %6835 = vmatpush1.msra.mxu0 0.0
    %6836 = vmatprep.subr.mxu0 0.0
    %6837 = vmatpush1.msra.mxu0 0.0
    %6838 = vmatprep.subr.mxu0 0.0
    %6839 = vmatpush1.msra.mxu0 0.0
    %6840 = vmatprep.subr.mxu0 0.0
    %6841 = vmatpush1.msra.mxu0 0.0
    %6842 = vmatprep.subr.mxu0 0.0
    %6843 = vmatpush1.msra.mxu0 0.0
    %6844 = vmatprep.subr.mxu0 0.0
    %6845 = vmatpush1.msra.mxu0 0.0
    %6846 = vmatprep.subr.mxu0 0.0
    %6847 = vmatpush1.msra.mxu0 0.0
    %6848 = vmatprep.subr.mxu0 0.0
    %6849 = vmatpush1.msra.mxu0 0.0
    %6850 = vmatprep.subr.mxu0 0.0
    %6851 = vmatpush1.msra.mxu0 0.0
    %6852 = vmatprep.subr.mxu0 0.0
    %6853 = vmatpush1.msra.mxu0 0.0
    %6854 = vmatprep.subr.mxu0 0.0
    %6855 = vmatpush1.msra.mxu0 0.0
    %6856 = vmatprep.subr.mxu0 0.0
    %6857 = vmatpush1.msra.mxu0 0.0
    %6858 = vmatprep.subr.mxu0 0.0
    %6859 = vmatpush1.msra.mxu0 0.0
    %6860 = vmatprep.subr.mxu0 0.0
    %6861 = vmatpush1.msra.mxu0 0.0
    %6862 = vmatprep.subr.mxu0 0.0
    %6863 = vmatpush1.msra.mxu0 0.0
    %6864 = vmatprep.mubr.f32.mxu0 0.0
    %6865 = vmatmul.mubr.f32.gmra.mrb[0].mxu0 %v6799
    %v6866 = vpop.f32.mrb[0].mxu0
    %v6867 = vadd.f32 %v104, %v6866
    %v6868 = vpop.f32.mrb[0].mxu0
    %6869 = vdwg.mxu0
    %v6870 = vmul.f32 %v6867, 0.0625
    %v6871 = vadd.f32 %v6442, %v6870
    %6872 = vmatprep.subr.mxu0 0.0
    %6873 = vmatpush1.msra.mxu0 %v60
    %6874 = vmatprep.subr.mxu0 0.0
    %6875 = vmatpush1.msra.mxu0 %v61
    %6876 = vmatprep.subr.mxu0 0.0
    %6877 = vmatpush1.msra.mxu0 %v62
    %6878 = vmatprep.subr.mxu0 0.0
    %6879 = vmatpush1.msra.mxu0 %v63
    %6880 = vmatprep.subr.mxu0 0.0
    %6881 = vmatpush1.msra.mxu0 %v64
    %6882 = vmatprep.subr.mxu0 0.0
    %6883 = vmatpush1.msra.mxu0 %v65
    %6884 = vmatprep.subr.mxu0 0.0
    %6885 = vmatpush1.msra.mxu0 %v66
    %6886 = vmatprep.subr.mxu0 0.0
    %6887 = vmatpush1.msra.mxu0 %v67
    %6888 = vmatprep.subr.mxu0 0.0
    %6889 = vmatpush1.msra.mxu0 %v68
    %6890 = vmatprep.subr.mxu0 0.0
    %6891 = vmatpush1.msra.mxu0 %v69
    %6892 = vmatprep.subr.mxu0 0.0
    %6893 = vmatpush1.msra.mxu0 %v70
    %6894 = vmatprep.subr.mxu0 0.0
    %6895 = vmatpush1.msra.mxu0 %v71
    %6896 = vmatprep.subr.mxu0 0.0
    %6897 = vmatpush1.msra.mxu0 %v72
    %6898 = vmatprep.subr.mxu0 0.0
    %6899 = vmatpush1.msra.mxu0 %v73
    %6900 = vmatprep.subr.mxu0 0.0
    %6901 = vmatpush1.msra.mxu0 %v74
    %6902 = vmatprep.subr.mxu0 0.0
    %6903 = vmatpush1.msra.mxu0 %v75
    %6904 = vmatprep.subr.mxu0 0.0
    %6905 = vmatpush1.msra.mxu0 0.0
    %6906 = vmatprep.subr.mxu0 0.0
    %6907 = vmatpush1.msra.mxu0 0.0
    %6908 = vmatprep.subr.mxu0 0.0
    %6909 = vmatpush1.msra.mxu0 0.0
    %6910 = vmatprep.subr.mxu0 0.0
    %6911 = vmatpush1.msra.mxu0 0.0
    %6912 = vmatprep.subr.mxu0 0.0
    %6913 = vmatpush1.msra.mxu0 0.0
    %6914 = vmatprep.subr.mxu0 0.0
    %6915 = vmatpush1.msra.mxu0 0.0
    %6916 = vmatprep.subr.mxu0 0.0
    %6917 = vmatpush1.msra.mxu0 0.0
    %6918 = vmatprep.subr.mxu0 0.0
    %6919 = vmatpush1.msra.mxu0 0.0
    %6920 = vmatprep.subr.mxu0 0.0
    %6921 = vmatpush1.msra.mxu0 0.0
    %6922 = vmatprep.subr.mxu0 0.0
    %6923 = vmatpush1.msra.mxu0 0.0
    %6924 = vmatprep.subr.mxu0 0.0
    %6925 = vmatpush1.msra.mxu0 0.0
    %6926 = vmatprep.subr.mxu0 0.0
    %6927 = vmatpush1.msra.mxu0 0.0
    %6928 = vmatprep.subr.mxu0 0.0
    %6929 = vmatpush1.msra.mxu0 0.0
    %6930 = vmatprep.subr.mxu0 0.0
    %6931 = vmatpush1.msra.mxu0 0.0
    %6932 = vmatprep.subr.mxu0 0.0
    %6933 = vmatpush1.msra.mxu0 0.0
    %6934 = vmatprep.subr.mxu0 0.0
    %6935 = vmatpush1.msra.mxu0 0.0
    %6936 = vmatprep.mubr.f32.mxu0 0.0
    %6937 = vmatmul.mubr.f32.gmra.mrb[0].mxu0 %v6871
    %v6938 = vpop.f32.mrb[0].mxu0
    %v6939 = vadd.f32 %v97, %v6938
    %v6940 = vpop.f32.mrb[0].mxu0
    %6941 = vdwg.mxu0
    %v6942 = vtanh.pop %v6939
    %6943 = vmatprep.subr.mxu0 0.0
    %6944 = vmatpush1.msra.mxu0 %v76
    %6945 = vmatprep.subr.mxu0 0.0
    %6946 = vmatpush1.msra.mxu0 %v77
    %6947 = vmatprep.subr.mxu0 0.0
    %6948 = vmatpush1.msra.mxu0 %v78
    %6949 = vmatprep.subr.mxu0 0.0
    %6950 = vmatpush1.msra.mxu0 %v79
    %6951 = vmatprep.subr.mxu0 0.0
    %6952 = vmatpush1.msra.mxu0 %v80
    %6953 = vmatprep.subr.mxu0 0.0
    %6954 = vmatpush1.msra.mxu0 %v81
    %6955 = vmatprep.subr.mxu0 0.0
    %6956 = vmatpush1.msra.mxu0 %v82
    %6957 = vmatprep.subr.mxu0 0.0
    %6958 = vmatpush1.msra.mxu0 %v83
    %6959 = vmatprep.subr.mxu0 0.0
    %6960 = vmatpush1.msra.mxu0 %v84
    %6961 = vmatprep.subr.mxu0 0.0
    %6962 = vmatpush1.msra.mxu0 %v85
    %6963 = vmatprep.subr.mxu0 0.0
    %6964 = vmatpush1.msra.mxu0 %v86
    %6965 = vmatprep.subr.mxu0 0.0
    %6966 = vmatpush1.msra.mxu0 %v87
    %6967 = vmatprep.subr.mxu0 0.0
    %6968 = vmatpush1.msra.mxu0 %v88
    %6969 = vmatprep.subr.mxu0 0.0
    %6970 = vmatpush1.msra.mxu0 %v89
    %6971 = vmatprep.subr.mxu0 0.0
    %6972 = vmatpush1.msra.mxu0 %v90
    %6973 = vmatprep.subr.mxu0 0.0
    %6974 = vmatpush1.msra.mxu0 %v91
    %6975 = vmatprep.subr.mxu0 0.0
    %6976 = vmatpush1.msra.mxu0 0.0
    %6977 = vmatprep.subr.mxu0 0.0
    %6978 = vmatpush1.msra.mxu0 0.0
    %6979 = vmatprep.subr.mxu0 0.0
    %6980 = vmatpush1.msra.mxu0 0.0
    %6981 = vmatprep.subr.mxu0 0.0
    %6982 = vmatpush1.msra.mxu0 0.0
    %6983 = vmatprep.subr.mxu0 0.0
    %6984 = vmatpush1.msra.mxu0 0.0
    %6985 = vmatprep.subr.mxu0 0.0
    %6986 = vmatpush1.msra.mxu0 0.0
    %6987 = vmatprep.subr.mxu0 0.0
    %6988 = vmatpush1.msra.mxu0 0.0
    %6989 = vmatprep.subr.mxu0 0.0
    %6990 = vmatpush1.msra.mxu0 0.0
    %6991 = vmatprep.subr.mxu0 0.0
    %6992 = vmatpush1.msra.mxu0 0.0
    %6993 = vmatprep.subr.mxu0 0.0
    %6994 = vmatpush1.msra.mxu0 0.0
    %6995 = vmatprep.subr.mxu0 0.0
    %6996 = vmatpush1.msra.mxu0 0.0
    %6997 = vmatprep.subr.mxu0 0.0
    %6998 = vmatpush1.msra.mxu0 0.0
    %6999 = vmatprep.subr.mxu0 0.0
    %7000 = vmatpush1.msra.mxu0 0.0
    %7001 = vmatprep.subr.mxu0 0.0
    %7002 = vmatpush1.msra.mxu0 0.0
    %7003 = vmatprep.subr.mxu0 0.0
    %7004 = vmatpush1.msra.mxu0 0.0
    %7005 = vmatprep.subr.mxu0 0.0
    %7006 = vmatpush1.msra.mxu0 0.0
    %7007 = vmatprep.mubr.f32.mxu0 0.0
    %7008 = vmatmul.mubr.f32.gmra.mrb[0].mxu0 %v6942
    %v7009 = vpop.f32.mrb[0].mxu0
    %v7010 = vadd.f32 %v104, %v7009
    %v7011 = vpop.f32.mrb[0].mxu0
    %7012 = vdwg.mxu0
    %v7013 = vadd.f32 %v6581, %v7010
    %v7014 = vadd.f32 %v6724, %v6867
    %v7015 = vmul.f32 %v7014, 2.0
    %v7016 = vadd.f32 %v7013, %v7015
    %v7017 = vmul.f32 %v7016, 0.010416667
    %v7018 = vadd.f32 %v6442, %v7017
    %7019 = vmatprep.subr.mxu0 0.0
    %7020 = vmatpush1.msra.mxu0 %v60
    %7021 = vmatprep.subr.mxu0 0.0
    %7022 = vmatpush1.msra.mxu0 %v61
    %7023 = vmatprep.subr.mxu0 0.0
    %7024 = vmatpush1.msra.mxu0 %v62
    %7025 = vmatprep.subr.mxu0 0.0
    %7026 = vmatpush1.msra.mxu0 %v63
    %7027 = vmatprep.subr.mxu0 0.0
    %7028 = vmatpush1.msra.mxu0 %v64
    %7029 = vmatprep.subr.mxu0 0.0
    %7030 = vmatpush1.msra.mxu0 %v65
    %7031 = vmatprep.subr.mxu0 0.0
    %7032 = vmatpush1.msra.mxu0 %v66
    %7033 = vmatprep.subr.mxu0 0.0
    %7034 = vmatpush1.msra.mxu0 %v67
    %7035 = vmatprep.subr.mxu0 0.0
    %7036 = vmatpush1.msra.mxu0 %v68
    %7037 = vmatprep.subr.mxu0 0.0
    %7038 = vmatpush1.msra.mxu0 %v69
    %7039 = vmatprep.subr.mxu0 0.0
    %7040 = vmatpush1.msra.mxu0 %v70
    %7041 = vmatprep.subr.mxu0 0.0
    %7042 = vmatpush1.msra.mxu0 %v71
    %7043 = vmatprep.subr.mxu0 0.0
    %7044 = vmatpush1.msra.mxu0 %v72
    %7045 = vmatprep.subr.mxu0 0.0
    %7046 = vmatpush1.msra.mxu0 %v73
    %7047 = vmatprep.subr.mxu0 0.0
    %7048 = vmatpush1.msra.mxu0 %v74
    %7049 = vmatprep.subr.mxu0 0.0
    %7050 = vmatpush1.msra.mxu0 %v75
    %7051 = vmatprep.subr.mxu0 0.0
    %7052 = vmatpush1.msra.mxu0 0.0
    %7053 = vmatprep.subr.mxu0 0.0
    %7054 = vmatpush1.msra.mxu0 0.0
    %7055 = vmatprep.subr.mxu0 0.0
    %7056 = vmatpush1.msra.mxu0 0.0
    %7057 = vmatprep.subr.mxu0 0.0
    %7058 = vmatpush1.msra.mxu0 0.0
    %7059 = vmatprep.subr.mxu0 0.0
    %7060 = vmatpush1.msra.mxu0 0.0
    %7061 = vmatprep.subr.mxu0 0.0
    %7062 = vmatpush1.msra.mxu0 0.0
    %7063 = vmatprep.subr.mxu0 0.0
    %7064 = vmatpush1.msra.mxu0 0.0
    %7065 = vmatprep.subr.mxu0 0.0
    %7066 = vmatpush1.msra.mxu0 0.0
    %7067 = vmatprep.subr.mxu0 0.0
    %7068 = vmatpush1.msra.mxu0 0.0
    %7069 = vmatprep.subr.mxu0 0.0
    %7070 = vmatpush1.msra.mxu0 0.0
    %7071 = vmatprep.subr.mxu0 0.0
    %7072 = vmatpush1.msra.mxu0 0.0
    %7073 = vmatprep.subr.mxu0 0.0
    %7074 = vmatpush1.msra.mxu0 0.0
    %7075 = vmatprep.subr.mxu0 0.0
    %7076 = vmatpush1.msra.mxu0 0.0
    %7077 = vmatprep.subr.mxu0 0.0
    %7078 = vmatpush1.msra.mxu0 0.0
    %7079 = vmatprep.subr.mxu0 0.0
    %7080 = vmatpush1.msra.mxu0 0.0
    %7081 = vmatprep.subr.mxu0 0.0
    %7082 = vmatpush1.msra.mxu0 0.0
    %7083 = vmatprep.mubr.f32.mxu0 0.0
    %7084 = vmatmul.mubr.f32.gmra.mrb[0].mxu0 %v7018
    %v7085 = vpop.f32.mrb[0].mxu0
    %v7086 = vadd.f32 %v97, %v7085
    %v7087 = vpop.f32.mrb[0].mxu0
    %7088 = vdwg.mxu0
    %v7089 = vtanh.pop %v7086
    %7090 = vmatprep.subr.mxu0 0.0
    %7091 = vmatpush1.msra.mxu0 %v76
    %7092 = vmatprep.subr.mxu0 0.0
    %7093 = vmatpush1.msra.mxu0 %v77
    %7094 = vmatprep.subr.mxu0 0.0
    %7095 = vmatpush1.msra.mxu0 %v78
    %7096 = vmatprep.subr.mxu0 0.0
    %7097 = vmatpush1.msra.mxu0 %v79
    %7098 = vmatprep.subr.mxu0 0.0
    %7099 = vmatpush1.msra.mxu0 %v80
    %7100 = vmatprep.subr.mxu0 0.0
    %7101 = vmatpush1.msra.mxu0 %v81
    %7102 = vmatprep.subr.mxu0 0.0
    %7103 = vmatpush1.msra.mxu0 %v82
    %7104 = vmatprep.subr.mxu0 0.0
    %7105 = vmatpush1.msra.mxu0 %v83
    %7106 = vmatprep.subr.mxu0 0.0
    %7107 = vmatpush1.msra.mxu0 %v84
    %7108 = vmatprep.subr.mxu0 0.0
    %7109 = vmatpush1.msra.mxu0 %v85
    %7110 = vmatprep.subr.mxu0 0.0
    %7111 = vmatpush1.msra.mxu0 %v86
    %7112 = vmatprep.subr.mxu0 0.0
    %7113 = vmatpush1.msra.mxu0 %v87
    %7114 = vmatprep.subr.mxu0 0.0
    %7115 = vmatpush1.msra.mxu0 %v88
    %7116 = vmatprep.subr.mxu0 0.0
    %7117 = vmatpush1.msra.mxu0 %v89
    %7118 = vmatprep.subr.mxu0 0.0
    %7119 = vmatpush1.msra.mxu0 %v90
    %7120 = vmatprep.subr.mxu0 0.0
    %7121 = vmatpush1.msra.mxu0 %v91
    %7122 = vmatprep.subr.mxu0 0.0
    %7123 = vmatpush1.msra.mxu0 0.0
    %7124 = vmatprep.subr.mxu0 0.0
    %7125 = vmatpush1.msra.mxu0 0.0
    %7126 = vmatprep.subr.mxu0 0.0
    %7127 = vmatpush1.msra.mxu0 0.0
    %7128 = vmatprep.subr.mxu0 0.0
    %7129 = vmatpush1.msra.mxu0 0.0
    %7130 = vmatprep.subr.mxu0 0.0
    %7131 = vmatpush1.msra.mxu0 0.0
    %7132 = vmatprep.subr.mxu0 0.0
    %7133 = vmatpush1.msra.mxu0 0.0
    %7134 = vmatprep.subr.mxu0 0.0
    %7135 = vmatpush1.msra.mxu0 0.0
    %7136 = vmatprep.subr.mxu0 0.0
    %7137 = vmatpush1.msra.mxu0 0.0
    %7138 = vmatprep.subr.mxu0 0.0
    %7139 = vmatpush1.msra.mxu0 0.0
    %7140 = vmatprep.subr.mxu0 0.0
    %7141 = vmatpush1.msra.mxu0 0.0
    %7142 = vmatprep.subr.mxu0 0.0
    %7143 = vmatpush1.msra.mxu0 0.0
    %7144 = vmatprep.subr.mxu0 0.0
    %7145 = vmatpush1.msra.mxu0 0.0
    %7146 = vmatprep.subr.mxu0 0.0
    %7147 = vmatpush1.msra.mxu0 0.0
    %7148 = vmatprep.subr.mxu0 0.0
    %7149 = vmatpush1.msra.mxu0 0.0
    %7150 = vmatprep.subr.mxu0 0.0
    %7151 = vmatpush1.msra.mxu0 0.0
    %7152 = vmatprep.subr.mxu0 0.0
    %7153 = vmatpush1.msra.mxu0 0.0
    %7154 = vmatprep.mubr.f32.mxu0 0.0
    %7155 = vmatmul.mubr.f32.gmra.mrb[0].mxu0 %v7089
    %v7156 = vpop.f32.mrb[0].mxu0
    %v7157 = vadd.f32 %v104, %v7156
    %v7158 = vpop.f32.mrb[0].mxu0
    %7159 = vdwg.mxu0
    %v7160 = vmul.f32 %v7157, 0.03125
    %v7161 = vadd.f32 %v7018, %v7160
    %7162 = vmatprep.subr.mxu0 0.0
    %7163 = vmatpush1.msra.mxu0 %v60
    %7164 = vmatprep.subr.mxu0 0.0
    %7165 = vmatpush1.msra.mxu0 %v61
    %7166 = vmatprep.subr.mxu0 0.0
    %7167 = vmatpush1.msra.mxu0 %v62
    %7168 = vmatprep.subr.mxu0 0.0
    %7169 = vmatpush1.msra.mxu0 %v63
    %7170 = vmatprep.subr.mxu0 0.0
    %7171 = vmatpush1.msra.mxu0 %v64
    %7172 = vmatprep.subr.mxu0 0.0
    %7173 = vmatpush1.msra.mxu0 %v65
    %7174 = vmatprep.subr.mxu0 0.0
    %7175 = vmatpush1.msra.mxu0 %v66
    %7176 = vmatprep.subr.mxu0 0.0
    %7177 = vmatpush1.msra.mxu0 %v67
    %7178 = vmatprep.subr.mxu0 0.0
    %7179 = vmatpush1.msra.mxu0 %v68
    %7180 = vmatprep.subr.mxu0 0.0
    %7181 = vmatpush1.msra.mxu0 %v69
    %7182 = vmatprep.subr.mxu0 0.0
    %7183 = vmatpush1.msra.mxu0 %v70
    %7184 = vmatprep.subr.mxu0 0.0
    %7185 = vmatpush1.msra.mxu0 %v71
    %7186 = vmatprep.subr.mxu0 0.0
    %7187 = vmatpush1.msra.mxu0 %v72
    %7188 = vmatprep.subr.mxu0 0.0
    %7189 = vmatpush1.msra.mxu0 %v73
    %7190 = vmatprep.subr.mxu0 0.0
    %7191 = vmatpush1.msra.mxu0 %v74
    %7192 = vmatprep.subr.mxu0 0.0
    %7193 = vmatpush1.msra.mxu0 %v75
    %7194 = vmatprep.subr.mxu0 0.0
    %7195 = vmatpush1.msra.mxu0 0.0
    %7196 = vmatprep.subr.mxu0 0.0
    %7197 = vmatpush1.msra.mxu0 0.0
    %7198 = vmatprep.subr.mxu0 0.0
    %7199 = vmatpush1.msra.mxu0 0.0
    %7200 = vmatprep.subr.mxu0 0.0
    %7201 = vmatpush1.msra.mxu0 0.0
    %7202 = vmatprep.subr.mxu0 0.0
    %7203 = vmatpush1.msra.mxu0 0.0
    %7204 = vmatprep.subr.mxu0 0.0
    %7205 = vmatpush1.msra.mxu0 0.0
    %7206 = vmatprep.subr.mxu0 0.0
    %7207 = vmatpush1.msra.mxu0 0.0
    %7208 = vmatprep.subr.mxu0 0.0
    %7209 = vmatpush1.msra.mxu0 0.0
    %7210 = vmatprep.subr.mxu0 0.0
    %7211 = vmatpush1.msra.mxu0 0.0
    %7212 = vmatprep.subr.mxu0 0.0
    %7213 = vmatpush1.msra.mxu0 0.0
    %7214 = vmatprep.subr.mxu0 0.0
    %7215 = vmatpush1.msra.mxu0 0.0
    %7216 = vmatprep.subr.mxu0 0.0
    %7217 = vmatpush1.msra.mxu0 0.0
    %7218 = vmatprep.subr.mxu0 0.0
    %7219 = vmatpush1.msra.mxu0 0.0
    %7220 = vmatprep.subr.mxu0 0.0
    %7221 = vmatpush1.msra.mxu0 0.0
    %7222 = vmatprep.subr.mxu0 0.0
    %7223 = vmatpush1.msra.mxu0 0.0
    %7224 = vmatprep.subr.mxu0 0.0
    %7225 = vmatpush1.msra.mxu0 0.0
    %7226 = vmatprep.mubr.f32.mxu0 0.0
    %7227 = vmatmul.mubr.f32.gmra.mrb[0].mxu0 %v7161
    %v7228 = vpop.f32.mrb[0].mxu0
    %v7229 = vadd.f32 %v97, %v7228
    %v7230 = vpop.f32.mrb[0].mxu0
    %7231 = vdwg.mxu0
    %v7232 = vtanh.pop %v7229
    %7233 = vmatprep.subr.mxu0 0.0
    %7234 = vmatpush1.msra.mxu0 %v76
    %7235 = vmatprep.subr.mxu0 0.0
    %7236 = vmatpush1.msra.mxu0 %v77
    %7237 = vmatprep.subr.mxu0 0.0
    %7238 = vmatpush1.msra.mxu0 %v78
    %7239 = vmatprep.subr.mxu0 0.0
    %7240 = vmatpush1.msra.mxu0 %v79
    %7241 = vmatprep.subr.mxu0 0.0
    %7242 = vmatpush1.msra.mxu0 %v80
    %7243 = vmatprep.subr.mxu0 0.0
    %7244 = vmatpush1.msra.mxu0 %v81
    %7245 = vmatprep.subr.mxu0 0.0
    %7246 = vmatpush1.msra.mxu0 %v82
    %7247 = vmatprep.subr.mxu0 0.0
    %7248 = vmatpush1.msra.mxu0 %v83
    %7249 = vmatprep.subr.mxu0 0.0
    %7250 = vmatpush1.msra.mxu0 %v84
    %7251 = vmatprep.subr.mxu0 0.0
    %7252 = vmatpush1.msra.mxu0 %v85
    %7253 = vmatprep.subr.mxu0 0.0
    %7254 = vmatpush1.msra.mxu0 %v86
    %7255 = vmatprep.subr.mxu0 0.0
    %7256 = vmatpush1.msra.mxu0 %v87
    %7257 = vmatprep.subr.mxu0 0.0
    %7258 = vmatpush1.msra.mxu0 %v88
    %7259 = vmatprep.subr.mxu0 0.0
    %7260 = vmatpush1.msra.mxu0 %v89
    %7261 = vmatprep.subr.mxu0 0.0
    %7262 = vmatpush1.msra.mxu0 %v90
    %7263 = vmatprep.subr.mxu0 0.0
    %7264 = vmatpush1.msra.mxu0 %v91
    %7265 = vmatprep.subr.mxu0 0.0
    %7266 = vmatpush1.msra.mxu0 0.0
    %7267 = vmatprep.subr.mxu0 0.0
    %7268 = vmatpush1.msra.mxu0 0.0
    %7269 = vmatprep.subr.mxu0 0.0
    %7270 = vmatpush1.msra.mxu0 0.0
    %7271 = vmatprep.subr.mxu0 0.0
    %7272 = vmatpush1.msra.mxu0 0.0
    %7273 = vmatprep.subr.mxu0 0.0
    %7274 = vmatpush1.msra.mxu0 0.0
    %7275 = vmatprep.subr.mxu0 0.0
    %7276 = vmatpush1.msra.mxu0 0.0
    %7277 = vmatprep.subr.mxu0 0.0
    %7278 = vmatpush1.msra.mxu0 0.0
    %7279 = vmatprep.subr.mxu0 0.0
    %7280 = vmatpush1.msra.mxu0 0.0
    %7281 = vmatprep.subr.mxu0 0.0
    %7282 = vmatpush1.msra.mxu0 0.0
    %7283 = vmatprep.subr.mxu0 0.0
    %7284 = vmatpush1.msra.mxu0 0.0
    %7285 = vmatprep.subr.mxu0 0.0
    %7286 = vmatpush1.msra.mxu0 0.0
    %7287 = vmatprep.subr.mxu0 0.0
    %7288 = vmatpush1.msra.mxu0 0.0
    %7289 = vmatprep.subr.mxu0 0.0
    %7290 = vmatpush1.msra.mxu0 0.0
    %7291 = vmatprep.subr.mxu0 0.0
    %7292 = vmatpush1.msra.mxu0 0.0
    %7293 = vmatprep.subr.mxu0 0.0
    %7294 = vmatpush1.msra.mxu0 0.0
    %7295 = vmatprep.subr.mxu0 0.0
    %7296 = vmatpush1.msra.mxu0 0.0
    %7297 = vmatprep.mubr.f32.mxu0 0.0
    %7298 = vmatmul.mubr.f32.gmra.mrb[0].mxu0 %v7232
    %v7299 = vpop.f32.mrb[0].mxu0
    %v7300 = vadd.f32 %v104, %v7299
    %v7301 = vpop.f32.mrb[0].mxu0
    %7302 = vdwg.mxu0
    %v7303 = vmul.f32 %v7300, 0.03125
    %v7304 = vadd.f32 %v7018, %v7303
    %7305 = vmatprep.subr.mxu0 0.0
    %7306 = vmatpush1.msra.mxu0 %v60
    %7307 = vmatprep.subr.mxu0 0.0
    %7308 = vmatpush1.msra.mxu0 %v61
    %7309 = vmatprep.subr.mxu0 0.0
    %7310 = vmatpush1.msra.mxu0 %v62
    %7311 = vmatprep.subr.mxu0 0.0
    %7312 = vmatpush1.msra.mxu0 %v63
    %7313 = vmatprep.subr.mxu0 0.0
    %7314 = vmatpush1.msra.mxu0 %v64
    %7315 = vmatprep.subr.mxu0 0.0
    %7316 = vmatpush1.msra.mxu0 %v65
    %7317 = vmatprep.subr.mxu0 0.0
    %7318 = vmatpush1.msra.mxu0 %v66
    %7319 = vmatprep.subr.mxu0 0.0
    %7320 = vmatpush1.msra.mxu0 %v67
    %7321 = vmatprep.subr.mxu0 0.0
    %7322 = vmatpush1.msra.mxu0 %v68
    %7323 = vmatprep.subr.mxu0 0.0
    %7324 = vmatpush1.msra.mxu0 %v69
    %7325 = vmatprep.subr.mxu0 0.0
    %7326 = vmatpush1.msra.mxu0 %v70
    %7327 = vmatprep.subr.mxu0 0.0
    %7328 = vmatpush1.msra.mxu0 %v71
    %7329 = vmatprep.subr.mxu0 0.0
    %7330 = vmatpush1.msra.mxu0 %v72
    %7331 = vmatprep.subr.mxu0 0.0
    %7332 = vmatpush1.msra.mxu0 %v73
    %7333 = vmatprep.subr.mxu0 0.0
    %7334 = vmatpush1.msra.mxu0 %v74
    %7335 = vmatprep.subr.mxu0 0.0
    %7336 = vmatpush1.msra.mxu0 %v75
    %7337 = vmatprep.subr.mxu0 0.0
    %7338 = vmatpush1.msra.mxu0 0.0
    %7339 = vmatprep.subr.mxu0 0.0
    %7340 = vmatpush1.msra.mxu0 0.0
    %7341 = vmatprep.subr.mxu0 0.0
    %7342 = vmatpush1.msra.mxu0 0.0
    %7343 = vmatprep.subr.mxu0 0.0
    %7344 = vmatpush1.msra.mxu0 0.0
    %7345 = vmatprep.subr.mxu0 0.0
    %7346 = vmatpush1.msra.mxu0 0.0
    %7347 = vmatprep.subr.mxu0 0.0
    %7348 = vmatpush1.msra.mxu0 0.0
    %7349 = vmatprep.subr.mxu0 0.0
    %7350 = vmatpush1.msra.mxu0 0.0
    %7351 = vmatprep.subr.mxu0 0.0
    %7352 = vmatpush1.msra.mxu0 0.0
    %7353 = vmatprep.subr.mxu0 0.0
    %7354 = vmatpush1.msra.mxu0 0.0
    %7355 = vmatprep.subr.mxu0 0.0
    %7356 = vmatpush1.msra.mxu0 0.0
    %7357 = vmatprep.subr.mxu0 0.0
    %7358 = vmatpush1.msra.mxu0 0.0
    %7359 = vmatprep.subr.mxu0 0.0
    %7360 = vmatpush1.msra.mxu0 0.0
    %7361 = vmatprep.subr.mxu0 0.0
    %7362 = vmatpush1.msra.mxu0 0.0
    %7363 = vmatprep.subr.mxu0 0.0
    %7364 = vmatpush1.msra.mxu0 0.0
    %7365 = vmatprep.subr.mxu0 0.0
    %7366 = vmatpush1.msra.mxu0 0.0
    %7367 = vmatprep.subr.mxu0 0.0
    %7368 = vmatpush1.msra.mxu0 0.0
    %7369 = vmatprep.mubr.f32.mxu0 0.0
    %7370 = vmatmul.mubr.f32.gmra.mrb[0].mxu0 %v7304
    %v7371 = vpop.f32.mrb[0].mxu0
    %v7372 = vadd.f32 %v97, %v7371
    %v7373 = vpop.f32.mrb[0].mxu0
    %7374 = vdwg.mxu0
    %v7375 = vtanh.pop %v7372
    %7376 = vmatprep.subr.mxu0 0.0
    %7377 = vmatpush1.msra.mxu0 %v76
    %7378 = vmatprep.subr.mxu0 0.0
    %7379 = vmatpush1.msra.mxu0 %v77
    %7380 = vmatprep.subr.mxu0 0.0
    %7381 = vmatpush1.msra.mxu0 %v78
    %7382 = vmatprep.subr.mxu0 0.0
    %7383 = vmatpush1.msra.mxu0 %v79
    %7384 = vmatprep.subr.mxu0 0.0
    %7385 = vmatpush1.msra.mxu0 %v80
    %7386 = vmatprep.subr.mxu0 0.0
    %7387 = vmatpush1.msra.mxu0 %v81
    %7388 = vmatprep.subr.mxu0 0.0
    %7389 = vmatpush1.msra.mxu0 %v82
    %7390 = vmatprep.subr.mxu0 0.0
    %7391 = vmatpush1.msra.mxu0 %v83
    %7392 = vmatprep.subr.mxu0 0.0
    %7393 = vmatpush1.msra.mxu0 %v84
    %7394 = vmatprep.subr.mxu0 0.0
    %7395 = vmatpush1.msra.mxu0 %v85
    %7396 = vmatprep.subr.mxu0 0.0
    %7397 = vmatpush1.msra.mxu0 %v86
    %7398 = vmatprep.subr.mxu0 0.0
    %7399 = vmatpush1.msra.mxu0 %v87
    %7400 = vmatprep.subr.mxu0 0.0
    %7401 = vmatpush1.msra.mxu0 %v88
    %7402 = vmatprep.subr.mxu0 0.0
    %7403 = vmatpush1.msra.mxu0 %v89
    %7404 = vmatprep.subr.mxu0 0.0
    %7405 = vmatpush1.msra.mxu0 %v90
    %7406 = vmatprep.subr.mxu0 0.0
    %7407 = vmatpush1.msra.mxu0 %v91
    %7408 = vmatprep.subr.mxu0 0.0
    %7409 = vmatpush1.msra.mxu0 0.0
    %7410 = vmatprep.subr.mxu0 0.0
    %7411 = vmatpush1.msra.mxu0 0.0
    %7412 = vmatprep.subr.mxu0 0.0
    %7413 = vmatpush1.msra.mxu0 0.0
    %7414 = vmatprep.subr.mxu0 0.0
    %7415 = vmatpush1.msra.mxu0 0.0
    %7416 = vmatprep.subr.mxu0 0.0
    %7417 = vmatpush1.msra.mxu0 0.0
    %7418 = vmatprep.subr.mxu0 0.0
    %7419 = vmatpush1.msra.mxu0 0.0
    %7420 = vmatprep.subr.mxu0 0.0
    %7421 = vmatpush1.msra.mxu0 0.0
    %7422 = vmatprep.subr.mxu0 0.0
    %7423 = vmatpush1.msra.mxu0 0.0
    %7424 = vmatprep.subr.mxu0 0.0
    %7425 = vmatpush1.msra.mxu0 0.0
    %7426 = vmatprep.subr.mxu0 0.0
    %7427 = vmatpush1.msra.mxu0 0.0
    %7428 = vmatprep.subr.mxu0 0.0
    %7429 = vmatpush1.msra.mxu0 0.0
    %7430 = vmatprep.subr.mxu0 0.0
    %7431 = vmatpush1.msra.mxu0 0.0
    %7432 = vmatprep.subr.mxu0 0.0
    %7433 = vmatpush1.msra.mxu0 0.0
    %7434 = vmatprep.subr.mxu0 0.0
    %7435 = vmatpush1.msra.mxu0 0.0
    %7436 = vmatprep.subr.mxu0 0.0
    %7437 = vmatpush1.msra.mxu0 0.0
    %7438 = vmatprep.subr.mxu0 0.0
    %7439 = vmatpush1.msra.mxu0 0.0
    %7440 = vmatprep.mubr.f32.mxu0 0.0
    %7441 = vmatmul.mubr.f32.gmra.mrb[0].mxu0 %v7375
    %v7442 = vpop.f32.mrb[0].mxu0
    %v7443 = vadd.f32 %v104, %v7442
    %v7444 = vpop.f32.mrb[0].mxu0
    %7445 = vdwg.mxu0
    %v7446 = vmul.f32 %v7443, 0.0625
    %v7447 = vadd.f32 %v7018, %v7446
    %7448 = vmatprep.subr.mxu0 0.0
    %7449 = vmatpush1.msra.mxu0 %v60
    %7450 = vmatprep.subr.mxu0 0.0
    %7451 = vmatpush1.msra.mxu0 %v61
    %7452 = vmatprep.subr.mxu0 0.0
    %7453 = vmatpush1.msra.mxu0 %v62
    %7454 = vmatprep.subr.mxu0 0.0
    %7455 = vmatpush1.msra.mxu0 %v63
    %7456 = vmatprep.subr.mxu0 0.0
    %7457 = vmatpush1.msra.mxu0 %v64
    %7458 = vmatprep.subr.mxu0 0.0
    %7459 = vmatpush1.msra.mxu0 %v65
    %7460 = vmatprep.subr.mxu0 0.0
    %7461 = vmatpush1.msra.mxu0 %v66
    %7462 = vmatprep.subr.mxu0 0.0
    %7463 = vmatpush1.msra.mxu0 %v67
    %7464 = vmatprep.subr.mxu0 0.0
    %7465 = vmatpush1.msra.mxu0 %v68
    %7466 = vmatprep.subr.mxu0 0.0
    %7467 = vmatpush1.msra.mxu0 %v69
    %7468 = vmatprep.subr.mxu0 0.0
    %7469 = vmatpush1.msra.mxu0 %v70
    %7470 = vmatprep.subr.mxu0 0.0
    %7471 = vmatpush1.msra.mxu0 %v71
    %7472 = vmatprep.subr.mxu0 0.0
    %7473 = vmatpush1.msra.mxu0 %v72
    %7474 = vmatprep.subr.mxu0 0.0
    %7475 = vmatpush1.msra.mxu0 %v73
    %7476 = vmatprep.subr.mxu0 0.0
    %7477 = vmatpush1.msra.mxu0 %v74
    %7478 = vmatprep.subr.mxu0 0.0
    %7479 = vmatpush1.msra.mxu0 %v75
    %7480 = vmatprep.subr.mxu0 0.0
    %7481 = vmatpush1.msra.mxu0 0.0
    %7482 = vmatprep.subr.mxu0 0.0
    %7483 = vmatpush1.msra.mxu0 0.0
    %7484 = vmatprep.subr.mxu0 0.0
    %7485 = vmatpush1.msra.mxu0 0.0
    %7486 = vmatprep.subr.mxu0 0.0
    %7487 = vmatpush1.msra.mxu0 0.0
    %7488 = vmatprep.subr.mxu0 0.0
    %7489 = vmatpush1.msra.mxu0 0.0
    %7490 = vmatprep.subr.mxu0 0.0
    %7491 = vmatpush1.msra.mxu0 0.0
    %7492 = vmatprep.subr.mxu0 0.0
    %7493 = vmatpush1.msra.mxu0 0.0
    %7494 = vmatprep.subr.mxu0 0.0
    %7495 = vmatpush1.msra.mxu0 0.0
    %7496 = vmatprep.subr.mxu0 0.0
    %7497 = vmatpush1.msra.mxu0 0.0
    %7498 = vmatprep.subr.mxu0 0.0
    %7499 = vmatpush1.msra.mxu0 0.0
    %7500 = vmatprep.subr.mxu0 0.0
    %7501 = vmatpush1.msra.mxu0 0.0
    %7502 = vmatprep.subr.mxu0 0.0
    %7503 = vmatpush1.msra.mxu0 0.0
    %7504 = vmatprep.subr.mxu0 0.0
    %7505 = vmatpush1.msra.mxu0 0.0
    %7506 = vmatprep.subr.mxu0 0.0
    %7507 = vmatpush1.msra.mxu0 0.0
    %7508 = vmatprep.subr.mxu0 0.0
    %7509 = vmatpush1.msra.mxu0 0.0
    %7510 = vmatprep.subr.mxu0 0.0
    %7511 = vmatpush1.msra.mxu0 0.0
    %7512 = vmatprep.mubr.f32.mxu0 0.0
    %7513 = vmatmul.mubr.f32.gmra.mrb[0].mxu0 %v7447
    %v7514 = vpop.f32.mrb[0].mxu0
    %v7515 = vadd.f32 %v97, %v7514
    %v7516 = vpop.f32.mrb[0].mxu0
    %7517 = vdwg.mxu0
    %v7518 = vtanh.pop %v7515
    %7519 = vmatprep.subr.mxu0 0.0
    %7520 = vmatpush1.msra.mxu0 %v76
    %7521 = vmatprep.subr.mxu0 0.0
    %7522 = vmatpush1.msra.mxu0 %v77
    %7523 = vmatprep.subr.mxu0 0.0
    %7524 = vmatpush1.msra.mxu0 %v78
    %7525 = vmatprep.subr.mxu0 0.0
    %7526 = vmatpush1.msra.mxu0 %v79
    %7527 = vmatprep.subr.mxu0 0.0
    %7528 = vmatpush1.msra.mxu0 %v80
    %7529 = vmatprep.subr.mxu0 0.0
    %7530 = vmatpush1.msra.mxu0 %v81
    %7531 = vmatprep.subr.mxu0 0.0
    %7532 = vmatpush1.msra.mxu0 %v82
    %7533 = vmatprep.subr.mxu0 0.0
    %7534 = vmatpush1.msra.mxu0 %v83
    %7535 = vmatprep.subr.mxu0 0.0
    %7536 = vmatpush1.msra.mxu0 %v84
    %7537 = vmatprep.subr.mxu0 0.0
    %7538 = vmatpush1.msra.mxu0 %v85
    %7539 = vmatprep.subr.mxu0 0.0
    %7540 = vmatpush1.msra.mxu0 %v86
    %7541 = vmatprep.subr.mxu0 0.0
    %7542 = vmatpush1.msra.mxu0 %v87
    %7543 = vmatprep.subr.mxu0 0.0
    %7544 = vmatpush1.msra.mxu0 %v88
    %7545 = vmatprep.subr.mxu0 0.0
    %7546 = vmatpush1.msra.mxu0 %v89
    %7547 = vmatprep.subr.mxu0 0.0
    %7548 = vmatpush1.msra.mxu0 %v90
    %7549 = vmatprep.subr.mxu0 0.0
    %7550 = vmatpush1.msra.mxu0 %v91
    %7551 = vmatprep.subr.mxu0 0.0
    %7552 = vmatpush1.msra.mxu0 0.0
    %7553 = vmatprep.subr.mxu0 0.0
    %7554 = vmatpush1.msra.mxu0 0.0
    %7555 = vmatprep.subr.mxu0 0.0
    %7556 = vmatpush1.msra.mxu0 0.0
    %7557 = vmatprep.subr.mxu0 0.0
    %7558 = vmatpush1.msra.mxu0 0.0
    %7559 = vmatprep.subr.mxu0 0.0
    %7560 = vmatpush1.msra.mxu0 0.0
    %7561 = vmatprep.subr.mxu0 0.0
    %7562 = vmatpush1.msra.mxu0 0.0
    %7563 = vmatprep.subr.mxu0 0.0
    %7564 = vmatpush1.msra.mxu0 0.0
    %7565 = vmatprep.subr.mxu0 0.0
    %7566 = vmatpush1.msra.mxu0 0.0
    %7567 = vmatprep.subr.mxu0 0.0
    %7568 = vmatpush1.msra.mxu0 0.0
    %7569 = vmatprep.subr.mxu0 0.0
    %7570 = vmatpush1.msra.mxu0 0.0
    %7571 = vmatprep.subr.mxu0 0.0
    %7572 = vmatpush1.msra.mxu0 0.0
    %7573 = vmatprep.subr.mxu0 0.0
    %7574 = vmatpush1.msra.mxu0 0.0
    %7575 = vmatprep.subr.mxu0 0.0
    %7576 = vmatpush1.msra.mxu0 0.0
    %7577 = vmatprep.subr.mxu0 0.0
    %7578 = vmatpush1.msra.mxu0 0.0
    %7579 = vmatprep.subr.mxu0 0.0
    %7580 = vmatpush1.msra.mxu0 0.0
    %7581 = vmatprep.subr.mxu0 0.0
    %7582 = vmatpush1.msra.mxu0 0.0
    %7583 = vmatprep.mubr.f32.mxu0 0.0
    %7584 = vmatmul.mubr.f32.gmra.mrb[0].mxu0 %v7518
    %v7585 = vpop.f32.mrb[0].mxu0
    %v7586 = vadd.f32 %v104, %v7585
    %v7587 = vpop.f32.mrb[0].mxu0
    %7588 = vdwg.mxu0
    %v7589 = vadd.f32 %v7157, %v7586
    %v7590 = vadd.f32 %v7300, %v7443
    %v7591 = vmul.f32 %v7590, 2.0
    %v7592 = vadd.f32 %v7589, %v7591
    %v7593 = vmul.f32 %v7592, 0.010416667
    %v7594 = vadd.f32 %v7018, %v7593
    %7595 = vmatprep.subr.mxu0 0.0
    %7596 = vmatpush1.msra.mxu0 %v60
    %7597 = vmatprep.subr.mxu0 0.0
    %7598 = vmatpush1.msra.mxu0 %v61
    %7599 = vmatprep.subr.mxu0 0.0
    %7600 = vmatpush1.msra.mxu0 %v62
    %7601 = vmatprep.subr.mxu0 0.0
    %7602 = vmatpush1.msra.mxu0 %v63
    %7603 = vmatprep.subr.mxu0 0.0
    %7604 = vmatpush1.msra.mxu0 %v64
    %7605 = vmatprep.subr.mxu0 0.0
    %7606 = vmatpush1.msra.mxu0 %v65
    %7607 = vmatprep.subr.mxu0 0.0
    %7608 = vmatpush1.msra.mxu0 %v66
    %7609 = vmatprep.subr.mxu0 0.0
    %7610 = vmatpush1.msra.mxu0 %v67
    %7611 = vmatprep.subr.mxu0 0.0
    %7612 = vmatpush1.msra.mxu0 %v68
    %7613 = vmatprep.subr.mxu0 0.0
    %7614 = vmatpush1.msra.mxu0 %v69
    %7615 = vmatprep.subr.mxu0 0.0
    %7616 = vmatpush1.msra.mxu0 %v70
    %7617 = vmatprep.subr.mxu0 0.0
    %7618 = vmatpush1.msra.mxu0 %v71
    %7619 = vmatprep.subr.mxu0 0.0
    %7620 = vmatpush1.msra.mxu0 %v72
    %7621 = vmatprep.subr.mxu0 0.0
    %7622 = vmatpush1.msra.mxu0 %v73
    %7623 = vmatprep.subr.mxu0 0.0
    %7624 = vmatpush1.msra.mxu0 %v74
    %7625 = vmatprep.subr.mxu0 0.0
    %7626 = vmatpush1.msra.mxu0 %v75
    %7627 = vmatprep.subr.mxu0 0.0
    %7628 = vmatpush1.msra.mxu0 0.0
    %7629 = vmatprep.subr.mxu0 0.0
    %7630 = vmatpush1.msra.mxu0 0.0
    %7631 = vmatprep.subr.mxu0 0.0
    %7632 = vmatpush1.msra.mxu0 0.0
    %7633 = vmatprep.subr.mxu0 0.0
    %7634 = vmatpush1.msra.mxu0 0.0
    %7635 = vmatprep.subr.mxu0 0.0
    %7636 = vmatpush1.msra.mxu0 0.0
    %7637 = vmatprep.subr.mxu0 0.0
    %7638 = vmatpush1.msra.mxu0 0.0
    %7639 = vmatprep.subr.mxu0 0.0
    %7640 = vmatpush1.msra.mxu0 0.0
    %7641 = vmatprep.subr.mxu0 0.0
    %7642 = vmatpush1.msra.mxu0 0.0
    %7643 = vmatprep.subr.mxu0 0.0
    %7644 = vmatpush1.msra.mxu0 0.0
    %7645 = vmatprep.subr.mxu0 0.0
    %7646 = vmatpush1.msra.mxu0 0.0
    %7647 = vmatprep.subr.mxu0 0.0
    %7648 = vmatpush1.msra.mxu0 0.0
    %7649 = vmatprep.subr.mxu0 0.0
    %7650 = vmatpush1.msra.mxu0 0.0
    %7651 = vmatprep.subr.mxu0 0.0
    %7652 = vmatpush1.msra.mxu0 0.0
    %7653 = vmatprep.subr.mxu0 0.0
    %7654 = vmatpush1.msra.mxu0 0.0
    %7655 = vmatprep.subr.mxu0 0.0
    %7656 = vmatpush1.msra.mxu0 0.0
    %7657 = vmatprep.subr.mxu0 0.0
    %7658 = vmatpush1.msra.mxu0 0.0
    %7659 = vmatprep.mubr.f32.mxu0 0.0
    %7660 = vmatmul.mubr.f32.gmra.mrb[0].mxu0 %v7594
    %v7661 = vpop.f32.mrb[0].mxu0
    %v7662 = vadd.f32 %v97, %v7661
    %v7663 = vpop.f32.mrb[0].mxu0
    %7664 = vdwg.mxu0
    %v7665 = vtanh.pop %v7662
    %7666 = vmatprep.subr.mxu0 0.0
    %7667 = vmatpush1.msra.mxu0 %v76
    %7668 = vmatprep.subr.mxu0 0.0
    %7669 = vmatpush1.msra.mxu0 %v77
    %7670 = vmatprep.subr.mxu0 0.0
    %7671 = vmatpush1.msra.mxu0 %v78
    %7672 = vmatprep.subr.mxu0 0.0
    %7673 = vmatpush1.msra.mxu0 %v79
    %7674 = vmatprep.subr.mxu0 0.0
    %7675 = vmatpush1.msra.mxu0 %v80
    %7676 = vmatprep.subr.mxu0 0.0
    %7677 = vmatpush1.msra.mxu0 %v81
    %7678 = vmatprep.subr.mxu0 0.0
    %7679 = vmatpush1.msra.mxu0 %v82
    %7680 = vmatprep.subr.mxu0 0.0
    %7681 = vmatpush1.msra.mxu0 %v83
    %7682 = vmatprep.subr.mxu0 0.0
    %7683 = vmatpush1.msra.mxu0 %v84
    %7684 = vmatprep.subr.mxu0 0.0
    %7685 = vmatpush1.msra.mxu0 %v85
    %7686 = vmatprep.subr.mxu0 0.0
    %7687 = vmatpush1.msra.mxu0 %v86
    %7688 = vmatprep.subr.mxu0 0.0
    %7689 = vmatpush1.msra.mxu0 %v87
    %7690 = vmatprep.subr.mxu0 0.0
    %7691 = vmatpush1.msra.mxu0 %v88
    %7692 = vmatprep.subr.mxu0 0.0
    %7693 = vmatpush1.msra.mxu0 %v89
    %7694 = vmatprep.subr.mxu0 0.0
    %7695 = vmatpush1.msra.mxu0 %v90
    %7696 = vmatprep.subr.mxu0 0.0
    %7697 = vmatpush1.msra.mxu0 %v91
    %7698 = vmatprep.subr.mxu0 0.0
    %7699 = vmatpush1.msra.mxu0 0.0
    %7700 = vmatprep.subr.mxu0 0.0
    %7701 = vmatpush1.msra.mxu0 0.0
    %7702 = vmatprep.subr.mxu0 0.0
    %7703 = vmatpush1.msra.mxu0 0.0
    %7704 = vmatprep.subr.mxu0 0.0
    %7705 = vmatpush1.msra.mxu0 0.0
    %7706 = vmatprep.subr.mxu0 0.0
    %7707 = vmatpush1.msra.mxu0 0.0
    %7708 = vmatprep.subr.mxu0 0.0
    %7709 = vmatpush1.msra.mxu0 0.0
    %7710 = vmatprep.subr.mxu0 0.0
    %7711 = vmatpush1.msra.mxu0 0.0
    %7712 = vmatprep.subr.mxu0 0.0
    %7713 = vmatpush1.msra.mxu0 0.0
    %7714 = vmatprep.subr.mxu0 0.0
    %7715 = vmatpush1.msra.mxu0 0.0
    %7716 = vmatprep.subr.mxu0 0.0
    %7717 = vmatpush1.msra.mxu0 0.0
    %7718 = vmatprep.subr.mxu0 0.0
    %7719 = vmatpush1.msra.mxu0 0.0
    %7720 = vmatprep.subr.mxu0 0.0
    %7721 = vmatpush1.msra.mxu0 0.0
    %7722 = vmatprep.subr.mxu0 0.0
    %7723 = vmatpush1.msra.mxu0 0.0
    %7724 = vmatprep.subr.mxu0 0.0
    %7725 = vmatpush1.msra.mxu0 0.0
    %7726 = vmatprep.subr.mxu0 0.0
    %7727 = vmatpush1.msra.mxu0 0.0
    %7728 = vmatprep.subr.mxu0 0.0
    %7729 = vmatpush1.msra.mxu0 0.0
    %7730 = vmatprep.mubr.f32.mxu0 0.0
    %7731 = vmatmul.mubr.f32.gmra.mrb[0].mxu0 %v7665
    %v7732 = vpop.f32.mrb[0].mxu0
    %v7733 = vadd.f32 %v104, %v7732
    %v7734 = vpop.f32.mrb[0].mxu0
    %7735 = vdwg.mxu0
    %v7736 = vmul.f32 %v7733, 0.03125
    %v7737 = vadd.f32 %v7594, %v7736
    %7738 = vmatprep.subr.mxu0 0.0
    %7739 = vmatpush1.msra.mxu0 %v60
    %7740 = vmatprep.subr.mxu0 0.0
    %7741 = vmatpush1.msra.mxu0 %v61
    %7742 = vmatprep.subr.mxu0 0.0
    %7743 = vmatpush1.msra.mxu0 %v62
    %7744 = vmatprep.subr.mxu0 0.0
    %7745 = vmatpush1.msra.mxu0 %v63
    %7746 = vmatprep.subr.mxu0 0.0
    %7747 = vmatpush1.msra.mxu0 %v64
    %7748 = vmatprep.subr.mxu0 0.0
    %7749 = vmatpush1.msra.mxu0 %v65
    %7750 = vmatprep.subr.mxu0 0.0
    %7751 = vmatpush1.msra.mxu0 %v66
    %7752 = vmatprep.subr.mxu0 0.0
    %7753 = vmatpush1.msra.mxu0 %v67
    %7754 = vmatprep.subr.mxu0 0.0
    %7755 = vmatpush1.msra.mxu0 %v68
    %7756 = vmatprep.subr.mxu0 0.0
    %7757 = vmatpush1.msra.mxu0 %v69
    %7758 = vmatprep.subr.mxu0 0.0
    %7759 = vmatpush1.msra.mxu0 %v70
    %7760 = vmatprep.subr.mxu0 0.0
    %7761 = vmatpush1.msra.mxu0 %v71
    %7762 = vmatprep.subr.mxu0 0.0
    %7763 = vmatpush1.msra.mxu0 %v72
    %7764 = vmatprep.subr.mxu0 0.0
    %7765 = vmatpush1.msra.mxu0 %v73
    %7766 = vmatprep.subr.mxu0 0.0
    %7767 = vmatpush1.msra.mxu0 %v74
    %7768 = vmatprep.subr.mxu0 0.0
    %7769 = vmatpush1.msra.mxu0 %v75
    %7770 = vmatprep.subr.mxu0 0.0
    %7771 = vmatpush1.msra.mxu0 0.0
    %7772 = vmatprep.subr.mxu0 0.0
    %7773 = vmatpush1.msra.mxu0 0.0
    %7774 = vmatprep.subr.mxu0 0.0
    %7775 = vmatpush1.msra.mxu0 0.0
    %7776 = vmatprep.subr.mxu0 0.0
    %7777 = vmatpush1.msra.mxu0 0.0
    %7778 = vmatprep.subr.mxu0 0.0
    %7779 = vmatpush1.msra.mxu0 0.0
    %7780 = vmatprep.subr.mxu0 0.0
    %7781 = vmatpush1.msra.mxu0 0.0
    %7782 = vmatprep.subr.mxu0 0.0
    %7783 = vmatpush1.msra.mxu0 0.0
    %7784 = vmatprep.subr.mxu0 0.0
    %7785 = vmatpush1.msra.mxu0 0.0
    %7786 = vmatprep.subr.mxu0 0.0
    %7787 = vmatpush1.msra.mxu0 0.0
    %7788 = vmatprep.subr.mxu0 0.0
    %7789 = vmatpush1.msra.mxu0 0.0
    %7790 = vmatprep.subr.mxu0 0.0
    %7791 = vmatpush1.msra.mxu0 0.0
    %7792 = vmatprep.subr.mxu0 0.0
    %7793 = vmatpush1.msra.mxu0 0.0
    %7794 = vmatprep.subr.mxu0 0.0
    %7795 = vmatpush1.msra.mxu0 0.0
    %7796 = vmatprep.subr.mxu0 0.0
    %7797 = vmatpush1.msra.mxu0 0.0
    %7798 = vmatprep.subr.mxu0 0.0
    %7799 = vmatpush1.msra.mxu0 0.0
    %7800 = vmatprep.subr.mxu0 0.0
    %7801 = vmatpush1.msra.mxu0 0.0
    %7802 = vmatprep.mubr.f32.mxu0 0.0
    %7803 = vmatmul.mubr.f32.gmra.mrb[0].mxu0 %v7737
    %v7804 = vpop.f32.mrb[0].mxu0
    %v7805 = vadd.f32 %v97, %v7804
    %v7806 = vpop.f32.mrb[0].mxu0
    %7807 = vdwg.mxu0
    %v7808 = vtanh.pop %v7805
    %7809 = vmatprep.subr.mxu0 0.0
    %7810 = vmatpush1.msra.mxu0 %v76
    %7811 = vmatprep.subr.mxu0 0.0
    %7812 = vmatpush1.msra.mxu0 %v77
    %7813 = vmatprep.subr.mxu0 0.0
    %7814 = vmatpush1.msra.mxu0 %v78
    %7815 = vmatprep.subr.mxu0 0.0
    %7816 = vmatpush1.msra.mxu0 %v79
    %7817 = vmatprep.subr.mxu0 0.0
    %7818 = vmatpush1.msra.mxu0 %v80
    %7819 = vmatprep.subr.mxu0 0.0
    %7820 = vmatpush1.msra.mxu0 %v81
    %7821 = vmatprep.subr.mxu0 0.0
    %7822 = vmatpush1.msra.mxu0 %v82
    %7823 = vmatprep.subr.mxu0 0.0
    %7824 = vmatpush1.msra.mxu0 %v83
    %7825 = vmatprep.subr.mxu0 0.0
    %7826 = vmatpush1.msra.mxu0 %v84
    %7827 = vmatprep.subr.mxu0 0.0
    %7828 = vmatpush1.msra.mxu0 %v85
    %7829 = vmatprep.subr.mxu0 0.0
    %7830 = vmatpush1.msra.mxu0 %v86
    %7831 = vmatprep.subr.mxu0 0.0
    %7832 = vmatpush1.msra.mxu0 %v87
    %7833 = vmatprep.subr.mxu0 0.0
    %7834 = vmatpush1.msra.mxu0 %v88
    %7835 = vmatprep.subr.mxu0 0.0
    %7836 = vmatpush1.msra.mxu0 %v89
    %7837 = vmatprep.subr.mxu0 0.0
    %7838 = vmatpush1.msra.mxu0 %v90
    %7839 = vmatprep.subr.mxu0 0.0
    %7840 = vmatpush1.msra.mxu0 %v91
    %7841 = vmatprep.subr.mxu0 0.0
    %7842 = vmatpush1.msra.mxu0 0.0
    %7843 = vmatprep.subr.mxu0 0.0
    %7844 = vmatpush1.msra.mxu0 0.0
    %7845 = vmatprep.subr.mxu0 0.0
    %7846 = vmatpush1.msra.mxu0 0.0
    %7847 = vmatprep.subr.mxu0 0.0
    %7848 = vmatpush1.msra.mxu0 0.0
    %7849 = vmatprep.subr.mxu0 0.0
    %7850 = vmatpush1.msra.mxu0 0.0
    %7851 = vmatprep.subr.mxu0 0.0
    %7852 = vmatpush1.msra.mxu0 0.0
    %7853 = vmatprep.subr.mxu0 0.0
    %7854 = vmatpush1.msra.mxu0 0.0
    %7855 = vmatprep.subr.mxu0 0.0
    %7856 = vmatpush1.msra.mxu0 0.0
    %7857 = vmatprep.subr.mxu0 0.0
    %7858 = vmatpush1.msra.mxu0 0.0
    %7859 = vmatprep.subr.mxu0 0.0
    %7860 = vmatpush1.msra.mxu0 0.0
    %7861 = vmatprep.subr.mxu0 0.0
    %7862 = vmatpush1.msra.mxu0 0.0
    %7863 = vmatprep.subr.mxu0 0.0
    %7864 = vmatpush1.msra.mxu0 0.0
    %7865 = vmatprep.subr.mxu0 0.0
    %7866 = vmatpush1.msra.mxu0 0.0
    %7867 = vmatprep.subr.mxu0 0.0
    %7868 = vmatpush1.msra.mxu0 0.0
    %7869 = vmatprep.subr.mxu0 0.0
    %7870 = vmatpush1.msra.mxu0 0.0
    %7871 = vmatprep.subr.mxu0 0.0
    %7872 = vmatpush1.msra.mxu0 0.0
    %7873 = vmatprep.mubr.f32.mxu0 0.0
    %7874 = vmatmul.mubr.f32.gmra.mrb[0].mxu0 %v7808
    %v7875 = vpop.f32.mrb[0].mxu0
    %v7876 = vadd.f32 %v104, %v7875
    %v7877 = vpop.f32.mrb[0].mxu0
    %7878 = vdwg.mxu0
    %v7879 = vmul.f32 %v7876, 0.03125
    %v7880 = vadd.f32 %v7594, %v7879
    %7881 = vmatprep.subr.mxu0 0.0
    %7882 = vmatpush1.msra.mxu0 %v60
    %7883 = vmatprep.subr.mxu0 0.0
    %7884 = vmatpush1.msra.mxu0 %v61
    %7885 = vmatprep.subr.mxu0 0.0
    %7886 = vmatpush1.msra.mxu0 %v62
    %7887 = vmatprep.subr.mxu0 0.0
    %7888 = vmatpush1.msra.mxu0 %v63
    %7889 = vmatprep.subr.mxu0 0.0
    %7890 = vmatpush1.msra.mxu0 %v64
    %7891 = vmatprep.subr.mxu0 0.0
    %7892 = vmatpush1.msra.mxu0 %v65
    %7893 = vmatprep.subr.mxu0 0.0
    %7894 = vmatpush1.msra.mxu0 %v66
    %7895 = vmatprep.subr.mxu0 0.0
    %7896 = vmatpush1.msra.mxu0 %v67
    %7897 = vmatprep.subr.mxu0 0.0
    %7898 = vmatpush1.msra.mxu0 %v68
    %7899 = vmatprep.subr.mxu0 0.0
    %7900 = vmatpush1.msra.mxu0 %v69
    %7901 = vmatprep.subr.mxu0 0.0
    %7902 = vmatpush1.msra.mxu0 %v70
    %7903 = vmatprep.subr.mxu0 0.0
    %7904 = vmatpush1.msra.mxu0 %v71
    %7905 = vmatprep.subr.mxu0 0.0
    %7906 = vmatpush1.msra.mxu0 %v72
    %7907 = vmatprep.subr.mxu0 0.0
    %7908 = vmatpush1.msra.mxu0 %v73
    %7909 = vmatprep.subr.mxu0 0.0
    %7910 = vmatpush1.msra.mxu0 %v74
    %7911 = vmatprep.subr.mxu0 0.0
    %7912 = vmatpush1.msra.mxu0 %v75
    %7913 = vmatprep.subr.mxu0 0.0
    %7914 = vmatpush1.msra.mxu0 0.0
    %7915 = vmatprep.subr.mxu0 0.0
    %7916 = vmatpush1.msra.mxu0 0.0
    %7917 = vmatprep.subr.mxu0 0.0
    %7918 = vmatpush1.msra.mxu0 0.0
    %7919 = vmatprep.subr.mxu0 0.0
    %7920 = vmatpush1.msra.mxu0 0.0
    %7921 = vmatprep.subr.mxu0 0.0
    %7922 = vmatpush1.msra.mxu0 0.0
    %7923 = vmatprep.subr.mxu0 0.0
    %7924 = vmatpush1.msra.mxu0 0.0
    %7925 = vmatprep.subr.mxu0 0.0
    %7926 = vmatpush1.msra.mxu0 0.0
    %7927 = vmatprep.subr.mxu0 0.0
    %7928 = vmatpush1.msra.mxu0 0.0
    %7929 = vmatprep.subr.mxu0 0.0
    %7930 = vmatpush1.msra.mxu0 0.0
    %7931 = vmatprep.subr.mxu0 0.0
    %7932 = vmatpush1.msra.mxu0 0.0
    %7933 = vmatprep.subr.mxu0 0.0
    %7934 = vmatpush1.msra.mxu0 0.0
    %7935 = vmatprep.subr.mxu0 0.0
    %7936 = vmatpush1.msra.mxu0 0.0
    %7937 = vmatprep.subr.mxu0 0.0
    %7938 = vmatpush1.msra.mxu0 0.0
    %7939 = vmatprep.subr.mxu0 0.0
    %7940 = vmatpush1.msra.mxu0 0.0
    %7941 = vmatprep.subr.mxu0 0.0
    %7942 = vmatpush1.msra.mxu0 0.0
    %7943 = vmatprep.subr.mxu0 0.0
    %7944 = vmatpush1.msra.mxu0 0.0
    %7945 = vmatprep.mubr.f32.mxu0 0.0
    %7946 = vmatmul.mubr.f32.gmra.mrb[0].mxu0 %v7880
    %v7947 = vpop.f32.mrb[0].mxu0
    %v7948 = vadd.f32 %v97, %v7947
    %v7949 = vpop.f32.mrb[0].mxu0
    %7950 = vdwg.mxu0
    %v7951 = vtanh.pop %v7948
    %7952 = vmatprep.subr.mxu0 0.0
    %7953 = vmatpush1.msra.mxu0 %v76
    %7954 = vmatprep.subr.mxu0 0.0
    %7955 = vmatpush1.msra.mxu0 %v77
    %7956 = vmatprep.subr.mxu0 0.0
    %7957 = vmatpush1.msra.mxu0 %v78
    %7958 = vmatprep.subr.mxu0 0.0
    %7959 = vmatpush1.msra.mxu0 %v79
    %7960 = vmatprep.subr.mxu0 0.0
    %7961 = vmatpush1.msra.mxu0 %v80
    %7962 = vmatprep.subr.mxu0 0.0
    %7963 = vmatpush1.msra.mxu0 %v81
    %7964 = vmatprep.subr.mxu0 0.0
    %7965 = vmatpush1.msra.mxu0 %v82
    %7966 = vmatprep.subr.mxu0 0.0
    %7967 = vmatpush1.msra.mxu0 %v83
    %7968 = vmatprep.subr.mxu0 0.0
    %7969 = vmatpush1.msra.mxu0 %v84
    %7970 = vmatprep.subr.mxu0 0.0
    %7971 = vmatpush1.msra.mxu0 %v85
    %7972 = vmatprep.subr.mxu0 0.0
    %7973 = vmatpush1.msra.mxu0 %v86
    %7974 = vmatprep.subr.mxu0 0.0
    %7975 = vmatpush1.msra.mxu0 %v87
    %7976 = vmatprep.subr.mxu0 0.0
    %7977 = vmatpush1.msra.mxu0 %v88
    %7978 = vmatprep.subr.mxu0 0.0
    %7979 = vmatpush1.msra.mxu0 %v89
    %7980 = vmatprep.subr.mxu0 0.0
    %7981 = vmatpush1.msra.mxu0 %v90
    %7982 = vmatprep.subr.mxu0 0.0
    %7983 = vmatpush1.msra.mxu0 %v91
    %7984 = vmatprep.subr.mxu0 0.0
    %7985 = vmatpush1.msra.mxu0 0.0
    %7986 = vmatprep.subr.mxu0 0.0
    %7987 = vmatpush1.msra.mxu0 0.0
    %7988 = vmatprep.subr.mxu0 0.0
    %7989 = vmatpush1.msra.mxu0 0.0
    %7990 = vmatprep.subr.mxu0 0.0
    %7991 = vmatpush1.msra.mxu0 0.0
    %7992 = vmatprep.subr.mxu0 0.0
    %7993 = vmatpush1.msra.mxu0 0.0
    %7994 = vmatprep.subr.mxu0 0.0
    %7995 = vmatpush1.msra.mxu0 0.0
    %7996 = vmatprep.subr.mxu0 0.0
    %7997 = vmatpush1.msra.mxu0 0.0
    %7998 = vmatprep.subr.mxu0 0.0
    %7999 = vmatpush1.msra.mxu0 0.0
    %8000 = vmatprep.subr.mxu0 0.0
    %8001 = vmatpush1.msra.mxu0 0.0
    %8002 = vmatprep.subr.mxu0 0.0
    %8003 = vmatpush1.msra.mxu0 0.0
    %8004 = vmatprep.subr.mxu0 0.0
    %8005 = vmatpush1.msra.mxu0 0.0
    %8006 = vmatprep.subr.mxu0 0.0
    %8007 = vmatpush1.msra.mxu0 0.0
    %8008 = vmatprep.subr.mxu0 0.0
    %8009 = vmatpush1.msra.mxu0 0.0
    %8010 = vmatprep.subr.mxu0 0.0
    %8011 = vmatpush1.msra.mxu0 0.0
    %8012 = vmatprep.subr.mxu0 0.0
    %8013 = vmatpush1.msra.mxu0 0.0
    %8014 = vmatprep.subr.mxu0 0.0
    %8015 = vmatpush1.msra.mxu0 0.0
    %8016 = vmatprep.mubr.f32.mxu0 0.0
    %8017 = vmatmul.mubr.f32.gmra.mrb[0].mxu0 %v7951
    %v8018 = vpop.f32.mrb[0].mxu0
    %v8019 = vadd.f32 %v104, %v8018
    %v8020 = vpop.f32.mrb[0].mxu0
    %8021 = vdwg.mxu0
    %v8022 = vmul.f32 %v8019, 0.0625
    %v8023 = vadd.f32 %v7594, %v8022
    %8024 = vmatprep.subr.mxu0 0.0
    %8025 = vmatpush1.msra.mxu0 %v60
    %8026 = vmatprep.subr.mxu0 0.0
    %8027 = vmatpush1.msra.mxu0 %v61
    %8028 = vmatprep.subr.mxu0 0.0
    %8029 = vmatpush1.msra.mxu0 %v62
    %8030 = vmatprep.subr.mxu0 0.0
    %8031 = vmatpush1.msra.mxu0 %v63
    %8032 = vmatprep.subr.mxu0 0.0
    %8033 = vmatpush1.msra.mxu0 %v64
    %8034 = vmatprep.subr.mxu0 0.0
    %8035 = vmatpush1.msra.mxu0 %v65
    %8036 = vmatprep.subr.mxu0 0.0
    %8037 = vmatpush1.msra.mxu0 %v66
    %8038 = vmatprep.subr.mxu0 0.0
    %8039 = vmatpush1.msra.mxu0 %v67
    %8040 = vmatprep.subr.mxu0 0.0
    %8041 = vmatpush1.msra.mxu0 %v68
    %8042 = vmatprep.subr.mxu0 0.0
    %8043 = vmatpush1.msra.mxu0 %v69
    %8044 = vmatprep.subr.mxu0 0.0
    %8045 = vmatpush1.msra.mxu0 %v70
    %8046 = vmatprep.subr.mxu0 0.0
    %8047 = vmatpush1.msra.mxu0 %v71
    %8048 = vmatprep.subr.mxu0 0.0
    %8049 = vmatpush1.msra.mxu0 %v72
    %8050 = vmatprep.subr.mxu0 0.0
    %8051 = vmatpush1.msra.mxu0 %v73
    %8052 = vmatprep.subr.mxu0 0.0
    %8053 = vmatpush1.msra.mxu0 %v74
    %8054 = vmatprep.subr.mxu0 0.0
    %8055 = vmatpush1.msra.mxu0 %v75
    %8056 = vmatprep.subr.mxu0 0.0
    %8057 = vmatpush1.msra.mxu0 0.0
    %8058 = vmatprep.subr.mxu0 0.0
    %8059 = vmatpush1.msra.mxu0 0.0
    %8060 = vmatprep.subr.mxu0 0.0
    %8061 = vmatpush1.msra.mxu0 0.0
    %8062 = vmatprep.subr.mxu0 0.0
    %8063 = vmatpush1.msra.mxu0 0.0
    %8064 = vmatprep.subr.mxu0 0.0
    %8065 = vmatpush1.msra.mxu0 0.0
    %8066 = vmatprep.subr.mxu0 0.0
    %8067 = vmatpush1.msra.mxu0 0.0
    %8068 = vmatprep.subr.mxu0 0.0
    %8069 = vmatpush1.msra.mxu0 0.0
    %8070 = vmatprep.subr.mxu0 0.0
    %8071 = vmatpush1.msra.mxu0 0.0
    %8072 = vmatprep.subr.mxu0 0.0
    %8073 = vmatpush1.msra.mxu0 0.0
    %8074 = vmatprep.subr.mxu0 0.0
    %8075 = vmatpush1.msra.mxu0 0.0
    %8076 = vmatprep.subr.mxu0 0.0
    %8077 = vmatpush1.msra.mxu0 0.0
    %8078 = vmatprep.subr.mxu0 0.0
    %8079 = vmatpush1.msra.mxu0 0.0
    %8080 = vmatprep.subr.mxu0 0.0
    %8081 = vmatpush1.msra.mxu0 0.0
    %8082 = vmatprep.subr.mxu0 0.0
    %8083 = vmatpush1.msra.mxu0 0.0
    %8084 = vmatprep.subr.mxu0 0.0
    %8085 = vmatpush1.msra.mxu0 0.0
    %8086 = vmatprep.subr.mxu0 0.0
    %8087 = vmatpush1.msra.mxu0 0.0
    %8088 = vmatprep.mubr.f32.mxu0 0.0
    %8089 = vmatmul.mubr.f32.gmra.mrb[0].mxu0 %v8023
    %v8090 = vpop.f32.mrb[0].mxu0
    %v8091 = vadd.f32 %v97, %v8090
    %v8092 = vpop.f32.mrb[0].mxu0
    %8093 = vdwg.mxu0
    %v8094 = vtanh.pop %v8091
    %8095 = vmatprep.subr.mxu0 0.0
    %8096 = vmatpush1.msra.mxu0 %v76
    %8097 = vmatprep.subr.mxu0 0.0
    %8098 = vmatpush1.msra.mxu0 %v77
    %8099 = vmatprep.subr.mxu0 0.0
    %8100 = vmatpush1.msra.mxu0 %v78
    %8101 = vmatprep.subr.mxu0 0.0
    %8102 = vmatpush1.msra.mxu0 %v79
    %8103 = vmatprep.subr.mxu0 0.0
    %8104 = vmatpush1.msra.mxu0 %v80
    %8105 = vmatprep.subr.mxu0 0.0
    %8106 = vmatpush1.msra.mxu0 %v81
    %8107 = vmatprep.subr.mxu0 0.0
    %8108 = vmatpush1.msra.mxu0 %v82
    %8109 = vmatprep.subr.mxu0 0.0
    %8110 = vmatpush1.msra.mxu0 %v83
    %8111 = vmatprep.subr.mxu0 0.0
    %8112 = vmatpush1.msra.mxu0 %v84
    %8113 = vmatprep.subr.mxu0 0.0
    %8114 = vmatpush1.msra.mxu0 %v85
    %8115 = vmatprep.subr.mxu0 0.0
    %8116 = vmatpush1.msra.mxu0 %v86
    %8117 = vmatprep.subr.mxu0 0.0
    %8118 = vmatpush1.msra.mxu0 %v87
    %8119 = vmatprep.subr.mxu0 0.0
    %8120 = vmatpush1.msra.mxu0 %v88
    %8121 = vmatprep.subr.mxu0 0.0
    %8122 = vmatpush1.msra.mxu0 %v89
    %8123 = vmatprep.subr.mxu0 0.0
    %8124 = vmatpush1.msra.mxu0 %v90
    %8125 = vmatprep.subr.mxu0 0.0
    %8126 = vmatpush1.msra.mxu0 %v91
    %8127 = vmatprep.subr.mxu0 0.0
    %8128 = vmatpush1.msra.mxu0 0.0
    %8129 = vmatprep.subr.mxu0 0.0
    %8130 = vmatpush1.msra.mxu0 0.0
    %8131 = vmatprep.subr.mxu0 0.0
    %8132 = vmatpush1.msra.mxu0 0.0
    %8133 = vmatprep.subr.mxu0 0.0
    %8134 = vmatpush1.msra.mxu0 0.0
    %8135 = vmatprep.subr.mxu0 0.0
    %8136 = vmatpush1.msra.mxu0 0.0
    %8137 = vmatprep.subr.mxu0 0.0
    %8138 = vmatpush1.msra.mxu0 0.0
    %8139 = vmatprep.subr.mxu0 0.0
    %8140 = vmatpush1.msra.mxu0 0.0
    %8141 = vmatprep.subr.mxu0 0.0
    %8142 = vmatpush1.msra.mxu0 0.0
    %8143 = vmatprep.subr.mxu0 0.0
    %8144 = vmatpush1.msra.mxu0 0.0
    %8145 = vmatprep.subr.mxu0 0.0
    %8146 = vmatpush1.msra.mxu0 0.0
    %8147 = vmatprep.subr.mxu0 0.0
    %8148 = vmatpush1.msra.mxu0 0.0
    %8149 = vmatprep.subr.mxu0 0.0
    %8150 = vmatpush1.msra.mxu0 0.0
    %8151 = vmatprep.subr.mxu0 0.0
    %8152 = vmatpush1.msra.mxu0 0.0
    %8153 = vmatprep.subr.mxu0 0.0
    %8154 = vmatpush1.msra.mxu0 0.0
    %8155 = vmatprep.subr.mxu0 0.0
    %8156 = vmatpush1.msra.mxu0 0.0
    %8157 = vmatprep.subr.mxu0 0.0
    %8158 = vmatpush1.msra.mxu0 0.0
    %8159 = vmatprep.mubr.f32.mxu0 0.0
    %8160 = vmatmul.mubr.f32.gmra.mrb[0].mxu0 %v8094
    %v8161 = vpop.f32.mrb[0].mxu0
    %v8162 = vadd.f32 %v104, %v8161
    %v8163 = vpop.f32.mrb[0].mxu0
    %8164 = vdwg.mxu0
    %v8165 = vadd.f32 %v7733, %v8162
    %v8166 = vadd.f32 %v7876, %v8019
    %v8167 = vmul.f32 %v8166, 2.0
    %v8168 = vadd.f32 %v8165, %v8167
    %v8169 = vmul.f32 %v8168, 0.010416667
    %v8170 = vadd.f32 %v7594, %v8169
    %8171 = vmatprep.subr.mxu0 0.0
    %8172 = vmatpush1.msra.mxu0 %v60
    %8173 = vmatprep.subr.mxu0 0.0
    %8174 = vmatpush1.msra.mxu0 %v61
    %8175 = vmatprep.subr.mxu0 0.0
    %8176 = vmatpush1.msra.mxu0 %v62
    %8177 = vmatprep.subr.mxu0 0.0
    %8178 = vmatpush1.msra.mxu0 %v63
    %8179 = vmatprep.subr.mxu0 0.0
    %8180 = vmatpush1.msra.mxu0 %v64
    %8181 = vmatprep.subr.mxu0 0.0
    %8182 = vmatpush1.msra.mxu0 %v65
    %8183 = vmatprep.subr.mxu0 0.0
    %8184 = vmatpush1.msra.mxu0 %v66
    %8185 = vmatprep.subr.mxu0 0.0
    %8186 = vmatpush1.msra.mxu0 %v67
    %8187 = vmatprep.subr.mxu0 0.0
    %8188 = vmatpush1.msra.mxu0 %v68
    %8189 = vmatprep.subr.mxu0 0.0
    %8190 = vmatpush1.msra.mxu0 %v69
    %8191 = vmatprep.subr.mxu0 0.0
    %8192 = vmatpush1.msra.mxu0 %v70
    %8193 = vmatprep.subr.mxu0 0.0
    %8194 = vmatpush1.msra.mxu0 %v71
    %8195 = vmatprep.subr.mxu0 0.0
    %8196 = vmatpush1.msra.mxu0 %v72
    %8197 = vmatprep.subr.mxu0 0.0
    %8198 = vmatpush1.msra.mxu0 %v73
    %8199 = vmatprep.subr.mxu0 0.0
    %8200 = vmatpush1.msra.mxu0 %v74
    %8201 = vmatprep.subr.mxu0 0.0
    %8202 = vmatpush1.msra.mxu0 %v75
    %8203 = vmatprep.subr.mxu0 0.0
    %8204 = vmatpush1.msra.mxu0 0.0
    %8205 = vmatprep.subr.mxu0 0.0
    %8206 = vmatpush1.msra.mxu0 0.0
    %8207 = vmatprep.subr.mxu0 0.0
    %8208 = vmatpush1.msra.mxu0 0.0
    %8209 = vmatprep.subr.mxu0 0.0
    %8210 = vmatpush1.msra.mxu0 0.0
    %8211 = vmatprep.subr.mxu0 0.0
    %8212 = vmatpush1.msra.mxu0 0.0
    %8213 = vmatprep.subr.mxu0 0.0
    %8214 = vmatpush1.msra.mxu0 0.0
    %8215 = vmatprep.subr.mxu0 0.0
    %8216 = vmatpush1.msra.mxu0 0.0
    %8217 = vmatprep.subr.mxu0 0.0
    %8218 = vmatpush1.msra.mxu0 0.0
    %8219 = vmatprep.subr.mxu0 0.0
    %8220 = vmatpush1.msra.mxu0 0.0
    %8221 = vmatprep.subr.mxu0 0.0
    %8222 = vmatpush1.msra.mxu0 0.0
    %8223 = vmatprep.subr.mxu0 0.0
    %8224 = vmatpush1.msra.mxu0 0.0
    %8225 = vmatprep.subr.mxu0 0.0
    %8226 = vmatpush1.msra.mxu0 0.0
    %8227 = vmatprep.subr.mxu0 0.0
    %8228 = vmatpush1.msra.mxu0 0.0
    %8229 = vmatprep.subr.mxu0 0.0
    %8230 = vmatpush1.msra.mxu0 0.0
    %8231 = vmatprep.subr.mxu0 0.0
    %8232 = vmatpush1.msra.mxu0 0.0
    %8233 = vmatprep.subr.mxu0 0.0
    %8234 = vmatpush1.msra.mxu0 0.0
    %8235 = vmatprep.mubr.f32.mxu0 0.0
    %8236 = vmatmul.mubr.f32.gmra.mrb[0].mxu0 %v8170
    %v8237 = vpop.f32.mrb[0].mxu0
    %v8238 = vadd.f32 %v97, %v8237
    %v8239 = vpop.f32.mrb[0].mxu0
    %8240 = vdwg.mxu0
    %v8241 = vtanh.pop %v8238
    %8242 = vmatprep.subr.mxu0 0.0
    %8243 = vmatpush1.msra.mxu0 %v76
    %8244 = vmatprep.subr.mxu0 0.0
    %8245 = vmatpush1.msra.mxu0 %v77
    %8246 = vmatprep.subr.mxu0 0.0
    %8247 = vmatpush1.msra.mxu0 %v78
    %8248 = vmatprep.subr.mxu0 0.0
    %8249 = vmatpush1.msra.mxu0 %v79
    %8250 = vmatprep.subr.mxu0 0.0
    %8251 = vmatpush1.msra.mxu0 %v80
    %8252 = vmatprep.subr.mxu0 0.0
    %8253 = vmatpush1.msra.mxu0 %v81
    %8254 = vmatprep.subr.mxu0 0.0
    %8255 = vmatpush1.msra.mxu0 %v82
    %8256 = vmatprep.subr.mxu0 0.0
    %8257 = vmatpush1.msra.mxu0 %v83
    %8258 = vmatprep.subr.mxu0 0.0
    %8259 = vmatpush1.msra.mxu0 %v84
    %8260 = vmatprep.subr.mxu0 0.0
    %8261 = vmatpush1.msra.mxu0 %v85
    %8262 = vmatprep.subr.mxu0 0.0
    %8263 = vmatpush1.msra.mxu0 %v86
    %8264 = vmatprep.subr.mxu0 0.0
    %8265 = vmatpush1.msra.mxu0 %v87
    %8266 = vmatprep.subr.mxu0 0.0
    %8267 = vmatpush1.msra.mxu0 %v88
    %8268 = vmatprep.subr.mxu0 0.0
    %8269 = vmatpush1.msra.mxu0 %v89
    %8270 = vmatprep.subr.mxu0 0.0
    %8271 = vmatpush1.msra.mxu0 %v90
    %8272 = vmatprep.subr.mxu0 0.0
    %8273 = vmatpush1.msra.mxu0 %v91
    %8274 = vmatprep.subr.mxu0 0.0
    %8275 = vmatpush1.msra.mxu0 0.0
    %8276 = vmatprep.subr.mxu0 0.0
    %8277 = vmatpush1.msra.mxu0 0.0
    %8278 = vmatprep.subr.mxu0 0.0
    %8279 = vmatpush1.msra.mxu0 0.0
    %8280 = vmatprep.subr.mxu0 0.0
    %8281 = vmatpush1.msra.mxu0 0.0
    %8282 = vmatprep.subr.mxu0 0.0
    %8283 = vmatpush1.msra.mxu0 0.0
    %8284 = vmatprep.subr.mxu0 0.0
    %8285 = vmatpush1.msra.mxu0 0.0
    %8286 = vmatprep.subr.mxu0 0.0
    %8287 = vmatpush1.msra.mxu0 0.0
    %8288 = vmatprep.subr.mxu0 0.0
    %8289 = vmatpush1.msra.mxu0 0.0
    %8290 = vmatprep.subr.mxu0 0.0
    %8291 = vmatpush1.msra.mxu0 0.0
    %8292 = vmatprep.subr.mxu0 0.0
    %8293 = vmatpush1.msra.mxu0 0.0
    %8294 = vmatprep.subr.mxu0 0.0
    %8295 = vmatpush1.msra.mxu0 0.0
    %8296 = vmatprep.subr.mxu0 0.0
    %8297 = vmatpush1.msra.mxu0 0.0
    %8298 = vmatprep.subr.mxu0 0.0
    %8299 = vmatpush1.msra.mxu0 0.0
    %8300 = vmatprep.subr.mxu0 0.0
    %8301 = vmatpush1.msra.mxu0 0.0
    %8302 = vmatprep.subr.mxu0 0.0
    %8303 = vmatpush1.msra.mxu0 0.0
    %8304 = vmatprep.subr.mxu0 0.0
    %8305 = vmatpush1.msra.mxu0 0.0
    %8306 = vmatprep.mubr.f32.mxu0 0.0
    %8307 = vmatmul.mubr.f32.gmra.mrb[0].mxu0 %v8241
    %v8308 = vpop.f32.mrb[0].mxu0
    %v8309 = vadd.f32 %v104, %v8308
    %v8310 = vpop.f32.mrb[0].mxu0
    %8311 = vdwg.mxu0
    %v8312 = vmul.f32 %v8309, 0.03125
    %v8313 = vadd.f32 %v8170, %v8312
    %8314 = vmatprep.subr.mxu0 0.0
    %8315 = vmatpush1.msra.mxu0 %v60
    %8316 = vmatprep.subr.mxu0 0.0
    %8317 = vmatpush1.msra.mxu0 %v61
    %8318 = vmatprep.subr.mxu0 0.0
    %8319 = vmatpush1.msra.mxu0 %v62
    %8320 = vmatprep.subr.mxu0 0.0
    %8321 = vmatpush1.msra.mxu0 %v63
    %8322 = vmatprep.subr.mxu0 0.0
    %8323 = vmatpush1.msra.mxu0 %v64
    %8324 = vmatprep.subr.mxu0 0.0
    %8325 = vmatpush1.msra.mxu0 %v65
    %8326 = vmatprep.subr.mxu0 0.0
    %8327 = vmatpush1.msra.mxu0 %v66
    %8328 = vmatprep.subr.mxu0 0.0
    %8329 = vmatpush1.msra.mxu0 %v67
    %8330 = vmatprep.subr.mxu0 0.0
    %8331 = vmatpush1.msra.mxu0 %v68
    %8332 = vmatprep.subr.mxu0 0.0
    %8333 = vmatpush1.msra.mxu0 %v69
    %8334 = vmatprep.subr.mxu0 0.0
    %8335 = vmatpush1.msra.mxu0 %v70
    %8336 = vmatprep.subr.mxu0 0.0
    %8337 = vmatpush1.msra.mxu0 %v71
    %8338 = vmatprep.subr.mxu0 0.0
    %8339 = vmatpush1.msra.mxu0 %v72
    %8340 = vmatprep.subr.mxu0 0.0
    %8341 = vmatpush1.msra.mxu0 %v73
    %8342 = vmatprep.subr.mxu0 0.0
    %8343 = vmatpush1.msra.mxu0 %v74
    %8344 = vmatprep.subr.mxu0 0.0
    %8345 = vmatpush1.msra.mxu0 %v75
    %8346 = vmatprep.subr.mxu0 0.0
    %8347 = vmatpush1.msra.mxu0 0.0
    %8348 = vmatprep.subr.mxu0 0.0
    %8349 = vmatpush1.msra.mxu0 0.0
    %8350 = vmatprep.subr.mxu0 0.0
    %8351 = vmatpush1.msra.mxu0 0.0
    %8352 = vmatprep.subr.mxu0 0.0
    %8353 = vmatpush1.msra.mxu0 0.0
    %8354 = vmatprep.subr.mxu0 0.0
    %8355 = vmatpush1.msra.mxu0 0.0
    %8356 = vmatprep.subr.mxu0 0.0
    %8357 = vmatpush1.msra.mxu0 0.0
    %8358 = vmatprep.subr.mxu0 0.0
    %8359 = vmatpush1.msra.mxu0 0.0
    %8360 = vmatprep.subr.mxu0 0.0
    %8361 = vmatpush1.msra.mxu0 0.0
    %8362 = vmatprep.subr.mxu0 0.0
    %8363 = vmatpush1.msra.mxu0 0.0
    %8364 = vmatprep.subr.mxu0 0.0
    %8365 = vmatpush1.msra.mxu0 0.0
    %8366 = vmatprep.subr.mxu0 0.0
    %8367 = vmatpush1.msra.mxu0 0.0
    %8368 = vmatprep.subr.mxu0 0.0
    %8369 = vmatpush1.msra.mxu0 0.0
    %8370 = vmatprep.subr.mxu0 0.0
    %8371 = vmatpush1.msra.mxu0 0.0
    %8372 = vmatprep.subr.mxu0 0.0
    %8373 = vmatpush1.msra.mxu0 0.0
    %8374 = vmatprep.subr.mxu0 0.0
    %8375 = vmatpush1.msra.mxu0 0.0
    %8376 = vmatprep.subr.mxu0 0.0
    %8377 = vmatpush1.msra.mxu0 0.0
    %8378 = vmatprep.mubr.f32.mxu0 0.0
    %8379 = vmatmul.mubr.f32.gmra.mrb[0].mxu0 %v8313
    %v8380 = vpop.f32.mrb[0].mxu0
    %v8381 = vadd.f32 %v97, %v8380
    %v8382 = vpop.f32.mrb[0].mxu0
    %8383 = vdwg.mxu0
    %v8384 = vtanh.pop %v8381
    %8385 = vmatprep.subr.mxu0 0.0
    %8386 = vmatpush1.msra.mxu0 %v76
    %8387 = vmatprep.subr.mxu0 0.0
    %8388 = vmatpush1.msra.mxu0 %v77
    %8389 = vmatprep.subr.mxu0 0.0
    %8390 = vmatpush1.msra.mxu0 %v78
    %8391 = vmatprep.subr.mxu0 0.0
    %8392 = vmatpush1.msra.mxu0 %v79
    %8393 = vmatprep.subr.mxu0 0.0
    %8394 = vmatpush1.msra.mxu0 %v80
    %8395 = vmatprep.subr.mxu0 0.0
    %8396 = vmatpush1.msra.mxu0 %v81
    %8397 = vmatprep.subr.mxu0 0.0
    %8398 = vmatpush1.msra.mxu0 %v82
    %8399 = vmatprep.subr.mxu0 0.0
    %8400 = vmatpush1.msra.mxu0 %v83
    %8401 = vmatprep.subr.mxu0 0.0
    %8402 = vmatpush1.msra.mxu0 %v84
    %8403 = vmatprep.subr.mxu0 0.0
    %8404 = vmatpush1.msra.mxu0 %v85
    %8405 = vmatprep.subr.mxu0 0.0
    %8406 = vmatpush1.msra.mxu0 %v86
    %8407 = vmatprep.subr.mxu0 0.0
    %8408 = vmatpush1.msra.mxu0 %v87
    %8409 = vmatprep.subr.mxu0 0.0
    %8410 = vmatpush1.msra.mxu0 %v88
    %8411 = vmatprep.subr.mxu0 0.0
    %8412 = vmatpush1.msra.mxu0 %v89
    %8413 = vmatprep.subr.mxu0 0.0
    %8414 = vmatpush1.msra.mxu0 %v90
    %8415 = vmatprep.subr.mxu0 0.0
    %8416 = vmatpush1.msra.mxu0 %v91
    %8417 = vmatprep.subr.mxu0 0.0
    %8418 = vmatpush1.msra.mxu0 0.0
    %8419 = vmatprep.subr.mxu0 0.0
    %8420 = vmatpush1.msra.mxu0 0.0
    %8421 = vmatprep.subr.mxu0 0.0
    %8422 = vmatpush1.msra.mxu0 0.0
    %8423 = vmatprep.subr.mxu0 0.0
    %8424 = vmatpush1.msra.mxu0 0.0
    %8425 = vmatprep.subr.mxu0 0.0
    %8426 = vmatpush1.msra.mxu0 0.0
    %8427 = vmatprep.subr.mxu0 0.0
    %8428 = vmatpush1.msra.mxu0 0.0
    %8429 = vmatprep.subr.mxu0 0.0
    %8430 = vmatpush1.msra.mxu0 0.0
    %8431 = vmatprep.subr.mxu0 0.0
    %8432 = vmatpush1.msra.mxu0 0.0
    %8433 = vmatprep.subr.mxu0 0.0
    %8434 = vmatpush1.msra.mxu0 0.0
    %8435 = vmatprep.subr.mxu0 0.0
    %8436 = vmatpush1.msra.mxu0 0.0
    %8437 = vmatprep.subr.mxu0 0.0
    %8438 = vmatpush1.msra.mxu0 0.0
    %8439 = vmatprep.subr.mxu0 0.0
    %8440 = vmatpush1.msra.mxu0 0.0
    %8441 = vmatprep.subr.mxu0 0.0
    %8442 = vmatpush1.msra.mxu0 0.0
    %8443 = vmatprep.subr.mxu0 0.0
    %8444 = vmatpush1.msra.mxu0 0.0
    %8445 = vmatprep.subr.mxu0 0.0
    %8446 = vmatpush1.msra.mxu0 0.0
    %8447 = vmatprep.subr.mxu0 0.0
    %8448 = vmatpush1.msra.mxu0 0.0
    %8449 = vmatprep.mubr.f32.mxu0 0.0
    %8450 = vmatmul.mubr.f32.gmra.mrb[0].mxu0 %v8384
    %v8451 = vpop.f32.mrb[0].mxu0
    %v8452 = vadd.f32 %v104, %v8451
    %v8453 = vpop.f32.mrb[0].mxu0
    %8454 = vdwg.mxu0
    %v8455 = vmul.f32 %v8452, 0.03125
    %v8456 = vadd.f32 %v8170, %v8455
    %8457 = vmatprep.subr.mxu0 0.0
    %8458 = vmatpush1.msra.mxu0 %v60
    %8459 = vmatprep.subr.mxu0 0.0
    %8460 = vmatpush1.msra.mxu0 %v61
    %8461 = vmatprep.subr.mxu0 0.0
    %8462 = vmatpush1.msra.mxu0 %v62
    %8463 = vmatprep.subr.mxu0 0.0
    %8464 = vmatpush1.msra.mxu0 %v63
    %8465 = vmatprep.subr.mxu0 0.0
    %8466 = vmatpush1.msra.mxu0 %v64
    %8467 = vmatprep.subr.mxu0 0.0
    %8468 = vmatpush1.msra.mxu0 %v65
    %8469 = vmatprep.subr.mxu0 0.0
    %8470 = vmatpush1.msra.mxu0 %v66
    %8471 = vmatprep.subr.mxu0 0.0
    %8472 = vmatpush1.msra.mxu0 %v67
    %8473 = vmatprep.subr.mxu0 0.0
    %8474 = vmatpush1.msra.mxu0 %v68
    %8475 = vmatprep.subr.mxu0 0.0
    %8476 = vmatpush1.msra.mxu0 %v69
    %8477 = vmatprep.subr.mxu0 0.0
    %8478 = vmatpush1.msra.mxu0 %v70
    %8479 = vmatprep.subr.mxu0 0.0
    %8480 = vmatpush1.msra.mxu0 %v71
    %8481 = vmatprep.subr.mxu0 0.0
    %8482 = vmatpush1.msra.mxu0 %v72
    %8483 = vmatprep.subr.mxu0 0.0
    %8484 = vmatpush1.msra.mxu0 %v73
    %8485 = vmatprep.subr.mxu0 0.0
    %8486 = vmatpush1.msra.mxu0 %v74
    %8487 = vmatprep.subr.mxu0 0.0
    %8488 = vmatpush1.msra.mxu0 %v75
    %8489 = vmatprep.subr.mxu0 0.0
    %8490 = vmatpush1.msra.mxu0 0.0
    %8491 = vmatprep.subr.mxu0 0.0
    %8492 = vmatpush1.msra.mxu0 0.0
    %8493 = vmatprep.subr.mxu0 0.0
    %8494 = vmatpush1.msra.mxu0 0.0
    %8495 = vmatprep.subr.mxu0 0.0
    %8496 = vmatpush1.msra.mxu0 0.0
    %8497 = vmatprep.subr.mxu0 0.0
    %8498 = vmatpush1.msra.mxu0 0.0
    %8499 = vmatprep.subr.mxu0 0.0
    %8500 = vmatpush1.msra.mxu0 0.0
    %8501 = vmatprep.subr.mxu0 0.0
    %8502 = vmatpush1.msra.mxu0 0.0
    %8503 = vmatprep.subr.mxu0 0.0
    %8504 = vmatpush1.msra.mxu0 0.0
    %8505 = vmatprep.subr.mxu0 0.0
    %8506 = vmatpush1.msra.mxu0 0.0
    %8507 = vmatprep.subr.mxu0 0.0
    %8508 = vmatpush1.msra.mxu0 0.0
    %8509 = vmatprep.subr.mxu0 0.0
    %8510 = vmatpush1.msra.mxu0 0.0
    %8511 = vmatprep.subr.mxu0 0.0
    %8512 = vmatpush1.msra.mxu0 0.0
    %8513 = vmatprep.subr.mxu0 0.0
    %8514 = vmatpush1.msra.mxu0 0.0
    %8515 = vmatprep.subr.mxu0 0.0
    %8516 = vmatpush1.msra.mxu0 0.0
    %8517 = vmatprep.subr.mxu0 0.0
    %8518 = vmatpush1.msra.mxu0 0.0
    %8519 = vmatprep.subr.mxu0 0.0
    %8520 = vmatpush1.msra.mxu0 0.0
    %8521 = vmatprep.mubr.f32.mxu0 0.0
    %8522 = vmatmul.mubr.f32.gmra.mrb[0].mxu0 %v8456
    %v8523 = vpop.f32.mrb[0].mxu0
    %v8524 = vadd.f32 %v97, %v8523
    %v8525 = vpop.f32.mrb[0].mxu0
    %8526 = vdwg.mxu0
    %v8527 = vtanh.pop %v8524
    %8528 = vmatprep.subr.mxu0 0.0
    %8529 = vmatpush1.msra.mxu0 %v76
    %8530 = vmatprep.subr.mxu0 0.0
    %8531 = vmatpush1.msra.mxu0 %v77
    %8532 = vmatprep.subr.mxu0 0.0
    %8533 = vmatpush1.msra.mxu0 %v78
    %8534 = vmatprep.subr.mxu0 0.0
    %8535 = vmatpush1.msra.mxu0 %v79
    %8536 = vmatprep.subr.mxu0 0.0
    %8537 = vmatpush1.msra.mxu0 %v80
    %8538 = vmatprep.subr.mxu0 0.0
    %8539 = vmatpush1.msra.mxu0 %v81
    %8540 = vmatprep.subr.mxu0 0.0
    %8541 = vmatpush1.msra.mxu0 %v82
    %8542 = vmatprep.subr.mxu0 0.0
    %8543 = vmatpush1.msra.mxu0 %v83
    %8544 = vmatprep.subr.mxu0 0.0
    %8545 = vmatpush1.msra.mxu0 %v84
    %8546 = vmatprep.subr.mxu0 0.0
    %8547 = vmatpush1.msra.mxu0 %v85
    %8548 = vmatprep.subr.mxu0 0.0
    %8549 = vmatpush1.msra.mxu0 %v86
    %8550 = vmatprep.subr.mxu0 0.0
    %8551 = vmatpush1.msra.mxu0 %v87
    %8552 = vmatprep.subr.mxu0 0.0
    %8553 = vmatpush1.msra.mxu0 %v88
    %8554 = vmatprep.subr.mxu0 0.0
    %8555 = vmatpush1.msra.mxu0 %v89
    %8556 = vmatprep.subr.mxu0 0.0
    %8557 = vmatpush1.msra.mxu0 %v90
    %8558 = vmatprep.subr.mxu0 0.0
    %8559 = vmatpush1.msra.mxu0 %v91
    %8560 = vmatprep.subr.mxu0 0.0
    %8561 = vmatpush1.msra.mxu0 0.0
    %8562 = vmatprep.subr.mxu0 0.0
    %8563 = vmatpush1.msra.mxu0 0.0
    %8564 = vmatprep.subr.mxu0 0.0
    %8565 = vmatpush1.msra.mxu0 0.0
    %8566 = vmatprep.subr.mxu0 0.0
    %8567 = vmatpush1.msra.mxu0 0.0
    %8568 = vmatprep.subr.mxu0 0.0
    %8569 = vmatpush1.msra.mxu0 0.0
    %8570 = vmatprep.subr.mxu0 0.0
    %8571 = vmatpush1.msra.mxu0 0.0
    %8572 = vmatprep.subr.mxu0 0.0
    %8573 = vmatpush1.msra.mxu0 0.0
    %8574 = vmatprep.subr.mxu0 0.0
    %8575 = vmatpush1.msra.mxu0 0.0
    %8576 = vmatprep.subr.mxu0 0.0
    %8577 = vmatpush1.msra.mxu0 0.0
    %8578 = vmatprep.subr.mxu0 0.0
    %8579 = vmatpush1.msra.mxu0 0.0
    %8580 = vmatprep.subr.mxu0 0.0
    %8581 = vmatpush1.msra.mxu0 0.0
    %8582 = vmatprep.subr.mxu0 0.0
    %8583 = vmatpush1.msra.mxu0 0.0
    %8584 = vmatprep.subr.mxu0 0.0
    %8585 = vmatpush1.msra.mxu0 0.0
    %8586 = vmatprep.subr.mxu0 0.0
    %8587 = vmatpush1.msra.mxu0 0.0
    %8588 = vmatprep.subr.mxu0 0.0
    %8589 = vmatpush1.msra.mxu0 0.0
    %8590 = vmatprep.subr.mxu0 0.0
    %8591 = vmatpush1.msra.mxu0 0.0
    %8592 = vmatprep.mubr.f32.mxu0 0.0
    %8593 = vmatmul.mubr.f32.gmra.mrb[0].mxu0 %v8527
    %v8594 = vpop.f32.mrb[0].mxu0
    %v8595 = vadd.f32 %v104, %v8594
    %v8596 = vpop.f32.mrb[0].mxu0
    %8597 = vdwg.mxu0
    %v8598 = vmul.f32 %v8595, 0.0625
    %v8599 = vadd.f32 %v8170, %v8598
    %8600 = vmatprep.subr.mxu0 0.0
    %8601 = vmatpush1.msra.mxu0 %v60
    %8602 = vmatprep.subr.mxu0 0.0
    %8603 = vmatpush1.msra.mxu0 %v61
    %8604 = vmatprep.subr.mxu0 0.0
    %8605 = vmatpush1.msra.mxu0 %v62
    %8606 = vmatprep.subr.mxu0 0.0
    %8607 = vmatpush1.msra.mxu0 %v63
    %8608 = vmatprep.subr.mxu0 0.0
    %8609 = vmatpush1.msra.mxu0 %v64
    %8610 = vmatprep.subr.mxu0 0.0
    %8611 = vmatpush1.msra.mxu0 %v65
    %8612 = vmatprep.subr.mxu0 0.0
    %8613 = vmatpush1.msra.mxu0 %v66
    %8614 = vmatprep.subr.mxu0 0.0
    %8615 = vmatpush1.msra.mxu0 %v67
    %8616 = vmatprep.subr.mxu0 0.0
    %8617 = vmatpush1.msra.mxu0 %v68
    %8618 = vmatprep.subr.mxu0 0.0
    %8619 = vmatpush1.msra.mxu0 %v69
    %8620 = vmatprep.subr.mxu0 0.0
    %8621 = vmatpush1.msra.mxu0 %v70
    %8622 = vmatprep.subr.mxu0 0.0
    %8623 = vmatpush1.msra.mxu0 %v71
    %8624 = vmatprep.subr.mxu0 0.0
    %8625 = vmatpush1.msra.mxu0 %v72
    %8626 = vmatprep.subr.mxu0 0.0
    %8627 = vmatpush1.msra.mxu0 %v73
    %8628 = vmatprep.subr.mxu0 0.0
    %8629 = vmatpush1.msra.mxu0 %v74
    %8630 = vmatprep.subr.mxu0 0.0
    %8631 = vmatpush1.msra.mxu0 %v75
    %8632 = vmatprep.subr.mxu0 0.0
    %8633 = vmatpush1.msra.mxu0 0.0
    %8634 = vmatprep.subr.mxu0 0.0
    %8635 = vmatpush1.msra.mxu0 0.0
    %8636 = vmatprep.subr.mxu0 0.0
    %8637 = vmatpush1.msra.mxu0 0.0
    %8638 = vmatprep.subr.mxu0 0.0
    %8639 = vmatpush1.msra.mxu0 0.0
    %8640 = vmatprep.subr.mxu0 0.0
    %8641 = vmatpush1.msra.mxu0 0.0
    %8642 = vmatprep.subr.mxu0 0.0
    %8643 = vmatpush1.msra.mxu0 0.0
    %8644 = vmatprep.subr.mxu0 0.0
    %8645 = vmatpush1.msra.mxu0 0.0
    %8646 = vmatprep.subr.mxu0 0.0
    %8647 = vmatpush1.msra.mxu0 0.0
    %8648 = vmatprep.subr.mxu0 0.0
    %8649 = vmatpush1.msra.mxu0 0.0
    %8650 = vmatprep.subr.mxu0 0.0
    %8651 = vmatpush1.msra.mxu0 0.0
    %8652 = vmatprep.subr.mxu0 0.0
    %8653 = vmatpush1.msra.mxu0 0.0
    %8654 = vmatprep.subr.mxu0 0.0
    %8655 = vmatpush1.msra.mxu0 0.0
    %8656 = vmatprep.subr.mxu0 0.0
    %8657 = vmatpush1.msra.mxu0 0.0
    %8658 = vmatprep.subr.mxu0 0.0
    %8659 = vmatpush1.msra.mxu0 0.0
    %8660 = vmatprep.subr.mxu0 0.0
    %8661 = vmatpush1.msra.mxu0 0.0
    %8662 = vmatprep.subr.mxu0 0.0
    %8663 = vmatpush1.msra.mxu0 0.0
    %8664 = vmatprep.mubr.f32.mxu0 0.0
    %8665 = vmatmul.mubr.f32.gmra.mrb[0].mxu0 %v8599
    %v8666 = vpop.f32.mrb[0].mxu0
    %v8667 = vadd.f32 %v97, %v8666
    %v8668 = vpop.f32.mrb[0].mxu0
    %8669 = vdwg.mxu0
    %v8670 = vtanh.pop %v8667
    %8671 = vmatprep.subr.mxu0 0.0
    %8672 = vmatpush1.msra.mxu0 %v76
    %8673 = vmatprep.subr.mxu0 0.0
    %8674 = vmatpush1.msra.mxu0 %v77
    %8675 = vmatprep.subr.mxu0 0.0
    %8676 = vmatpush1.msra.mxu0 %v78
    %8677 = vmatprep.subr.mxu0 0.0
    %8678 = vmatpush1.msra.mxu0 %v79
    %8679 = vmatprep.subr.mxu0 0.0
    %8680 = vmatpush1.msra.mxu0 %v80
    %8681 = vmatprep.subr.mxu0 0.0
    %8682 = vmatpush1.msra.mxu0 %v81
    %8683 = vmatprep.subr.mxu0 0.0
    %8684 = vmatpush1.msra.mxu0 %v82
    %8685 = vmatprep.subr.mxu0 0.0
    %8686 = vmatpush1.msra.mxu0 %v83
    %8687 = vmatprep.subr.mxu0 0.0
    %8688 = vmatpush1.msra.mxu0 %v84
    %8689 = vmatprep.subr.mxu0 0.0
    %8690 = vmatpush1.msra.mxu0 %v85
    %8691 = vmatprep.subr.mxu0 0.0
    %8692 = vmatpush1.msra.mxu0 %v86
    %8693 = vmatprep.subr.mxu0 0.0
    %8694 = vmatpush1.msra.mxu0 %v87
    %8695 = vmatprep.subr.mxu0 0.0
    %8696 = vmatpush1.msra.mxu0 %v88
    %8697 = vmatprep.subr.mxu0 0.0
    %8698 = vmatpush1.msra.mxu0 %v89
    %8699 = vmatprep.subr.mxu0 0.0
    %8700 = vmatpush1.msra.mxu0 %v90
    %8701 = vmatprep.subr.mxu0 0.0
    %8702 = vmatpush1.msra.mxu0 %v91
    %8703 = vmatprep.subr.mxu0 0.0
    %8704 = vmatpush1.msra.mxu0 0.0
    %8705 = vmatprep.subr.mxu0 0.0
    %8706 = vmatpush1.msra.mxu0 0.0
    %8707 = vmatprep.subr.mxu0 0.0
    %8708 = vmatpush1.msra.mxu0 0.0
    %8709 = vmatprep.subr.mxu0 0.0
    %8710 = vmatpush1.msra.mxu0 0.0
    %8711 = vmatprep.subr.mxu0 0.0
    %8712 = vmatpush1.msra.mxu0 0.0
    %8713 = vmatprep.subr.mxu0 0.0
    %8714 = vmatpush1.msra.mxu0 0.0
    %8715 = vmatprep.subr.mxu0 0.0
    %8716 = vmatpush1.msra.mxu0 0.0
    %8717 = vmatprep.subr.mxu0 0.0
    %8718 = vmatpush1.msra.mxu0 0.0
    %8719 = vmatprep.subr.mxu0 0.0
    %8720 = vmatpush1.msra.mxu0 0.0
    %8721 = vmatprep.subr.mxu0 0.0
    %8722 = vmatpush1.msra.mxu0 0.0
    %8723 = vmatprep.subr.mxu0 0.0
    %8724 = vmatpush1.msra.mxu0 0.0
    %8725 = vmatprep.subr.mxu0 0.0
    %8726 = vmatpush1.msra.mxu0 0.0
    %8727 = vmatprep.subr.mxu0 0.0
    %8728 = vmatpush1.msra.mxu0 0.0
    %8729 = vmatprep.subr.mxu0 0.0
    %8730 = vmatpush1.msra.mxu0 0.0
    %8731 = vmatprep.subr.mxu0 0.0
    %8732 = vmatpush1.msra.mxu0 0.0
    %8733 = vmatprep.subr.mxu0 0.0
    %8734 = vmatpush1.msra.mxu0 0.0
    %8735 = vmatprep.mubr.f32.mxu0 0.0
    %8736 = vmatmul.mubr.f32.gmra.mrb[0].mxu0 %v8670
    %v8737 = vpop.f32.mrb[0].mxu0
    %v8738 = vadd.f32 %v104, %v8737
    %v8739 = vpop.f32.mrb[0].mxu0
    %8740 = vdwg.mxu0
    %v8741 = vadd.f32 %v8309, %v8738
    %v8742 = vadd.f32 %v8452, %v8595
    %v8743 = vmul.f32 %v8742, 2.0
    %v8744 = vadd.f32 %v8741, %v8743
    %v8745 = vmul.f32 %v8744, 0.010416667
    %v8746 = vadd.f32 %v8170, %v8745
    %8747 = vmatprep.subr.mxu0 0.0
    %8748 = vmatpush1.msra.mxu0 %v60
    %8749 = vmatprep.subr.mxu0 0.0
    %8750 = vmatpush1.msra.mxu0 %v61
    %8751 = vmatprep.subr.mxu0 0.0
    %8752 = vmatpush1.msra.mxu0 %v62
    %8753 = vmatprep.subr.mxu0 0.0
    %8754 = vmatpush1.msra.mxu0 %v63
    %8755 = vmatprep.subr.mxu0 0.0
    %8756 = vmatpush1.msra.mxu0 %v64
    %8757 = vmatprep.subr.mxu0 0.0
    %8758 = vmatpush1.msra.mxu0 %v65
    %8759 = vmatprep.subr.mxu0 0.0
    %8760 = vmatpush1.msra.mxu0 %v66
    %8761 = vmatprep.subr.mxu0 0.0
    %8762 = vmatpush1.msra.mxu0 %v67
    %8763 = vmatprep.subr.mxu0 0.0
    %8764 = vmatpush1.msra.mxu0 %v68
    %8765 = vmatprep.subr.mxu0 0.0
    %8766 = vmatpush1.msra.mxu0 %v69
    %8767 = vmatprep.subr.mxu0 0.0
    %8768 = vmatpush1.msra.mxu0 %v70
    %8769 = vmatprep.subr.mxu0 0.0
    %8770 = vmatpush1.msra.mxu0 %v71
    %8771 = vmatprep.subr.mxu0 0.0
    %8772 = vmatpush1.msra.mxu0 %v72
    %8773 = vmatprep.subr.mxu0 0.0
    %8774 = vmatpush1.msra.mxu0 %v73
    %8775 = vmatprep.subr.mxu0 0.0
    %8776 = vmatpush1.msra.mxu0 %v74
    %8777 = vmatprep.subr.mxu0 0.0
    %8778 = vmatpush1.msra.mxu0 %v75
    %8779 = vmatprep.subr.mxu0 0.0
    %8780 = vmatpush1.msra.mxu0 0.0
    %8781 = vmatprep.subr.mxu0 0.0
    %8782 = vmatpush1.msra.mxu0 0.0
    %8783 = vmatprep.subr.mxu0 0.0
    %8784 = vmatpush1.msra.mxu0 0.0
    %8785 = vmatprep.subr.mxu0 0.0
    %8786 = vmatpush1.msra.mxu0 0.0
    %8787 = vmatprep.subr.mxu0 0.0
    %8788 = vmatpush1.msra.mxu0 0.0
    %8789 = vmatprep.subr.mxu0 0.0
    %8790 = vmatpush1.msra.mxu0 0.0
    %8791 = vmatprep.subr.mxu0 0.0
    %8792 = vmatpush1.msra.mxu0 0.0
    %8793 = vmatprep.subr.mxu0 0.0
    %8794 = vmatpush1.msra.mxu0 0.0
    %8795 = vmatprep.subr.mxu0 0.0
    %8796 = vmatpush1.msra.mxu0 0.0
    %8797 = vmatprep.subr.mxu0 0.0
    %8798 = vmatpush1.msra.mxu0 0.0
    %8799 = vmatprep.subr.mxu0 0.0
    %8800 = vmatpush1.msra.mxu0 0.0
    %8801 = vmatprep.subr.mxu0 0.0
    %8802 = vmatpush1.msra.mxu0 0.0
    %8803 = vmatprep.subr.mxu0 0.0
    %8804 = vmatpush1.msra.mxu0 0.0
    %8805 = vmatprep.subr.mxu0 0.0
    %8806 = vmatpush1.msra.mxu0 0.0
    %8807 = vmatprep.subr.mxu0 0.0
    %8808 = vmatpush1.msra.mxu0 0.0
    %8809 = vmatprep.subr.mxu0 0.0
    %8810 = vmatpush1.msra.mxu0 0.0
    %8811 = vmatprep.mubr.f32.mxu0 0.0
    %8812 = vmatmul.mubr.f32.gmra.mrb[0].mxu0 %v8746
    %v8813 = vpop.f32.mrb[0].mxu0
    %v8814 = vadd.f32 %v97, %v8813
    %v8815 = vpop.f32.mrb[0].mxu0
    %8816 = vdwg.mxu0
    %v8817 = vtanh.pop %v8814
    %8818 = vmatprep.subr.mxu0 0.0
    %8819 = vmatpush1.msra.mxu0 %v76
    %8820 = vmatprep.subr.mxu0 0.0
    %8821 = vmatpush1.msra.mxu0 %v77
    %8822 = vmatprep.subr.mxu0 0.0
    %8823 = vmatpush1.msra.mxu0 %v78
    %8824 = vmatprep.subr.mxu0 0.0
    %8825 = vmatpush1.msra.mxu0 %v79
    %8826 = vmatprep.subr.mxu0 0.0
    %8827 = vmatpush1.msra.mxu0 %v80
    %8828 = vmatprep.subr.mxu0 0.0
    %8829 = vmatpush1.msra.mxu0 %v81
    %8830 = vmatprep.subr.mxu0 0.0
    %8831 = vmatpush1.msra.mxu0 %v82
    %8832 = vmatprep.subr.mxu0 0.0
    %8833 = vmatpush1.msra.mxu0 %v83
    %8834 = vmatprep.subr.mxu0 0.0
    %8835 = vmatpush1.msra.mxu0 %v84
    %8836 = vmatprep.subr.mxu0 0.0
    %8837 = vmatpush1.msra.mxu0 %v85
    %8838 = vmatprep.subr.mxu0 0.0
    %8839 = vmatpush1.msra.mxu0 %v86
    %8840 = vmatprep.subr.mxu0 0.0
    %8841 = vmatpush1.msra.mxu0 %v87
    %8842 = vmatprep.subr.mxu0 0.0
    %8843 = vmatpush1.msra.mxu0 %v88
    %8844 = vmatprep.subr.mxu0 0.0
    %8845 = vmatpush1.msra.mxu0 %v89
    %8846 = vmatprep.subr.mxu0 0.0
    %8847 = vmatpush1.msra.mxu0 %v90
    %8848 = vmatprep.subr.mxu0 0.0
    %8849 = vmatpush1.msra.mxu0 %v91
    %8850 = vmatprep.subr.mxu0 0.0
    %8851 = vmatpush1.msra.mxu0 0.0
    %8852 = vmatprep.subr.mxu0 0.0
    %8853 = vmatpush1.msra.mxu0 0.0
    %8854 = vmatprep.subr.mxu0 0.0
    %8855 = vmatpush1.msra.mxu0 0.0
    %8856 = vmatprep.subr.mxu0 0.0
    %8857 = vmatpush1.msra.mxu0 0.0
    %8858 = vmatprep.subr.mxu0 0.0
    %8859 = vmatpush1.msra.mxu0 0.0
    %8860 = vmatprep.subr.mxu0 0.0
    %8861 = vmatpush1.msra.mxu0 0.0
    %8862 = vmatprep.subr.mxu0 0.0
    %8863 = vmatpush1.msra.mxu0 0.0
    %8864 = vmatprep.subr.mxu0 0.0
    %8865 = vmatpush1.msra.mxu0 0.0
    %8866 = vmatprep.subr.mxu0 0.0
    %8867 = vmatpush1.msra.mxu0 0.0
    %8868 = vmatprep.subr.mxu0 0.0
    %8869 = vmatpush1.msra.mxu0 0.0
    %8870 = vmatprep.subr.mxu0 0.0
    %8871 = vmatpush1.msra.mxu0 0.0
    %8872 = vmatprep.subr.mxu0 0.0
    %8873 = vmatpush1.msra.mxu0 0.0
    %8874 = vmatprep.subr.mxu0 0.0
    %8875 = vmatpush1.msra.mxu0 0.0
    %8876 = vmatprep.subr.mxu0 0.0
    %8877 = vmatpush1.msra.mxu0 0.0
    %8878 = vmatprep.subr.mxu0 0.0
    %8879 = vmatpush1.msra.mxu0 0.0
    %8880 = vmatprep.subr.mxu0 0.0
    %8881 = vmatpush1.msra.mxu0 0.0
    %8882 = vmatprep.mubr.f32.mxu0 0.0
    %8883 = vmatmul.mubr.f32.gmra.mrb[0].mxu0 %v8817
    %v8884 = vpop.f32.mrb[0].mxu0
    %v8885 = vadd.f32 %v104, %v8884
    %v8886 = vpop.f32.mrb[0].mxu0
    %8887 = vdwg.mxu0
    %v8888 = vmul.f32 %v8885, 0.03125
    %v8889 = vadd.f32 %v8746, %v8888
    %8890 = vmatprep.subr.mxu0 0.0
    %8891 = vmatpush1.msra.mxu0 %v60
    %8892 = vmatprep.subr.mxu0 0.0
    %8893 = vmatpush1.msra.mxu0 %v61
    %8894 = vmatprep.subr.mxu0 0.0
    %8895 = vmatpush1.msra.mxu0 %v62
    %8896 = vmatprep.subr.mxu0 0.0
    %8897 = vmatpush1.msra.mxu0 %v63
    %8898 = vmatprep.subr.mxu0 0.0
    %8899 = vmatpush1.msra.mxu0 %v64
    %8900 = vmatprep.subr.mxu0 0.0
    %8901 = vmatpush1.msra.mxu0 %v65
    %8902 = vmatprep.subr.mxu0 0.0
    %8903 = vmatpush1.msra.mxu0 %v66
    %8904 = vmatprep.subr.mxu0 0.0
    %8905 = vmatpush1.msra.mxu0 %v67
    %8906 = vmatprep.subr.mxu0 0.0
    %8907 = vmatpush1.msra.mxu0 %v68
    %8908 = vmatprep.subr.mxu0 0.0
    %8909 = vmatpush1.msra.mxu0 %v69
    %8910 = vmatprep.subr.mxu0 0.0
    %8911 = vmatpush1.msra.mxu0 %v70
    %8912 = vmatprep.subr.mxu0 0.0
    %8913 = vmatpush1.msra.mxu0 %v71
    %8914 = vmatprep.subr.mxu0 0.0
    %8915 = vmatpush1.msra.mxu0 %v72
    %8916 = vmatprep.subr.mxu0 0.0
    %8917 = vmatpush1.msra.mxu0 %v73
    %8918 = vmatprep.subr.mxu0 0.0
    %8919 = vmatpush1.msra.mxu0 %v74
    %8920 = vmatprep.subr.mxu0 0.0
    %8921 = vmatpush1.msra.mxu0 %v75
    %8922 = vmatprep.subr.mxu0 0.0
    %8923 = vmatpush1.msra.mxu0 0.0
    %8924 = vmatprep.subr.mxu0 0.0
    %8925 = vmatpush1.msra.mxu0 0.0
    %8926 = vmatprep.subr.mxu0 0.0
    %8927 = vmatpush1.msra.mxu0 0.0
    %8928 = vmatprep.subr.mxu0 0.0
    %8929 = vmatpush1.msra.mxu0 0.0
    %8930 = vmatprep.subr.mxu0 0.0
    %8931 = vmatpush1.msra.mxu0 0.0
    %8932 = vmatprep.subr.mxu0 0.0
    %8933 = vmatpush1.msra.mxu0 0.0
    %8934 = vmatprep.subr.mxu0 0.0
    %8935 = vmatpush1.msra.mxu0 0.0
    %8936 = vmatprep.subr.mxu0 0.0
    %8937 = vmatpush1.msra.mxu0 0.0
    %8938 = vmatprep.subr.mxu0 0.0
    %8939 = vmatpush1.msra.mxu0 0.0
    %8940 = vmatprep.subr.mxu0 0.0
    %8941 = vmatpush1.msra.mxu0 0.0
    %8942 = vmatprep.subr.mxu0 0.0
    %8943 = vmatpush1.msra.mxu0 0.0
    %8944 = vmatprep.subr.mxu0 0.0
    %8945 = vmatpush1.msra.mxu0 0.0
    %8946 = vmatprep.subr.mxu0 0.0
    %8947 = vmatpush1.msra.mxu0 0.0
    %8948 = vmatprep.subr.mxu0 0.0
    %8949 = vmatpush1.msra.mxu0 0.0
    %8950 = vmatprep.subr.mxu0 0.0
    %8951 = vmatpush1.msra.mxu0 0.0
    %8952 = vmatprep.subr.mxu0 0.0
    %8953 = vmatpush1.msra.mxu0 0.0
    %8954 = vmatprep.mubr.f32.mxu0 0.0
    %8955 = vmatmul.mubr.f32.gmra.mrb[0].mxu0 %v8889
    %v8956 = vpop.f32.mrb[0].mxu0
    %v8957 = vadd.f32 %v97, %v8956
    %v8958 = vpop.f32.mrb[0].mxu0
    %8959 = vdwg.mxu0
    %v8960 = vtanh.pop %v8957
    %8961 = vmatprep.subr.mxu0 0.0
    %8962 = vmatpush1.msra.mxu0 %v76
    %8963 = vmatprep.subr.mxu0 0.0
    %8964 = vmatpush1.msra.mxu0 %v77
    %8965 = vmatprep.subr.mxu0 0.0
    %8966 = vmatpush1.msra.mxu0 %v78
    %8967 = vmatprep.subr.mxu0 0.0
    %8968 = vmatpush1.msra.mxu0 %v79
    %8969 = vmatprep.subr.mxu0 0.0
    %8970 = vmatpush1.msra.mxu0 %v80
    %8971 = vmatprep.subr.mxu0 0.0
    %8972 = vmatpush1.msra.mxu0 %v81
    %8973 = vmatprep.subr.mxu0 0.0
    %8974 = vmatpush1.msra.mxu0 %v82
    %8975 = vmatprep.subr.mxu0 0.0
    %8976 = vmatpush1.msra.mxu0 %v83
    %8977 = vmatprep.subr.mxu0 0.0
    %8978 = vmatpush1.msra.mxu0 %v84
    %8979 = vmatprep.subr.mxu0 0.0
    %8980 = vmatpush1.msra.mxu0 %v85
    %8981 = vmatprep.subr.mxu0 0.0
    %8982 = vmatpush1.msra.mxu0 %v86
    %8983 = vmatprep.subr.mxu0 0.0
    %8984 = vmatpush1.msra.mxu0 %v87
    %8985 = vmatprep.subr.mxu0 0.0
    %8986 = vmatpush1.msra.mxu0 %v88
    %8987 = vmatprep.subr.mxu0 0.0
    %8988 = vmatpush1.msra.mxu0 %v89
    %8989 = vmatprep.subr.mxu0 0.0
    %8990 = vmatpush1.msra.mxu0 %v90
    %8991 = vmatprep.subr.mxu0 0.0
    %8992 = vmatpush1.msra.mxu0 %v91
    %8993 = vmatprep.subr.mxu0 0.0
    %8994 = vmatpush1.msra.mxu0 0.0
    %8995 = vmatprep.subr.mxu0 0.0
    %8996 = vmatpush1.msra.mxu0 0.0
    %8997 = vmatprep.subr.mxu0 0.0
    %8998 = vmatpush1.msra.mxu0 0.0
    %8999 = vmatprep.subr.mxu0 0.0
    %9000 = vmatpush1.msra.mxu0 0.0
    %9001 = vmatprep.subr.mxu0 0.0
    %9002 = vmatpush1.msra.mxu0 0.0
    %9003 = vmatprep.subr.mxu0 0.0
    %9004 = vmatpush1.msra.mxu0 0.0
    %9005 = vmatprep.subr.mxu0 0.0
    %9006 = vmatpush1.msra.mxu0 0.0
    %9007 = vmatprep.subr.mxu0 0.0
    %9008 = vmatpush1.msra.mxu0 0.0
    %9009 = vmatprep.subr.mxu0 0.0
    %9010 = vmatpush1.msra.mxu0 0.0
    %9011 = vmatprep.subr.mxu0 0.0
    %9012 = vmatpush1.msra.mxu0 0.0
    %9013 = vmatprep.subr.mxu0 0.0
    %9014 = vmatpush1.msra.mxu0 0.0
    %9015 = vmatprep.subr.mxu0 0.0
    %9016 = vmatpush1.msra.mxu0 0.0
    %9017 = vmatprep.subr.mxu0 0.0
    %9018 = vmatpush1.msra.mxu0 0.0
    %9019 = vmatprep.subr.mxu0 0.0
    %9020 = vmatpush1.msra.mxu0 0.0
    %9021 = vmatprep.subr.mxu0 0.0
    %9022 = vmatpush1.msra.mxu0 0.0
    %9023 = vmatprep.subr.mxu0 0.0
    %9024 = vmatpush1.msra.mxu0 0.0
    %9025 = vmatprep.mubr.f32.mxu0 0.0
    %9026 = vmatmul.mubr.f32.gmra.mrb[0].mxu0 %v8960
    %v9027 = vpop.f32.mrb[0].mxu0
    %v9028 = vadd.f32 %v104, %v9027
    %v9029 = vpop.f32.mrb[0].mxu0
    %9030 = vdwg.mxu0
    %v9031 = vmul.f32 %v9028, 0.03125
    %v9032 = vadd.f32 %v8746, %v9031
    %9033 = vmatprep.subr.mxu0 0.0
    %9034 = vmatpush1.msra.mxu0 %v60
    %9035 = vmatprep.subr.mxu0 0.0
    %9036 = vmatpush1.msra.mxu0 %v61
    %9037 = vmatprep.subr.mxu0 0.0
    %9038 = vmatpush1.msra.mxu0 %v62
    %9039 = vmatprep.subr.mxu0 0.0
    %9040 = vmatpush1.msra.mxu0 %v63
    %9041 = vmatprep.subr.mxu0 0.0
    %9042 = vmatpush1.msra.mxu0 %v64
    %9043 = vmatprep.subr.mxu0 0.0
    %9044 = vmatpush1.msra.mxu0 %v65
    %9045 = vmatprep.subr.mxu0 0.0
    %9046 = vmatpush1.msra.mxu0 %v66
    %9047 = vmatprep.subr.mxu0 0.0
    %9048 = vmatpush1.msra.mxu0 %v67
    %9049 = vmatprep.subr.mxu0 0.0
    %9050 = vmatpush1.msra.mxu0 %v68
    %9051 = vmatprep.subr.mxu0 0.0
    %9052 = vmatpush1.msra.mxu0 %v69
    %9053 = vmatprep.subr.mxu0 0.0
    %9054 = vmatpush1.msra.mxu0 %v70
    %9055 = vmatprep.subr.mxu0 0.0
    %9056 = vmatpush1.msra.mxu0 %v71
    %9057 = vmatprep.subr.mxu0 0.0
    %9058 = vmatpush1.msra.mxu0 %v72
    %9059 = vmatprep.subr.mxu0 0.0
    %9060 = vmatpush1.msra.mxu0 %v73
    %9061 = vmatprep.subr.mxu0 0.0
    %9062 = vmatpush1.msra.mxu0 %v74
    %9063 = vmatprep.subr.mxu0 0.0
    %9064 = vmatpush1.msra.mxu0 %v75
    %9065 = vmatprep.subr.mxu0 0.0
    %9066 = vmatpush1.msra.mxu0 0.0
    %9067 = vmatprep.subr.mxu0 0.0
    %9068 = vmatpush1.msra.mxu0 0.0
    %9069 = vmatprep.subr.mxu0 0.0
    %9070 = vmatpush1.msra.mxu0 0.0
    %9071 = vmatprep.subr.mxu0 0.0
    %9072 = vmatpush1.msra.mxu0 0.0
    %9073 = vmatprep.subr.mxu0 0.0
    %9074 = vmatpush1.msra.mxu0 0.0
    %9075 = vmatprep.subr.mxu0 0.0
    %9076 = vmatpush1.msra.mxu0 0.0
    %9077 = vmatprep.subr.mxu0 0.0
    %9078 = vmatpush1.msra.mxu0 0.0
    %9079 = vmatprep.subr.mxu0 0.0
    %9080 = vmatpush1.msra.mxu0 0.0
    %9081 = vmatprep.subr.mxu0 0.0
    %9082 = vmatpush1.msra.mxu0 0.0
    %9083 = vmatprep.subr.mxu0 0.0
    %9084 = vmatpush1.msra.mxu0 0.0
    %9085 = vmatprep.subr.mxu0 0.0
    %9086 = vmatpush1.msra.mxu0 0.0
    %9087 = vmatprep.subr.mxu0 0.0
    %9088 = vmatpush1.msra.mxu0 0.0
    %9089 = vmatprep.subr.mxu0 0.0
    %9090 = vmatpush1.msra.mxu0 0.0
    %9091 = vmatprep.subr.mxu0 0.0
    %9092 = vmatpush1.msra.mxu0 0.0
    %9093 = vmatprep.subr.mxu0 0.0
    %9094 = vmatpush1.msra.mxu0 0.0
    %9095 = vmatprep.subr.mxu0 0.0
    %9096 = vmatpush1.msra.mxu0 0.0
    %9097 = vmatprep.mubr.f32.mxu0 0.0
    %9098 = vmatmul.mubr.f32.gmra.mrb[0].mxu0 %v9032
    %v9099 = vpop.f32.mrb[0].mxu0
    %v9100 = vadd.f32 %v97, %v9099
    %v9101 = vpop.f32.mrb[0].mxu0
    %9102 = vdwg.mxu0
    %v9103 = vtanh.pop %v9100
    %9104 = vmatprep.subr.mxu0 0.0
    %9105 = vmatpush1.msra.mxu0 %v76
    %9106 = vmatprep.subr.mxu0 0.0
    %9107 = vmatpush1.msra.mxu0 %v77
    %9108 = vmatprep.subr.mxu0 0.0
    %9109 = vmatpush1.msra.mxu0 %v78
    %9110 = vmatprep.subr.mxu0 0.0
    %9111 = vmatpush1.msra.mxu0 %v79
    %9112 = vmatprep.subr.mxu0 0.0
    %9113 = vmatpush1.msra.mxu0 %v80
    %9114 = vmatprep.subr.mxu0 0.0
    %9115 = vmatpush1.msra.mxu0 %v81
    %9116 = vmatprep.subr.mxu0 0.0
    %9117 = vmatpush1.msra.mxu0 %v82
    %9118 = vmatprep.subr.mxu0 0.0
    %9119 = vmatpush1.msra.mxu0 %v83
    %9120 = vmatprep.subr.mxu0 0.0
    %9121 = vmatpush1.msra.mxu0 %v84
    %9122 = vmatprep.subr.mxu0 0.0
    %9123 = vmatpush1.msra.mxu0 %v85
    %9124 = vmatprep.subr.mxu0 0.0
    %9125 = vmatpush1.msra.mxu0 %v86
    %9126 = vmatprep.subr.mxu0 0.0
    %9127 = vmatpush1.msra.mxu0 %v87
    %9128 = vmatprep.subr.mxu0 0.0
    %9129 = vmatpush1.msra.mxu0 %v88
    %9130 = vmatprep.subr.mxu0 0.0
    %9131 = vmatpush1.msra.mxu0 %v89
    %9132 = vmatprep.subr.mxu0 0.0
    %9133 = vmatpush1.msra.mxu0 %v90
    %9134 = vmatprep.subr.mxu0 0.0
    %9135 = vmatpush1.msra.mxu0 %v91
    %9136 = vmatprep.subr.mxu0 0.0
    %9137 = vmatpush1.msra.mxu0 0.0
    %9138 = vmatprep.subr.mxu0 0.0
    %9139 = vmatpush1.msra.mxu0 0.0
    %9140 = vmatprep.subr.mxu0 0.0
    %9141 = vmatpush1.msra.mxu0 0.0
    %9142 = vmatprep.subr.mxu0 0.0
    %9143 = vmatpush1.msra.mxu0 0.0
    %9144 = vmatprep.subr.mxu0 0.0
    %9145 = vmatpush1.msra.mxu0 0.0
    %9146 = vmatprep.subr.mxu0 0.0
    %9147 = vmatpush1.msra.mxu0 0.0
    %9148 = vmatprep.subr.mxu0 0.0
    %9149 = vmatpush1.msra.mxu0 0.0
    %9150 = vmatprep.subr.mxu0 0.0
    %9151 = vmatpush1.msra.mxu0 0.0
    %9152 = vmatprep.subr.mxu0 0.0
    %9153 = vmatpush1.msra.mxu0 0.0
    %9154 = vmatprep.subr.mxu0 0.0
    %9155 = vmatpush1.msra.mxu0 0.0
    %9156 = vmatprep.subr.mxu0 0.0
    %9157 = vmatpush1.msra.mxu0 0.0
    %9158 = vmatprep.subr.mxu0 0.0
    %9159 = vmatpush1.msra.mxu0 0.0
    %9160 = vmatprep.subr.mxu0 0.0
    %9161 = vmatpush1.msra.mxu0 0.0
    %9162 = vmatprep.subr.mxu0 0.0
    %9163 = vmatpush1.msra.mxu0 0.0
    %9164 = vmatprep.subr.mxu0 0.0
    %9165 = vmatpush1.msra.mxu0 0.0
    %9166 = vmatprep.subr.mxu0 0.0
    %9167 = vmatpush1.msra.mxu0 0.0
    %9168 = vmatprep.mubr.f32.mxu0 0.0
    %9169 = vmatmul.mubr.f32.gmra.mrb[0].mxu0 %v9103
    %v9170 = vpop.f32.mrb[0].mxu0
    %v9171 = vadd.f32 %v104, %v9170
    %v9172 = vpop.f32.mrb[0].mxu0
    %9173 = vdwg.mxu0
    %v9174 = vmul.f32 %v9171, 0.0625
    %v9175 = vadd.f32 %v8746, %v9174
    %9176 = vmatprep.subr.mxu0 0.0
    %9177 = vmatpush1.msra.mxu0 %v60
    %9178 = vmatprep.subr.mxu0 0.0
    %9179 = vmatpush1.msra.mxu0 %v61
    %9180 = vmatprep.subr.mxu0 0.0
    %9181 = vmatpush1.msra.mxu0 %v62
    %9182 = vmatprep.subr.mxu0 0.0
    %9183 = vmatpush1.msra.mxu0 %v63
    %9184 = vmatprep.subr.mxu0 0.0
    %9185 = vmatpush1.msra.mxu0 %v64
    %9186 = vmatprep.subr.mxu0 0.0
    %9187 = vmatpush1.msra.mxu0 %v65
    %9188 = vmatprep.subr.mxu0 0.0
    %9189 = vmatpush1.msra.mxu0 %v66
    %9190 = vmatprep.subr.mxu0 0.0
    %9191 = vmatpush1.msra.mxu0 %v67
    %9192 = vmatprep.subr.mxu0 0.0
    %9193 = vmatpush1.msra.mxu0 %v68
    %9194 = vmatprep.subr.mxu0 0.0
    %9195 = vmatpush1.msra.mxu0 %v69
    %9196 = vmatprep.subr.mxu0 0.0
    %9197 = vmatpush1.msra.mxu0 %v70
    %9198 = vmatprep.subr.mxu0 0.0
    %9199 = vmatpush1.msra.mxu0 %v71
    %9200 = vmatprep.subr.mxu0 0.0
    %9201 = vmatpush1.msra.mxu0 %v72
    %9202 = vmatprep.subr.mxu0 0.0
    %9203 = vmatpush1.msra.mxu0 %v73
    %9204 = vmatprep.subr.mxu0 0.0
    %9205 = vmatpush1.msra.mxu0 %v74
    %9206 = vmatprep.subr.mxu0 0.0
    %9207 = vmatpush1.msra.mxu0 %v75
    %9208 = vmatprep.subr.mxu0 0.0
    %9209 = vmatpush1.msra.mxu0 0.0
    %9210 = vmatprep.subr.mxu0 0.0
    %9211 = vmatpush1.msra.mxu0 0.0
    %9212 = vmatprep.subr.mxu0 0.0
    %9213 = vmatpush1.msra.mxu0 0.0
    %9214 = vmatprep.subr.mxu0 0.0
    %9215 = vmatpush1.msra.mxu0 0.0
    %9216 = vmatprep.subr.mxu0 0.0
    %9217 = vmatpush1.msra.mxu0 0.0
    %9218 = vmatprep.subr.mxu0 0.0
    %9219 = vmatpush1.msra.mxu0 0.0
    %9220 = vmatprep.subr.mxu0 0.0
    %9221 = vmatpush1.msra.mxu0 0.0
    %9222 = vmatprep.subr.mxu0 0.0
    %9223 = vmatpush1.msra.mxu0 0.0
    %9224 = vmatprep.subr.mxu0 0.0
    %9225 = vmatpush1.msra.mxu0 0.0
    %9226 = vmatprep.subr.mxu0 0.0
    %9227 = vmatpush1.msra.mxu0 0.0
    %9228 = vmatprep.subr.mxu0 0.0
    %9229 = vmatpush1.msra.mxu0 0.0
    %9230 = vmatprep.subr.mxu0 0.0
    %9231 = vmatpush1.msra.mxu0 0.0
    %9232 = vmatprep.subr.mxu0 0.0
    %9233 = vmatpush1.msra.mxu0 0.0
    %9234 = vmatprep.subr.mxu0 0.0
    %9235 = vmatpush1.msra.mxu0 0.0
    %9236 = vmatprep.subr.mxu0 0.0
    %9237 = vmatpush1.msra.mxu0 0.0
    %9238 = vmatprep.subr.mxu0 0.0
    %9239 = vmatpush1.msra.mxu0 0.0
    %9240 = vmatprep.mubr.f32.mxu0 0.0
    %9241 = vmatmul.mubr.f32.gmra.mrb[0].mxu0 %v9175
    %v9242 = vpop.f32.mrb[0].mxu0
    %v9243 = vadd.f32 %v97, %v9242
    %v9244 = vpop.f32.mrb[0].mxu0
    %9245 = vdwg.mxu0
    %v9246 = vtanh.pop %v9243
    %9247 = vmatprep.subr.mxu0 0.0
    %9248 = vmatpush1.msra.mxu0 %v76
    %9249 = vmatprep.subr.mxu0 0.0
    %9250 = vmatpush1.msra.mxu0 %v77
    %9251 = vmatprep.subr.mxu0 0.0
    %9252 = vmatpush1.msra.mxu0 %v78
    %9253 = vmatprep.subr.mxu0 0.0
    %9254 = vmatpush1.msra.mxu0 %v79
    %9255 = vmatprep.subr.mxu0 0.0
    %9256 = vmatpush1.msra.mxu0 %v80
    %9257 = vmatprep.subr.mxu0 0.0
    %9258 = vmatpush1.msra.mxu0 %v81
    %9259 = vmatprep.subr.mxu0 0.0
    %9260 = vmatpush1.msra.mxu0 %v82
    %9261 = vmatprep.subr.mxu0 0.0
    %9262 = vmatpush1.msra.mxu0 %v83
    %9263 = vmatprep.subr.mxu0 0.0
    %9264 = vmatpush1.msra.mxu0 %v84
    %9265 = vmatprep.subr.mxu0 0.0
    %9266 = vmatpush1.msra.mxu0 %v85
    %9267 = vmatprep.subr.mxu0 0.0
    %9268 = vmatpush1.msra.mxu0 %v86
    %9269 = vmatprep.subr.mxu0 0.0
    %9270 = vmatpush1.msra.mxu0 %v87
    %9271 = vmatprep.subr.mxu0 0.0
    %9272 = vmatpush1.msra.mxu0 %v88
    %9273 = vmatprep.subr.mxu0 0.0
    %9274 = vmatpush1.msra.mxu0 %v89
    %9275 = vmatprep.subr.mxu0 0.0
    %9276 = vmatpush1.msra.mxu0 %v90
    %9277 = vmatprep.subr.mxu0 0.0
    %9278 = vmatpush1.msra.mxu0 %v91
    %9279 = vmatprep.subr.mxu0 0.0
    %9280 = vmatpush1.msra.mxu0 0.0
    %9281 = vmatprep.subr.mxu0 0.0
    %9282 = vmatpush1.msra.mxu0 0.0
    %9283 = vmatprep.subr.mxu0 0.0
    %9284 = vmatpush1.msra.mxu0 0.0
    %9285 = vmatprep.subr.mxu0 0.0
    %9286 = vmatpush1.msra.mxu0 0.0
    %9287 = vmatprep.subr.mxu0 0.0
    %9288 = vmatpush1.msra.mxu0 0.0
    %9289 = vmatprep.subr.mxu0 0.0
    %9290 = vmatpush1.msra.mxu0 0.0
    %9291 = vmatprep.subr.mxu0 0.0
    %9292 = vmatpush1.msra.mxu0 0.0
    %9293 = vmatprep.subr.mxu0 0.0
    %9294 = vmatpush1.msra.mxu0 0.0
    %9295 = vmatprep.subr.mxu0 0.0
    %9296 = vmatpush1.msra.mxu0 0.0
    %9297 = vmatprep.subr.mxu0 0.0
    %9298 = vmatpush1.msra.mxu0 0.0
    %9299 = vmatprep.subr.mxu0 0.0
    %9300 = vmatpush1.msra.mxu0 0.0
    %9301 = vmatprep.subr.mxu0 0.0
    %9302 = vmatpush1.msra.mxu0 0.0
    %9303 = vmatprep.subr.mxu0 0.0
    %9304 = vmatpush1.msra.mxu0 0.0
    %9305 = vmatprep.subr.mxu0 0.0
    %9306 = vmatpush1.msra.mxu0 0.0
    %9307 = vmatprep.subr.mxu0 0.0
    %9308 = vmatpush1.msra.mxu0 0.0
    %9309 = vmatprep.subr.mxu0 0.0
    %9310 = vmatpush1.msra.mxu0 0.0
    %9311 = vmatprep.mubr.f32.mxu0 0.0
    %9312 = vmatmul.mubr.f32.gmra.mrb[0].mxu0 %v9246
    %v9313 = vpop.f32.mrb[0].mxu0
    %v9314 = vadd.f32 %v104, %v9313
    %v9315 = vpop.f32.mrb[0].mxu0
    %9316 = vdwg.mxu0
    %v9317 = vadd.f32 %v8885, %v9314
    %v9318 = vadd.f32 %v9028, %v9171
    %v9319 = vmul.f32 %v9318, 2.0
    %v9320 = vadd.f32 %v9317, %v9319
    %v9321 = vmul.f32 %v9320, 0.010416667
    %v9322 = vadd.f32 %v8746, %v9321
    %9323 = vst [vmem:[#allocation8] sm:$0xff] %v9322
    // Predicated region
    $region34: #{tpu_custom_call.1} parent=1 // pred_check
      _
    $region35: #{tpu_custom_call.1} parent=1 // pred_check_branch
      %9325 = sbr.rel (0) target = $region37
    $region36: #{tpu_custom_call.1} parent=1 // pred_region
      %s9327 = ssub.s32 128, 128
      %9328 = vsyncadd [#allocation4], %s9327
      %s9330 = sshll.u32 [#allocation8], 4
      %s9331 = int_to_ptr.vmem [resolvable:$true] %s9330
      %9333 = dma.vmem_to_hbm [thread:$0]  %s9331, 128, %s5, [#allocation4]
    $region37: #{tpu_custom_call.1} parent=1 // pred_fallthru
      _
    // Predicated region
    $region38: #{tpu_custom_call.1} parent=1 // pred_check
      _
    $region39: #{tpu_custom_call.1} parent=1 // pred_check_branch
      %9335 = sbr.rel (0) target = $region41
    $region40: #{tpu_custom_call.1} parent=1 // pred_region
      %9336 = dma.done [#allocation4], 128
    $region41: #{tpu_custom_call.1} parent=1 // pred_fallthru
      _
    %9337 = vsyncpa [#allocation3], 1
    %9338 = vsyncpa [#allocation6], 1
    %9339 = vsyncpa [#allocation4], 1

</llo_original>
